<compile_context>
chip_gen: v7x
topology: tpu7x:2x2x1
jax: 0.10.0
libtpu: 0.0.40
codegen_flags: <defaults>
</compile_context>

<pallas_src>
import functools

import jax
import jax.numpy as jnp
from jax.experimental import pallas as pl
from jax.experimental.pallas import tpu as pltpu

LEAKY_SLOPE = 0.2
BN_EPS = 1e-5
VMEM_LIMIT_BYTES = 32 * 1024 * 1024


def _round_up(a, m):
    return ((a + m - 1) // m) * m


def _split_tile(n, max_tile, align):
    """Tile size <= max_tile (multiple of `align`) minimizing padding of n."""
    nt = -(-n // max_tile)
    t = _round_up(-(-n // nt), align)
    return t, t * nt


# ----------------------------------------------------------------------------
# Pallas kernels
# ----------------------------------------------------------------------------
def _matmul_bias_act_kernel(x_ref, w_ref, b_ref, o_ref, acc_ref, *, negative_slope):
    # x: [tm, tk] bf16, w: [tk, tn] bf16, b: [1, tn] f32, o: [tm, tn] (bf16/f32).
    @pl.when(pl.program_id(2) == 0)
    def _init():
        acc_ref[...] = jnp.zeros_like(acc_ref)

    acc_ref[...] += jnp.dot(x_ref[...], w_ref[...],
                            preferred_element_type=jnp.float32)

    @pl.when(pl.program_id(2) == pl.num_programs(2) - 1)
    def _finalize():
        y = acc_ref[...] + b_ref[...]
        if negative_slope is not None:
            y = jnp.where(y > 0, y, negative_slope * y)
        o_ref[...] = y.astype(o_ref.dtype)


def _bn_partial_stats_kernel(x_ref, sum_ref, ssq_ref):
    # x: [tm, C] bf16.  Each grid step ("parallel") writes its own partial
    # per-channel sum / sum-of-squares block; zero-padded rows contribute 0.
    x = x_ref[...].astype(jnp.float32)
    sum_ref[...] = jnp.sum(x, axis=0, keepdims=True).reshape(sum_ref.shape)
    ssq_ref[...] = jnp.sum(x * x, axis=0, keepdims=True).reshape(ssq_ref.shape)


def _bn_apply_kernel(x_ref, scale_ref, shift_ref, o_ref):
    # Precomputed per-channel scale/shift -> pure FMA + LeakyReLU, f32 math.
    y = x_ref[...].astype(jnp.float32) * scale_ref[...] + shift_ref[...]
    o_ref[...] = jnp.where(y > 0, y, LEAKY_SLOPE * y).astype(o_ref.dtype)


def _avgpool_kernel(tap_ref, invr_ref, invw_ref, o_ref):
    # tap: [1, tr, Wo] (one of 9 window taps); invr: [tr, 1]; invw: [1, Wo].
    # Output block is resident across the tap ("arbitrary") axis.
    t = pl.program_id(1)

    @pl.when(t == 0)
    def _init():
        o_ref[...] = jnp.zeros_like(o_ref)

    o_ref[...] += tap_ref[0]

    @pl.when(t == pl.num_programs(1) - 1)
    def _finalize():
        o_ref[...] = o_ref[...] * (invr_ref[...] * invw_ref[...])


# ----------------------------------------------------------------------------
# Pallas wrappers
# ----------------------------------------------------------------------------
def _pallas_matmul_bias_act(x, w, b, negative_slope, out_dtype):
    """x: [M, K] bf16, w: [K, Cout] bf16, b: [Cout] f32 -> [M, Cout] out_dtype."""
    M, K = x.shape
    _, Cout = w.shape

    tm, Mp = _split_tile(M, 512, 8)
    Cp = _round_up(Cout, 128)
    tn = min(512, Cp)
    Np = _round_up(Cp, tn)
    Kp128 = _round_up(K, 128)
    if Kp128 <= 1024:
        tk, Kp = Kp128, Kp128
    elif Kp128 % 1024 == 0:
        tk, Kp = 1024, Kp128
    else:
        tk, Kp = 512, _round_up(Kp128, 512)

    xp = jnp.pad(x, ((0, Mp - M), (0, Kp - K)))
    wp = jnp.pad(w, ((0, Kp - K), (0, Np - Cout)))
    bp = jnp.pad(b.astype(jnp.float32), (0, Np - Cout)).reshape(1, Np)

    grid = (Mp // tm, Np // tn, Kp // tk)
    kernel = functools.partial(_matmul_bias_act_kernel,
                               negative_slope=negative_slope)
    out_bytes = jnp.dtype(out_dtype).itemsize
    out = pl.pallas_call(
        kernel,
        out_shape=jax.ShapeDtypeStruct((Mp, Np), out_dtype),
        grid=grid,
        in_specs=[
            pl.BlockSpec((tm, tk), lambda i, j, k: (i, k)),
            pl.BlockSpec((tk, tn), lambda i, j, k: (k, j)),
            pl.BlockSpec((1, tn), lambda i, j, k: (0, j)),
        ],
        out_specs=pl.BlockSpec((tm, tn), lambda i, j, k: (i, j)),
        scratch_shapes=[pltpu.VMEM((tm, tn), jnp.float32)],
        compiler_params=pltpu.CompilerParams(
            dimension_semantics=("parallel", "parallel", "arbitrary"),
            vmem_limit_bytes=VMEM_LIMIT_BYTES,
        ),
        cost_estimate=pl.CostEstimate(
            flops=2 * Mp * Kp * Np,
            bytes_accessed=Mp * Kp * 2 + Kp * Np * 2 + Mp * Np * out_bytes,
            transcendentals=0,
        ),
    )(xp, wp, bp)
    return out[:M, :Cout]


def _pallas_bn_lrelu(x, gamma, beta):
    """x: [N, H, W, C] bf16.  Training-mode BatchNorm + LeakyReLU(0.2) -> bf16."""
    N, H, W, C = x.shape
    M = N * H * W
    x2 = x.reshape(M, C)

    tm, Mp = _split_tile(M, 2048, 8)
    x2p = jnp.pad(x2, ((0, Mp - M), (0, 0)))
    n_tiles = Mp // tm

    # Pass 1: per-tile partial stats, fully "parallel" (shards across v7x TCs).
    psum, pssq = pl.pallas_call(
        _bn_partial_stats_kernel,
        out_shape=(jax.ShapeDtypeStruct((n_tiles, 1, C), jnp.float32),
                   jax.ShapeDtypeStruct((n_tiles, 1, C), jnp.float32)),
        grid=(n_tiles,),
        in_specs=[pl.BlockSpec((tm, C), lambda i: (i, 0))],
        out_specs=(pl.BlockSpec((1, 1, C), lambda i: (i, 0, 0)),
                   pl.BlockSpec((1, 1, C), lambda i: (i, 0, 0))),
        compiler_params=pltpu.CompilerParams(
            dimension_semantics=("parallel",),
            vmem_limit_bytes=VMEM_LIMIT_BYTES),
    )(x2p)

    # Tiny (C,) epilogue: batch-stat reduction + per-channel scale/shift (f32).
    s = jnp.sum(psum[:, 0, :], axis=0)
    ss = jnp.sum(pssq[:, 0, :], axis=0)
    mean = s / M
    var = jnp.maximum(ss / M - mean * mean, 0.0)
    scale = gamma.astype(jnp.float32) * jax.lax.rsqrt(var + BN_EPS)
    shift = beta.astype(jnp.float32) - mean * scale

    # Pass 2: normalize + LeakyReLU, bf16 output feeding the next conv.
    y = pl.pallas_call(
        _bn_apply_kernel,
        out_shape=jax.ShapeDtypeStruct((Mp, C), jnp.bfloat16),
        grid=(n_tiles,),
        in_specs=[
            pl.BlockSpec((tm, C), lambda i: (i, 0)),
            pl.BlockSpec((1, C), lambda i: (0, 0)),
            pl.BlockSpec((1, C), lambda i: (0, 0)),
        ],
        out_specs=pl.BlockSpec((tm, C), lambda i: (i, 0)),
        compiler_params=pltpu.CompilerParams(
            dimension_semantics=("parallel",),
            vmem_limit_bytes=VMEM_LIMIT_BYTES),
    )(x2p, scale.reshape(1, C), shift.reshape(1, C))
    return y[:M].reshape(N, H, W, C)


# ----------------------------------------------------------------------------
# Glue: patch extraction (plain JAX), conv / pool front-ends
# ----------------------------------------------------------------------------
def _extract_patches(x, k, s):
    # x: [N, Hp, Wp, C] (already padded, bf16).  Returns [N, Ho, Wo, k*k*C]
    # ordered (kh, kw, c) along the last axis to match the reshaped weight.
    _, Hp, Wp, _ = x.shape
    Ho = (Hp - k) // s + 1
    Wo = (Wp - k) // s + 1
    slices = []
    for kh in range(k):
        for kw in range(k):
            slices.append(
                x[:, kh:kh + s * (Ho - 1) + 1:s, kw:kw + s * (Wo - 1) + 1:s, :]
            )
    return jnp.concatenate(slices, axis=-1), Ho, Wo


def conv2d(x, w, b, stride, padding, negative_slope=None, out_dtype=jnp.bfloat16):
    # x: [N, H, W, Cin] (NHWC); w: [Cout, Cin, kh, kw] (PyTorch layout); b: [Cout]
    Cout, Cin, kh, kw = w.shape
    N = x.shape[0]
    x = x.astype(jnp.bfloat16)  # no-op after the first layer
    xp = jnp.pad(x, ((0, 0), (padding, padding), (padding, padding), (0, 0)))
    patches, Ho, Wo = _extract_patches(xp, kh, stride)
    w2 = jnp.transpose(w, (2, 3, 1, 0)).reshape(kh * kw * Cin, Cout)
    out = _pallas_matmul_bias_act(
        patches.reshape(N * Ho * Wo, kh * kw * Cin),
        w2.astype(jnp.bfloat16),
        b,
        negative_slope,
        out_dtype,
    )
    return out.reshape(N, Ho, Wo, Cout)


def avg_pool_3x3_s2(x):
    # AvgPool2d(3, stride=2, padding=1, count_include_pad=False); x: NHWC f32.
    N, H, W, C = x.shape
    Ho = (H + 2 - 3) // 2 + 1
    Wo = (W + 2 - 3) // 2 + 1

    xc = jnp.transpose(x, (0, 3, 1, 2)).astype(jnp.float32)   # [N, C, H, W]
    xp = jnp.pad(xc, ((0, 0), (0, 0), (1, 1), (1, 1)))
    taps = []
    for dh in range(3):
        for dw in range(3):
            taps.append(xp[:, :,
                           dh:dh + 2 * (Ho - 1) + 1:2,
                           dw:dw + 2 * (Wo - 1) + 1:2])
    taps = jnp.stack(taps, axis=0)                            # [9, N, C, Ho, Wo]
    R = N * C * Ho
    taps2 = taps.reshape(9, R, Wo)

    # Separable count_include_pad=False divisor: count(ho,wo) = ch(ho)*cw(wo).
    ones_h = jnp.pad(jnp.ones((H,), jnp.float32), (1, 1))
    ones_w = jnp.pad(jnp.ones((W,), jnp.float32), (1, 1))
    ch = sum(ones_h[dh:dh + 2 * (Ho - 1) + 1:2] for dh in range(3))   # (Ho,)
    cw = sum(ones_w[dw:dw + 2 * (Wo - 1) + 1:2] for dw in range(3))   # (Wo,)
    inv_r = jnp.broadcast_to((1.0 / ch)[None, None, :], (N, C, Ho)).reshape(R, 1)
    inv_w = (1.0 / cw).reshape(1, Wo)

    tr, Rp = _split_tile(R, 1024, 8)
    taps2 = jnp.pad(taps2, ((0, 0), (0, Rp - R), (0, 0)))
    inv_r = jnp.pad(inv_r, ((0, Rp - R), (0, 0)))

    grid = (Rp // tr, 9)
    out = pl.pallas_call(
        _avgpool_kernel,
        out_shape=jax.ShapeDtypeStruct((Rp, Wo), jnp.float32),
        grid=grid,
        in_specs=[
            pl.BlockSpec((1, tr, Wo), lambda i, t: (t, i, 0)),
            pl.BlockSpec((tr, 1), lambda i, t: (i, 0)),
            pl.BlockSpec((1, Wo), lambda i, t: (0, 0)),
        ],
        out_specs=pl.BlockSpec((tr, Wo), lambda i, t: (i, 0)),
        compiler_params=pltpu.CompilerParams(
            dimension_semantics=("parallel", "arbitrary"),
            vmem_limit_bytes=VMEM_LIMIT_BYTES),
    )(taps2, inv_r, inv_w)
    out = out[:R].reshape(N, C, Ho, Wo)
    return jnp.transpose(out, (0, 2, 3, 1))                   # back to NHWC


# ----------------------------------------------------------------------------
# Parameter construction (deterministic, mirrors NLayerDiscriminator.__init__)
# ----------------------------------------------------------------------------
def init_nlayer_discriminator_params(key, input_nc, ndf=64, n_layers=3):
    kw = 4

    def conv_params(k, cin, cout):
        k1, k2 = jax.random.split(k)
        w = jax.random.normal(k1, (cout, cin, kw, kw), jnp.float32) * 0.05
        b = jax.random.normal(k2, (cout,), jnp.float32) * 0.05
        return w, b

    keys = jax.random.split(key, n_layers + 2)
    layers = []
    # Conv(input_nc -> ndf, stride 2) + LeakyReLU (no norm)
    w, b = conv_params(keys[0], input_nc, ndf)
    layers.append(dict(type="conv_lrelu", w=w, b=b, stride=2))
    nf = ndf
    for n in range(1, n_layers):
        nf_prev, nf = nf, min(nf * 2, 512)
        w, b = conv_params(keys[n], nf_prev, nf)
        layers.append(dict(type="conv_bn_lrelu", w=w, b=b, stride=2,
                           gamma=jnp.ones((nf,), jnp.float32),
                           beta=jnp.zeros((nf,), jnp.float32)))
    # Conv(nf_prev -> nf, stride 1) + BN + LeakyReLU
    nf_prev, nf = nf, min(nf * 2, 512)
    w, b = conv_params(keys[n_layers], nf_prev, nf)
    layers.append(dict(type="conv_bn_lrelu", w=w, b=b, stride=1,
                       gamma=jnp.ones((nf,), jnp.float32),
                       beta=jnp.zeros((nf,), jnp.float32)))
    # Final Conv(nf -> 1, stride 1), no activation
    w, b = conv_params(keys[n_layers + 1], nf, 1)
    layers.append(dict(type="conv", w=w, b=b, stride=1))
    return layers


def nlayer_discriminator_forward(layers, x_nhwc):
    h = x_nhwc
    for layer in layers:
        if layer["type"] == "conv_lrelu":
            h = conv2d(h, layer["w"], layer["b"], layer["stride"], 2,
                       negative_slope=LEAKY_SLOPE, out_dtype=jnp.bfloat16)
        elif layer["type"] == "conv_bn_lrelu":
            h = conv2d(h, layer["w"], layer["b"], layer["stride"], 2,
                       negative_slope=None, out_dtype=jnp.bfloat16)
            h = _pallas_bn_lrelu(h, layer["gamma"], layer["beta"])
        else:  # plain conv (final 1-channel head; lane-dense padded internally)
            h = conv2d(h, layer["w"], layer["b"], layer["stride"], 2,
                       negative_slope=None, out_dtype=jnp.float32)
    return h


# ----------------------------------------------------------------------------
# MultiscaleDiscriminator
# ----------------------------------------------------------------------------
def init_multiscale_discriminator(key, input_nc, ndf=64, n_layers=3, num_D=3):
    keys = jax.random.split(key, num_D)
    return [init_nlayer_discriminator_params(keys[i], input_nc, ndf, n_layers)
            for i in range(num_D)]


def multiscale_discriminator_forward(params, x_nchw):
    # Input is NCHW (PyTorch convention); kernels run lane-dense; outputs NCHW.
    num_D = len(params)
    x = jnp.transpose(x_nchw, (0, 2, 3, 1)).astype(jnp.float32)
    result = []
    inp = x
    for i in range(num_D):
        layers = params[num_D - 1 - i]
        out = nlayer_discriminator_forward(layers, inp)
        result.append([jnp.transpose(out, (0, 3, 1, 2))])  # singleD_forward -> [out]
        if i != num_D - 1:
            inp = avg_pool_3x3_s2(inp)
    return result


if __name__ == "__main__":
    key = jax.random.PRNGKey(0)
    kp, kx = jax.random.split(key)

    # Small, forward-consistent shapes: batch=2, input_nc=3, 16x16 images,
    # ndf=8, n_layers=3, num_D=3.
    input_nc, ndf, n_layers, num_D = 3, 8, 3, 3
    params = init_multiscale_discriminator(kp, input_nc, ndf, n_layers, num_D)
    x = jax.random.normal(kx, (2, input_nc, 16, 16), jnp.float32)

    fwd = jax.jit(functools.partial(multiscale_discriminator_forward, params))
    outs = fwd(x)
    for scale_out in outs:
        for o in scale_out:
            jax.block_until_ready(o)
    print("KERNEL_OK")
</pallas_src>

<mosaic_0001>
module attributes {stable_mosaic.version = 11 : i64} {
  func.func @_matmul_bias_act_kernel(%arg0: i32, %arg1: i32, %arg2: i32, %arg3: memref<168x128xbf16, #tpu.memory_space<vmem>>, %arg4: memref<128x128xbf16, #tpu.memory_space<vmem>>, %arg5: memref<1x128xf32, #tpu.memory_space<vmem>>, %arg6: memref<168x128xbf16, #tpu.memory_space<vmem>>, %arg7: memref<168x128xf32, #tpu.memory_space<vmem>>) attributes {dimension_semantics = [#tpu.dimension_semantics<parallel>, #tpu.dimension_semantics<parallel>, #tpu.dimension_semantics<arbitrary>], iteration_bounds = array<i64: 1, 1, 1>, scalar_prefetch = 0 : i64, scratch_operands = 1 : i64, tpu.core_type = #tpu.core_type<tc>, window_params = [{transform_indices = @transform_0, window_bounds = array<i64: 168, 128>}, {transform_indices = @transform_1, window_bounds = array<i64: 128, 128>}, {transform_indices = @transform_2, window_bounds = array<i64: 1, 128>}, {transform_indices = @transform_3, window_bounds = array<i64: 168, 128>}]} {
    %c0_i32 = arith.constant 0 : i32
    %0 = arith.cmpi eq, %arg2, %c0_i32 : i32
    %1 = arith.extui %0 : i1 to i32
    %c0_i32_0 = arith.constant 0 : i32
    %2 = arith.cmpi ne, %1, %c0_i32_0 : i32
    scf.if %2 {
      %cst_10 = arith.constant 0.000000e+00 : f32
      %12 = vector.broadcast %cst_10 : f32 to vector<168x128xf32>
      %c0_11 = arith.constant 0 : index
      %c0_12 = arith.constant 0 : index
      %13 = vector.load %arg7[%c0_11, %c0_12] : memref<168x128xf32, #tpu.memory_space<vmem>>, vector<168x128xf32>
      tpu.vector_store %arg7[%c0_11, %c0_12], %12 {strides = array<i32>} : memref<168x128xf32, #tpu.memory_space<vmem>>, vector<168x128xf32>,
    } else {
    }
    %c0 = arith.constant 0 : index
    %c0_1 = arith.constant 0 : index
    %3 = vector.load %arg7[%c0, %c0_1] : memref<168x128xf32, #tpu.memory_space<vmem>>, vector<168x128xf32>
    %c0_2 = arith.constant 0 : index
    %c0_3 = arith.constant 0 : index
    %4 = vector.load %arg3[%c0_2, %c0_3] : memref<168x128xbf16, #tpu.memory_space<vmem>>, vector<168x128xbf16>
    %c0_4 = arith.constant 0 : index
    %c0_5 = arith.constant 0 : index
    %5 = vector.load %arg4[%c0_4, %c0_5] : memref<128x128xbf16, #tpu.memory_space<vmem>>, vector<128x128xbf16>
    %cst = arith.constant dense<0.000000e+00> : vector<168x128xf32>
    %6 = tpu.matmul %4, %5, %cst {dimension_numbers = #tpu.dot_dimension_numbers<[1], [0], [0], [1], [0, 0, 1, 1], [], []>} : vector<168x128xbf16>, vector<128x128xbf16>, vector<168x128xf32> -> vector<168x128xf32>
    %7 = arith.addf %3, %6 : vector<168x128xf32>
    %c0_6 = arith.constant 0 : index
    %c0_7 = arith.constant 0 : index
    %8 = vector.load %arg7[%c0_6, %c0_7] : memref<168x128xf32, #tpu.memory_space<vmem>>, vector<168x128xf32>
    tpu.vector_store %arg7[%c0_6, %c0_7], %7 {strides = array<i32>} : memref<168x128xf32, #tpu.memory_space<vmem>>, vector<168x128xf32>,
    %c0_i32_8 = arith.constant 0 : i32
    %9 = arith.cmpi eq, %arg2, %c0_i32_8 : i32
    %10 = arith.extui %9 : i1 to i32
    %c0_i32_9 = arith.constant 0 : i32
    %11 = arith.cmpi ne, %10, %c0_i32_9 : i32
    scf.if %11 {
      %c0_10 = arith.constant 0 : index
      %c0_11 = arith.constant 0 : index
      %12 = vector.load %arg7[%c0_10, %c0_11] : memref<168x128xf32, #tpu.memory_space<vmem>>, vector<168x128xf32>
      %c0_12 = arith.constant 0 : index
      %c0_13 = arith.constant 0 : index
      %13 = vector.load %arg5[%c0_12, %c0_13] : memref<1x128xf32, #tpu.memory_space<vmem>>, vector<1x128xf32>
      %14 = vector.broadcast %13 : vector<1x128xf32> to vector<168x128xf32>
      %15 = arith.addf %12, %14 : vector<168x128xf32>
      %cst_14 = arith.constant 0.000000e+00 : f32
      %16 = vector.broadcast %cst_14 : f32 to vector<168x128xf32>
      %17 = arith.cmpf ogt, %15, %16 : vector<168x128xf32>
      %cst_15 = arith.constant 2.000000e-01 : f32
      %18 = vector.broadcast %cst_15 : f32 to vector<168x128xf32>
      %19 = arith.mulf %18, %15 : vector<168x128xf32>
      %20 = arith.select %17, %15, %19 : vector<168x128xi1>, vector<168x128xf32>
      %21 = arith.truncf %20 : vector<168x128xf32> to vector<168x128xbf16>
      %c0_16 = arith.constant 0 : index
      %c0_17 = arith.constant 0 : index
      %22 = vector.load %arg6[%c0_16, %c0_17] : memref<168x128xbf16, #tpu.memory_space<vmem>>, vector<168x128xbf16>
      tpu.vector_store %arg6[%c0_16, %c0_17], %21 {strides = array<i32>} : memref<168x128xbf16, #tpu.memory_space<vmem>>, vector<168x128xbf16>,
    } else {
    }
    return
  }
  func.func @transform_0(%arg0: i32, %arg1: i32, %arg2: i32) -> (i32, i32) {
    %c0_i32 = arith.constant 0 : i32
    return %arg0, %arg2 : i32, i32
  }
  func.func @transform_1(%arg0: i32, %arg1: i32, %arg2: i32) -> (i32, i32) {
    %c0_i32 = arith.constant 0 : i32
    return %arg2, %arg1 : i32, i32
  }
  func.func @transform_2(%arg0: i32, %arg1: i32, %arg2: i32) -> (i32, i32) {
    %c0_i32 = arith.constant 0 : i32
    %c0_i32_0 = arith.constant 0 : i32
    return %c0_i32, %arg1 : i32, i32
  }
  func.func @transform_3(%arg0: i32, %arg1: i32, %arg2: i32) -> (i32, i32) {
    %c0_i32 = arith.constant 0 : i32
    return %arg0, %arg1 : i32, i32
  }
}

module attributes {stable_mosaic.version = 11 : i64} {
  func.func @_bn_partial_stats_kernel(%arg0: i32, %arg1: memref<56x16xbf16, #tpu.memory_space<vmem>>, %arg2: memref<1x1x16xf32, #tpu.memory_space<vmem>>, %arg3: memref<1x1x16xf32, #tpu.memory_space<vmem>>) attributes {dimension_semantics = [#tpu.dimension_semantics<parallel>], iteration_bounds = array<i64: 1>, scalar_prefetch = 0 : i64, scratch_operands = 0 : i64, tpu.core_type = #tpu.core_type<tc>, window_params = [{transform_indices = @transform_0, window_bounds = array<i64: 56, 16>}, {transform_indices = @transform_1, window_bounds = array<i64: 1, 1, 16>}, {transform_indices = @transform_2, window_bounds = array<i64: 1, 1, 16>}]} {
    %c0 = arith.constant 0 : index
    %c0_0 = arith.constant 0 : index
    %0 = vector.load %arg1[%c0, %c0_0] : memref<56x16xbf16, #tpu.memory_space<vmem>>, vector<56x16xbf16>
    %1 = arith.extf %0 : vector<56x16xbf16> to vector<56x16xf32>
    %cst = arith.constant dense<0.000000e+00> : vector<16xf32>
    %2 = vector.multi_reduction <add>, %1, %cst [0] : vector<56x16xf32> to vector<16xf32>
    %3 = vector.shape_cast %2 : vector<16xf32> to vector<1x16xf32>
    %4 = vector.shape_cast %3 : vector<1x16xf32> to vector<1x1x16xf32>
    %c0_1 = arith.constant 0 : index
    %c0_2 = arith.constant 0 : index
    %c0_3 = arith.constant 0 : index
    %5 = vector.load %arg2[%c0_1, %c0_2, %c0_3] : memref<1x1x16xf32, #tpu.memory_space<vmem>>, vector<1x1x16xf32>
    tpu.vector_store %arg2[%c0_1, %c0_2, %c0_3], %4 {strides = array<i32>} : memref<1x1x16xf32, #tpu.memory_space<vmem>>, vector<1x1x16xf32>,
    %6 = arith.mulf %1, %1 : vector<56x16xf32>
    %cst_4 = arith.constant dense<0.000000e+00> : vector<16xf32>
    %7 = vector.multi_reduction <add>, %6, %cst_4 [0] : vector<56x16xf32> to vector<16xf32>
    %8 = vector.shape_cast %7 : vector<16xf32> to vector<1x16xf32>
    %9 = vector.shape_cast %8 : vector<1x16xf32> to vector<1x1x16xf32>
    %c0_5 = arith.constant 0 : index
    %c0_6 = arith.constant 0 : index
    %c0_7 = arith.constant 0 : index
    %10 = vector.load %arg3[%c0_5, %c0_6, %c0_7] : memref<1x1x16xf32, #tpu.memory_space<vmem>>, vector<1x1x16xf32>
    tpu.vector_store %arg3[%c0_5, %c0_6, %c0_7], %9 {strides = array<i32>} : memref<1x1x16xf32, #tpu.memory_space<vmem>>, vector<1x1x16xf32>,
    return
  }
  func.func @transform_0(%arg0: i32) -> (i32, i32) {
    %c0_i32 = arith.constant 0 : i32
    %c0_i32_0 = arith.constant 0 : i32
    return %arg0, %c0_i32 : i32, i32
  }
  func.func @transform_1(%arg0: i32) -> (i32, i32, i32) {
    %c0_i32 = arith.constant 0 : i32
    %c0_i32_0 = arith.constant 0 : i32
    %c0_i32_1 = arith.constant 0 : i32
    return %arg0, %c0_i32, %c0_i32_0 : i32, i32, i32
  }
  func.func @transform_2(%arg0: i32) -> (i32, i32, i32) {
    %c0_i32 = arith.constant 0 : i32
    %c0_i32_0 = arith.constant 0 : i32
    %c0_i32_1 = arith.constant 0 : i32
    return %arg0, %c0_i32, %c0_i32_0 : i32, i32, i32
  }
}

module attributes {stable_mosaic.version = 11 : i64} {
  func.func @_matmul_bias_act_kernel(%arg0: i32, %arg1: i32, %arg2: i32, %arg3: memref<56x128xbf16, #tpu.memory_space<vmem>>, %arg4: memref<128x128xbf16, #tpu.memory_space<vmem>>, %arg5: memref<1x128xf32, #tpu.memory_space<vmem>>, %arg6: memref<56x128xbf16, #tpu.memory_space<vmem>>, %arg7: memref<56x128xf32, #tpu.memory_space<vmem>>) attributes {dimension_semantics = [#tpu.dimension_semantics<parallel>, #tpu.dimension_semantics<parallel>, #tpu.dimension_semantics<arbitrary>], iteration_bounds = array<i64: 1, 1, 1>, scalar_prefetch = 0 : i64, scratch_operands = 1 : i64, tpu.core_type = #tpu.core_type<tc>, window_params = [{transform_indices = @transform_0, window_bounds = array<i64: 56, 128>}, {transform_indices = @transform_1, window_bounds = array<i64: 128, 128>}, {transform_indices = @transform_2, window_bounds = array<i64: 1, 128>}, {transform_indices = @transform_3, window_bounds = array<i64: 56, 128>}]} {
    %c0_i32 = arith.constant 0 : i32
    %0 = arith.cmpi eq, %arg2, %c0_i32 : i32
    %1 = arith.extui %0 : i1 to i32
    %c0_i32_0 = arith.constant 0 : i32
    %2 = arith.cmpi ne, %1, %c0_i32_0 : i32
    scf.if %2 {
      %cst_10 = arith.constant 0.000000e+00 : f32
      %12 = vector.broadcast %cst_10 : f32 to vector<56x128xf32>
      %c0_11 = arith.constant 0 : index
      %c0_12 = arith.constant 0 : index
      %13 = vector.load %arg7[%c0_11, %c0_12] : memref<56x128xf32, #tpu.memory_space<vmem>>, vector<56x128xf32>
      tpu.vector_store %arg7[%c0_11, %c0_12], %12 {strides = array<i32>} : memref<56x128xf32, #tpu.memory_space<vmem>>, vector<56x128xf32>,
    } else {
    }
    %c0 = arith.constant 0 : index
    %c0_1 = arith.constant 0 : index
    %3 = vector.load %arg7[%c0, %c0_1] : memref<56x128xf32, #tpu.memory_space<vmem>>, vector<56x128xf32>
    %c0_2 = arith.constant 0 : index
    %c0_3 = arith.constant 0 : index
    %4 = vector.load %arg3[%c0_2, %c0_3] : memref<56x128xbf16, #tpu.memory_space<vmem>>, vector<56x128xbf16>
    %c0_4 = arith.constant 0 : index
    %c0_5 = arith.constant 0 : index
    %5 = vector.load %arg4[%c0_4, %c0_5] : memref<128x128xbf16, #tpu.memory_space<vmem>>, vector<128x128xbf16>
    %cst = arith.constant dense<0.000000e+00> : vector<56x128xf32>
    %6 = tpu.matmul %4, %5, %cst {dimension_numbers = #tpu.dot_dimension_numbers<[1], [0], [0], [1], [0, 0, 1, 1], [], []>} : vector<56x128xbf16>, vector<128x128xbf16>, vector<56x128xf32> -> vector<56x128xf32>
    %7 = arith.addf %3, %6 : vector<56x128xf32>
    %c0_6 = arith.constant 0 : index
    %c0_7 = arith.constant 0 : index
    %8 = vector.load %arg7[%c0_6, %c0_7] : memref<56x128xf32, #tpu.memory_space<vmem>>, vector<56x128xf32>
    tpu.vector_store %arg7[%c0_6, %c0_7], %7 {strides = array<i32>} : memref<56x128xf32, #tpu.memory_space<vmem>>, vector<56x128xf32>,
    %c0_i32_8 = arith.constant 0 : i32
    %9 = arith.cmpi eq, %arg2, %c0_i32_8 : i32
    %10 = arith.extui %9 : i1 to i32
    %c0_i32_9 = arith.constant 0 : i32
    %11 = arith.cmpi ne, %10, %c0_i32_9 : i32
    scf.if %11 {
      %c0_10 = arith.constant 0 : index
      %c0_11 = arith.constant 0 : index
      %12 = vector.load %arg7[%c0_10, %c0_11] : memref<56x128xf32, #tpu.memory_space<vmem>>, vector<56x128xf32>
      %c0_12 = arith.constant 0 : index
      %c0_13 = arith.constant 0 : index
      %13 = vector.load %arg5[%c0_12, %c0_13] : memref<1x128xf32, #tpu.memory_space<vmem>>, vector<1x128xf32>
      %14 = vector.broadcast %13 : vector<1x128xf32> to vector<56x128xf32>
      %15 = arith.addf %12, %14 : vector<56x128xf32>
      %16 = arith.truncf %15 : vector<56x128xf32> to vector<56x128xbf16>
      %c0_14 = arith.constant 0 : index
      %c0_15 = arith.constant 0 : index
      %17 = vector.load %arg6[%c0_14, %c0_15] : memref<56x128xbf16, #tpu.memory_space<vmem>>, vector<56x128xbf16>
      tpu.vector_store %arg6[%c0_14, %c0_15], %16 {strides = array<i32>} : memref<56x128xbf16, #tpu.memory_space<vmem>>, vector<56x128xbf16>,
    } else {
    }
    return
  }
  func.func @transform_0(%arg0: i32, %arg1: i32, %arg2: i32) -> (i32, i32) {
    %c0_i32 = arith.constant 0 : i32
    return %arg0, %arg2 : i32, i32
  }
  func.func @transform_1(%arg0: i32, %arg1: i32, %arg2: i32) -> (i32, i32) {
    %c0_i32 = arith.constant 0 : i32
    return %arg2, %arg1 : i32, i32
  }
  func.func @transform_2(%arg0: i32, %arg1: i32, %arg2: i32) -> (i32, i32) {
    %c0_i32 = arith.constant 0 : i32
    %c0_i32_0 = arith.constant 0 : i32
    return %c0_i32, %arg1 : i32, i32
  }
  func.func @transform_3(%arg0: i32, %arg1: i32, %arg2: i32) -> (i32, i32) {
    %c0_i32 = arith.constant 0 : i32
    return %arg0, %arg1 : i32, i32
  }
}

module attributes {stable_mosaic.version = 11 : i64} {
  func.func @_bn_apply_kernel(%arg0: i32, %arg1: memref<56x16xbf16, #tpu.memory_space<vmem>>, %arg2: memref<1x16xf32, #tpu.memory_space<vmem>>, %arg3: memref<1x16xf32, #tpu.memory_space<vmem>>, %arg4: memref<56x16xbf16, #tpu.memory_space<vmem>>) attributes {dimension_semantics = [#tpu.dimension_semantics<parallel>], iteration_bounds = array<i64: 1>, scalar_prefetch = 0 : i64, scratch_operands = 0 : i64, tpu.core_type = #tpu.core_type<tc>, window_params = [{transform_indices = @transform_0, window_bounds = array<i64: 56, 16>}, {pipeline_mode = #tpu.pipeline_mode<synchronous>, transform_indices = @transform_1, window_bounds = array<i64: 1, 16>}, {pipeline_mode = #tpu.pipeline_mode<synchronous>, transform_indices = @transform_2, window_bounds = array<i64: 1, 16>}, {transform_indices = @transform_3, window_bounds = array<i64: 56, 16>}]} {
    %c0 = arith.constant 0 : index
    %c0_0 = arith.constant 0 : index
    %0 = vector.load %arg1[%c0, %c0_0] : memref<56x16xbf16, #tpu.memory_space<vmem>>, vector<56x16xbf16>
    %1 = arith.extf %0 : vector<56x16xbf16> to vector<56x16xf32>
    %c0_1 = arith.constant 0 : index
    %c0_2 = arith.constant 0 : index
    %2 = vector.load %arg2[%c0_1, %c0_2] : memref<1x16xf32, #tpu.memory_space<vmem>>, vector<1x16xf32>
    %3 = vector.broadcast %2 : vector<1x16xf32> to vector<56x16xf32>
    %4 = arith.mulf %1, %3 : vector<56x16xf32>
    %c0_3 = arith.constant 0 : index
    %c0_4 = arith.constant 0 : index
    %5 = vector.load %arg3[%c0_3, %c0_4] : memref<1x16xf32, #tpu.memory_space<vmem>>, vector<1x16xf32>
    %6 = vector.broadcast %5 : vector<1x16xf32> to vector<56x16xf32>
    %7 = arith.addf %4, %6 : vector<56x16xf32>
    %cst = arith.constant 0.000000e+00 : f32
    %8 = vector.broadcast %cst : f32 to vector<56x16xf32>
    %9 = arith.cmpf ogt, %7, %8 : vector<56x16xf32>
    %cst_5 = arith.constant 2.000000e-01 : f32
    %10 = vector.broadcast %cst_5 : f32 to vector<56x16xf32>
    %11 = arith.mulf %10, %7 : vector<56x16xf32>
    %12 = arith.select %9, %7, %11 : vector<56x16xi1>, vector<56x16xf32>
    %13 = arith.truncf %12 : vector<56x16xf32> to vector<56x16xbf16>
    %c0_6 = arith.constant 0 : index
    %c0_7 = arith.constant 0 : index
    %14 = vector.load %arg4[%c0_6, %c0_7] : memref<56x16xbf16, #tpu.memory_space<vmem>>, vector<56x16xbf16>
    tpu.vector_store %arg4[%c0_6, %c0_7], %13 {strides = array<i32>} : memref<56x16xbf16, #tpu.memory_space<vmem>>, vector<56x16xbf16>,
    return
  }
  func.func @transform_0(%arg0: i32) -> (i32, i32) {
    %c0_i32 = arith.constant 0 : i32
    %c0_i32_0 = arith.constant 0 : i32
    return %arg0, %c0_i32 : i32, i32
  }
  func.func @transform_1(%arg0: i32) -> (i32, i32) {
    %c0_i32 = arith.constant 0 : i32
    %c0_i32_0 = arith.constant 0 : i32
    %c0_i32_1 = arith.constant 0 : i32
    return %c0_i32, %c0_i32_0 : i32, i32
  }
  func.func @transform_2(%arg0: i32) -> (i32, i32) {
    %c0_i32 = arith.constant 0 : i32
    %c0_i32_0 = arith.constant 0 : i32
    %c0_i32_1 = arith.constant 0 : i32
    return %c0_i32, %c0_i32_0 : i32, i32
  }
  func.func @transform_3(%arg0: i32) -> (i32, i32) {
    %c0_i32 = arith.constant 0 : i32
    %c0_i32_0 = arith.constant 0 : i32
    return %arg0, %c0_i32 : i32, i32
  }
}

module attributes {stable_mosaic.version = 11 : i64} {
  func.func @_matmul_bias_act_kernel(%arg0: i32, %arg1: i32, %arg2: i32, %arg3: memref<24x256xbf16, #tpu.memory_space<vmem>>, %arg4: memref<256x128xbf16, #tpu.memory_space<vmem>>, %arg5: memref<1x128xf32, #tpu.memory_space<vmem>>, %arg6: memref<24x128xbf16, #tpu.memory_space<vmem>>, %arg7: memref<24x128xf32, #tpu.memory_space<vmem>>) attributes {dimension_semantics = [#tpu.dimension_semantics<parallel>, #tpu.dimension_semantics<parallel>, #tpu.dimension_semantics<arbitrary>], iteration_bounds = array<i64: 1, 1, 1>, scalar_prefetch = 0 : i64, scratch_operands = 1 : i64, tpu.core_type = #tpu.core_type<tc>, window_params = [{transform_indices = @transform_0, window_bounds = array<i64: 24, 256>}, {transform_indices = @transform_1, window_bounds = array<i64: 256, 128>}, {transform_indices = @transform_2, window_bounds = array<i64: 1, 128>}, {transform_indices = @transform_3, window_bounds = array<i64: 24, 128>}]} {
    %c0_i32 = arith.constant 0 : i32
    %0 = arith.cmpi eq, %arg2, %c0_i32 : i32
    %1 = arith.extui %0 : i1 to i32
    %c0_i32_0 = arith.constant 0 : i32
    %2 = arith.cmpi ne, %1, %c0_i32_0 : i32
    scf.if %2 {
      %cst_10 = arith.constant 0.000000e+00 : f32
      %12 = vector.broadcast %cst_10 : f32 to vector<24x128xf32>
      %c0_11 = arith.constant 0 : index
      %c0_12 = arith.constant 0 : index
      %13 = vector.load %arg7[%c0_11, %c0_12] : memref<24x128xf32, #tpu.memory_space<vmem>>, vector<24x128xf32>
      tpu.vector_store %arg7[%c0_11, %c0_12], %12 {strides = array<i32>} : memref<24x128xf32, #tpu.memory_space<vmem>>, vector<24x128xf32>,
    } else {
    }
    %c0 = arith.constant 0 : index
    %c0_1 = arith.constant 0 : index
    %3 = vector.load %arg7[%c0, %c0_1] : memref<24x128xf32, #tpu.memory_space<vmem>>, vector<24x128xf32>
    %c0_2 = arith.constant 0 : index
    %c0_3 = arith.constant 0 : index
    %4 = vector.load %arg3[%c0_2, %c0_3] : memref<24x256xbf16, #tpu.memory_space<vmem>>, vector<24x256xbf16>
    %c0_4 = arith.constant 0 : index
    %c0_5 = arith.constant 0 : index
    %5 = vector.load %arg4[%c0_4, %c0_5] : memref<256x128xbf16, #tpu.memory_space<vmem>>, vector<256x128xbf16>
    %cst = arith.constant dense<0.000000e+00> : vector<24x128xf32>
    %6 = tpu.matmul %4, %5, %cst {dimension_numbers = #tpu.dot_dimension_numbers<[1], [0], [0], [1], [0, 0, 1, 1], [], []>} : vector<24x256xbf16>, vector<256x128xbf16>, vector<24x128xf32> -> vector<24x128xf32>
    %7 = arith.addf %3, %6 : vector<24x128xf32>
    %c0_6 = arith.constant 0 : index
    %c0_7 = arith.constant 0 : index
    %8 = vector.load %arg7[%c0_6, %c0_7] : memref<24x128xf32, #tpu.memory_space<vmem>>, vector<24x128xf32>
    tpu.vector_store %arg7[%c0_6, %c0_7], %7 {strides = array<i32>} : memref<24x128xf32, #tpu.memory_space<vmem>>, vector<24x128xf32>,
    %c0_i32_8 = arith.constant 0 : i32
    %9 = arith.cmpi eq, %arg2, %c0_i32_8 : i32
    %10 = arith.extui %9 : i1 to i32
    %c0_i32_9 = arith.constant 0 : i32
    %11 = arith.cmpi ne, %10, %c0_i32_9 : i32
    scf.if %11 {
      %c0_10 = arith.constant 0 : index
      %c0_11 = arith.constant 0 : index
      %12 = vector.load %arg7[%c0_10, %c0_11] : memref<24x128xf32, #tpu.memory_space<vmem>>, vector<24x128xf32>
      %c0_12 = arith.constant 0 : index
      %c0_13 = arith.constant 0 : index
      %13 = vector.load %arg5[%c0_12, %c0_13] : memref<1x128xf32, #tpu.memory_space<vmem>>, vector<1x128xf32>
      %14 = vector.broadcast %13 : vector<1x128xf32> to vector<24x128xf32>
      %15 = arith.addf %12, %14 : vector<24x128xf32>
      %16 = arith.truncf %15 : vector<24x128xf32> to vector<24x128xbf16>
      %c0_14 = arith.constant 0 : index
      %c0_15 = arith.constant 0 : index
      %17 = vector.load %arg6[%c0_14, %c0_15] : memref<24x128xbf16, #tpu.memory_space<vmem>>, vector<24x128xbf16>
      tpu.vector_store %arg6[%c0_14, %c0_15], %16 {strides = array<i32>} : memref<24x128xbf16, #tpu.memory_space<vmem>>, vector<24x128xbf16>,
    } else {
    }
    return
  }
  func.func @transform_0(%arg0: i32, %arg1: i32, %arg2: i32) -> (i32, i32) {
    %c0_i32 = arith.constant 0 : i32
    return %arg0, %arg2 : i32, i32
  }
  func.func @transform_1(%arg0: i32, %arg1: i32, %arg2: i32) -> (i32, i32) {
    %c0_i32 = arith.constant 0 : i32
    return %arg2, %arg1 : i32, i32
  }
  func.func @transform_2(%arg0: i32, %arg1: i32, %arg2: i32) -> (i32, i32) {
    %c0_i32 = arith.constant 0 : i32
    %c0_i32_0 = arith.constant 0 : i32
    return %c0_i32, %arg1 : i32, i32
  }
  func.func @transform_3(%arg0: i32, %arg1: i32, %arg2: i32) -> (i32, i32) {
    %c0_i32 = arith.constant 0 : i32
    return %arg0, %arg1 : i32, i32
  }
}

module attributes {stable_mosaic.version = 11 : i64} {
  func.func @_bn_partial_stats_kernel(%arg0: i32, %arg1: memref<24x32xbf16, #tpu.memory_space<vmem>>, %arg2: memref<1x1x32xf32, #tpu.memory_space<vmem>>, %arg3: memref<1x1x32xf32, #tpu.memory_space<vmem>>) attributes {dimension_semantics = [#tpu.dimension_semantics<parallel>], iteration_bounds = array<i64: 1>, scalar_prefetch = 0 : i64, scratch_operands = 0 : i64, tpu.core_type = #tpu.core_type<tc>, window_params = [{transform_indices = @transform_0, window_bounds = array<i64: 24, 32>}, {transform_indices = @transform_1, window_bounds = array<i64: 1, 1, 32>}, {transform_indices = @transform_2, window_bounds = array<i64: 1, 1, 32>}]} {
    %c0 = arith.constant 0 : index
    %c0_0 = arith.constant 0 : index
    %0 = vector.load %arg1[%c0, %c0_0] : memref<24x32xbf16, #tpu.memory_space<vmem>>, vector<24x32xbf16>
    %1 = arith.extf %0 : vector<24x32xbf16> to vector<24x32xf32>
    %cst = arith.constant dense<0.000000e+00> : vector<32xf32>
    %2 = vector.multi_reduction <add>, %1, %cst [0] : vector<24x32xf32> to vector<32xf32>
    %3 = vector.shape_cast %2 : vector<32xf32> to vector<1x32xf32>
    %4 = vector.shape_cast %3 : vector<1x32xf32> to vector<1x1x32xf32>
    %c0_1 = arith.constant 0 : index
    %c0_2 = arith.constant 0 : index
    %c0_3 = arith.constant 0 : index
    %5 = vector.load %arg2[%c0_1, %c0_2, %c0_3] : memref<1x1x32xf32, #tpu.memory_space<vmem>>, vector<1x1x32xf32>
    tpu.vector_store %arg2[%c0_1, %c0_2, %c0_3], %4 {strides = array<i32>} : memref<1x1x32xf32, #tpu.memory_space<vmem>>, vector<1x1x32xf32>,
    %6 = arith.mulf %1, %1 : vector<24x32xf32>
    %cst_4 = arith.constant dense<0.000000e+00> : vector<32xf32>
    %7 = vector.multi_reduction <add>, %6, %cst_4 [0] : vector<24x32xf32> to vector<32xf32>
    %8 = vector.shape_cast %7 : vector<32xf32> to vector<1x32xf32>
    %9 = vector.shape_cast %8 : vector<1x32xf32> to vector<1x1x32xf32>
    %c0_5 = arith.constant 0 : index
    %c0_6 = arith.constant 0 : index
    %c0_7 = arith.constant 0 : index
    %10 = vector.load %arg3[%c0_5, %c0_6, %c0_7] : memref<1x1x32xf32, #tpu.memory_space<vmem>>, vector<1x1x32xf32>
    tpu.vector_store %arg3[%c0_5, %c0_6, %c0_7], %9 {strides = array<i32>} : memref<1x1x32xf32, #tpu.memory_space<vmem>>, vector<1x1x32xf32>,
    return
  }
  func.func @transform_0(%arg0: i32) -> (i32, i32) {
    %c0_i32 = arith.constant 0 : i32
    %c0_i32_0 = arith.constant 0 : i32
    return %arg0, %c0_i32 : i32, i32
  }
  func.func @transform_1(%arg0: i32) -> (i32, i32, i32) {
    %c0_i32 = arith.constant 0 : i32
    %c0_i32_0 = arith.constant 0 : i32
    %c0_i32_1 = arith.constant 0 : i32
    return %arg0, %c0_i32, %c0_i32_0 : i32, i32, i32
  }
  func.func @transform_2(%arg0: i32) -> (i32, i32, i32) {
    %c0_i32 = arith.constant 0 : i32
    %c0_i32_0 = arith.constant 0 : i32
    %c0_i32_1 = arith.constant 0 : i32
    return %arg0, %c0_i32, %c0_i32_0 : i32, i32, i32
  }
}

module attributes {stable_mosaic.version = 11 : i64} {
  func.func @_bn_apply_kernel(%arg0: i32, %arg1: memref<24x32xbf16, #tpu.memory_space<vmem>>, %arg2: memref<1x32xf32, #tpu.memory_space<vmem>>, %arg3: memref<1x32xf32, #tpu.memory_space<vmem>>, %arg4: memref<24x32xbf16, #tpu.memory_space<vmem>>) attributes {dimension_semantics = [#tpu.dimension_semantics<parallel>], iteration_bounds = array<i64: 1>, scalar_prefetch = 0 : i64, scratch_operands = 0 : i64, tpu.core_type = #tpu.core_type<tc>, window_params = [{transform_indices = @transform_0, window_bounds = array<i64: 24, 32>}, {pipeline_mode = #tpu.pipeline_mode<synchronous>, transform_indices = @transform_1, window_bounds = array<i64: 1, 32>}, {pipeline_mode = #tpu.pipeline_mode<synchronous>, transform_indices = @transform_2, window_bounds = array<i64: 1, 32>}, {transform_indices = @transform_3, window_bounds = array<i64: 24, 32>}]} {
    %c0 = arith.constant 0 : index
    %c0_0 = arith.constant 0 : index
    %0 = vector.load %arg1[%c0, %c0_0] : memref<24x32xbf16, #tpu.memory_space<vmem>>, vector<24x32xbf16>
    %1 = arith.extf %0 : vector<24x32xbf16> to vector<24x32xf32>
    %c0_1 = arith.constant 0 : index
    %c0_2 = arith.constant 0 : index
    %2 = vector.load %arg2[%c0_1, %c0_2] : memref<1x32xf32, #tpu.memory_space<vmem>>, vector<1x32xf32>
    %3 = vector.broadcast %2 : vector<1x32xf32> to vector<24x32xf32>
    %4 = arith.mulf %1, %3 : vector<24x32xf32>
    %c0_3 = arith.constant 0 : index
    %c0_4 = arith.constant 0 : index
    %5 = vector.load %arg3[%c0_3, %c0_4] : memref<1x32xf32, #tpu.memory_space<vmem>>, vector<1x32xf32>
    %6 = vector.broadcast %5 : vector<1x32xf32> to vector<24x32xf32>
    %7 = arith.addf %4, %6 : vector<24x32xf32>
    %cst = arith.constant 0.000000e+00 : f32
    %8 = vector.broadcast %cst : f32 to vector<24x32xf32>
    %9 = arith.cmpf ogt, %7, %8 : vector<24x32xf32>
    %cst_5 = arith.constant 2.000000e-01 : f32
    %10 = vector.broadcast %cst_5 : f32 to vector<24x32xf32>
    %11 = arith.mulf %10, %7 : vector<24x32xf32>
    %12 = arith.select %9, %7, %11 : vector<24x32xi1>, vector<24x32xf32>
    %13 = arith.truncf %12 : vector<24x32xf32> to vector<24x32xbf16>
    %c0_6 = arith.constant 0 : index
    %c0_7 = arith.constant 0 : index
    %14 = vector.load %arg4[%c0_6, %c0_7] : memref<24x32xbf16, #tpu.memory_space<vmem>>, vector<24x32xbf16>
    tpu.vector_store %arg4[%c0_6, %c0_7], %13 {strides = array<i32>} : memref<24x32xbf16, #tpu.memory_space<vmem>>, vector<24x32xbf16>,
    return
  }
  func.func @transform_0(%arg0: i32) -> (i32, i32) {
    %c0_i32 = arith.constant 0 : i32
    %c0_i32_0 = arith.constant 0 : i32
    return %arg0, %c0_i32 : i32, i32
  }
  func.func @transform_1(%arg0: i32) -> (i32, i32) {
    %c0_i32 = arith.constant 0 : i32
    %c0_i32_0 = arith.constant 0 : i32
    %c0_i32_1 = arith.constant 0 : i32
    return %c0_i32, %c0_i32_0 : i32, i32
  }
  func.func @transform_2(%arg0: i32) -> (i32, i32) {
    %c0_i32 = arith.constant 0 : i32
    %c0_i32_0 = arith.constant 0 : i32
    %c0_i32_1 = arith.constant 0 : i32
    return %c0_i32, %c0_i32_0 : i32, i32
  }
  func.func @transform_3(%arg0: i32) -> (i32, i32) {
    %c0_i32 = arith.constant 0 : i32
    %c0_i32_0 = arith.constant 0 : i32
    return %arg0, %c0_i32 : i32, i32
  }
}

module attributes {stable_mosaic.version = 11 : i64} {
  func.func @_matmul_bias_act_kernel(%arg0: i32, %arg1: i32, %arg2: i32, %arg3: memref<32x512xbf16, #tpu.memory_space<vmem>>, %arg4: memref<512x128xbf16, #tpu.memory_space<vmem>>, %arg5: memref<1x128xf32, #tpu.memory_space<vmem>>, %arg6: memref<32x128xbf16, #tpu.memory_space<vmem>>, %arg7: memref<32x128xf32, #tpu.memory_space<vmem>>) attributes {dimension_semantics = [#tpu.dimension_semantics<parallel>, #tpu.dimension_semantics<parallel>, #tpu.dimension_semantics<arbitrary>], iteration_bounds = array<i64: 1, 1, 1>, scalar_prefetch = 0 : i64, scratch_operands = 1 : i64, tpu.core_type = #tpu.core_type<tc>, window_params = [{transform_indices = @transform_0, window_bounds = array<i64: 32, 512>}, {transform_indices = @transform_1, window_bounds = array<i64: 512, 128>}, {transform_indices = @transform_2, window_bounds = array<i64: 1, 128>}, {transform_indices = @transform_3, window_bounds = array<i64: 32, 128>}]} {
    %c0_i32 = arith.constant 0 : i32
    %0 = arith.cmpi eq, %arg2, %c0_i32 : i32
    %1 = arith.extui %0 : i1 to i32
    %c0_i32_0 = arith.constant 0 : i32
    %2 = arith.cmpi ne, %1, %c0_i32_0 : i32
    scf.if %2 {
      %cst_10 = arith.constant 0.000000e+00 : f32
      %12 = vector.broadcast %cst_10 : f32 to vector<32x128xf32>
      %c0_11 = arith.constant 0 : index
      %c0_12 = arith.constant 0 : index
      %13 = vector.load %arg7[%c0_11, %c0_12] : memref<32x128xf32, #tpu.memory_space<vmem>>, vector<32x128xf32>
      tpu.vector_store %arg7[%c0_11, %c0_12], %12 {strides = array<i32>} : memref<32x128xf32, #tpu.memory_space<vmem>>, vector<32x128xf32>,
    } else {
    }
    %c0 = arith.constant 0 : index
    %c0_1 = arith.constant 0 : index
    %3 = vector.load %arg7[%c0, %c0_1] : memref<32x128xf32, #tpu.memory_space<vmem>>, vector<32x128xf32>
    %c0_2 = arith.constant 0 : index
    %c0_3 = arith.constant 0 : index
    %4 = vector.load %arg3[%c0_2, %c0_3] : memref<32x512xbf16, #tpu.memory_space<vmem>>, vector<32x512xbf16>
    %c0_4 = arith.constant 0 : index
    %c0_5 = arith.constant 0 : index
    %5 = vector.load %arg4[%c0_4, %c0_5] : memref<512x128xbf16, #tpu.memory_space<vmem>>, vector<512x128xbf16>
    %cst = arith.constant dense<0.000000e+00> : vector<32x128xf32>
    %6 = tpu.matmul %4, %5, %cst {dimension_numbers = #tpu.dot_dimension_numbers<[1], [0], [0], [1], [0, 0, 1, 1], [], []>} : vector<32x512xbf16>, vector<512x128xbf16>, vector<32x128xf32> -> vector<32x128xf32>
    %7 = arith.addf %3, %6 : vector<32x128xf32>
    %c0_6 = arith.constant 0 : index
    %c0_7 = arith.constant 0 : index
    %8 = vector.load %arg7[%c0_6, %c0_7] : memref<32x128xf32, #tpu.memory_space<vmem>>, vector<32x128xf32>
    tpu.vector_store %arg7[%c0_6, %c0_7], %7 {strides = array<i32>} : memref<32x128xf32, #tpu.memory_space<vmem>>, vector<32x128xf32>,
    %c0_i32_8 = arith.constant 0 : i32
    %9 = arith.cmpi eq, %arg2, %c0_i32_8 : i32
    %10 = arith.extui %9 : i1 to i32
    %c0_i32_9 = arith.constant 0 : i32
    %11 = arith.cmpi ne, %10, %c0_i32_9 : i32
    scf.if %11 {
      %c0_10 = arith.constant 0 : index
      %c0_11 = arith.constant 0 : index
      %12 = vector.load %arg7[%c0_10, %c0_11] : memref<32x128xf32, #tpu.memory_space<vmem>>, vector<32x128xf32>
      %c0_12 = arith.constant 0 : index
      %c0_13 = arith.constant 0 : index
      %13 = vector.load %arg5[%c0_12, %c0_13] : memref<1x128xf32, #tpu.memory_space<vmem>>, vector<1x128xf32>
      %14 = vector.broadcast %13 : vector<1x128xf32> to vector<32x128xf32>
      %15 = arith.addf %12, %14 : vector<32x128xf32>
      %16 = arith.truncf %15 : vector<32x128xf32> to vector<32x128xbf16>
      %c0_14 = arith.constant 0 : index
      %c0_15 = arith.constant 0 : index
      %17 = vector.load %arg6[%c0_14, %c0_15] : memref<32x128xbf16, #tpu.memory_space<vmem>>, vector<32x128xbf16>
      tpu.vector_store %arg6[%c0_14, %c0_15], %16 {strides = array<i32>} : memref<32x128xbf16, #tpu.memory_space<vmem>>, vector<32x128xbf16>,
    } else {
    }
    return
  }
  func.func @transform_0(%arg0: i32, %arg1: i32, %arg2: i32) -> (i32, i32) {
    %c0_i32 = arith.constant 0 : i32
    return %arg0, %arg2 : i32, i32
  }
  func.func @transform_1(%arg0: i32, %arg1: i32, %arg2: i32) -> (i32, i32) {
    %c0_i32 = arith.constant 0 : i32
    return %arg2, %arg1 : i32, i32
  }
  func.func @transform_2(%arg0: i32, %arg1: i32, %arg2: i32) -> (i32, i32) {
    %c0_i32 = arith.constant 0 : i32
    %c0_i32_0 = arith.constant 0 : i32
    return %c0_i32, %arg1 : i32, i32
  }
  func.func @transform_3(%arg0: i32, %arg1: i32, %arg2: i32) -> (i32, i32) {
    %c0_i32 = arith.constant 0 : i32
    return %arg0, %arg1 : i32, i32
  }
}

module attributes {stable_mosaic.version = 11 : i64} {
  func.func @_bn_partial_stats_kernel(%arg0: i32, %arg1: memref<32x64xbf16, #tpu.memory_space<vmem>>, %arg2: memref<1x1x64xf32, #tpu.memory_space<vmem>>, %arg3: memref<1x1x64xf32, #tpu.memory_space<vmem>>) attributes {dimension_semantics = [#tpu.dimension_semantics<parallel>], iteration_bounds = array<i64: 1>, scalar_prefetch = 0 : i64, scratch_operands = 0 : i64, tpu.core_type = #tpu.core_type<tc>, window_params = [{transform_indices = @transform_0, window_bounds = array<i64: 32, 64>}, {transform_indices = @transform_1, window_bounds = array<i64: 1, 1, 64>}, {transform_indices = @transform_2, window_bounds = array<i64: 1, 1, 64>}]} {
    %c0 = arith.constant 0 : index
    %c0_0 = arith.constant 0 : index
    %0 = vector.load %arg1[%c0, %c0_0] : memref<32x64xbf16, #tpu.memory_space<vmem>>, vector<32x64xbf16>
    %1 = arith.extf %0 : vector<32x64xbf16> to vector<32x64xf32>
    %cst = arith.constant dense<0.000000e+00> : vector<64xf32>
    %2 = vector.multi_reduction <add>, %1, %cst [0] : vector<32x64xf32> to vector<64xf32>
    %3 = vector.shape_cast %2 : vector<64xf32> to vector<1x64xf32>
    %4 = vector.shape_cast %3 : vector<1x64xf32> to vector<1x1x64xf32>
    %c0_1 = arith.constant 0 : index
    %c0_2 = arith.constant 0 : index
    %c0_3 = arith.constant 0 : index
    %5 = vector.load %arg2[%c0_1, %c0_2, %c0_3] : memref<1x1x64xf32, #tpu.memory_space<vmem>>, vector<1x1x64xf32>
    tpu.vector_store %arg2[%c0_1, %c0_2, %c0_3], %4 {strides = array<i32>} : memref<1x1x64xf32, #tpu.memory_space<vmem>>, vector<1x1x64xf32>,
    %6 = arith.mulf %1, %1 : vector<32x64xf32>
    %cst_4 = arith.constant dense<0.000000e+00> : vector<64xf32>
    %7 = vector.multi_reduction <add>, %6, %cst_4 [0] : vector<32x64xf32> to vector<64xf32>
    %8 = vector.shape_cast %7 : vector<64xf32> to vector<1x64xf32>
    %9 = vector.shape_cast %8 : vector<1x64xf32> to vector<1x1x64xf32>
    %c0_5 = arith.constant 0 : index
    %c0_6 = arith.constant 0 : index
    %c0_7 = arith.constant 0 : index
    %10 = vector.load %arg3[%c0_5, %c0_6, %c0_7] : memref<1x1x64xf32, #tpu.memory_space<vmem>>, vector<1x1x64xf32>
    tpu.vector_store %arg3[%c0_5, %c0_6, %c0_7], %9 {strides = array<i32>} : memref<1x1x64xf32, #tpu.memory_space<vmem>>, vector<1x1x64xf32>,
    return
  }
  func.func @transform_0(%arg0: i32) -> (i32, i32) {
    %c0_i32 = arith.constant 0 : i32
    %c0_i32_0 = arith.constant 0 : i32
    return %arg0, %c0_i32 : i32, i32
  }
  func.func @transform_1(%arg0: i32) -> (i32, i32, i32) {
    %c0_i32 = arith.constant 0 : i32
    %c0_i32_0 = arith.constant 0 : i32
    %c0_i32_1 = arith.constant 0 : i32
    return %arg0, %c0_i32, %c0_i32_0 : i32, i32, i32
  }
  func.func @transform_2(%arg0: i32) -> (i32, i32, i32) {
    %c0_i32 = arith.constant 0 : i32
    %c0_i32_0 = arith.constant 0 : i32
    %c0_i32_1 = arith.constant 0 : i32
    return %arg0, %c0_i32, %c0_i32_0 : i32, i32, i32
  }
}

module attributes {stable_mosaic.version = 11 : i64} {
  func.func @_bn_apply_kernel(%arg0: i32, %arg1: memref<32x64xbf16, #tpu.memory_space<vmem>>, %arg2: memref<1x64xf32, #tpu.memory_space<vmem>>, %arg3: memref<1x64xf32, #tpu.memory_space<vmem>>, %arg4: memref<32x64xbf16, #tpu.memory_space<vmem>>) attributes {dimension_semantics = [#tpu.dimension_semantics<parallel>], iteration_bounds = array<i64: 1>, scalar_prefetch = 0 : i64, scratch_operands = 0 : i64, tpu.core_type = #tpu.core_type<tc>, window_params = [{transform_indices = @transform_0, window_bounds = array<i64: 32, 64>}, {pipeline_mode = #tpu.pipeline_mode<synchronous>, transform_indices = @transform_1, window_bounds = array<i64: 1, 64>}, {pipeline_mode = #tpu.pipeline_mode<synchronous>, transform_indices = @transform_2, window_bounds = array<i64: 1, 64>}, {transform_indices = @transform_3, window_bounds = array<i64: 32, 64>}]} {
    %c0 = arith.constant 0 : index
    %c0_0 = arith.constant 0 : index
    %0 = vector.load %arg1[%c0, %c0_0] : memref<32x64xbf16, #tpu.memory_space<vmem>>, vector<32x64xbf16>
    %1 = arith.extf %0 : vector<32x64xbf16> to vector<32x64xf32>
    %c0_1 = arith.constant 0 : index
    %c0_2 = arith.constant 0 : index
    %2 = vector.load %arg2[%c0_1, %c0_2] : memref<1x64xf32, #tpu.memory_space<vmem>>, vector<1x64xf32>
    %3 = vector.broadcast %2 : vector<1x64xf32> to vector<32x64xf32>
    %4 = arith.mulf %1, %3 : vector<32x64xf32>
    %c0_3 = arith.constant 0 : index
    %c0_4 = arith.constant 0 : index
    %5 = vector.load %arg3[%c0_3, %c0_4] : memref<1x64xf32, #tpu.memory_space<vmem>>, vector<1x64xf32>
    %6 = vector.broadcast %5 : vector<1x64xf32> to vector<32x64xf32>
    %7 = arith.addf %4, %6 : vector<32x64xf32>
    %cst = arith.constant 0.000000e+00 : f32
    %8 = vector.broadcast %cst : f32 to vector<32x64xf32>
    %9 = arith.cmpf ogt, %7, %8 : vector<32x64xf32>
    %cst_5 = arith.constant 2.000000e-01 : f32
    %10 = vector.broadcast %cst_5 : f32 to vector<32x64xf32>
    %11 = arith.mulf %10, %7 : vector<32x64xf32>
    %12 = arith.select %9, %7, %11 : vector<32x64xi1>, vector<32x64xf32>
    %13 = arith.truncf %12 : vector<32x64xf32> to vector<32x64xbf16>
    %c0_6 = arith.constant 0 : index
    %c0_7 = arith.constant 0 : index
    %14 = vector.load %arg4[%c0_6, %c0_7] : memref<32x64xbf16, #tpu.memory_space<vmem>>, vector<32x64xbf16>
    tpu.vector_store %arg4[%c0_6, %c0_7], %13 {strides = array<i32>} : memref<32x64xbf16, #tpu.memory_space<vmem>>, vector<32x64xbf16>,
    return
  }
  func.func @transform_0(%arg0: i32) -> (i32, i32) {
    %c0_i32 = arith.constant 0 : i32
    %c0_i32_0 = arith.constant 0 : i32
    return %arg0, %c0_i32 : i32, i32
  }
  func.func @transform_1(%arg0: i32) -> (i32, i32) {
    %c0_i32 = arith.constant 0 : i32
    %c0_i32_0 = arith.constant 0 : i32
    %c0_i32_1 = arith.constant 0 : i32
    return %c0_i32, %c0_i32_0 : i32, i32
  }
  func.func @transform_2(%arg0: i32) -> (i32, i32) {
    %c0_i32 = arith.constant 0 : i32
    %c0_i32_0 = arith.constant 0 : i32
    %c0_i32_1 = arith.constant 0 : i32
    return %c0_i32, %c0_i32_0 : i32, i32
  }
  func.func @transform_3(%arg0: i32) -> (i32, i32) {
    %c0_i32 = arith.constant 0 : i32
    %c0_i32_0 = arith.constant 0 : i32
    return %arg0, %c0_i32 : i32, i32
  }
}

module attributes {stable_mosaic.version = 11 : i64} {
  func.func @_matmul_bias_act_kernel(%arg0: i32, %arg1: i32, %arg2: i32, %arg3: memref<56x1024xbf16, #tpu.memory_space<vmem>>, %arg4: memref<1024x128xbf16, #tpu.memory_space<vmem>>, %arg5: memref<1x128xf32, #tpu.memory_space<vmem>>, %arg6: memref<56x128xf32, #tpu.memory_space<vmem>>, %arg7: memref<56x128xf32, #tpu.memory_space<vmem>>) attributes {dimension_semantics = [#tpu.dimension_semantics<parallel>, #tpu.dimension_semantics<parallel>, #tpu.dimension_semantics<arbitrary>], iteration_bounds = array<i64: 1, 1, 1>, scalar_prefetch = 0 : i64, scratch_operands = 1 : i64, tpu.core_type = #tpu.core_type<tc>, window_params = [{transform_indices = @transform_0, window_bounds = array<i64: 56, 1024>}, {transform_indices = @transform_1, window_bounds = array<i64: 1024, 128>}, {transform_indices = @transform_2, window_bounds = array<i64: 1, 128>}, {transform_indices = @transform_3, window_bounds = array<i64: 56, 128>}]} {
    %c0_i32 = arith.constant 0 : i32
    %0 = arith.cmpi eq, %arg2, %c0_i32 : i32
    %1 = arith.extui %0 : i1 to i32
    %c0_i32_0 = arith.constant 0 : i32
    %2 = arith.cmpi ne, %1, %c0_i32_0 : i32
    scf.if %2 {
      %cst_10 = arith.constant 0.000000e+00 : f32
      %12 = vector.broadcast %cst_10 : f32 to vector<56x128xf32>
      %c0_11 = arith.constant 0 : index
      %c0_12 = arith.constant 0 : index
      %13 = vector.load %arg7[%c0_11, %c0_12] : memref<56x128xf32, #tpu.memory_space<vmem>>, vector<56x128xf32>
      tpu.vector_store %arg7[%c0_11, %c0_12], %12 {strides = array<i32>} : memref<56x128xf32, #tpu.memory_space<vmem>>, vector<56x128xf32>,
    } else {
    }
    %c0 = arith.constant 0 : index
    %c0_1 = arith.constant 0 : index
    %3 = vector.load %arg7[%c0, %c0_1] : memref<56x128xf32, #tpu.memory_space<vmem>>, vector<56x128xf32>
    %c0_2 = arith.constant 0 : index
    %c0_3 = arith.constant 0 : index
    %4 = vector.load %arg3[%c0_2, %c0_3] : memref<56x1024xbf16, #tpu.memory_space<vmem>>, vector<56x1024xbf16>
    %c0_4 = arith.constant 0 : index
    %c0_5 = arith.constant 0 : index
    %5 = vector.load %arg4[%c0_4, %c0_5] : memref<1024x128xbf16, #tpu.memory_space<vmem>>, vector<1024x128xbf16>
    %cst = arith.constant dense<0.000000e+00> : vector<56x128xf32>
    %6 = tpu.matmul %4, %5, %cst {dimension_numbers = #tpu.dot_dimension_numbers<[1], [0], [0], [1], [0, 0, 1, 1], [], []>} : vector<56x1024xbf16>, vector<1024x128xbf16>, vector<56x128xf32> -> vector<56x128xf32>
    %7 = arith.addf %3, %6 : vector<56x128xf32>
    %c0_6 = arith.constant 0 : index
    %c0_7 = arith.constant 0 : index
    %8 = vector.load %arg7[%c0_6, %c0_7] : memref<56x128xf32, #tpu.memory_space<vmem>>, vector<56x128xf32>
    tpu.vector_store %arg7[%c0_6, %c0_7], %7 {strides = array<i32>} : memref<56x128xf32, #tpu.memory_space<vmem>>, vector<56x128xf32>,
    %c0_i32_8 = arith.constant 0 : i32
    %9 = arith.cmpi eq, %arg2, %c0_i32_8 : i32
    %10 = arith.extui %9 : i1 to i32
    %c0_i32_9 = arith.constant 0 : i32
    %11 = arith.cmpi ne, %10, %c0_i32_9 : i32
    scf.if %11 {
      %c0_10 = arith.constant 0 : index
      %c0_11 = arith.constant 0 : index
      %12 = vector.load %arg7[%c0_10, %c0_11] : memref<56x128xf32, #tpu.memory_space<vmem>>, vector<56x128xf32>
      %c0_12 = arith.constant 0 : index
      %c0_13 = arith.constant 0 : index
      %13 = vector.load %arg5[%c0_12, %c0_13] : memref<1x128xf32, #tpu.memory_space<vmem>>, vector<1x128xf32>
      %14 = vector.broadcast %13 : vector<1x128xf32> to vector<56x128xf32>
      %15 = arith.addf %12, %14 : vector<56x128xf32>
      %c0_14 = arith.constant 0 : index
      %c0_15 = arith.constant 0 : index
      %16 = vector.load %arg6[%c0_14, %c0_15] : memref<56x128xf32, #tpu.memory_space<vmem>>, vector<56x128xf32>
      tpu.vector_store %arg6[%c0_14, %c0_15], %15 {strides = array<i32>} : memref<56x128xf32, #tpu.memory_space<vmem>>, vector<56x128xf32>,
    } else {
    }
    return
  }
  func.func @transform_0(%arg0: i32, %arg1: i32, %arg2: i32) -> (i32, i32) {
    %c0_i32 = arith.constant 0 : i32
    return %arg0, %arg2 : i32, i32
  }
  func.func @transform_1(%arg0: i32, %arg1: i32, %arg2: i32) -> (i32, i32) {
    %c0_i32 = arith.constant 0 : i32
    return %arg2, %arg1 : i32, i32
  }
  func.func @transform_2(%arg0: i32, %arg1: i32, %arg2: i32) -> (i32, i32) {
    %c0_i32 = arith.constant 0 : i32
    %c0_i32_0 = arith.constant 0 : i32
    return %c0_i32, %arg1 : i32, i32
  }
  func.func @transform_3(%arg0: i32, %arg1: i32, %arg2: i32) -> (i32, i32) {
    %c0_i32 = arith.constant 0 : i32
    return %arg0, %arg1 : i32, i32
  }
}

module attributes {stable_mosaic.version = 11 : i64} {
  func.func @_avgpool_kernel(%arg0: i32, %arg1: i32, %arg2: memref<1x48x8xf32, #tpu.memory_space<vmem>>, %arg3: memref<48x1xf32, #tpu.memory_space<vmem>>, %arg4: memref<1x8xf32, #tpu.memory_space<vmem>>, %arg5: memref<48x8xf32, #tpu.memory_space<vmem>>) attributes {dimension_semantics = [#tpu.dimension_semantics<parallel>, #tpu.dimension_semantics<arbitrary>], iteration_bounds = array<i64: 1, 9>, scalar_prefetch = 0 : i64, scratch_operands = 0 : i64, tpu.core_type = #tpu.core_type<tc>, window_params = [{transform_indices = @transform_0, window_bounds = array<i64: 1, 48, 8>}, {transform_indices = @transform_1, window_bounds = array<i64: 48, 1>}, {pipeline_mode = #tpu.pipeline_mode<synchronous>, transform_indices = @transform_2, window_bounds = array<i64: 1, 8>}, {transform_indices = @transform_3, window_bounds = array<i64: 48, 8>}]} {
    %c0_i32 = arith.constant 0 : i32
    %0 = arith.cmpi eq, %arg1, %c0_i32 : i32
    %1 = arith.extui %0 : i1 to i32
    %c0_i32_0 = arith.constant 0 : i32
    %2 = arith.cmpi ne, %1, %c0_i32_0 : i32
    scf.if %2 {
      %cst = arith.constant 0.000000e+00 : f32
      %11 = vector.broadcast %cst : f32 to vector<48x8xf32>
      %c0_8 = arith.constant 0 : index
      %c0_9 = arith.constant 0 : index
      %12 = vector.load %arg5[%c0_8, %c0_9] : memref<48x8xf32, #tpu.memory_space<vmem>>, vector<48x8xf32>
      tpu.vector_store %arg5[%c0_8, %c0_9], %11 {strides = array<i32>} : memref<48x8xf32, #tpu.memory_space<vmem>>, vector<48x8xf32>,
    } else {
    }
    %c0 = arith.constant 0 : index
    %c0_1 = arith.constant 0 : index
    %3 = vector.load %arg5[%c0, %c0_1] : memref<48x8xf32, #tpu.memory_space<vmem>>, vector<48x8xf32>
    %c0_2 = arith.constant 0 : index
    %c0_3 = arith.constant 0 : index
    %c0_4 = arith.constant 0 : index
    %4 = vector.load %arg2[%c0_2, %c0_3, %c0_4] : memref<1x48x8xf32, #tpu.memory_space<vmem>>, vector<1x48x8xf32>
    %5 = vector.shape_cast %4 : vector<1x48x8xf32> to vector<48x8xf32>
    %6 = arith.addf %3, %5 : vector<48x8xf32>
    %c0_5 = arith.constant 0 : index
    %c0_6 = arith.constant 0 : index
    %7 = vector.load %arg5[%c0_5, %c0_6] : memref<48x8xf32, #tpu.memory_space<vmem>>, vector<48x8xf32>
    tpu.vector_store %arg5[%c0_5, %c0_6], %6 {strides = array<i32>} : memref<48x8xf32, #tpu.memory_space<vmem>>, vector<48x8xf32>,
    %c8_i32 = arith.constant 8 : i32
    %8 = arith.cmpi eq, %arg1, %c8_i32 : i32
    %9 = arith.extui %8 : i1 to i32
    %c0_i32_7 = arith.constant 0 : i32
    %10 = arith.cmpi ne, %9, %c0_i32_7 : i32
    scf.if %10 {
      %c0_8 = arith.constant 0 : index
      %c0_9 = arith.constant 0 : index
      %11 = vector.load %arg5[%c0_8, %c0_9] : memref<48x8xf32, #tpu.memory_space<vmem>>, vector<48x8xf32>
      %c0_10 = arith.constant 0 : index
      %c0_11 = arith.constant 0 : index
      %12 = vector.load %arg3[%c0_10, %c0_11] : memref<48x1xf32, #tpu.memory_space<vmem>>, vector<48x1xf32>
      %c0_12 = arith.constant 0 : index
      %c0_13 = arith.constant 0 : index
      %13 = vector.load %arg4[%c0_12, %c0_13] : memref<1x8xf32, #tpu.memory_space<vmem>>, vector<1x8xf32>
      %14 = vector.broadcast %12 : vector<48x1xf32> to vector<48x8xf32>
      %15 = vector.broadcast %13 : vector<1x8xf32> to vector<48x8xf32>
      %16 = arith.mulf %14, %15 : vector<48x8xf32>
      %17 = arith.mulf %11, %16 : vector<48x8xf32>
      %c0_14 = arith.constant 0 : index
      %c0_15 = arith.constant 0 : index
      %18 = vector.load %arg5[%c0_14, %c0_15] : memref<48x8xf32, #tpu.memory_space<vmem>>, vector<48x8xf32>
      tpu.vector_store %arg5[%c0_14, %c0_15], %17 {strides = array<i32>} : memref<48x8xf32, #tpu.memory_space<vmem>>, vector<48x8xf32>,
    } else {
    }
    return
  }
  func.func @transform_0(%arg0: i32, %arg1: i32) -> (i32, i32, i32) {
    %c0_i32 = arith.constant 0 : i32
    %c0_i32_0 = arith.constant 0 : i32
    return %arg1, %arg0, %c0_i32 : i32, i32, i32
  }
  func.func @transform_1(%arg0: i32, %arg1: i32) -> (i32, i32) {
    %c0_i32 = arith.constant 0 : i32
    %c0_i32_0 = arith.constant 0 : i32
    return %arg0, %c0_i32 : i32, i32
  }
  func.func @transform_2(%arg0: i32, %arg1: i32) -> (i32, i32) {
    %c0_i32 = arith.constant 0 : i32
    %c0_i32_0 = arith.constant 0 : i32
    %c0_i32_1 = arith.constant 0 : i32
    return %c0_i32, %c0_i32_0 : i32, i32
  }
  func.func @transform_3(%arg0: i32, %arg1: i32) -> (i32, i32) {
    %c0_i32 = arith.constant 0 : i32
    %c0_i32_0 = arith.constant 0 : i32
    return %arg0, %c0_i32 : i32, i32
  }
}

module attributes {stable_mosaic.version = 11 : i64} {
  func.func @_matmul_bias_act_kernel(%arg0: i32, %arg1: i32, %arg2: i32, %arg3: memref<56x128xbf16, #tpu.memory_space<vmem>>, %arg4: memref<128x128xbf16, #tpu.memory_space<vmem>>, %arg5: memref<1x128xf32, #tpu.memory_space<vmem>>, %arg6: memref<56x128xbf16, #tpu.memory_space<vmem>>, %arg7: memref<56x128xf32, #tpu.memory_space<vmem>>) attributes {dimension_semantics = [#tpu.dimension_semantics<parallel>, #tpu.dimension_semantics<parallel>, #tpu.dimension_semantics<arbitrary>], iteration_bounds = array<i64: 1, 1, 1>, scalar_prefetch = 0 : i64, scratch_operands = 1 : i64, tpu.core_type = #tpu.core_type<tc>, window_params = [{transform_indices = @transform_0, window_bounds = array<i64: 56, 128>}, {transform_indices = @transform_1, window_bounds = array<i64: 128, 128>}, {transform_indices = @transform_2, window_bounds = array<i64: 1, 128>}, {transform_indices = @transform_3, window_bounds = array<i64: 56, 128>}]} {
    %c0_i32 = arith.constant 0 : i32
    %0 = arith.cmpi eq, %arg2, %c0_i32 : i32
    %1 = arith.extui %0 : i1 to i32
    %c0_i32_0 = arith.constant 0 : i32
    %2 = arith.cmpi ne, %1, %c0_i32_0 : i32
    scf.if %2 {
      %cst_10 = arith.constant 0.000000e+00 : f32
      %12 = vector.broadcast %cst_10 : f32 to vector<56x128xf32>
      %c0_11 = arith.constant 0 : index
      %c0_12 = arith.constant 0 : index
      %13 = vector.load %arg7[%c0_11, %c0_12] : memref<56x128xf32, #tpu.memory_space<vmem>>, vector<56x128xf32>
      tpu.vector_store %arg7[%c0_11, %c0_12], %12 {strides = array<i32>} : memref<56x128xf32, #tpu.memory_space<vmem>>, vector<56x128xf32>,
    } else {
    }
    %c0 = arith.constant 0 : index
    %c0_1 = arith.constant 0 : index
    %3 = vector.load %arg7[%c0, %c0_1] : memref<56x128xf32, #tpu.memory_space<vmem>>, vector<56x128xf32>
    %c0_2 = arith.constant 0 : index
    %c0_3 = arith.constant 0 : index
    %4 = vector.load %arg3[%c0_2, %c0_3] : memref<56x128xbf16, #tpu.memory_space<vmem>>, vector<56x128xbf16>
    %c0_4 = arith.constant 0 : index
    %c0_5 = arith.constant 0 : index
    %5 = vector.load %arg4[%c0_4, %c0_5] : memref<128x128xbf16, #tpu.memory_space<vmem>>, vector<128x128xbf16>
    %cst = arith.constant dense<0.000000e+00> : vector<56x128xf32>
    %6 = tpu.matmul %4, %5, %cst {dimension_numbers = #tpu.dot_dimension_numbers<[1], [0], [0], [1], [0, 0, 1, 1], [], []>} : vector<56x128xbf16>, vector<128x128xbf16>, vector<56x128xf32> -> vector<56x128xf32>
    %7 = arith.addf %3, %6 : vector<56x128xf32>
    %c0_6 = arith.constant 0 : index
    %c0_7 = arith.constant 0 : index
    %8 = vector.load %arg7[%c0_6, %c0_7] : memref<56x128xf32, #tpu.memory_space<vmem>>, vector<56x128xf32>
    tpu.vector_store %arg7[%c0_6, %c0_7], %7 {strides = array<i32>} : memref<56x128xf32, #tpu.memory_space<vmem>>, vector<56x128xf32>,
    %c0_i32_8 = arith.constant 0 : i32
    %9 = arith.cmpi eq, %arg2, %c0_i32_8 : i32
    %10 = arith.extui %9 : i1 to i32
    %c0_i32_9 = arith.constant 0 : i32
    %11 = arith.cmpi ne, %10, %c0_i32_9 : i32
    scf.if %11 {
      %c0_10 = arith.constant 0 : index
      %c0_11 = arith.constant 0 : index
      %12 = vector.load %arg7[%c0_10, %c0_11] : memref<56x128xf32, #tpu.memory_space<vmem>>, vector<56x128xf32>
      %c0_12 = arith.constant 0 : index
      %c0_13 = arith.constant 0 : index
      %13 = vector.load %arg5[%c0_12, %c0_13] : memref<1x128xf32, #tpu.memory_space<vmem>>, vector<1x128xf32>
      %14 = vector.broadcast %13 : vector<1x128xf32> to vector<56x128xf32>
      %15 = arith.addf %12, %14 : vector<56x128xf32>
      %cst_14 = arith.constant 0.000000e+00 : f32
      %16 = vector.broadcast %cst_14 : f32 to vector<56x128xf32>
      %17 = arith.cmpf ogt, %15, %16 : vector<56x128xf32>
      %cst_15 = arith.constant 2.000000e-01 : f32
      %18 = vector.broadcast %cst_15 : f32 to vector<56x128xf32>
      %19 = arith.mulf %18, %15 : vector<56x128xf32>
      %20 = arith.select %17, %15, %19 : vector<56x128xi1>, vector<56x128xf32>
      %21 = arith.truncf %20 : vector<56x128xf32> to vector<56x128xbf16>
      %c0_16 = arith.constant 0 : index
      %c0_17 = arith.constant 0 : index
      %22 = vector.load %arg6[%c0_16, %c0_17] : memref<56x128xbf16, #tpu.memory_space<vmem>>, vector<56x128xbf16>
      tpu.vector_store %arg6[%c0_16, %c0_17], %21 {strides = array<i32>} : memref<56x128xbf16, #tpu.memory_space<vmem>>, vector<56x128xbf16>,
    } else {
    }
    return
  }
  func.func @transform_0(%arg0: i32, %arg1: i32, %arg2: i32) -> (i32, i32) {
    %c0_i32 = arith.constant 0 : i32
    return %arg0, %arg2 : i32, i32
  }
  func.func @transform_1(%arg0: i32, %arg1: i32, %arg2: i32) -> (i32, i32) {
    %c0_i32 = arith.constant 0 : i32
    return %arg2, %arg1 : i32, i32
  }
  func.func @transform_2(%arg0: i32, %arg1: i32, %arg2: i32) -> (i32, i32) {
    %c0_i32 = arith.constant 0 : i32
    %c0_i32_0 = arith.constant 0 : i32
    return %c0_i32, %arg1 : i32, i32
  }
  func.func @transform_3(%arg0: i32, %arg1: i32, %arg2: i32) -> (i32, i32) {
    %c0_i32 = arith.constant 0 : i32
    return %arg0, %arg1 : i32, i32
  }
}

module attributes {stable_mosaic.version = 11 : i64} {
  func.func @_matmul_bias_act_kernel(%arg0: i32, %arg1: i32, %arg2: i32, %arg3: memref<24x128xbf16, #tpu.memory_space<vmem>>, %arg4: memref<128x128xbf16, #tpu.memory_space<vmem>>, %arg5: memref<1x128xf32, #tpu.memory_space<vmem>>, %arg6: memref<24x128xbf16, #tpu.memory_space<vmem>>, %arg7: memref<24x128xf32, #tpu.memory_space<vmem>>) attributes {dimension_semantics = [#tpu.dimension_semantics<parallel>, #tpu.dimension_semantics<parallel>, #tpu.dimension_semantics<arbitrary>], iteration_bounds = array<i64: 1, 1, 1>, scalar_prefetch = 0 : i64, scratch_operands = 1 : i64, tpu.core_type = #tpu.core_type<tc>, window_params = [{transform_indices = @transform_0, window_bounds = array<i64: 24, 128>}, {transform_indices = @transform_1, window_bounds = array<i64: 128, 128>}, {transform_indices = @transform_2, window_bounds = array<i64: 1, 128>}, {transform_indices = @transform_3, window_bounds = array<i64: 24, 128>}]} {
    %c0_i32 = arith.constant 0 : i32
    %0 = arith.cmpi eq, %arg2, %c0_i32 : i32
    %1 = arith.extui %0 : i1 to i32
    %c0_i32_0 = arith.constant 0 : i32
    %2 = arith.cmpi ne, %1, %c0_i32_0 : i32
    scf.if %2 {
      %cst_10 = arith.constant 0.000000e+00 : f32
      %12 = vector.broadcast %cst_10 : f32 to vector<24x128xf32>
      %c0_11 = arith.constant 0 : index
      %c0_12 = arith.constant 0 : index
      %13 = vector.load %arg7[%c0_11, %c0_12] : memref<24x128xf32, #tpu.memory_space<vmem>>, vector<24x128xf32>
      tpu.vector_store %arg7[%c0_11, %c0_12], %12 {strides = array<i32>} : memref<24x128xf32, #tpu.memory_space<vmem>>, vector<24x128xf32>,
    } else {
    }
    %c0 = arith.constant 0 : index
    %c0_1 = arith.constant 0 : index
    %3 = vector.load %arg7[%c0, %c0_1] : memref<24x128xf32, #tpu.memory_space<vmem>>, vector<24x128xf32>
    %c0_2 = arith.constant 0 : index
    %c0_3 = arith.constant 0 : index
    %4 = vector.load %arg3[%c0_2, %c0_3] : memref<24x128xbf16, #tpu.memory_space<vmem>>, vector<24x128xbf16>
    %c0_4 = arith.constant 0 : index
    %c0_5 = arith.constant 0 : index
    %5 = vector.load %arg4[%c0_4, %c0_5] : memref<128x128xbf16, #tpu.memory_space<vmem>>, vector<128x128xbf16>
    %cst = arith.constant dense<0.000000e+00> : vector<24x128xf32>
    %6 = tpu.matmul %4, %5, %cst {dimension_numbers = #tpu.dot_dimension_numbers<[1], [0], [0], [1], [0, 0, 1, 1], [], []>} : vector<24x128xbf16>, vector<128x128xbf16>, vector<24x128xf32> -> vector<24x128xf32>
    %7 = arith.addf %3, %6 : vector<24x128xf32>
    %c0_6 = arith.constant 0 : index
    %c0_7 = arith.constant 0 : index
    %8 = vector.load %arg7[%c0_6, %c0_7] : memref<24x128xf32, #tpu.memory_space<vmem>>, vector<24x128xf32>
    tpu.vector_store %arg7[%c0_6, %c0_7], %7 {strides = array<i32>} : memref<24x128xf32, #tpu.memory_space<vmem>>, vector<24x128xf32>,
    %c0_i32_8 = arith.constant 0 : i32
    %9 = arith.cmpi eq, %arg2, %c0_i32_8 : i32
    %10 = arith.extui %9 : i1 to i32
    %c0_i32_9 = arith.constant 0 : i32
    %11 = arith.cmpi ne, %10, %c0_i32_9 : i32
    scf.if %11 {
      %c0_10 = arith.constant 0 : index
      %c0_11 = arith.constant 0 : index
      %12 = vector.load %arg7[%c0_10, %c0_11] : memref<24x128xf32, #tpu.memory_space<vmem>>, vector<24x128xf32>
      %c0_12 = arith.constant 0 : index
      %c0_13 = arith.constant 0 : index
      %13 = vector.load %arg5[%c0_12, %c0_13] : memref<1x128xf32, #tpu.memory_space<vmem>>, vector<1x128xf32>
      %14 = vector.broadcast %13 : vector<1x128xf32> to vector<24x128xf32>
      %15 = arith.addf %12, %14 : vector<24x128xf32>
      %16 = arith.truncf %15 : vector<24x128xf32> to vector<24x128xbf16>
      %c0_14 = arith.constant 0 : index
      %c0_15 = arith.constant 0 : index
      %17 = vector.load %arg6[%c0_14, %c0_15] : memref<24x128xbf16, #tpu.memory_space<vmem>>, vector<24x128xbf16>
      tpu.vector_store %arg6[%c0_14, %c0_15], %16 {strides = array<i32>} : memref<24x128xbf16, #tpu.memory_space<vmem>>, vector<24x128xbf16>,
    } else {
    }
    return
  }
  func.func @transform_0(%arg0: i32, %arg1: i32, %arg2: i32) -> (i32, i32) {
    %c0_i32 = arith.constant 0 : i32
    return %arg0, %arg2 : i32, i32
  }
  func.func @transform_1(%arg0: i32, %arg1: i32, %arg2: i32) -> (i32, i32) {
    %c0_i32 = arith.constant 0 : i32
    return %arg2, %arg1 : i32, i32
  }
  func.func @transform_2(%arg0: i32, %arg1: i32, %arg2: i32) -> (i32, i32) {
    %c0_i32 = arith.constant 0 : i32
    %c0_i32_0 = arith.constant 0 : i32
    return %c0_i32, %arg1 : i32, i32
  }
  func.func @transform_3(%arg0: i32, %arg1: i32, %arg2: i32) -> (i32, i32) {
    %c0_i32 = arith.constant 0 : i32
    return %arg0, %arg1 : i32, i32
  }
}

module attributes {stable_mosaic.version = 11 : i64} {
  func.func @_bn_partial_stats_kernel(%arg0: i32, %arg1: memref<24x16xbf16, #tpu.memory_space<vmem>>, %arg2: memref<1x1x16xf32, #tpu.memory_space<vmem>>, %arg3: memref<1x1x16xf32, #tpu.memory_space<vmem>>) attributes {dimension_semantics = [#tpu.dimension_semantics<parallel>], iteration_bounds = array<i64: 1>, scalar_prefetch = 0 : i64, scratch_operands = 0 : i64, tpu.core_type = #tpu.core_type<tc>, window_params = [{transform_indices = @transform_0, window_bounds = array<i64: 24, 16>}, {transform_indices = @transform_1, window_bounds = array<i64: 1, 1, 16>}, {transform_indices = @transform_2, window_bounds = array<i64: 1, 1, 16>}]} {
    %c0 = arith.constant 0 : index
    %c0_0 = arith.constant 0 : index
    %0 = vector.load %arg1[%c0, %c0_0] : memref<24x16xbf16, #tpu.memory_space<vmem>>, vector<24x16xbf16>
    %1 = arith.extf %0 : vector<24x16xbf16> to vector<24x16xf32>
    %cst = arith.constant dense<0.000000e+00> : vector<16xf32>
    %2 = vector.multi_reduction <add>, %1, %cst [0] : vector<24x16xf32> to vector<16xf32>
    %3 = vector.shape_cast %2 : vector<16xf32> to vector<1x16xf32>
    %4 = vector.shape_cast %3 : vector<1x16xf32> to vector<1x1x16xf32>
    %c0_1 = arith.constant 0 : index
    %c0_2 = arith.constant 0 : index
    %c0_3 = arith.constant 0 : index
    %5 = vector.load %arg2[%c0_1, %c0_2, %c0_3] : memref<1x1x16xf32, #tpu.memory_space<vmem>>, vector<1x1x16xf32>
    tpu.vector_store %arg2[%c0_1, %c0_2, %c0_3], %4 {strides = array<i32>} : memref<1x1x16xf32, #tpu.memory_space<vmem>>, vector<1x1x16xf32>,
    %6 = arith.mulf %1, %1 : vector<24x16xf32>
    %cst_4 = arith.constant dense<0.000000e+00> : vector<16xf32>
    %7 = vector.multi_reduction <add>, %6, %cst_4 [0] : vector<24x16xf32> to vector<16xf32>
    %8 = vector.shape_cast %7 : vector<16xf32> to vector<1x16xf32>
    %9 = vector.shape_cast %8 : vector<1x16xf32> to vector<1x1x16xf32>
    %c0_5 = arith.constant 0 : index
    %c0_6 = arith.constant 0 : index
    %c0_7 = arith.constant 0 : index
    %10 = vector.load %arg3[%c0_5, %c0_6, %c0_7] : memref<1x1x16xf32, #tpu.memory_space<vmem>>, vector<1x1x16xf32>
    tpu.vector_store %arg3[%c0_5, %c0_6, %c0_7], %9 {strides = array<i32>} : memref<1x1x16xf32, #tpu.memory_space<vmem>>, vector<1x1x16xf32>,
    return
  }
  func.func @transform_0(%arg0: i32) -> (i32, i32) {
    %c0_i32 = arith.constant 0 : i32
    %c0_i32_0 = arith.constant 0 : i32
    return %arg0, %c0_i32 : i32, i32
  }
  func.func @transform_1(%arg0: i32) -> (i32, i32, i32) {
    %c0_i32 = arith.constant 0 : i32
    %c0_i32_0 = arith.constant 0 : i32
    %c0_i32_1 = arith.constant 0 : i32
    return %arg0, %c0_i32, %c0_i32_0 : i32, i32, i32
  }
  func.func @transform_2(%arg0: i32) -> (i32, i32, i32) {
    %c0_i32 = arith.constant 0 : i32
    %c0_i32_0 = arith.constant 0 : i32
    %c0_i32_1 = arith.constant 0 : i32
    return %arg0, %c0_i32, %c0_i32_0 : i32, i32, i32
  }
}

module attributes {stable_mosaic.version = 11 : i64} {
  func.func @_bn_apply_kernel(%arg0: i32, %arg1: memref<24x16xbf16, #tpu.memory_space<vmem>>, %arg2: memref<1x16xf32, #tpu.memory_space<vmem>>, %arg3: memref<1x16xf32, #tpu.memory_space<vmem>>, %arg4: memref<24x16xbf16, #tpu.memory_space<vmem>>) attributes {dimension_semantics = [#tpu.dimension_semantics<parallel>], iteration_bounds = array<i64: 1>, scalar_prefetch = 0 : i64, scratch_operands = 0 : i64, tpu.core_type = #tpu.core_type<tc>, window_params = [{transform_indices = @transform_0, window_bounds = array<i64: 24, 16>}, {pipeline_mode = #tpu.pipeline_mode<synchronous>, transform_indices = @transform_1, window_bounds = array<i64: 1, 16>}, {pipeline_mode = #tpu.pipeline_mode<synchronous>, transform_indices = @transform_2, window_bounds = array<i64: 1, 16>}, {transform_indices = @transform_3, window_bounds = array<i64: 24, 16>}]} {
    %c0 = arith.constant 0 : index
    %c0_0 = arith.constant 0 : index
    %0 = vector.load %arg1[%c0, %c0_0] : memref<24x16xbf16, #tpu.memory_space<vmem>>, vector<24x16xbf16>
    %1 = arith.extf %0 : vector<24x16xbf16> to vector<24x16xf32>
    %c0_1 = arith.constant 0 : index
    %c0_2 = arith.constant 0 : index
    %2 = vector.load %arg2[%c0_1, %c0_2] : memref<1x16xf32, #tpu.memory_space<vmem>>, vector<1x16xf32>
    %3 = vector.broadcast %2 : vector<1x16xf32> to vector<24x16xf32>
    %4 = arith.mulf %1, %3 : vector<24x16xf32>
    %c0_3 = arith.constant 0 : index
    %c0_4 = arith.constant 0 : index
    %5 = vector.load %arg3[%c0_3, %c0_4] : memref<1x16xf32, #tpu.memory_space<vmem>>, vector<1x16xf32>
    %6 = vector.broadcast %5 : vector<1x16xf32> to vector<24x16xf32>
    %7 = arith.addf %4, %6 : vector<24x16xf32>
    %cst = arith.constant 0.000000e+00 : f32
    %8 = vector.broadcast %cst : f32 to vector<24x16xf32>
    %9 = arith.cmpf ogt, %7, %8 : vector<24x16xf32>
    %cst_5 = arith.constant 2.000000e-01 : f32
    %10 = vector.broadcast %cst_5 : f32 to vector<24x16xf32>
    %11 = arith.mulf %10, %7 : vector<24x16xf32>
    %12 = arith.select %9, %7, %11 : vector<24x16xi1>, vector<24x16xf32>
    %13 = arith.truncf %12 : vector<24x16xf32> to vector<24x16xbf16>
    %c0_6 = arith.constant 0 : index
    %c0_7 = arith.constant 0 : index
    %14 = vector.load %arg4[%c0_6, %c0_7] : memref<24x16xbf16, #tpu.memory_space<vmem>>, vector<24x16xbf16>
    tpu.vector_store %arg4[%c0_6, %c0_7], %13 {strides = array<i32>} : memref<24x16xbf16, #tpu.memory_space<vmem>>, vector<24x16xbf16>,
    return
  }
  func.func @transform_0(%arg0: i32) -> (i32, i32) {
    %c0_i32 = arith.constant 0 : i32
    %c0_i32_0 = arith.constant 0 : i32
    return %arg0, %c0_i32 : i32, i32
  }
  func.func @transform_1(%arg0: i32) -> (i32, i32) {
    %c0_i32 = arith.constant 0 : i32
    %c0_i32_0 = arith.constant 0 : i32
    %c0_i32_1 = arith.constant 0 : i32
    return %c0_i32, %c0_i32_0 : i32, i32
  }
  func.func @transform_2(%arg0: i32) -> (i32, i32) {
    %c0_i32 = arith.constant 0 : i32
    %c0_i32_0 = arith.constant 0 : i32
    %c0_i32_1 = arith.constant 0 : i32
    return %c0_i32, %c0_i32_0 : i32, i32
  }
  func.func @transform_3(%arg0: i32) -> (i32, i32) {
    %c0_i32 = arith.constant 0 : i32
    %c0_i32_0 = arith.constant 0 : i32
    return %arg0, %c0_i32 : i32, i32
  }
}

module attributes {stable_mosaic.version = 11 : i64} {
  func.func @_matmul_bias_act_kernel(%arg0: i32, %arg1: i32, %arg2: i32, %arg3: memref<8x256xbf16, #tpu.memory_space<vmem>>, %arg4: memref<256x128xbf16, #tpu.memory_space<vmem>>, %arg5: memref<1x128xf32, #tpu.memory_space<vmem>>, %arg6: memref<8x128xbf16, #tpu.memory_space<vmem>>, %arg7: memref<8x128xf32, #tpu.memory_space<vmem>>) attributes {dimension_semantics = [#tpu.dimension_semantics<parallel>, #tpu.dimension_semantics<parallel>, #tpu.dimension_semantics<arbitrary>], iteration_bounds = array<i64: 1, 1, 1>, scalar_prefetch = 0 : i64, scratch_operands = 1 : i64, tpu.core_type = #tpu.core_type<tc>, window_params = [{transform_indices = @transform_0, window_bounds = array<i64: 8, 256>}, {transform_indices = @transform_1, window_bounds = array<i64: 256, 128>}, {transform_indices = @transform_2, window_bounds = array<i64: 1, 128>}, {transform_indices = @transform_3, window_bounds = array<i64: 8, 128>}]} {
    %c0_i32 = arith.constant 0 : i32
    %0 = arith.cmpi eq, %arg2, %c0_i32 : i32
    %1 = arith.extui %0 : i1 to i32
    %c0_i32_0 = arith.constant 0 : i32
    %2 = arith.cmpi ne, %1, %c0_i32_0 : i32
    scf.if %2 {
      %cst_10 = arith.constant 0.000000e+00 : f32
      %12 = vector.broadcast %cst_10 : f32 to vector<8x128xf32>
      %c0_11 = arith.constant 0 : index
      %c0_12 = arith.constant 0 : index
      %13 = vector.load %arg7[%c0_11, %c0_12] : memref<8x128xf32, #tpu.memory_space<vmem>>, vector<8x128xf32>
      tpu.vector_store %arg7[%c0_11, %c0_12], %12 {strides = array<i32>} : memref<8x128xf32, #tpu.memory_space<vmem>>, vector<8x128xf32>,
    } else {
    }
    %c0 = arith.constant 0 : index
    %c0_1 = arith.constant 0 : index
    %3 = vector.load %arg7[%c0, %c0_1] : memref<8x128xf32, #tpu.memory_space<vmem>>, vector<8x128xf32>
    %c0_2 = arith.constant 0 : index
    %c0_3 = arith.constant 0 : index
    %4 = vector.load %arg3[%c0_2, %c0_3] : memref<8x256xbf16, #tpu.memory_space<vmem>>, vector<8x256xbf16>
    %c0_4 = arith.constant 0 : index
    %c0_5 = arith.constant 0 : index
    %5 = vector.load %arg4[%c0_4, %c0_5] : memref<256x128xbf16, #tpu.memory_space<vmem>>, vector<256x128xbf16>
    %cst = arith.constant dense<0.000000e+00> : vector<8x128xf32>
    %6 = tpu.matmul %4, %5, %cst {dimension_numbers = #tpu.dot_dimension_numbers<[1], [0], [0], [1], [0, 0, 1, 1], [], []>} : vector<8x256xbf16>, vector<256x128xbf16>, vector<8x128xf32> -> vector<8x128xf32>
    %7 = arith.addf %3, %6 : vector<8x128xf32>
    %c0_6 = arith.constant 0 : index
    %c0_7 = arith.constant 0 : index
    %8 = vector.load %arg7[%c0_6, %c0_7] : memref<8x128xf32, #tpu.memory_space<vmem>>, vector<8x128xf32>
    tpu.vector_store %arg7[%c0_6, %c0_7], %7 {strides = array<i32>} : memref<8x128xf32, #tpu.memory_space<vmem>>, vector<8x128xf32>,
    %c0_i32_8 = arith.constant 0 : i32
    %9 = arith.cmpi eq, %arg2, %c0_i32_8 : i32
    %10 = arith.extui %9 : i1 to i32
    %c0_i32_9 = arith.constant 0 : i32
    %11 = arith.cmpi ne, %10, %c0_i32_9 : i32
    scf.if %11 {
      %c0_10 = arith.constant 0 : index
      %c0_11 = arith.constant 0 : index
      %12 = vector.load %arg7[%c0_10, %c0_11] : memref<8x128xf32, #tpu.memory_space<vmem>>, vector<8x128xf32>
      %c0_12 = arith.constant 0 : index
      %c0_13 = arith.constant 0 : index
      %13 = vector.load %arg5[%c0_12, %c0_13] : memref<1x128xf32, #tpu.memory_space<vmem>>, vector<1x128xf32>
      %14 = vector.broadcast %13 : vector<1x128xf32> to vector<8x128xf32>
      %15 = arith.addf %12, %14 : vector<8x128xf32>
      %16 = arith.truncf %15 : vector<8x128xf32> to vector<8x128xbf16>
      %c0_14 = arith.constant 0 : index
      %c0_15 = arith.constant 0 : index
      %17 = vector.load %arg6[%c0_14, %c0_15] : memref<8x128xbf16, #tpu.memory_space<vmem>>, vector<8x128xbf16>
      tpu.vector_store %arg6[%c0_14, %c0_15], %16 {strides = array<i32>} : memref<8x128xbf16, #tpu.memory_space<vmem>>, vector<8x128xbf16>,
    } else {
    }
    return
  }
  func.func @transform_0(%arg0: i32, %arg1: i32, %arg2: i32) -> (i32, i32) {
    %c0_i32 = arith.constant 0 : i32
    return %arg0, %arg2 : i32, i32
  }
  func.func @transform_1(%arg0: i32, %arg1: i32, %arg2: i32) -> (i32, i32) {
    %c0_i32 = arith.constant 0 : i32
    return %arg2, %arg1 : i32, i32
  }
  func.func @transform_2(%arg0: i32, %arg1: i32, %arg2: i32) -> (i32, i32) {
    %c0_i32 = arith.constant 0 : i32
    %c0_i32_0 = arith.constant 0 : i32
    return %c0_i32, %arg1 : i32, i32
  }
  func.func @transform_3(%arg0: i32, %arg1: i32, %arg2: i32) -> (i32, i32) {
    %c0_i32 = arith.constant 0 : i32
    return %arg0, %arg1 : i32, i32
  }
}

module attributes {stable_mosaic.version = 11 : i64} {
  func.func @_bn_partial_stats_kernel(%arg0: i32, %arg1: memref<8x32xbf16, #tpu.memory_space<vmem>>, %arg2: memref<1x1x32xf32, #tpu.memory_space<vmem>>, %arg3: memref<1x1x32xf32, #tpu.memory_space<vmem>>) attributes {dimension_semantics = [#tpu.dimension_semantics<parallel>], iteration_bounds = array<i64: 1>, scalar_prefetch = 0 : i64, scratch_operands = 0 : i64, tpu.core_type = #tpu.core_type<tc>, window_params = [{transform_indices = @transform_0, window_bounds = array<i64: 8, 32>}, {transform_indices = @transform_1, window_bounds = array<i64: 1, 1, 32>}, {transform_indices = @transform_2, window_bounds = array<i64: 1, 1, 32>}]} {
    %c0 = arith.constant 0 : index
    %c0_0 = arith.constant 0 : index
    %0 = vector.load %arg1[%c0, %c0_0] : memref<8x32xbf16, #tpu.memory_space<vmem>>, vector<8x32xbf16>
    %1 = arith.extf %0 : vector<8x32xbf16> to vector<8x32xf32>
    %cst = arith.constant dense<0.000000e+00> : vector<32xf32>
    %2 = vector.multi_reduction <add>, %1, %cst [0] : vector<8x32xf32> to vector<32xf32>
    %3 = vector.shape_cast %2 : vector<32xf32> to vector<1x32xf32>
    %4 = vector.shape_cast %3 : vector<1x32xf32> to vector<1x1x32xf32>
    %c0_1 = arith.constant 0 : index
    %c0_2 = arith.constant 0 : index
    %c0_3 = arith.constant 0 : index
    %5 = vector.load %arg2[%c0_1, %c0_2, %c0_3] : memref<1x1x32xf32, #tpu.memory_space<vmem>>, vector<1x1x32xf32>
    tpu.vector_store %arg2[%c0_1, %c0_2, %c0_3], %4 {strides = array<i32>} : memref<1x1x32xf32, #tpu.memory_space<vmem>>, vector<1x1x32xf32>,
    %6 = arith.mulf %1, %1 : vector<8x32xf32>
    %cst_4 = arith.constant dense<0.000000e+00> : vector<32xf32>
    %7 = vector.multi_reduction <add>, %6, %cst_4 [0] : vector<8x32xf32> to vector<32xf32>
    %8 = vector.shape_cast %7 : vector<32xf32> to vector<1x32xf32>
    %9 = vector.shape_cast %8 : vector<1x32xf32> to vector<1x1x32xf32>
    %c0_5 = arith.constant 0 : index
    %c0_6 = arith.constant 0 : index
    %c0_7 = arith.constant 0 : index
    %10 = vector.load %arg3[%c0_5, %c0_6, %c0_7] : memref<1x1x32xf32, #tpu.memory_space<vmem>>, vector<1x1x32xf32>
    tpu.vector_store %arg3[%c0_5, %c0_6, %c0_7], %9 {strides = array<i32>} : memref<1x1x32xf32, #tpu.memory_space<vmem>>, vector<1x1x32xf32>,
    return
  }
  func.func @transform_0(%arg0: i32) -> (i32, i32) {
    %c0_i32 = arith.constant 0 : i32
    %c0_i32_0 = arith.constant 0 : i32
    return %arg0, %c0_i32 : i32, i32
  }
  func.func @transform_1(%arg0: i32) -> (i32, i32, i32) {
    %c0_i32 = arith.constant 0 : i32
    %c0_i32_0 = arith.constant 0 : i32
    %c0_i32_1 = arith.constant 0 : i32
    return %arg0, %c0_i32, %c0_i32_0 : i32, i32, i32
  }
  func.func @transform_2(%arg0: i32) -> (i32, i32, i32) {
    %c0_i32 = arith.constant 0 : i32
    %c0_i32_0 = arith.constant 0 : i32
    %c0_i32_1 = arith.constant 0 : i32
    return %arg0, %c0_i32, %c0_i32_0 : i32, i32, i32
  }
}

module attributes {stable_mosaic.version = 11 : i64} {
  func.func @_bn_apply_kernel(%arg0: i32, %arg1: memref<8x32xbf16, #tpu.memory_space<vmem>>, %arg2: memref<1x32xf32, #tpu.memory_space<vmem>>, %arg3: memref<1x32xf32, #tpu.memory_space<vmem>>, %arg4: memref<8x32xbf16, #tpu.memory_space<vmem>>) attributes {dimension_semantics = [#tpu.dimension_semantics<parallel>], iteration_bounds = array<i64: 1>, scalar_prefetch = 0 : i64, scratch_operands = 0 : i64, tpu.core_type = #tpu.core_type<tc>, window_params = [{transform_indices = @transform_0, window_bounds = array<i64: 8, 32>}, {pipeline_mode = #tpu.pipeline_mode<synchronous>, transform_indices = @transform_1, window_bounds = array<i64: 1, 32>}, {pipeline_mode = #tpu.pipeline_mode<synchronous>, transform_indices = @transform_2, window_bounds = array<i64: 1, 32>}, {transform_indices = @transform_3, window_bounds = array<i64: 8, 32>}]} {
    %c0 = arith.constant 0 : index
    %c0_0 = arith.constant 0 : index
    %0 = vector.load %arg1[%c0, %c0_0] : memref<8x32xbf16, #tpu.memory_space<vmem>>, vector<8x32xbf16>
    %1 = arith.extf %0 : vector<8x32xbf16> to vector<8x32xf32>
    %c0_1 = arith.constant 0 : index
    %c0_2 = arith.constant 0 : index
    %2 = vector.load %arg2[%c0_1, %c0_2] : memref<1x32xf32, #tpu.memory_space<vmem>>, vector<1x32xf32>
    %3 = vector.broadcast %2 : vector<1x32xf32> to vector<8x32xf32>
    %4 = arith.mulf %1, %3 : vector<8x32xf32>
    %c0_3 = arith.constant 0 : index
    %c0_4 = arith.constant 0 : index
    %5 = vector.load %arg3[%c0_3, %c0_4] : memref<1x32xf32, #tpu.memory_space<vmem>>, vector<1x32xf32>
    %6 = vector.broadcast %5 : vector<1x32xf32> to vector<8x32xf32>
    %7 = arith.addf %4, %6 : vector<8x32xf32>
    %cst = arith.constant 0.000000e+00 : f32
    %8 = vector.broadcast %cst : f32 to vector<8x32xf32>
    %9 = arith.cmpf ogt, %7, %8 : vector<8x32xf32>
    %cst_5 = arith.constant 2.000000e-01 : f32
    %10 = vector.broadcast %cst_5 : f32 to vector<8x32xf32>
    %11 = arith.mulf %10, %7 : vector<8x32xf32>
    %12 = arith.select %9, %7, %11 : vector<8x32xi1>, vector<8x32xf32>
    %13 = arith.truncf %12 : vector<8x32xf32> to vector<8x32xbf16>
    %c0_6 = arith.constant 0 : index
    %c0_7 = arith.constant 0 : index
    %14 = vector.load %arg4[%c0_6, %c0_7] : memref<8x32xbf16, #tpu.memory_space<vmem>>, vector<8x32xbf16>
    tpu.vector_store %arg4[%c0_6, %c0_7], %13 {strides = array<i32>} : memref<8x32xbf16, #tpu.memory_space<vmem>>, vector<8x32xbf16>,
    return
  }
  func.func @transform_0(%arg0: i32) -> (i32, i32) {
    %c0_i32 = arith.constant 0 : i32
    %c0_i32_0 = arith.constant 0 : i32
    return %arg0, %c0_i32 : i32, i32
  }
  func.func @transform_1(%arg0: i32) -> (i32, i32) {
    %c0_i32 = arith.constant 0 : i32
    %c0_i32_0 = arith.constant 0 : i32
    %c0_i32_1 = arith.constant 0 : i32
    return %c0_i32, %c0_i32_0 : i32, i32
  }
  func.func @transform_2(%arg0: i32) -> (i32, i32) {
    %c0_i32 = arith.constant 0 : i32
    %c0_i32_0 = arith.constant 0 : i32
    %c0_i32_1 = arith.constant 0 : i32
    return %c0_i32, %c0_i32_0 : i32, i32
  }
  func.func @transform_3(%arg0: i32) -> (i32, i32) {
    %c0_i32 = arith.constant 0 : i32
    %c0_i32_0 = arith.constant 0 : i32
    return %arg0, %c0_i32 : i32, i32
  }
}

module attributes {stable_mosaic.version = 11 : i64} {
  func.func @_matmul_bias_act_kernel(%arg0: i32, %arg1: i32, %arg2: i32, %arg3: memref<24x512xbf16, #tpu.memory_space<vmem>>, %arg4: memref<512x128xbf16, #tpu.memory_space<vmem>>, %arg5: memref<1x128xf32, #tpu.memory_space<vmem>>, %arg6: memref<24x128xbf16, #tpu.memory_space<vmem>>, %arg7: memref<24x128xf32, #tpu.memory_space<vmem>>) attributes {dimension_semantics = [#tpu.dimension_semantics<parallel>, #tpu.dimension_semantics<parallel>, #tpu.dimension_semantics<arbitrary>], iteration_bounds = array<i64: 1, 1, 1>, scalar_prefetch = 0 : i64, scratch_operands = 1 : i64, tpu.core_type = #tpu.core_type<tc>, window_params = [{transform_indices = @transform_0, window_bounds = array<i64: 24, 512>}, {transform_indices = @transform_1, window_bounds = array<i64: 512, 128>}, {transform_indices = @transform_2, window_bounds = array<i64: 1, 128>}, {transform_indices = @transform_3, window_bounds = array<i64: 24, 128>}]} {
    %c0_i32 = arith.constant 0 : i32
    %0 = arith.cmpi eq, %arg2, %c0_i32 : i32
    %1 = arith.extui %0 : i1 to i32
    %c0_i32_0 = arith.constant 0 : i32
    %2 = arith.cmpi ne, %1, %c0_i32_0 : i32
    scf.if %2 {
      %cst_10 = arith.constant 0.000000e+00 : f32
      %12 = vector.broadcast %cst_10 : f32 to vector<24x128xf32>
      %c0_11 = arith.constant 0 : index
      %c0_12 = arith.constant 0 : index
      %13 = vector.load %arg7[%c0_11, %c0_12] : memref<24x128xf32, #tpu.memory_space<vmem>>, vector<24x128xf32>
      tpu.vector_store %arg7[%c0_11, %c0_12], %12 {strides = array<i32>} : memref<24x128xf32, #tpu.memory_space<vmem>>, vector<24x128xf32>,
    } else {
    }
    %c0 = arith.constant 0 : index
    %c0_1 = arith.constant 0 : index
    %3 = vector.load %arg7[%c0, %c0_1] : memref<24x128xf32, #tpu.memory_space<vmem>>, vector<24x128xf32>
    %c0_2 = arith.constant 0 : index
    %c0_3 = arith.constant 0 : index
    %4 = vector.load %arg3[%c0_2, %c0_3] : memref<24x512xbf16, #tpu.memory_space<vmem>>, vector<24x512xbf16>
    %c0_4 = arith.constant 0 : index
    %c0_5 = arith.constant 0 : index
    %5 = vector.load %arg4[%c0_4, %c0_5] : memref<512x128xbf16, #tpu.memory_space<vmem>>, vector<512x128xbf16>
    %cst = arith.constant dense<0.000000e+00> : vector<24x128xf32>
    %6 = tpu.matmul %4, %5, %cst {dimension_numbers = #tpu.dot_dimension_numbers<[1], [0], [0], [1], [0, 0, 1, 1], [], []>} : vector<24x512xbf16>, vector<512x128xbf16>, vector<24x128xf32> -> vector<24x128xf32>
    %7 = arith.addf %3, %6 : vector<24x128xf32>
    %c0_6 = arith.constant 0 : index
    %c0_7 = arith.constant 0 : index
    %8 = vector.load %arg7[%c0_6, %c0_7] : memref<24x128xf32, #tpu.memory_space<vmem>>, vector<24x128xf32>
    tpu.vector_store %arg7[%c0_6, %c0_7], %7 {strides = array<i32>} : memref<24x128xf32, #tpu.memory_space<vmem>>, vector<24x128xf32>,
    %c0_i32_8 = arith.constant 0 : i32
    %9 = arith.cmpi eq, %arg2, %c0_i32_8 : i32
    %10 = arith.extui %9 : i1 to i32
    %c0_i32_9 = arith.constant 0 : i32
    %11 = arith.cmpi ne, %10, %c0_i32_9 : i32
    scf.if %11 {
      %c0_10 = arith.constant 0 : index
      %c0_11 = arith.constant 0 : index
      %12 = vector.load %arg7[%c0_10, %c0_11] : memref<24x128xf32, #tpu.memory_space<vmem>>, vector<24x128xf32>
      %c0_12 = arith.constant 0 : index
      %c0_13 = arith.constant 0 : index
      %13 = vector.load %arg5[%c0_12, %c0_13] : memref<1x128xf32, #tpu.memory_space<vmem>>, vector<1x128xf32>
      %14 = vector.broadcast %13 : vector<1x128xf32> to vector<24x128xf32>
      %15 = arith.addf %12, %14 : vector<24x128xf32>
      %16 = arith.truncf %15 : vector<24x128xf32> to vector<24x128xbf16>
      %c0_14 = arith.constant 0 : index
      %c0_15 = arith.constant 0 : index
      %17 = vector.load %arg6[%c0_14, %c0_15] : memref<24x128xbf16, #tpu.memory_space<vmem>>, vector<24x128xbf16>
      tpu.vector_store %arg6[%c0_14, %c0_15], %16 {strides = array<i32>} : memref<24x128xbf16, #tpu.memory_space<vmem>>, vector<24x128xbf16>,
    } else {
    }
    return
  }
  func.func @transform_0(%arg0: i32, %arg1: i32, %arg2: i32) -> (i32, i32) {
    %c0_i32 = arith.constant 0 : i32
    return %arg0, %arg2 : i32, i32
  }
  func.func @transform_1(%arg0: i32, %arg1: i32, %arg2: i32) -> (i32, i32) {
    %c0_i32 = arith.constant 0 : i32
    return %arg2, %arg1 : i32, i32
  }
  func.func @transform_2(%arg0: i32, %arg1: i32, %arg2: i32) -> (i32, i32) {
    %c0_i32 = arith.constant 0 : i32
    %c0_i32_0 = arith.constant 0 : i32
    return %c0_i32, %arg1 : i32, i32
  }
  func.func @transform_3(%arg0: i32, %arg1: i32, %arg2: i32) -> (i32, i32) {
    %c0_i32 = arith.constant 0 : i32
    return %arg0, %arg1 : i32, i32
  }
}

module attributes {stable_mosaic.version = 11 : i64} {
  func.func @_bn_partial_stats_kernel(%arg0: i32, %arg1: memref<24x64xbf16, #tpu.memory_space<vmem>>, %arg2: memref<1x1x64xf32, #tpu.memory_space<vmem>>, %arg3: memref<1x1x64xf32, #tpu.memory_space<vmem>>) attributes {dimension_semantics = [#tpu.dimension_semantics<parallel>], iteration_bounds = array<i64: 1>, scalar_prefetch = 0 : i64, scratch_operands = 0 : i64, tpu.core_type = #tpu.core_type<tc>, window_params = [{transform_indices = @transform_0, window_bounds = array<i64: 24, 64>}, {transform_indices = @transform_1, window_bounds = array<i64: 1, 1, 64>}, {transform_indices = @transform_2, window_bounds = array<i64: 1, 1, 64>}]} {
    %c0 = arith.constant 0 : index
    %c0_0 = arith.constant 0 : index
    %0 = vector.load %arg1[%c0, %c0_0] : memref<24x64xbf16, #tpu.memory_space<vmem>>, vector<24x64xbf16>
    %1 = arith.extf %0 : vector<24x64xbf16> to vector<24x64xf32>
    %cst = arith.constant dense<0.000000e+00> : vector<64xf32>
    %2 = vector.multi_reduction <add>, %1, %cst [0] : vector<24x64xf32> to vector<64xf32>
    %3 = vector.shape_cast %2 : vector<64xf32> to vector<1x64xf32>
    %4 = vector.shape_cast %3 : vector<1x64xf32> to vector<1x1x64xf32>
    %c0_1 = arith.constant 0 : index
    %c0_2 = arith.constant 0 : index
    %c0_3 = arith.constant 0 : index
    %5 = vector.load %arg2[%c0_1, %c0_2, %c0_3] : memref<1x1x64xf32, #tpu.memory_space<vmem>>, vector<1x1x64xf32>
    tpu.vector_store %arg2[%c0_1, %c0_2, %c0_3], %4 {strides = array<i32>} : memref<1x1x64xf32, #tpu.memory_space<vmem>>, vector<1x1x64xf32>,
    %6 = arith.mulf %1, %1 : vector<24x64xf32>
    %cst_4 = arith.constant dense<0.000000e+00> : vector<64xf32>
    %7 = vector.multi_reduction <add>, %6, %cst_4 [0] : vector<24x64xf32> to vector<64xf32>
    %8 = vector.shape_cast %7 : vector<64xf32> to vector<1x64xf32>
    %9 = vector.shape_cast %8 : vector<1x64xf32> to vector<1x1x64xf32>
    %c0_5 = arith.constant 0 : index
    %c0_6 = arith.constant 0 : index
    %c0_7 = arith.constant 0 : index
    %10 = vector.load %arg3[%c0_5, %c0_6, %c0_7] : memref<1x1x64xf32, #tpu.memory_space<vmem>>, vector<1x1x64xf32>
    tpu.vector_store %arg3[%c0_5, %c0_6, %c0_7], %9 {strides = array<i32>} : memref<1x1x64xf32, #tpu.memory_space<vmem>>, vector<1x1x64xf32>,
    return
  }
  func.func @transform_0(%arg0: i32) -> (i32, i32) {
    %c0_i32 = arith.constant 0 : i32
    %c0_i32_0 = arith.constant 0 : i32
    return %arg0, %c0_i32 : i32, i32
  }
  func.func @transform_1(%arg0: i32) -> (i32, i32, i32) {
    %c0_i32 = arith.constant 0 : i32
    %c0_i32_0 = arith.constant 0 : i32
    %c0_i32_1 = arith.constant 0 : i32
    return %arg0, %c0_i32, %c0_i32_0 : i32, i32, i32
  }
  func.func @transform_2(%arg0: i32) -> (i32, i32, i32) {
    %c0_i32 = arith.constant 0 : i32
    %c0_i32_0 = arith.constant 0 : i32
    %c0_i32_1 = arith.constant 0 : i32
    return %arg0, %c0_i32, %c0_i32_0 : i32, i32, i32
  }
}

module attributes {stable_mosaic.version = 11 : i64} {
  func.func @_bn_apply_kernel(%arg0: i32, %arg1: memref<24x64xbf16, #tpu.memory_space<vmem>>, %arg2: memref<1x64xf32, #tpu.memory_space<vmem>>, %arg3: memref<1x64xf32, #tpu.memory_space<vmem>>, %arg4: memref<24x64xbf16, #tpu.memory_space<vmem>>) attributes {dimension_semantics = [#tpu.dimension_semantics<parallel>], iteration_bounds = array<i64: 1>, scalar_prefetch = 0 : i64, scratch_operands = 0 : i64, tpu.core_type = #tpu.core_type<tc>, window_params = [{transform_indices = @transform_0, window_bounds = array<i64: 24, 64>}, {pipeline_mode = #tpu.pipeline_mode<synchronous>, transform_indices = @transform_1, window_bounds = array<i64: 1, 64>}, {pipeline_mode = #tpu.pipeline_mode<synchronous>, transform_indices = @transform_2, window_bounds = array<i64: 1, 64>}, {transform_indices = @transform_3, window_bounds = array<i64: 24, 64>}]} {
    %c0 = arith.constant 0 : index
    %c0_0 = arith.constant 0 : index
    %0 = vector.load %arg1[%c0, %c0_0] : memref<24x64xbf16, #tpu.memory_space<vmem>>, vector<24x64xbf16>
    %1 = arith.extf %0 : vector<24x64xbf16> to vector<24x64xf32>
    %c0_1 = arith.constant 0 : index
    %c0_2 = arith.constant 0 : index
    %2 = vector.load %arg2[%c0_1, %c0_2] : memref<1x64xf32, #tpu.memory_space<vmem>>, vector<1x64xf32>
    %3 = vector.broadcast %2 : vector<1x64xf32> to vector<24x64xf32>
    %4 = arith.mulf %1, %3 : vector<24x64xf32>
    %c0_3 = arith.constant 0 : index
    %c0_4 = arith.constant 0 : index
    %5 = vector.load %arg3[%c0_3, %c0_4] : memref<1x64xf32, #tpu.memory_space<vmem>>, vector<1x64xf32>
    %6 = vector.broadcast %5 : vector<1x64xf32> to vector<24x64xf32>
    %7 = arith.addf %4, %6 : vector<24x64xf32>
    %cst = arith.constant 0.000000e+00 : f32
    %8 = vector.broadcast %cst : f32 to vector<24x64xf32>
    %9 = arith.cmpf ogt, %7, %8 : vector<24x64xf32>
    %cst_5 = arith.constant 2.000000e-01 : f32
    %10 = vector.broadcast %cst_5 : f32 to vector<24x64xf32>
    %11 = arith.mulf %10, %7 : vector<24x64xf32>
    %12 = arith.select %9, %7, %11 : vector<24x64xi1>, vector<24x64xf32>
    %13 = arith.truncf %12 : vector<24x64xf32> to vector<24x64xbf16>
    %c0_6 = arith.constant 0 : index
    %c0_7 = arith.constant 0 : index
    %14 = vector.load %arg4[%c0_6, %c0_7] : memref<24x64xbf16, #tpu.memory_space<vmem>>, vector<24x64xbf16>
    tpu.vector_store %arg4[%c0_6, %c0_7], %13 {strides = array<i32>} : memref<24x64xbf16, #tpu.memory_space<vmem>>, vector<24x64xbf16>,
    return
  }
  func.func @transform_0(%arg0: i32) -> (i32, i32) {
    %c0_i32 = arith.constant 0 : i32
    %c0_i32_0 = arith.constant 0 : i32
    return %arg0, %c0_i32 : i32, i32
  }
  func.func @transform_1(%arg0: i32) -> (i32, i32) {
    %c0_i32 = arith.constant 0 : i32
    %c0_i32_0 = arith.constant 0 : i32
    %c0_i32_1 = arith.constant 0 : i32
    return %c0_i32, %c0_i32_0 : i32, i32
  }
  func.func @transform_2(%arg0: i32) -> (i32, i32) {
    %c0_i32 = arith.constant 0 : i32
    %c0_i32_0 = arith.constant 0 : i32
    %c0_i32_1 = arith.constant 0 : i32
    return %c0_i32, %c0_i32_0 : i32, i32
  }
  func.func @transform_3(%arg0: i32) -> (i32, i32) {
    %c0_i32 = arith.constant 0 : i32
    %c0_i32_0 = arith.constant 0 : i32
    return %arg0, %c0_i32 : i32, i32
  }
}

module attributes {stable_mosaic.version = 11 : i64} {
  func.func @_matmul_bias_act_kernel(%arg0: i32, %arg1: i32, %arg2: i32, %arg3: memref<32x1024xbf16, #tpu.memory_space<vmem>>, %arg4: memref<1024x128xbf16, #tpu.memory_space<vmem>>, %arg5: memref<1x128xf32, #tpu.memory_space<vmem>>, %arg6: memref<32x128xf32, #tpu.memory_space<vmem>>, %arg7: memref<32x128xf32, #tpu.memory_space<vmem>>) attributes {dimension_semantics = [#tpu.dimension_semantics<parallel>, #tpu.dimension_semantics<parallel>, #tpu.dimension_semantics<arbitrary>], iteration_bounds = array<i64: 1, 1, 1>, scalar_prefetch = 0 : i64, scratch_operands = 1 : i64, tpu.core_type = #tpu.core_type<tc>, window_params = [{transform_indices = @transform_0, window_bounds = array<i64: 32, 1024>}, {transform_indices = @transform_1, window_bounds = array<i64: 1024, 128>}, {transform_indices = @transform_2, window_bounds = array<i64: 1, 128>}, {transform_indices = @transform_3, window_bounds = array<i64: 32, 128>}]} {
    %c0_i32 = arith.constant 0 : i32
    %0 = arith.cmpi eq, %arg2, %c0_i32 : i32
    %1 = arith.extui %0 : i1 to i32
    %c0_i32_0 = arith.constant 0 : i32
    %2 = arith.cmpi ne, %1, %c0_i32_0 : i32
    scf.if %2 {
      %cst_10 = arith.constant 0.000000e+00 : f32
      %12 = vector.broadcast %cst_10 : f32 to vector<32x128xf32>
      %c0_11 = arith.constant 0 : index
      %c0_12 = arith.constant 0 : index
      %13 = vector.load %arg7[%c0_11, %c0_12] : memref<32x128xf32, #tpu.memory_space<vmem>>, vector<32x128xf32>
      tpu.vector_store %arg7[%c0_11, %c0_12], %12 {strides = array<i32>} : memref<32x128xf32, #tpu.memory_space<vmem>>, vector<32x128xf32>,
    } else {
    }
    %c0 = arith.constant 0 : index
    %c0_1 = arith.constant 0 : index
    %3 = vector.load %arg7[%c0, %c0_1] : memref<32x128xf32, #tpu.memory_space<vmem>>, vector<32x128xf32>
    %c0_2 = arith.constant 0 : index
    %c0_3 = arith.constant 0 : index
    %4 = vector.load %arg3[%c0_2, %c0_3] : memref<32x1024xbf16, #tpu.memory_space<vmem>>, vector<32x1024xbf16>
    %c0_4 = arith.constant 0 : index
    %c0_5 = arith.constant 0 : index
    %5 = vector.load %arg4[%c0_4, %c0_5] : memref<1024x128xbf16, #tpu.memory_space<vmem>>, vector<1024x128xbf16>
    %cst = arith.constant dense<0.000000e+00> : vector<32x128xf32>
    %6 = tpu.matmul %4, %5, %cst {dimension_numbers = #tpu.dot_dimension_numbers<[1], [0], [0], [1], [0, 0, 1, 1], [], []>} : vector<32x1024xbf16>, vector<1024x128xbf16>, vector<32x128xf32> -> vector<32x128xf32>
    %7 = arith.addf %3, %6 : vector<32x128xf32>
    %c0_6 = arith.constant 0 : index
    %c0_7 = arith.constant 0 : index
    %8 = vector.load %arg7[%c0_6, %c0_7] : memref<32x128xf32, #tpu.memory_space<vmem>>, vector<32x128xf32>
    tpu.vector_store %arg7[%c0_6, %c0_7], %7 {strides = array<i32>} : memref<32x128xf32, #tpu.memory_space<vmem>>, vector<32x128xf32>,
    %c0_i32_8 = arith.constant 0 : i32
    %9 = arith.cmpi eq, %arg2, %c0_i32_8 : i32
    %10 = arith.extui %9 : i1 to i32
    %c0_i32_9 = arith.constant 0 : i32
    %11 = arith.cmpi ne, %10, %c0_i32_9 : i32
    scf.if %11 {
      %c0_10 = arith.constant 0 : index
      %c0_11 = arith.constant 0 : index
      %12 = vector.load %arg7[%c0_10, %c0_11] : memref<32x128xf32, #tpu.memory_space<vmem>>, vector<32x128xf32>
      %c0_12 = arith.constant 0 : index
      %c0_13 = arith.constant 0 : index
      %13 = vector.load %arg5[%c0_12, %c0_13] : memref<1x128xf32, #tpu.memory_space<vmem>>, vector<1x128xf32>
      %14 = vector.broadcast %13 : vector<1x128xf32> to vector<32x128xf32>
      %15 = arith.addf %12, %14 : vector<32x128xf32>
      %c0_14 = arith.constant 0 : index
      %c0_15 = arith.constant 0 : index
      %16 = vector.load %arg6[%c0_14, %c0_15] : memref<32x128xf32, #tpu.memory_space<vmem>>, vector<32x128xf32>
      tpu.vector_store %arg6[%c0_14, %c0_15], %15 {strides = array<i32>} : memref<32x128xf32, #tpu.memory_space<vmem>>, vector<32x128xf32>,
    } else {
    }
    return
  }
  func.func @transform_0(%arg0: i32, %arg1: i32, %arg2: i32) -> (i32, i32) {
    %c0_i32 = arith.constant 0 : i32
    return %arg0, %arg2 : i32, i32
  }
  func.func @transform_1(%arg0: i32, %arg1: i32, %arg2: i32) -> (i32, i32) {
    %c0_i32 = arith.constant 0 : i32
    return %arg2, %arg1 : i32, i32
  }
  func.func @transform_2(%arg0: i32, %arg1: i32, %arg2: i32) -> (i32, i32) {
    %c0_i32 = arith.constant 0 : i32
    %c0_i32_0 = arith.constant 0 : i32
    return %c0_i32, %arg1 : i32, i32
  }
  func.func @transform_3(%arg0: i32, %arg1: i32, %arg2: i32) -> (i32, i32) {
    %c0_i32 = arith.constant 0 : i32
    return %arg0, %arg1 : i32, i32
  }
}

module attributes {stable_mosaic.version = 11 : i64} {
  func.func @_avgpool_kernel(%arg0: i32, %arg1: i32, %arg2: memref<1x24x4xf32, #tpu.memory_space<vmem>>, %arg3: memref<24x1xf32, #tpu.memory_space<vmem>>, %arg4: memref<1x4xf32, #tpu.memory_space<vmem>>, %arg5: memref<24x4xf32, #tpu.memory_space<vmem>>) attributes {dimension_semantics = [#tpu.dimension_semantics<parallel>, #tpu.dimension_semantics<arbitrary>], iteration_bounds = array<i64: 1, 9>, scalar_prefetch = 0 : i64, scratch_operands = 0 : i64, tpu.core_type = #tpu.core_type<tc>, window_params = [{transform_indices = @transform_0, window_bounds = array<i64: 1, 24, 4>}, {transform_indices = @transform_1, window_bounds = array<i64: 24, 1>}, {pipeline_mode = #tpu.pipeline_mode<synchronous>, transform_indices = @transform_2, window_bounds = array<i64: 1, 4>}, {transform_indices = @transform_3, window_bounds = array<i64: 24, 4>}]} {
    %c0_i32 = arith.constant 0 : i32
    %0 = arith.cmpi eq, %arg1, %c0_i32 : i32
    %1 = arith.extui %0 : i1 to i32
    %c0_i32_0 = arith.constant 0 : i32
    %2 = arith.cmpi ne, %1, %c0_i32_0 : i32
    scf.if %2 {
      %cst = arith.constant 0.000000e+00 : f32
      %11 = vector.broadcast %cst : f32 to vector<24x4xf32>
      %c0_8 = arith.constant 0 : index
      %c0_9 = arith.constant 0 : index
      %12 = vector.load %arg5[%c0_8, %c0_9] : memref<24x4xf32, #tpu.memory_space<vmem>>, vector<24x4xf32>
      tpu.vector_store %arg5[%c0_8, %c0_9], %11 {strides = array<i32>} : memref<24x4xf32, #tpu.memory_space<vmem>>, vector<24x4xf32>,
    } else {
    }
    %c0 = arith.constant 0 : index
    %c0_1 = arith.constant 0 : index
    %3 = vector.load %arg5[%c0, %c0_1] : memref<24x4xf32, #tpu.memory_space<vmem>>, vector<24x4xf32>
    %c0_2 = arith.constant 0 : index
    %c0_3 = arith.constant 0 : index
    %c0_4 = arith.constant 0 : index
    %4 = vector.load %arg2[%c0_2, %c0_3, %c0_4] : memref<1x24x4xf32, #tpu.memory_space<vmem>>, vector<1x24x4xf32>
    %5 = vector.shape_cast %4 : vector<1x24x4xf32> to vector<24x4xf32>
    %6 = arith.addf %3, %5 : vector<24x4xf32>
    %c0_5 = arith.constant 0 : index
    %c0_6 = arith.constant 0 : index
    %7 = vector.load %arg5[%c0_5, %c0_6] : memref<24x4xf32, #tpu.memory_space<vmem>>, vector<24x4xf32>
    tpu.vector_store %arg5[%c0_5, %c0_6], %6 {strides = array<i32>} : memref<24x4xf32, #tpu.memory_space<vmem>>, vector<24x4xf32>,
    %c8_i32 = arith.constant 8 : i32
    %8 = arith.cmpi eq, %arg1, %c8_i32 : i32
    %9 = arith.extui %8 : i1 to i32
    %c0_i32_7 = arith.constant 0 : i32
    %10 = arith.cmpi ne, %9, %c0_i32_7 : i32
    scf.if %10 {
      %c0_8 = arith.constant 0 : index
      %c0_9 = arith.constant 0 : index
      %11 = vector.load %arg5[%c0_8, %c0_9] : memref<24x4xf32, #tpu.memory_space<vmem>>, vector<24x4xf32>
      %c0_10 = arith.constant 0 : index
      %c0_11 = arith.constant 0 : index
      %12 = vector.load %arg3[%c0_10, %c0_11] : memref<24x1xf32, #tpu.memory_space<vmem>>, vector<24x1xf32>
      %c0_12 = arith.constant 0 : index
      %c0_13 = arith.constant 0 : index
      %13 = vector.load %arg4[%c0_12, %c0_13] : memref<1x4xf32, #tpu.memory_space<vmem>>, vector<1x4xf32>
      %14 = vector.broadcast %12 : vector<24x1xf32> to vector<24x4xf32>
      %15 = vector.broadcast %13 : vector<1x4xf32> to vector<24x4xf32>
      %16 = arith.mulf %14, %15 : vector<24x4xf32>
      %17 = arith.mulf %11, %16 : vector<24x4xf32>
      %c0_14 = arith.constant 0 : index
      %c0_15 = arith.constant 0 : index
      %18 = vector.load %arg5[%c0_14, %c0_15] : memref<24x4xf32, #tpu.memory_space<vmem>>, vector<24x4xf32>
      tpu.vector_store %arg5[%c0_14, %c0_15], %17 {strides = array<i32>} : memref<24x4xf32, #tpu.memory_space<vmem>>, vector<24x4xf32>,
    } else {
    }
    return
  }
  func.func @transform_0(%arg0: i32, %arg1: i32) -> (i32, i32, i32) {
    %c0_i32 = arith.constant 0 : i32
    %c0_i32_0 = arith.constant 0 : i32
    return %arg1, %arg0, %c0_i32 : i32, i32, i32
  }
  func.func @transform_1(%arg0: i32, %arg1: i32) -> (i32, i32) {
    %c0_i32 = arith.constant 0 : i32
    %c0_i32_0 = arith.constant 0 : i32
    return %arg0, %c0_i32 : i32, i32
  }
  func.func @transform_2(%arg0: i32, %arg1: i32) -> (i32, i32) {
    %c0_i32 = arith.constant 0 : i32
    %c0_i32_0 = arith.constant 0 : i32
    %c0_i32_1 = arith.constant 0 : i32
    return %c0_i32, %c0_i32_0 : i32, i32
  }
  func.func @transform_3(%arg0: i32, %arg1: i32) -> (i32, i32) {
    %c0_i32 = arith.constant 0 : i32
    %c0_i32_0 = arith.constant 0 : i32
    return %arg0, %c0_i32 : i32, i32
  }
}

module attributes {stable_mosaic.version = 11 : i64} {
  func.func @_matmul_bias_act_kernel(%arg0: i32, %arg1: i32, %arg2: i32, %arg3: memref<24x128xbf16, #tpu.memory_space<vmem>>, %arg4: memref<128x128xbf16, #tpu.memory_space<vmem>>, %arg5: memref<1x128xf32, #tpu.memory_space<vmem>>, %arg6: memref<24x128xbf16, #tpu.memory_space<vmem>>, %arg7: memref<24x128xf32, #tpu.memory_space<vmem>>) attributes {dimension_semantics = [#tpu.dimension_semantics<parallel>, #tpu.dimension_semantics<parallel>, #tpu.dimension_semantics<arbitrary>], iteration_bounds = array<i64: 1, 1, 1>, scalar_prefetch = 0 : i64, scratch_operands = 1 : i64, tpu.core_type = #tpu.core_type<tc>, window_params = [{transform_indices = @transform_0, window_bounds = array<i64: 24, 128>}, {transform_indices = @transform_1, window_bounds = array<i64: 128, 128>}, {transform_indices = @transform_2, window_bounds = array<i64: 1, 128>}, {transform_indices = @transform_3, window_bounds = array<i64: 24, 128>}]} {
    %c0_i32 = arith.constant 0 : i32
    %0 = arith.cmpi eq, %arg2, %c0_i32 : i32
    %1 = arith.extui %0 : i1 to i32
    %c0_i32_0 = arith.constant 0 : i32
    %2 = arith.cmpi ne, %1, %c0_i32_0 : i32
    scf.if %2 {
      %cst_10 = arith.constant 0.000000e+00 : f32
      %12 = vector.broadcast %cst_10 : f32 to vector<24x128xf32>
      %c0_11 = arith.constant 0 : index
      %c0_12 = arith.constant 0 : index
      %13 = vector.load %arg7[%c0_11, %c0_12] : memref<24x128xf32, #tpu.memory_space<vmem>>, vector<24x128xf32>
      tpu.vector_store %arg7[%c0_11, %c0_12], %12 {strides = array<i32>} : memref<24x128xf32, #tpu.memory_space<vmem>>, vector<24x128xf32>,
    } else {
    }
    %c0 = arith.constant 0 : index
    %c0_1 = arith.constant 0 : index
    %3 = vector.load %arg7[%c0, %c0_1] : memref<24x128xf32, #tpu.memory_space<vmem>>, vector<24x128xf32>
    %c0_2 = arith.constant 0 : index
    %c0_3 = arith.constant 0 : index
    %4 = vector.load %arg3[%c0_2, %c0_3] : memref<24x128xbf16, #tpu.memory_space<vmem>>, vector<24x128xbf16>
    %c0_4 = arith.constant 0 : index
    %c0_5 = arith.constant 0 : index
    %5 = vector.load %arg4[%c0_4, %c0_5] : memref<128x128xbf16, #tpu.memory_space<vmem>>, vector<128x128xbf16>
    %cst = arith.constant dense<0.000000e+00> : vector<24x128xf32>
    %6 = tpu.matmul %4, %5, %cst {dimension_numbers = #tpu.dot_dimension_numbers<[1], [0], [0], [1], [0, 0, 1, 1], [], []>} : vector<24x128xbf16>, vector<128x128xbf16>, vector<24x128xf32> -> vector<24x128xf32>
    %7 = arith.addf %3, %6 : vector<24x128xf32>
    %c0_6 = arith.constant 0 : index
    %c0_7 = arith.constant 0 : index
    %8 = vector.load %arg7[%c0_6, %c0_7] : memref<24x128xf32, #tpu.memory_space<vmem>>, vector<24x128xf32>
    tpu.vector_store %arg7[%c0_6, %c0_7], %7 {strides = array<i32>} : memref<24x128xf32, #tpu.memory_space<vmem>>, vector<24x128xf32>,
    %c0_i32_8 = arith.constant 0 : i32
    %9 = arith.cmpi eq, %arg2, %c0_i32_8 : i32
    %10 = arith.extui %9 : i1 to i32
    %c0_i32_9 = arith.constant 0 : i32
    %11 = arith.cmpi ne, %10, %c0_i32_9 : i32
    scf.if %11 {
      %c0_10 = arith.constant 0 : index
      %c0_11 = arith.constant 0 : index
      %12 = vector.load %arg7[%c0_10, %c0_11] : memref<24x128xf32, #tpu.memory_space<vmem>>, vector<24x128xf32>
      %c0_12 = arith.constant 0 : index
      %c0_13 = arith.constant 0 : index
      %13 = vector.load %arg5[%c0_12, %c0_13] : memref<1x128xf32, #tpu.memory_space<vmem>>, vector<1x128xf32>
      %14 = vector.broadcast %13 : vector<1x128xf32> to vector<24x128xf32>
      %15 = arith.addf %12, %14 : vector<24x128xf32>
      %cst_14 = arith.constant 0.000000e+00 : f32
      %16 = vector.broadcast %cst_14 : f32 to vector<24x128xf32>
      %17 = arith.cmpf ogt, %15, %16 : vector<24x128xf32>
      %cst_15 = arith.constant 2.000000e-01 : f32
      %18 = vector.broadcast %cst_15 : f32 to vector<24x128xf32>
      %19 = arith.mulf %18, %15 : vector<24x128xf32>
      %20 = arith.select %17, %15, %19 : vector<24x128xi1>, vector<24x128xf32>
      %21 = arith.truncf %20 : vector<24x128xf32> to vector<24x128xbf16>
      %c0_16 = arith.constant 0 : index
      %c0_17 = arith.constant 0 : index
      %22 = vector.load %arg6[%c0_16, %c0_17] : memref<24x128xbf16, #tpu.memory_space<vmem>>, vector<24x128xbf16>
      tpu.vector_store %arg6[%c0_16, %c0_17], %21 {strides = array<i32>} : memref<24x128xbf16, #tpu.memory_space<vmem>>, vector<24x128xbf16>,
    } else {
    }
    return
  }
  func.func @transform_0(%arg0: i32, %arg1: i32, %arg2: i32) -> (i32, i32) {
    %c0_i32 = arith.constant 0 : i32
    return %arg0, %arg2 : i32, i32
  }
  func.func @transform_1(%arg0: i32, %arg1: i32, %arg2: i32) -> (i32, i32) {
    %c0_i32 = arith.constant 0 : i32
    return %arg2, %arg1 : i32, i32
  }
  func.func @transform_2(%arg0: i32, %arg1: i32, %arg2: i32) -> (i32, i32) {
    %c0_i32 = arith.constant 0 : i32
    %c0_i32_0 = arith.constant 0 : i32
    return %c0_i32, %arg1 : i32, i32
  }
  func.func @transform_3(%arg0: i32, %arg1: i32, %arg2: i32) -> (i32, i32) {
    %c0_i32 = arith.constant 0 : i32
    return %arg0, %arg1 : i32, i32
  }
}

module attributes {stable_mosaic.version = 11 : i64} {
  func.func @_matmul_bias_act_kernel(%arg0: i32, %arg1: i32, %arg2: i32, %arg3: memref<8x128xbf16, #tpu.memory_space<vmem>>, %arg4: memref<128x128xbf16, #tpu.memory_space<vmem>>, %arg5: memref<1x128xf32, #tpu.memory_space<vmem>>, %arg6: memref<8x128xbf16, #tpu.memory_space<vmem>>, %arg7: memref<8x128xf32, #tpu.memory_space<vmem>>) attributes {dimension_semantics = [#tpu.dimension_semantics<parallel>, #tpu.dimension_semantics<parallel>, #tpu.dimension_semantics<arbitrary>], iteration_bounds = array<i64: 1, 1, 1>, scalar_prefetch = 0 : i64, scratch_operands = 1 : i64, tpu.core_type = #tpu.core_type<tc>, window_params = [{transform_indices = @transform_0, window_bounds = array<i64: 8, 128>}, {transform_indices = @transform_1, window_bounds = array<i64: 128, 128>}, {transform_indices = @transform_2, window_bounds = array<i64: 1, 128>}, {transform_indices = @transform_3, window_bounds = array<i64: 8, 128>}]} {
    %c0_i32 = arith.constant 0 : i32
    %0 = arith.cmpi eq, %arg2, %c0_i32 : i32
    %1 = arith.extui %0 : i1 to i32
    %c0_i32_0 = arith.constant 0 : i32
    %2 = arith.cmpi ne, %1, %c0_i32_0 : i32
    scf.if %2 {
      %cst_10 = arith.constant 0.000000e+00 : f32
      %12 = vector.broadcast %cst_10 : f32 to vector<8x128xf32>
      %c0_11 = arith.constant 0 : index
      %c0_12 = arith.constant 0 : index
      %13 = vector.load %arg7[%c0_11, %c0_12] : memref<8x128xf32, #tpu.memory_space<vmem>>, vector<8x128xf32>
      tpu.vector_store %arg7[%c0_11, %c0_12], %12 {strides = array<i32>} : memref<8x128xf32, #tpu.memory_space<vmem>>, vector<8x128xf32>,
    } else {
    }
    %c0 = arith.constant 0 : index
    %c0_1 = arith.constant 0 : index
    %3 = vector.load %arg7[%c0, %c0_1] : memref<8x128xf32, #tpu.memory_space<vmem>>, vector<8x128xf32>
    %c0_2 = arith.constant 0 : index
    %c0_3 = arith.constant 0 : index
    %4 = vector.load %arg3[%c0_2, %c0_3] : memref<8x128xbf16, #tpu.memory_space<vmem>>, vector<8x128xbf16>
    %c0_4 = arith.constant 0 : index
    %c0_5 = arith.constant 0 : index
    %5 = vector.load %arg4[%c0_4, %c0_5] : memref<128x128xbf16, #tpu.memory_space<vmem>>, vector<128x128xbf16>
    %cst = arith.constant dense<0.000000e+00> : vector<8x128xf32>
    %6 = tpu.matmul %4, %5, %cst {dimension_numbers = #tpu.dot_dimension_numbers<[1], [0], [0], [1], [0, 0, 1, 1], [], []>} : vector<8x128xbf16>, vector<128x128xbf16>, vector<8x128xf32> -> vector<8x128xf32>
    %7 = arith.addf %3, %6 : vector<8x128xf32>
    %c0_6 = arith.constant 0 : index
    %c0_7 = arith.constant 0 : index
    %8 = vector.load %arg7[%c0_6, %c0_7] : memref<8x128xf32, #tpu.memory_space<vmem>>, vector<8x128xf32>
    tpu.vector_store %arg7[%c0_6, %c0_7], %7 {strides = array<i32>} : memref<8x128xf32, #tpu.memory_space<vmem>>, vector<8x128xf32>,
    %c0_i32_8 = arith.constant 0 : i32
    %9 = arith.cmpi eq, %arg2, %c0_i32_8 : i32
    %10 = arith.extui %9 : i1 to i32
    %c0_i32_9 = arith.constant 0 : i32
    %11 = arith.cmpi ne, %10, %c0_i32_9 : i32
    scf.if %11 {
      %c0_10 = arith.constant 0 : index
      %c0_11 = arith.constant 0 : index
      %12 = vector.load %arg7[%c0_10, %c0_11] : memref<8x128xf32, #tpu.memory_space<vmem>>, vector<8x128xf32>
      %c0_12 = arith.constant 0 : index
      %c0_13 = arith.constant 0 : index
      %13 = vector.load %arg5[%c0_12, %c0_13] : memref<1x128xf32, #tpu.memory_space<vmem>>, vector<1x128xf32>
      %14 = vector.broadcast %13 : vector<1x128xf32> to vector<8x128xf32>
      %15 = arith.addf %12, %14 : vector<8x128xf32>
      %16 = arith.truncf %15 : vector<8x128xf32> to vector<8x128xbf16>
      %c0_14 = arith.constant 0 : index
      %c0_15 = arith.constant 0 : index
      %17 = vector.load %arg6[%c0_14, %c0_15] : memref<8x128xbf16, #tpu.memory_space<vmem>>, vector<8x128xbf16>
      tpu.vector_store %arg6[%c0_14, %c0_15], %16 {strides = array<i32>} : memref<8x128xbf16, #tpu.memory_space<vmem>>, vector<8x128xbf16>,
    } else {
    }
    return
  }
  func.func @transform_0(%arg0: i32, %arg1: i32, %arg2: i32) -> (i32, i32) {
    %c0_i32 = arith.constant 0 : i32
    return %arg0, %arg2 : i32, i32
  }
  func.func @transform_1(%arg0: i32, %arg1: i32, %arg2: i32) -> (i32, i32) {
    %c0_i32 = arith.constant 0 : i32
    return %arg2, %arg1 : i32, i32
  }
  func.func @transform_2(%arg0: i32, %arg1: i32, %arg2: i32) -> (i32, i32) {
    %c0_i32 = arith.constant 0 : i32
    %c0_i32_0 = arith.constant 0 : i32
    return %c0_i32, %arg1 : i32, i32
  }
  func.func @transform_3(%arg0: i32, %arg1: i32, %arg2: i32) -> (i32, i32) {
    %c0_i32 = arith.constant 0 : i32
    return %arg0, %arg1 : i32, i32
  }
}

module attributes {stable_mosaic.version = 11 : i64} {
  func.func @_bn_partial_stats_kernel(%arg0: i32, %arg1: memref<8x16xbf16, #tpu.memory_space<vmem>>, %arg2: memref<1x1x16xf32, #tpu.memory_space<vmem>>, %arg3: memref<1x1x16xf32, #tpu.memory_space<vmem>>) attributes {dimension_semantics = [#tpu.dimension_semantics<parallel>], iteration_bounds = array<i64: 1>, scalar_prefetch = 0 : i64, scratch_operands = 0 : i64, tpu.core_type = #tpu.core_type<tc>, window_params = [{transform_indices = @transform_0, window_bounds = array<i64: 8, 16>}, {transform_indices = @transform_1, window_bounds = array<i64: 1, 1, 16>}, {transform_indices = @transform_2, window_bounds = array<i64: 1, 1, 16>}]} {
    %c0 = arith.constant 0 : index
    %c0_0 = arith.constant 0 : index
    %0 = vector.load %arg1[%c0, %c0_0] : memref<8x16xbf16, #tpu.memory_space<vmem>>, vector<8x16xbf16>
    %1 = arith.extf %0 : vector<8x16xbf16> to vector<8x16xf32>
    %cst = arith.constant dense<0.000000e+00> : vector<16xf32>
    %2 = vector.multi_reduction <add>, %1, %cst [0] : vector<8x16xf32> to vector<16xf32>
    %3 = vector.shape_cast %2 : vector<16xf32> to vector<1x16xf32>
    %4 = vector.shape_cast %3 : vector<1x16xf32> to vector<1x1x16xf32>
    %c0_1 = arith.constant 0 : index
    %c0_2 = arith.constant 0 : index
    %c0_3 = arith.constant 0 : index
    %5 = vector.load %arg2[%c0_1, %c0_2, %c0_3] : memref<1x1x16xf32, #tpu.memory_space<vmem>>, vector<1x1x16xf32>
    tpu.vector_store %arg2[%c0_1, %c0_2, %c0_3], %4 {strides = array<i32>} : memref<1x1x16xf32, #tpu.memory_space<vmem>>, vector<1x1x16xf32>,
    %6 = arith.mulf %1, %1 : vector<8x16xf32>
    %cst_4 = arith.constant dense<0.000000e+00> : vector<16xf32>
    %7 = vector.multi_reduction <add>, %6, %cst_4 [0] : vector<8x16xf32> to vector<16xf32>
    %8 = vector.shape_cast %7 : vector<16xf32> to vector<1x16xf32>
    %9 = vector.shape_cast %8 : vector<1x16xf32> to vector<1x1x16xf32>
    %c0_5 = arith.constant 0 : index
    %c0_6 = arith.constant 0 : index
    %c0_7 = arith.constant 0 : index
    %10 = vector.load %arg3[%c0_5, %c0_6, %c0_7] : memref<1x1x16xf32, #tpu.memory_space<vmem>>, vector<1x1x16xf32>
    tpu.vector_store %arg3[%c0_5, %c0_6, %c0_7], %9 {strides = array<i32>} : memref<1x1x16xf32, #tpu.memory_space<vmem>>, vector<1x1x16xf32>,
    return
  }
  func.func @transform_0(%arg0: i32) -> (i32, i32) {
    %c0_i32 = arith.constant 0 : i32
    %c0_i32_0 = arith.constant 0 : i32
    return %arg0, %c0_i32 : i32, i32
  }
  func.func @transform_1(%arg0: i32) -> (i32, i32, i32) {
    %c0_i32 = arith.constant 0 : i32
    %c0_i32_0 = arith.constant 0 : i32
    %c0_i32_1 = arith.constant 0 : i32
    return %arg0, %c0_i32, %c0_i32_0 : i32, i32, i32
  }
  func.func @transform_2(%arg0: i32) -> (i32, i32, i32) {
    %c0_i32 = arith.constant 0 : i32
    %c0_i32_0 = arith.constant 0 : i32
    %c0_i32_1 = arith.constant 0 : i32
    return %arg0, %c0_i32, %c0_i32_0 : i32, i32, i32
  }
}

module attributes {stable_mosaic.version = 11 : i64} {
  func.func @_bn_apply_kernel(%arg0: i32, %arg1: memref<8x16xbf16, #tpu.memory_space<vmem>>, %arg2: memref<1x16xf32, #tpu.memory_space<vmem>>, %arg3: memref<1x16xf32, #tpu.memory_space<vmem>>, %arg4: memref<8x16xbf16, #tpu.memory_space<vmem>>) attributes {dimension_semantics = [#tpu.dimension_semantics<parallel>], iteration_bounds = array<i64: 1>, scalar_prefetch = 0 : i64, scratch_operands = 0 : i64, tpu.core_type = #tpu.core_type<tc>, window_params = [{transform_indices = @transform_0, window_bounds = array<i64: 8, 16>}, {pipeline_mode = #tpu.pipeline_mode<synchronous>, transform_indices = @transform_1, window_bounds = array<i64: 1, 16>}, {pipeline_mode = #tpu.pipeline_mode<synchronous>, transform_indices = @transform_2, window_bounds = array<i64: 1, 16>}, {transform_indices = @transform_3, window_bounds = array<i64: 8, 16>}]} {
    %c0 = arith.constant 0 : index
    %c0_0 = arith.constant 0 : index
    %0 = vector.load %arg1[%c0, %c0_0] : memref<8x16xbf16, #tpu.memory_space<vmem>>, vector<8x16xbf16>
    %1 = arith.extf %0 : vector<8x16xbf16> to vector<8x16xf32>
    %c0_1 = arith.constant 0 : index
    %c0_2 = arith.constant 0 : index
    %2 = vector.load %arg2[%c0_1, %c0_2] : memref<1x16xf32, #tpu.memory_space<vmem>>, vector<1x16xf32>
    %3 = vector.broadcast %2 : vector<1x16xf32> to vector<8x16xf32>
    %4 = arith.mulf %1, %3 : vector<8x16xf32>
    %c0_3 = arith.constant 0 : index
    %c0_4 = arith.constant 0 : index
    %5 = vector.load %arg3[%c0_3, %c0_4] : memref<1x16xf32, #tpu.memory_space<vmem>>, vector<1x16xf32>
    %6 = vector.broadcast %5 : vector<1x16xf32> to vector<8x16xf32>
    %7 = arith.addf %4, %6 : vector<8x16xf32>
    %cst = arith.constant 0.000000e+00 : f32
    %8 = vector.broadcast %cst : f32 to vector<8x16xf32>
    %9 = arith.cmpf ogt, %7, %8 : vector<8x16xf32>
    %cst_5 = arith.constant 2.000000e-01 : f32
    %10 = vector.broadcast %cst_5 : f32 to vector<8x16xf32>
    %11 = arith.mulf %10, %7 : vector<8x16xf32>
    %12 = arith.select %9, %7, %11 : vector<8x16xi1>, vector<8x16xf32>
    %13 = arith.truncf %12 : vector<8x16xf32> to vector<8x16xbf16>
    %c0_6 = arith.constant 0 : index
    %c0_7 = arith.constant 0 : index
    %14 = vector.load %arg4[%c0_6, %c0_7] : memref<8x16xbf16, #tpu.memory_space<vmem>>, vector<8x16xbf16>
    tpu.vector_store %arg4[%c0_6, %c0_7], %13 {strides = array<i32>} : memref<8x16xbf16, #tpu.memory_space<vmem>>, vector<8x16xbf16>,
    return
  }
  func.func @transform_0(%arg0: i32) -> (i32, i32) {
    %c0_i32 = arith.constant 0 : i32
    %c0_i32_0 = arith.constant 0 : i32
    return %arg0, %c0_i32 : i32, i32
  }
  func.func @transform_1(%arg0: i32) -> (i32, i32) {
    %c0_i32 = arith.constant 0 : i32
    %c0_i32_0 = arith.constant 0 : i32
    %c0_i32_1 = arith.constant 0 : i32
    return %c0_i32, %c0_i32_0 : i32, i32
  }
  func.func @transform_2(%arg0: i32) -> (i32, i32) {
    %c0_i32 = arith.constant 0 : i32
    %c0_i32_0 = arith.constant 0 : i32
    %c0_i32_1 = arith.constant 0 : i32
    return %c0_i32, %c0_i32_0 : i32, i32
  }
  func.func @transform_3(%arg0: i32) -> (i32, i32) {
    %c0_i32 = arith.constant 0 : i32
    %c0_i32_0 = arith.constant 0 : i32
    return %arg0, %c0_i32 : i32, i32
  }
}

</mosaic_0001>

<llo_original>
// kernel: multiscale_discriminator_forward.35
$region0: #{multiscale_discriminator_forward.35}
  #allocation0 [shape = 'u32[]', space=smem, size = 0x4, offset = 0x4, fixed_abs, tag = 'smem constant byte address 0x4 - core index']
  #allocation1 [shape = 'u32[144,128]{1,0:T(1,128)}', space=vmem, size = 0x12000, scoped, tag = 'internal scratch']
  #allocation2 [shape = 'f32[168,128]{1,0:T(8,128)}', space=vmem, size = 0x15000, scoped, tag = 'scratch operand']
  %s0 = inlined_call_operand.vmem [shape: bf16[168,128], index: 0, kind: input, shape index: {}]
  %s1 = inlined_call_operand.vmem [shape: bf16[128,128], index: 1, kind: input, shape index: {}]
  %s2 = inlined_call_operand.vmem [shape: f32[1,128], index: 2, kind: input, shape index: {}]
  %s3 = inlined_call_operand.vmem [shape: bf16[168,128], index: 3, kind: output, shape index: {}]
  %s4 = sld [smem:[#allocation0]]
  $region30: #{multiscale_discriminator_forward.35} parent=0
    _
  %s6 = ssub.s32 1, %s4
  %s7 = scalar_select 0, %s6, %s4
  // Predicated region
  $region2: #{multiscale_discriminator_forward.35} parent=0 // pred_check
    _
  $region3: #{multiscale_discriminator_forward.35} parent=0 // pred_check_branch
    %9 = sbr.rel (0) target = $region5
  $region4: #{multiscale_discriminator_forward.35} parent=0 // pred_region
    _
  $region5: #{multiscale_discriminator_forward.35} parent=0 // pred_fallthru
    _
  // Predicated region
  $region6: #{multiscale_discriminator_forward.35} parent=0 // pred_check
    _
  $region7: #{multiscale_discriminator_forward.35} parent=0 // pred_check_branch
    %11 = sbr.rel (0) target = $region9
  $region8: #{multiscale_discriminator_forward.35} parent=0 // pred_region
    _
  $region9: #{multiscale_discriminator_forward.35} parent=0 // pred_fallthru
    _
  // Predicated region
  $region10: #{multiscale_discriminator_forward.35} parent=0 // pred_check
    _
  $region11: #{multiscale_discriminator_forward.35} parent=0 // pred_check_branch
    %13 = sbr.rel (0) target = $region13
  $region12: #{multiscale_discriminator_forward.35} parent=0 // pred_region
    _
  $region13: #{multiscale_discriminator_forward.35} parent=0 // pred_fallthru
    _
  %p15 = scmp.eq.s32.totalorder 0, 0
  // Predicated region
  $region14: #{multiscale_discriminator_forward.35} parent=0 // pred_check
    %p16 = pneg %p15
  $region15: #{multiscale_discriminator_forward.35} parent=0 // pred_check_branch
    %18 = sbr.rel (%p16) target = $region17
  $region16: #{multiscale_discriminator_forward.35} parent=0 // pred_region
    %19 = vst [vmem:[#allocation2] sm:$0xff] 0.0
    %20 = vst [vmem:[#allocation2 + $0x8] sm:$0xff] 0.0
    %21 = vst [vmem:[#allocation2 + $0x10] sm:$0xff] 0.0
    %22 = vst [vmem:[#allocation2 + $0x18] sm:$0xff] 0.0
    %23 = vst [vmem:[#allocation2 + $0x20] sm:$0xff] 0.0
    %24 = vst [vmem:[#allocation2 + $0x28] sm:$0xff] 0.0
    %25 = vst [vmem:[#allocation2 + $0x30] sm:$0xff] 0.0
    %26 = vst [vmem:[#allocation2 + $0x38] sm:$0xff] 0.0
    %27 = vst [vmem:[#allocation2 + $0x40] sm:$0xff] 0.0
    %28 = vst [vmem:[#allocation2 + $0x48] sm:$0xff] 0.0
    %29 = vst [vmem:[#allocation2 + $0x50] sm:$0xff] 0.0
    %30 = vst [vmem:[#allocation2 + $0x58] sm:$0xff] 0.0
    %31 = vst [vmem:[#allocation2 + $0x60] sm:$0xff] 0.0
    %32 = vst [vmem:[#allocation2 + $0x68] sm:$0xff] 0.0
    %33 = vst [vmem:[#allocation2 + $0x70] sm:$0xff] 0.0
    %34 = vst [vmem:[#allocation2 + $0x78] sm:$0xff] 0.0
    %35 = vst [vmem:[#allocation2 + $0x80] sm:$0xff] 0.0
    %36 = vst [vmem:[#allocation2 + $0x88] sm:$0xff] 0.0
    %37 = vst [vmem:[#allocation2 + $0x90] sm:$0xff] 0.0
    %38 = vst [vmem:[#allocation2 + $0x98] sm:$0xff] 0.0
    %39 = vst [vmem:[#allocation2 + $0xa0] sm:$0xff] 0.0
  $region17: #{multiscale_discriminator_forward.35} parent=0 // pred_fallthru
    _
  %v40 = vld [vmem:[#allocation2] sm:$0xff]
  %v41 = vld [vmem:[#allocation2 + $0x8] sm:$0xff]
  %v42 = vld [vmem:[#allocation2 + $0x10] sm:$0xff]
  %v43 = vld [vmem:[#allocation2 + $0x18] sm:$0xff]
  %v44 = vld [vmem:[#allocation2 + $0x20] sm:$0xff]
  %v45 = vld [vmem:[#allocation2 + $0x28] sm:$0xff]
  %v46 = vld [vmem:[#allocation2 + $0x30] sm:$0xff]
  %v47 = vld [vmem:[#allocation2 + $0x38] sm:$0xff]
  %v48 = vld [vmem:[#allocation2 + $0x40] sm:$0xff]
  %v49 = vld [vmem:[#allocation2 + $0x48] sm:$0xff]
  %v50 = vld [vmem:[#allocation2 + $0x50] sm:$0xff]
  %v51 = vld [vmem:[#allocation2 + $0x58] sm:$0xff]
  %v52 = vld [vmem:[#allocation2 + $0x60] sm:$0xff]
  %v53 = vld [vmem:[#allocation2 + $0x68] sm:$0xff]
  %v54 = vld [vmem:[#allocation2 + $0x70] sm:$0xff]
  %v55 = vld [vmem:[#allocation2 + $0x78] sm:$0xff]
  %v56 = vld [vmem:[#allocation2 + $0x80] sm:$0xff]
  %v57 = vld [vmem:[#allocation2 + $0x88] sm:$0xff]
  %v58 = vld [vmem:[#allocation2 + $0x90] sm:$0xff]
  %v59 = vld [vmem:[#allocation2 + $0x98] sm:$0xff]
  %v60 = vld [vmem:[#allocation2 + $0xa0] sm:$0xff]
  %v61 = vld [vmem:[%s0] sm:$0xf]
  %v62 = vld [vmem:[%s0 + $0x4] sm:$0xf]
  %v63 = vld [vmem:[%s0 + $0x8] sm:$0xf]
  %v64 = vld [vmem:[%s0 + $0xc] sm:$0xf]
  %v65 = vld [vmem:[%s0 + $0x10] sm:$0xf]
  %v66 = vld [vmem:[%s0 + $0x14] sm:$0xf]
  %v67 = vld [vmem:[%s0 + $0x18] sm:$0xf]
  %v68 = vld [vmem:[%s0 + $0x1c] sm:$0xf]
  %v69 = vld [vmem:[%s0 + $0x20] sm:$0xf]
  %v70 = vld [vmem:[%s0 + $0x24] sm:$0xf]
  %v71 = vld [vmem:[%s0 + $0x28] sm:$0xf]
  %v72 = vld [vmem:[%s0 + $0x2c] sm:$0xf]
  %v73 = vld [vmem:[%s0 + $0x30] sm:$0xf]
  %v74 = vld [vmem:[%s0 + $0x34] sm:$0xf]
  %v75 = vld [vmem:[%s0 + $0x38] sm:$0xf]
  %v76 = vld [vmem:[%s0 + $0x3c] sm:$0xf]
  %v77 = vld [vmem:[%s0 + $0x40] sm:$0xf]
  %v78 = vld [vmem:[%s0 + $0x44] sm:$0xf]
  %v79 = vld [vmem:[%s0 + $0x48] sm:$0xf]
  %v80 = vld [vmem:[%s0 + $0x4c] sm:$0xf]
  %v81 = vld [vmem:[%s0 + $0x50] sm:$0xf]
  %v82 = vld [vmem:[%s1] sm:$0xf]
  %v83 = vld [vmem:[%s1 + $0x4] sm:$0xf]
  %v84 = vld [vmem:[%s1 + $0x8] sm:$0xf]
  %v85 = vld [vmem:[%s1 + $0xc] sm:$0xf]
  %v86 = vld [vmem:[%s1 + $0x10] sm:$0xf]
  %v87 = vld [vmem:[%s1 + $0x14] sm:$0xf]
  %v88 = vld [vmem:[%s1 + $0x18] sm:$0xf]
  %v89 = vld [vmem:[%s1 + $0x1c] sm:$0xf]
  %v90 = vld [vmem:[%s1 + $0x20] sm:$0xf]
  %v91 = vld [vmem:[%s1 + $0x24] sm:$0xf]
  %v92 = vld [vmem:[%s1 + $0x28] sm:$0xf]
  %v93 = vld [vmem:[%s1 + $0x2c] sm:$0xf]
  %v94 = vld [vmem:[%s1 + $0x30] sm:$0xf]
  %v95 = vld [vmem:[%s1 + $0x34] sm:$0xf]
  %v96 = vld [vmem:[%s1 + $0x38] sm:$0xf]
  %v97 = vld [vmem:[%s1 + $0x3c] sm:$0xf]
  %v119 = vunpack.c.l.b16 %v61
  %v120 = vunpack.c.l.b16 %v62
  %v121 = vunpack.c.l.b16 %v63
  %v122 = vunpack.c.l.b16 %v64
  %v123 = vunpack.c.l.b16 %v65
  %v124 = vunpack.c.l.b16 %v66
  %v125 = vunpack.c.l.b16 %v67
  %v126 = vunpack.c.l.b16 %v68
  %v127 = vunpack.c.l.b16 %v69
  %v128 = vunpack.c.l.b16 %v70
  %v129 = vunpack.c.l.b16 %v71
  %v130 = vunpack.c.l.b16 %v72
  %v131 = vunpack.c.l.b16 %v73
  %v132 = vunpack.c.l.b16 %v74
  %v133 = vunpack.c.l.b16 %v75
  %v134 = vunpack.c.l.b16 %v76
  %v135 = vunpack.c.l.b16 %v77
  %v136 = vunpack.c.l.b16 %v78
  %v137 = vunpack.c.l.b16 %v79
  %v138 = vunpack.c.l.b16 %v80
  %v139 = vunpack.c.l.b16 %v81
  %v140 = vpack.c.b16 %v120, %v119
  %v141 = vpack.c.b16 %v122, %v121
  %v142 = vpack.c.b16 %v124, %v123
  %v143 = vpack.c.b16 %v126, %v125
  %v144 = vpack.c.b16 %v128, %v127
  %v145 = vpack.c.b16 %v130, %v129
  %v146 = vpack.c.b16 %v132, %v131
  %v147 = vpack.c.b16 %v134, %v133
  %v148 = vpack.c.b16 %v136, %v135
  %v149 = vpack.c.b16 %v138, %v137
  %v150 = vpack.c.b16 %v139, %v139
  %v178 = vunpack.c.l.b16 %v82
  %v179 = vunpack.c.l.b16 %v83
  %v180 = vunpack.c.l.b16 %v84
  %v181 = vunpack.c.l.b16 %v85
  %v182 = vunpack.c.l.b16 %v86
  %v183 = vunpack.c.l.b16 %v87
  %v184 = vunpack.c.l.b16 %v88
  %v185 = vunpack.c.l.b16 %v89
  %v186 = vunpack.c.l.b16 %v90
  %v187 = vunpack.c.l.b16 %v91
  %v188 = vunpack.c.l.b16 %v92
  %v189 = vunpack.c.l.b16 %v93
  %v190 = vunpack.c.l.b16 %v94
  %v191 = vunpack.c.l.b16 %v95
  %v192 = vunpack.c.l.b16 %v96
  %v193 = vunpack.c.l.b16 %v97
  %v194 = vpack.c.b16 %v179, %v178
  %v195 = vpack.c.b16 %v181, %v180
  %v196 = vpack.c.b16 %v183, %v182
  %v197 = vpack.c.b16 %v185, %v184
  %v198 = vpack.c.b16 %v187, %v186
  %v199 = vpack.c.b16 %v189, %v188
  %v200 = vpack.c.b16 %v191, %v190
  %v201 = vpack.c.b16 %v193, %v192
  %210 = vmatprep.subr.bf16.mxu0 0
  %211 = vmatpush1.bf16.msra.mxu0 %v194
  %212 = vmatprep.subr.bf16.mxu0 0
  %213 = vmatpush1.bf16.msra.mxu0 %v195
  %214 = vmatprep.subr.bf16.mxu0 0
  %215 = vmatpush1.bf16.msra.mxu0 %v196
  %216 = vmatprep.subr.bf16.mxu0 0
  %217 = vmatpush1.bf16.msra.mxu0 %v197
  %218 = vmatprep.subr.bf16.mxu0 0
  %219 = vmatpush1.bf16.msra.mxu0 %v198
  %220 = vmatprep.subr.bf16.mxu0 0
  %221 = vmatpush1.bf16.msra.mxu0 %v199
  %222 = vmatprep.subr.bf16.mxu0 0
  %223 = vmatpush1.bf16.msra.mxu0 %v200
  %224 = vmatprep.subr.bf16.mxu0 0
  %225 = vmatpush1.bf16.msra.mxu0 %v201
  %226 = vmatprep.subr.bf16.mxu0 0
  %227 = vmatpush1.bf16.msra.mxu0 0
  %228 = vmatprep.subr.bf16.mxu0 0
  %229 = vmatpush1.bf16.msra.mxu0 0
  %230 = vmatprep.subr.bf16.mxu0 0
  %231 = vmatpush1.bf16.msra.mxu0 0
  %232 = vmatprep.subr.bf16.mxu0 0
  %233 = vmatpush1.bf16.msra.mxu0 0
  %234 = vmatprep.subr.bf16.mxu0 0
  %235 = vmatpush1.bf16.msra.mxu0 0
  %236 = vmatprep.subr.bf16.mxu0 0
  %237 = vmatpush1.bf16.msra.mxu0 0
  %238 = vmatprep.subr.bf16.mxu0 0
  %239 = vmatpush1.bf16.msra.mxu0 0
  %240 = vmatprep.subr.bf16.mxu0 0
  %241 = vmatpush1.bf16.msra.mxu0 0
  %242 = vmatprep.mubr.bf16.mxu0 0
  %243 = vmatmul.mubr.bf16.gmra.mrb[0].mxu0 %v140
  %v244 = vpop.f32.mrb[0].mxu0
  %v245 = vadd.f32 0.0, %v244
  %v246 = vpop.f32.mrb[0].mxu0
  %v247 = vpop.f32.mrb[0].mxu0
  %v248 = vadd.f32 0.0, %v247
  %v249 = vpop.f32.mrb[0].mxu0
  %250 = vmatprep.mubr.bf16.mxu0 0
  %251 = vmatmul.mubr.bf16.gmra.mrb[0].mxu0 %v141
  %v252 = vpop.f32.mrb[0].mxu0
  %v253 = vadd.f32 0.0, %v252
  %v254 = vpop.f32.mrb[0].mxu0
  %v255 = vpop.f32.mrb[0].mxu0
  %v256 = vadd.f32 0.0, %v255
  %v257 = vpop.f32.mrb[0].mxu0
  %258 = vmatprep.mubr.bf16.mxu0 0
  %259 = vmatmul.mubr.bf16.gmra.mrb[0].mxu0 %v142
  %v260 = vpop.f32.mrb[0].mxu0
  %v261 = vadd.f32 0.0, %v260
  %v262 = vpop.f32.mrb[0].mxu0
  %v263 = vpop.f32.mrb[0].mxu0
  %v264 = vadd.f32 0.0, %v263
  %v265 = vpop.f32.mrb[0].mxu0
  %266 = vmatprep.mubr.bf16.mxu0 0
  %267 = vmatmul.mubr.bf16.gmra.mrb[0].mxu0 %v143
  %v268 = vpop.f32.mrb[0].mxu0
  %v269 = vadd.f32 0.0, %v268
  %v270 = vpop.f32.mrb[0].mxu0
  %v271 = vpop.f32.mrb[0].mxu0
  %v272 = vadd.f32 0.0, %v271
  %v273 = vpop.f32.mrb[0].mxu0
  %274 = vmatprep.mubr.bf16.mxu0 0
  %275 = vmatmul.mubr.bf16.gmra.mrb[0].mxu0 %v144
  %v276 = vpop.f32.mrb[0].mxu0
  %v277 = vadd.f32 0.0, %v276
  %v278 = vpop.f32.mrb[0].mxu0
  %v279 = vpop.f32.mrb[0].mxu0
  %v280 = vadd.f32 0.0, %v279
  %v281 = vpop.f32.mrb[0].mxu0
  %282 = vmatprep.mubr.bf16.mxu0 0
  %283 = vmatmul.mubr.bf16.gmra.mrb[0].mxu0 %v145
  %v284 = vpop.f32.mrb[0].mxu0
  %v285 = vadd.f32 0.0, %v284
  %v286 = vpop.f32.mrb[0].mxu0
  %v287 = vpop.f32.mrb[0].mxu0
  %v288 = vadd.f32 0.0, %v287
  %v289 = vpop.f32.mrb[0].mxu0
  %290 = vmatprep.mubr.bf16.mxu0 0
  %291 = vmatmul.mubr.bf16.gmra.mrb[0].mxu0 %v146
  %v292 = vpop.f32.mrb[0].mxu0
  %v293 = vadd.f32 0.0, %v292
  %v294 = vpop.f32.mrb[0].mxu0
  %v295 = vpop.f32.mrb[0].mxu0
  %v296 = vadd.f32 0.0, %v295
  %v297 = vpop.f32.mrb[0].mxu0
  %298 = vmatprep.mubr.bf16.mxu0 0
  %299 = vmatmul.mubr.bf16.gmra.mrb[0].mxu0 %v147
  %v300 = vpop.f32.mrb[0].mxu0
  %v301 = vadd.f32 0.0, %v300
  %v302 = vpop.f32.mrb[0].mxu0
  %v303 = vpop.f32.mrb[0].mxu0
  %v304 = vadd.f32 0.0, %v303
  %v305 = vpop.f32.mrb[0].mxu0
  %306 = vmatprep.mubr.bf16.mxu0 0
  %307 = vmatmul.mubr.bf16.gmra.mrb[0].mxu0 %v148
  %v308 = vpop.f32.mrb[0].mxu0
  %v309 = vadd.f32 0.0, %v308
  %v310 = vpop.f32.mrb[0].mxu0
  %v311 = vpop.f32.mrb[0].mxu0
  %v312 = vadd.f32 0.0, %v311
  %v313 = vpop.f32.mrb[0].mxu0
  %314 = vmatprep.mubr.bf16.mxu0 0
  %315 = vmatmul.mubr.bf16.gmra.mrb[0].mxu0 %v149
  %v316 = vpop.f32.mrb[0].mxu0
  %v317 = vadd.f32 0.0, %v316
  %v318 = vpop.f32.mrb[0].mxu0
  %v319 = vpop.f32.mrb[0].mxu0
  %v320 = vadd.f32 0.0, %v319
  %v321 = vpop.f32.mrb[0].mxu0
  %322 = vmatprep.mubr.bf16.mxu0 0
  %323 = vmatmul.mubr.bf16.gmra.mrb[0].mxu0 %v150
  %v324 = vpop.f32.mrb[0].mxu0
  %v325 = vadd.f32 0.0, %v324
  %v326 = vpop.f32.mrb[0].mxu0
  %v327 = vpop.f32.mrb[0].mxu0
  %v328 = vpop.f32.mrb[0].mxu0
  %329 = vdwg.mxu0
  %v330 = vadd.f32 %v40, %v245
  %v331 = vadd.f32 %v41, %v248
  %v332 = vadd.f32 %v42, %v253
  %v333 = vadd.f32 %v43, %v256
  %v334 = vadd.f32 %v44, %v261
  %v335 = vadd.f32 %v45, %v264
  %v336 = vadd.f32 %v46, %v269
  %v337 = vadd.f32 %v47, %v272
  %v338 = vadd.f32 %v48, %v277
  %v339 = vadd.f32 %v49, %v280
  %v340 = vadd.f32 %v50, %v285
  %v341 = vadd.f32 %v51, %v288
  %v342 = vadd.f32 %v52, %v293
  %v343 = vadd.f32 %v53, %v296
  %v344 = vadd.f32 %v54, %v301
  %v345 = vadd.f32 %v55, %v304
  %v346 = vadd.f32 %v56, %v309
  %v347 = vadd.f32 %v57, %v312
  %v348 = vadd.f32 %v58, %v317
  %v349 = vadd.f32 %v59, %v320
  %v350 = vadd.f32 %v60, %v325
  %351 = vst [vmem:[#allocation2] sm:$0xff] %v330
  %352 = vst [vmem:[#allocation2 + $0x8] sm:$0xff] %v331
  %353 = vst [vmem:[#allocation2 + $0x10] sm:$0xff] %v332
  %354 = vst [vmem:[#allocation2 + $0x18] sm:$0xff] %v333
  %355 = vst [vmem:[#allocation2 + $0x20] sm:$0xff] %v334
  %356 = vst [vmem:[#allocation2 + $0x28] sm:$0xff] %v335
  %357 = vst [vmem:[#allocation2 + $0x30] sm:$0xff] %v336
  %358 = vst [vmem:[#allocation2 + $0x38] sm:$0xff] %v337
  %359 = vst [vmem:[#allocation2 + $0x40] sm:$0xff] %v338
  %360 = vst [vmem:[#allocation2 + $0x48] sm:$0xff] %v339
  %361 = vst [vmem:[#allocation2 + $0x50] sm:$0xff] %v340
  %362 = vst [vmem:[#allocation2 + $0x58] sm:$0xff] %v341
  %363 = vst [vmem:[#allocation2 + $0x60] sm:$0xff] %v342
  %364 = vst [vmem:[#allocation2 + $0x68] sm:$0xff] %v343
  %365 = vst [vmem:[#allocation2 + $0x70] sm:$0xff] %v344
  %366 = vst [vmem:[#allocation2 + $0x78] sm:$0xff] %v345
  %367 = vst [vmem:[#allocation2 + $0x80] sm:$0xff] %v346
  %368 = vst [vmem:[#allocation2 + $0x88] sm:$0xff] %v347
  %369 = vst [vmem:[#allocation2 + $0x90] sm:$0xff] %v348
  %370 = vst [vmem:[#allocation2 + $0x98] sm:$0xff] %v349
  %371 = vst [vmem:[#allocation2 + $0xa0] sm:$0xff] %v350
  // Predicated region
  $region18: #{multiscale_discriminator_forward.35} parent=0 // pred_check
    %p372 = pneg %p15
  $region19: #{multiscale_discriminator_forward.35} parent=0 // pred_check_branch
    %374 = sbr.rel (%p372) target = $region21
  $region20: #{multiscale_discriminator_forward.35} parent=0 // pred_region
    %v375 = vld [vmem:[#allocation2] sm:$0xff]
    %v376 = vld [vmem:[#allocation2 + $0x8] sm:$0xff]
    %v377 = vld [vmem:[#allocation2 + $0x10] sm:$0xff]
    %v378 = vld [vmem:[#allocation2 + $0x18] sm:$0xff]
    %v379 = vld [vmem:[#allocation2 + $0x20] sm:$0xff]
    %v380 = vld [vmem:[#allocation2 + $0x28] sm:$0xff]
    %v381 = vld [vmem:[#allocation2 + $0x30] sm:$0xff]
    %v382 = vld [vmem:[#allocation2 + $0x38] sm:$0xff]
    %v383 = vld [vmem:[#allocation2 + $0x40] sm:$0xff]
    %v384 = vld [vmem:[#allocation2 + $0x48] sm:$0xff]
    %v385 = vld [vmem:[#allocation2 + $0x50] sm:$0xff]
    %v386 = vld [vmem:[#allocation2 + $0x58] sm:$0xff]
    %v387 = vld [vmem:[#allocation2 + $0x60] sm:$0xff]
    %v388 = vld [vmem:[#allocation2 + $0x68] sm:$0xff]
    %v389 = vld [vmem:[#allocation2 + $0x70] sm:$0xff]
    %v390 = vld [vmem:[#allocation2 + $0x78] sm:$0xff]
    %v391 = vld [vmem:[#allocation2 + $0x80] sm:$0xff]
    %v392 = vld [vmem:[#allocation2 + $0x88] sm:$0xff]
    %v393 = vld [vmem:[#allocation2 + $0x90] sm:$0xff]
    %v394 = vld [vmem:[#allocation2 + $0x98] sm:$0xff]
    %v395 = vld [vmem:[#allocation2 + $0xa0] sm:$0xff]
    %v396 = vld [vmem:[%s2] sm:$0x1]
    %v398 = vlaneseq
    %v399 = vshrl.u32 %v398, 7
    %v400 = vsub.s32 0, %v399
    %v401 = vrot.slane %v396, %v400
    %v403 = vadd.f32 %v375, %v401
    %v404 = vadd.f32 %v376, %v401
    %v405 = vadd.f32 %v377, %v401
    %v406 = vadd.f32 %v378, %v401
    %v407 = vadd.f32 %v379, %v401
    %v408 = vadd.f32 %v380, %v401
    %v409 = vadd.f32 %v381, %v401
    %v410 = vadd.f32 %v382, %v401
    %v411 = vadd.f32 %v383, %v401
    %v412 = vadd.f32 %v384, %v401
    %v413 = vadd.f32 %v385, %v401
    %v414 = vadd.f32 %v386, %v401
    %v415 = vadd.f32 %v387, %v401
    %v416 = vadd.f32 %v388, %v401
    %v417 = vadd.f32 %v389, %v401
    %v418 = vadd.f32 %v390, %v401
    %v419 = vadd.f32 %v391, %v401
    %v420 = vadd.f32 %v392, %v401
    %v421 = vadd.f32 %v393, %v401
    %v422 = vadd.f32 %v394, %v401
    %v423 = vadd.f32 %v395, %v401
    %vm424 = vcmp.gt.f32.partialorder %v403, 0.0
    %vm425 = vcmp.gt.f32.partialorder %v404, 0.0
    %vm426 = vcmp.gt.f32.partialorder %v405, 0.0
    %vm427 = vcmp.gt.f32.partialorder %v406, 0.0
    %vm428 = vcmp.gt.f32.partialorder %v407, 0.0
    %vm429 = vcmp.gt.f32.partialorder %v408, 0.0
    %vm430 = vcmp.gt.f32.partialorder %v409, 0.0
    %vm431 = vcmp.gt.f32.partialorder %v410, 0.0
    %vm432 = vcmp.gt.f32.partialorder %v411, 0.0
    %vm433 = vcmp.gt.f32.partialorder %v412, 0.0
    %vm434 = vcmp.gt.f32.partialorder %v413, 0.0
    %vm435 = vcmp.gt.f32.partialorder %v414, 0.0
    %vm436 = vcmp.gt.f32.partialorder %v415, 0.0
    %vm437 = vcmp.gt.f32.partialorder %v416, 0.0
    %vm438 = vcmp.gt.f32.partialorder %v417, 0.0
    %vm439 = vcmp.gt.f32.partialorder %v418, 0.0
    %vm440 = vcmp.gt.f32.partialorder %v419, 0.0
    %vm441 = vcmp.gt.f32.partialorder %v420, 0.0
    %vm442 = vcmp.gt.f32.partialorder %v421, 0.0
    %vm443 = vcmp.gt.f32.partialorder %v422, 0.0
    %vm444 = vcmp.gt.f32.partialorder %v423, 0.0
    %v445 = vmul.f32 %v403, 0.2
    %v446 = vmul.f32 %v404, 0.2
    %v447 = vmul.f32 %v405, 0.2
    %v448 = vmul.f32 %v406, 0.2
    %v449 = vmul.f32 %v407, 0.2
    %v450 = vmul.f32 %v408, 0.2
    %v451 = vmul.f32 %v409, 0.2
    %v452 = vmul.f32 %v410, 0.2
    %v453 = vmul.f32 %v411, 0.2
    %v454 = vmul.f32 %v412, 0.2
    %v455 = vmul.f32 %v413, 0.2
    %v456 = vmul.f32 %v414, 0.2
    %v457 = vmul.f32 %v415, 0.2
    %v458 = vmul.f32 %v416, 0.2
    %v459 = vmul.f32 %v417, 0.2
    %v460 = vmul.f32 %v418, 0.2
    %v461 = vmul.f32 %v419, 0.2
    %v462 = vmul.f32 %v420, 0.2
    %v463 = vmul.f32 %v421, 0.2
    %v464 = vmul.f32 %v422, 0.2
    %v465 = vmul.f32 %v423, 0.2
    %v466 = vsel %vm424, %v403, %v445
    %v467 = vsel %vm425, %v404, %v446
    %v468 = vsel %vm426, %v405, %v447
    %v469 = vsel %vm427, %v406, %v448
    %v470 = vsel %vm428, %v407, %v449
    %v471 = vsel %vm429, %v408, %v450
    %v472 = vsel %vm430, %v409, %v451
    %v473 = vsel %vm431, %v410, %v452
    %v474 = vsel %vm432, %v411, %v453
    %v475 = vsel %vm433, %v412, %v454
    %v476 = vsel %vm434, %v413, %v455
    %v477 = vsel %vm435, %v414, %v456
    %v478 = vsel %vm436, %v415, %v457
    %v479 = vsel %vm437, %v416, %v458
    %v480 = vsel %vm438, %v417, %v459
    %v481 = vsel %vm439, %v418, %v460
    %v482 = vsel %vm440, %v419, %v461
    %v483 = vsel %vm441, %v420, %v462
    %v484 = vsel %vm442, %v421, %v463
    %v485 = vsel %vm443, %v422, %v464
    %v486 = vsel %vm444, %v423, %v465
    %v487 = vpack.c.bf16 %v467, %v466
    %v488 = vpack.c.bf16 %v469, %v468
    %v489 = vpack.c.bf16 %v471, %v470
    %v490 = vpack.c.bf16 %v473, %v472
    %v491 = vpack.c.bf16 %v475, %v474
    %v492 = vpack.c.bf16 %v477, %v476
    %v493 = vpack.c.bf16 %v479, %v478
    %v494 = vpack.c.bf16 %v481, %v480
    %v495 = vpack.c.bf16 %v483, %v482
    %v496 = vpack.c.bf16 %v485, %v484
    %v497 = vpack.c.bf16 %v486, %v486
    %v509 = vunpack.c.l.b16 %v487
    %v510 = vunpack.c.h.b16 %v487
    %v511 = vunpack.c.l.b16 %v488
    %v512 = vunpack.c.h.b16 %v488
    %v513 = vunpack.c.l.b16 %v489
    %v514 = vunpack.c.h.b16 %v489
    %v515 = vunpack.c.l.b16 %v490
    %v516 = vunpack.c.h.b16 %v490
    %v517 = vunpack.c.l.b16 %v491
    %v518 = vunpack.c.h.b16 %v491
    %v519 = vunpack.c.l.b16 %v492
    %v520 = vunpack.c.h.b16 %v492
    %v521 = vunpack.c.l.b16 %v493
    %v522 = vunpack.c.h.b16 %v493
    %v523 = vunpack.c.l.b16 %v494
    %v524 = vunpack.c.h.b16 %v494
    %v525 = vunpack.c.l.b16 %v495
    %v526 = vunpack.c.h.b16 %v495
    %v527 = vunpack.c.l.b16 %v496
    %v528 = vunpack.c.h.b16 %v496
    %v529 = vunpack.c.l.b16 %v497
    %v530 = vpack.c.b16 %v509, %v509
    %v531 = vpack.c.b16 %v510, %v510
    %v532 = vpack.c.b16 %v511, %v511
    %v533 = vpack.c.b16 %v512, %v512
    %v534 = vpack.c.b16 %v513, %v513
    %v535 = vpack.c.b16 %v514, %v514
    %v536 = vpack.c.b16 %v515, %v515
    %v537 = vpack.c.b16 %v516, %v516
    %v538 = vpack.c.b16 %v517, %v517
    %v539 = vpack.c.b16 %v518, %v518
    %v540 = vpack.c.b16 %v519, %v519
    %v541 = vpack.c.b16 %v520, %v520
    %v542 = vpack.c.b16 %v521, %v521
    %v543 = vpack.c.b16 %v522, %v522
    %v544 = vpack.c.b16 %v523, %v523
    %v545 = vpack.c.b16 %v524, %v524
    %v546 = vpack.c.b16 %v525, %v525
    %v547 = vpack.c.b16 %v526, %v526
    %v548 = vpack.c.b16 %v527, %v527
    %v549 = vpack.c.b16 %v528, %v528
    %v550 = vpack.c.b16 %v529, %v529
    %572 = vst [vmem:[%s3] sm:$0xf] %v530
    %573 = vst [vmem:[%s3 + $0x4] sm:$0xf] %v531
    %574 = vst [vmem:[%s3 + $0x8] sm:$0xf] %v532
    %575 = vst [vmem:[%s3 + $0xc] sm:$0xf] %v533
    %576 = vst [vmem:[%s3 + $0x10] sm:$0xf] %v534
    %577 = vst [vmem:[%s3 + $0x14] sm:$0xf] %v535
    %578 = vst [vmem:[%s3 + $0x18] sm:$0xf] %v536
    %579 = vst [vmem:[%s3 + $0x1c] sm:$0xf] %v537
    %580 = vst [vmem:[%s3 + $0x20] sm:$0xf] %v538
    %581 = vst [vmem:[%s3 + $0x24] sm:$0xf] %v539
    %582 = vst [vmem:[%s3 + $0x28] sm:$0xf] %v540
    %583 = vst [vmem:[%s3 + $0x2c] sm:$0xf] %v541
    %584 = vst [vmem:[%s3 + $0x30] sm:$0xf] %v542
    %585 = vst [vmem:[%s3 + $0x34] sm:$0xf] %v543
    %586 = vst [vmem:[%s3 + $0x38] sm:$0xf] %v544
    %587 = vst [vmem:[%s3 + $0x3c] sm:$0xf] %v545
    %588 = vst [vmem:[%s3 + $0x40] sm:$0xf] %v546
    %589 = vst [vmem:[%s3 + $0x44] sm:$0xf] %v547
    %590 = vst [vmem:[%s3 + $0x48] sm:$0xf] %v548
    %591 = vst [vmem:[%s3 + $0x4c] sm:$0xf] %v549
    %592 = vst [vmem:[%s3 + $0x50] sm:$0xf] %v550
  $region21: #{multiscale_discriminator_forward.35} parent=0 // pred_fallthru
    _
  // Predicated region
  $region22: #{multiscale_discriminator_forward.35} parent=0 // pred_check
    _
  $region23: #{multiscale_discriminator_forward.35} parent=0 // pred_check_branch
    %594 = sbr.rel (0) target = $region25
  $region24: #{multiscale_discriminator_forward.35} parent=0 // pred_region
    _
  $region25: #{multiscale_discriminator_forward.35} parent=0 // pred_fallthru
    _
  // Predicated region
  $region26: #{multiscale_discriminator_forward.35} parent=0 // pred_check
    _
  $region27: #{multiscale_discriminator_forward.35} parent=0 // pred_check_branch
    %596 = sbr.rel (0) target = $region29
  $region28: #{multiscale_discriminator_forward.35} parent=0 // pred_region
    _
  $region29: #{multiscale_discriminator_forward.35} parent=0 // pred_fallthru
    _

// kernel: multiscale_discriminator_forward.37
$region0: #{multiscale_discriminator_forward.37}
  #allocation0 [shape = 'u32[]', space=smem, size = 0x4, offset = 0x4, fixed_abs, tag = 'smem constant byte address 0x4 - core index']
  #allocation1 [shape = 'u32[144,128]{1,0:T(1,128)}', space=vmem, size = 0x12000, scoped, tag = 'internal scratch']
  %s0 = inlined_call_operand.vmem [shape: bf16[56,16], index: 0, kind: input, shape index: {}]
  %s1 = inlined_call_operand.vmem [shape: f32[1,1,16], index: 1, kind: output, shape index: {0}]
  %s2 = inlined_call_operand.vmem [shape: f32[1,1,16], index: 2, kind: output, shape index: {1}]
  %3 = xla_tuple %s1, %s2
  %s4 = sld [smem:[#allocation0]]
  $region22: #{multiscale_discriminator_forward.37} parent=0
    _
  %s6 = ssub.s32 1, %s4
  %s7 = scalar_select 0, %s6, %s4
  // Predicated region
  $region2: #{multiscale_discriminator_forward.37} parent=0 // pred_check
    _
  $region3: #{multiscale_discriminator_forward.37} parent=0 // pred_check_branch
    %9 = sbr.rel (0) target = $region5
  $region4: #{multiscale_discriminator_forward.37} parent=0 // pred_region
    _
  $region5: #{multiscale_discriminator_forward.37} parent=0 // pred_fallthru
    _
  %v10 = vld [vmem:[%s0] sm:$0xf]
  %v11 = vld [vmem:[%s0 + $0x4] sm:$0xf]
  %v12 = vld [vmem:[%s0 + $0x8] sm:$0xf]
  %v13 = vld [vmem:[%s0 + $0xc] sm:$0xf]
  %v14 = vld [vmem:[%s0 + $0x10] sm:$0xf]
  %v15 = vld [vmem:[%s0 + $0x14] sm:$0xf]
  %v16 = vld [vmem:[%s0 + $0x18] sm:$0xf]
  %v17 = vunpack.c.l.bf16 %v10
  %v18 = vunpack.c.l.bf16 %v11
  %v19 = vunpack.c.l.bf16 %v12
  %v20 = vunpack.c.l.bf16 %v13
  %v21 = vunpack.c.l.bf16 %v14
  %v22 = vunpack.c.l.bf16 %v15
  %v23 = vunpack.c.l.bf16 %v16
  %vm24 = vcmask 130048
  %v25 = vsel %vm24, %v17, 0.0
  %v26 = vsel %vm24, %v18, 0.0
  %v27 = vadd.f32 %v25, %v26
  %v28 = vsel %vm24, %v19, 0.0
  %v29 = vadd.f32 %v27, %v28
  %v30 = vsel %vm24, %v20, 0.0
  %v31 = vadd.f32 %v29, %v30
  %v32 = vsel %vm24, %v21, 0.0
  %v33 = vadd.f32 %v31, %v32
  %v34 = vsel %vm24, %v22, 0.0
  %v35 = vadd.f32 %v33, %v34
  %v36 = vsel %vm24, %v23, 0.0
  %v37 = vadd.f32 %v35, %v36
  %v38 = vrot.slane %v37, 4
  %v39 = vadd.f32 %v37, %v38
  %v40 = vrot.slane %v39, 2
  %v41 = vadd.f32 %v39, %v40
  %v42 = vrot.slane %v41, 1
  %v43 = vadd.f32 %v41, %v42
  %vm44 = vcmask 122880
  %45 = vst.msk [vmem:[%s1] sm:$0x1] %vm44, %v43
  %v46 = vmul.f32 %v17, %v17
  %v47 = vmul.f32 %v18, %v18
  %v48 = vmul.f32 %v19, %v19
  %v49 = vmul.f32 %v20, %v20
  %v50 = vmul.f32 %v21, %v21
  %v51 = vmul.f32 %v22, %v22
  %v52 = vmul.f32 %v23, %v23
  %v53 = vsel %vm24, %v46, 0.0
  %v54 = vsel %vm24, %v47, 0.0
  %v55 = vadd.f32 %v53, %v54
  %v56 = vsel %vm24, %v48, 0.0
  %v57 = vadd.f32 %v55, %v56
  %v58 = vsel %vm24, %v49, 0.0
  %v59 = vadd.f32 %v57, %v58
  %v60 = vsel %vm24, %v50, 0.0
  %v61 = vadd.f32 %v59, %v60
  %v62 = vsel %vm24, %v51, 0.0
  %v63 = vadd.f32 %v61, %v62
  %v64 = vsel %vm24, %v52, 0.0
  %v65 = vadd.f32 %v63, %v64
  %v66 = vrot.slane %v65, 4
  %v67 = vadd.f32 %v65, %v66
  %v68 = vrot.slane %v67, 2
  %v69 = vadd.f32 %v67, %v68
  %v70 = vrot.slane %v69, 1
  %v71 = vadd.f32 %v69, %v70
  %72 = vst.msk [vmem:[%s2] sm:$0x1] %vm44, %v71
  // Predicated region
  $region6: #{multiscale_discriminator_forward.37} parent=0 // pred_check
    _
  $region7: #{multiscale_discriminator_forward.37} parent=0 // pred_check_branch
    %74 = sbr.rel (0) target = $region9
  $region8: #{multiscale_discriminator_forward.37} parent=0 // pred_region
    _
  $region9: #{multiscale_discriminator_forward.37} parent=0 // pred_fallthru
    _
  // Predicated region
  $region10: #{multiscale_discriminator_forward.37} parent=0 // pred_check
    _
  $region11: #{multiscale_discriminator_forward.37} parent=0 // pred_check_branch
    %76 = sbr.rel (0) target = $region13
  $region12: #{multiscale_discriminator_forward.37} parent=0 // pred_region
    _
  $region13: #{multiscale_discriminator_forward.37} parent=0 // pred_fallthru
    _
  // Predicated region
  $region14: #{multiscale_discriminator_forward.37} parent=0 // pred_check
    _
  $region15: #{multiscale_discriminator_forward.37} parent=0 // pred_check_branch
    %78 = sbr.rel (0) target = $region17
  $region16: #{multiscale_discriminator_forward.37} parent=0 // pred_region
    _
  $region17: #{multiscale_discriminator_forward.37} parent=0 // pred_fallthru
    _
  // Predicated region
  $region18: #{multiscale_discriminator_forward.37} parent=0 // pred_check
    _
  $region19: #{multiscale_discriminator_forward.37} parent=0 // pred_check_branch
    %80 = sbr.rel (0) target = $region21
  $region20: #{multiscale_discriminator_forward.37} parent=0 // pred_region
    _
  $region21: #{multiscale_discriminator_forward.37} parent=0 // pred_fallthru
    _

// kernel: multiscale_discriminator_forward.36
$region0: #{multiscale_discriminator_forward.36}
  #allocation0 [shape = 'u32[]', space=smem, size = 0x4, offset = 0x4, fixed_abs, tag = 'smem constant byte address 0x4 - core index']
  #allocation1 [shape = 'u32[144,128]{1,0:T(1,128)}', space=vmem, size = 0x12000, scoped, tag = 'internal scratch']
  #allocation2 [shape = 'f32[56,128]{1,0:T(8,128)}', space=vmem, size = 0x7000, scoped, tag = 'scratch operand']
  %s0 = inlined_call_operand.vmem [shape: bf16[56,128], index: 0, kind: input, shape index: {}]
  %s1 = inlined_call_operand.vmem [shape: bf16[128,128], index: 1, kind: input, shape index: {}]
  %s2 = inlined_call_operand.vmem [shape: f32[1,128], index: 2, kind: input, shape index: {}]
  %s3 = inlined_call_operand.vmem [shape: bf16[56,128], index: 3, kind: output, shape index: {}]
  %s4 = sld [smem:[#allocation0]]
  $region30: #{multiscale_discriminator_forward.36} parent=0
    _
  %s6 = ssub.s32 1, %s4
  %s7 = scalar_select 0, %s6, %s4
  // Predicated region
  $region2: #{multiscale_discriminator_forward.36} parent=0 // pred_check
    _
  $region3: #{multiscale_discriminator_forward.36} parent=0 // pred_check_branch
    %9 = sbr.rel (0) target = $region5
  $region4: #{multiscale_discriminator_forward.36} parent=0 // pred_region
    _
  $region5: #{multiscale_discriminator_forward.36} parent=0 // pred_fallthru
    _
  // Predicated region
  $region6: #{multiscale_discriminator_forward.36} parent=0 // pred_check
    _
  $region7: #{multiscale_discriminator_forward.36} parent=0 // pred_check_branch
    %11 = sbr.rel (0) target = $region9
  $region8: #{multiscale_discriminator_forward.36} parent=0 // pred_region
    _
  $region9: #{multiscale_discriminator_forward.36} parent=0 // pred_fallthru
    _
  // Predicated region
  $region10: #{multiscale_discriminator_forward.36} parent=0 // pred_check
    _
  $region11: #{multiscale_discriminator_forward.36} parent=0 // pred_check_branch
    %13 = sbr.rel (0) target = $region13
  $region12: #{multiscale_discriminator_forward.36} parent=0 // pred_region
    _
  $region13: #{multiscale_discriminator_forward.36} parent=0 // pred_fallthru
    _
  %p15 = scmp.eq.s32.totalorder 0, 0
  // Predicated region
  $region14: #{multiscale_discriminator_forward.36} parent=0 // pred_check
    %p16 = pneg %p15
  $region15: #{multiscale_discriminator_forward.36} parent=0 // pred_check_branch
    %18 = sbr.rel (%p16) target = $region17
  $region16: #{multiscale_discriminator_forward.36} parent=0 // pred_region
    %19 = vst [vmem:[#allocation2] sm:$0xff] 0.0
    %20 = vst [vmem:[#allocation2 + $0x8] sm:$0xff] 0.0
    %21 = vst [vmem:[#allocation2 + $0x10] sm:$0xff] 0.0
    %22 = vst [vmem:[#allocation2 + $0x18] sm:$0xff] 0.0
    %23 = vst [vmem:[#allocation2 + $0x20] sm:$0xff] 0.0
    %24 = vst [vmem:[#allocation2 + $0x28] sm:$0xff] 0.0
    %25 = vst [vmem:[#allocation2 + $0x30] sm:$0xff] 0.0
  $region17: #{multiscale_discriminator_forward.36} parent=0 // pred_fallthru
    _
  %v26 = vld [vmem:[#allocation2] sm:$0xff]
  %v27 = vld [vmem:[#allocation2 + $0x8] sm:$0xff]
  %v28 = vld [vmem:[#allocation2 + $0x10] sm:$0xff]
  %v29 = vld [vmem:[#allocation2 + $0x18] sm:$0xff]
  %v30 = vld [vmem:[#allocation2 + $0x20] sm:$0xff]
  %v31 = vld [vmem:[#allocation2 + $0x28] sm:$0xff]
  %v32 = vld [vmem:[#allocation2 + $0x30] sm:$0xff]
  %v33 = vld [vmem:[%s0] sm:$0xf]
  %v34 = vld [vmem:[%s0 + $0x4] sm:$0xf]
  %v35 = vld [vmem:[%s0 + $0x8] sm:$0xf]
  %v36 = vld [vmem:[%s0 + $0xc] sm:$0xf]
  %v37 = vld [vmem:[%s0 + $0x10] sm:$0xf]
  %v38 = vld [vmem:[%s0 + $0x14] sm:$0xf]
  %v39 = vld [vmem:[%s0 + $0x18] sm:$0xf]
  %v40 = vld [vmem:[%s1] sm:$0xf]
  %v41 = vld [vmem:[%s1 + $0x4] sm:$0xf]
  %v42 = vld [vmem:[%s1 + $0x8] sm:$0xf]
  %v43 = vld [vmem:[%s1 + $0xc] sm:$0xf]
  %v44 = vld [vmem:[%s1 + $0x10] sm:$0xf]
  %v45 = vld [vmem:[%s1 + $0x14] sm:$0xf]
  %v46 = vld [vmem:[%s1 + $0x18] sm:$0xf]
  %v47 = vld [vmem:[%s1 + $0x1c] sm:$0xf]
  %v48 = vld [vmem:[%s1 + $0x20] sm:$0xf]
  %v49 = vld [vmem:[%s1 + $0x24] sm:$0xf]
  %v50 = vld [vmem:[%s1 + $0x28] sm:$0xf]
  %v51 = vld [vmem:[%s1 + $0x2c] sm:$0xf]
  %v52 = vld [vmem:[%s1 + $0x30] sm:$0xf]
  %v53 = vld [vmem:[%s1 + $0x34] sm:$0xf]
  %v54 = vld [vmem:[%s1 + $0x38] sm:$0xf]
  %v55 = vld [vmem:[%s1 + $0x3c] sm:$0xf]
  %v63 = vunpack.c.l.b16 %v33
  %v64 = vunpack.c.l.b16 %v34
  %v65 = vunpack.c.l.b16 %v35
  %v66 = vunpack.c.l.b16 %v36
  %v67 = vunpack.c.l.b16 %v37
  %v68 = vunpack.c.l.b16 %v38
  %v69 = vunpack.c.l.b16 %v39
  %v70 = vpack.c.b16 %v64, %v63
  %v71 = vpack.c.b16 %v66, %v65
  %v72 = vpack.c.b16 %v68, %v67
  %v73 = vpack.c.b16 %v69, %v69
  %v94 = vunpack.c.l.b16 %v40
  %v95 = vunpack.c.l.b16 %v41
  %v96 = vunpack.c.l.b16 %v42
  %v97 = vunpack.c.l.b16 %v43
  %v98 = vunpack.c.l.b16 %v44
  %v99 = vunpack.c.l.b16 %v45
  %v100 = vunpack.c.l.b16 %v46
  %v101 = vunpack.c.l.b16 %v47
  %v102 = vunpack.c.l.b16 %v48
  %v103 = vunpack.c.l.b16 %v49
  %v104 = vunpack.c.l.b16 %v50
  %v105 = vunpack.c.l.b16 %v51
  %v106 = vunpack.c.l.b16 %v52
  %v107 = vunpack.c.l.b16 %v53
  %v108 = vunpack.c.l.b16 %v54
  %v109 = vunpack.c.l.b16 %v55
  %v110 = vpack.c.b16 %v95, %v94
  %v111 = vpack.c.b16 %v97, %v96
  %v112 = vpack.c.b16 %v99, %v98
  %v113 = vpack.c.b16 %v101, %v100
  %v114 = vpack.c.b16 %v103, %v102
  %v115 = vpack.c.b16 %v105, %v104
  %v116 = vpack.c.b16 %v107, %v106
  %v117 = vpack.c.b16 %v109, %v108
  %126 = vmatprep.subr.bf16.mxu0 0
  %127 = vmatpush1.bf16.msra.mxu0 %v110
  %128 = vmatprep.subr.bf16.mxu0 0
  %129 = vmatpush1.bf16.msra.mxu0 %v111
  %130 = vmatprep.subr.bf16.mxu0 0
  %131 = vmatpush1.bf16.msra.mxu0 %v112
  %132 = vmatprep.subr.bf16.mxu0 0
  %133 = vmatpush1.bf16.msra.mxu0 %v113
  %134 = vmatprep.subr.bf16.mxu0 0
  %135 = vmatpush1.bf16.msra.mxu0 %v114
  %136 = vmatprep.subr.bf16.mxu0 0
  %137 = vmatpush1.bf16.msra.mxu0 %v115
  %138 = vmatprep.subr.bf16.mxu0 0
  %139 = vmatpush1.bf16.msra.mxu0 %v116
  %140 = vmatprep.subr.bf16.mxu0 0
  %141 = vmatpush1.bf16.msra.mxu0 %v117
  %142 = vmatprep.subr.bf16.mxu0 0
  %143 = vmatpush1.bf16.msra.mxu0 0
  %144 = vmatprep.subr.bf16.mxu0 0
  %145 = vmatpush1.bf16.msra.mxu0 0
  %146 = vmatprep.subr.bf16.mxu0 0
  %147 = vmatpush1.bf16.msra.mxu0 0
  %148 = vmatprep.subr.bf16.mxu0 0
  %149 = vmatpush1.bf16.msra.mxu0 0
  %150 = vmatprep.subr.bf16.mxu0 0
  %151 = vmatpush1.bf16.msra.mxu0 0
  %152 = vmatprep.subr.bf16.mxu0 0
  %153 = vmatpush1.bf16.msra.mxu0 0
  %154 = vmatprep.subr.bf16.mxu0 0
  %155 = vmatpush1.bf16.msra.mxu0 0
  %156 = vmatprep.subr.bf16.mxu0 0
  %157 = vmatpush1.bf16.msra.mxu0 0
  %158 = vmatprep.mubr.bf16.mxu0 0
  %159 = vmatmul.mubr.bf16.gmra.mrb[0].mxu0 %v70
  %v160 = vpop.f32.mrb[0].mxu0
  %v161 = vadd.f32 0.0, %v160
  %v162 = vpop.f32.mrb[0].mxu0
  %v163 = vpop.f32.mrb[0].mxu0
  %v164 = vadd.f32 0.0, %v163
  %v165 = vpop.f32.mrb[0].mxu0
  %166 = vmatprep.mubr.bf16.mxu0 0
  %167 = vmatmul.mubr.bf16.gmra.mrb[0].mxu0 %v71
  %v168 = vpop.f32.mrb[0].mxu0
  %v169 = vadd.f32 0.0, %v168
  %v170 = vpop.f32.mrb[0].mxu0
  %v171 = vpop.f32.mrb[0].mxu0
  %v172 = vadd.f32 0.0, %v171
  %v173 = vpop.f32.mrb[0].mxu0
  %174 = vmatprep.mubr.bf16.mxu0 0
  %175 = vmatmul.mubr.bf16.gmra.mrb[0].mxu0 %v72
  %v176 = vpop.f32.mrb[0].mxu0
  %v177 = vadd.f32 0.0, %v176
  %v178 = vpop.f32.mrb[0].mxu0
  %v179 = vpop.f32.mrb[0].mxu0
  %v180 = vadd.f32 0.0, %v179
  %v181 = vpop.f32.mrb[0].mxu0
  %182 = vmatprep.mubr.bf16.mxu0 0
  %183 = vmatmul.mubr.bf16.gmra.mrb[0].mxu0 %v73
  %v184 = vpop.f32.mrb[0].mxu0
  %v185 = vadd.f32 0.0, %v184
  %v186 = vpop.f32.mrb[0].mxu0
  %v187 = vpop.f32.mrb[0].mxu0
  %v188 = vpop.f32.mrb[0].mxu0
  %189 = vdwg.mxu0
  %v190 = vadd.f32 %v26, %v161
  %v191 = vadd.f32 %v27, %v164
  %v192 = vadd.f32 %v28, %v169
  %v193 = vadd.f32 %v29, %v172
  %v194 = vadd.f32 %v30, %v177
  %v195 = vadd.f32 %v31, %v180
  %v196 = vadd.f32 %v32, %v185
  %197 = vst [vmem:[#allocation2] sm:$0xff] %v190
  %198 = vst [vmem:[#allocation2 + $0x8] sm:$0xff] %v191
  %199 = vst [vmem:[#allocation2 + $0x10] sm:$0xff] %v192
  %200 = vst [vmem:[#allocation2 + $0x18] sm:$0xff] %v193
  %201 = vst [vmem:[#allocation2 + $0x20] sm:$0xff] %v194
  %202 = vst [vmem:[#allocation2 + $0x28] sm:$0xff] %v195
  %203 = vst [vmem:[#allocation2 + $0x30] sm:$0xff] %v196
  // Predicated region
  $region18: #{multiscale_discriminator_forward.36} parent=0 // pred_check
    %p204 = pneg %p15
  $region19: #{multiscale_discriminator_forward.36} parent=0 // pred_check_branch
    %206 = sbr.rel (%p204) target = $region21
  $region20: #{multiscale_discriminator_forward.36} parent=0 // pred_region
    %v207 = vld [vmem:[#allocation2] sm:$0xff]
    %v208 = vld [vmem:[#allocation2 + $0x8] sm:$0xff]
    %v209 = vld [vmem:[#allocation2 + $0x10] sm:$0xff]
    %v210 = vld [vmem:[#allocation2 + $0x18] sm:$0xff]
    %v211 = vld [vmem:[#allocation2 + $0x20] sm:$0xff]
    %v212 = vld [vmem:[#allocation2 + $0x28] sm:$0xff]
    %v213 = vld [vmem:[#allocation2 + $0x30] sm:$0xff]
    %v214 = vld [vmem:[%s2] sm:$0x1]
    %v216 = vlaneseq
    %v217 = vshrl.u32 %v216, 7
    %v218 = vsub.s32 0, %v217
    %v219 = vrot.slane %v214, %v218
    %v221 = vadd.f32 %v207, %v219
    %v222 = vadd.f32 %v208, %v219
    %v223 = vadd.f32 %v209, %v219
    %v224 = vadd.f32 %v210, %v219
    %v225 = vadd.f32 %v211, %v219
    %v226 = vadd.f32 %v212, %v219
    %v227 = vadd.f32 %v213, %v219
    %v228 = vpack.c.bf16 %v222, %v221
    %v229 = vpack.c.bf16 %v224, %v223
    %v230 = vpack.c.bf16 %v226, %v225
    %v231 = vpack.c.bf16 %v227, %v227
    %v236 = vunpack.c.l.b16 %v228
    %v237 = vunpack.c.h.b16 %v228
    %v238 = vunpack.c.l.b16 %v229
    %v239 = vunpack.c.h.b16 %v229
    %v240 = vunpack.c.l.b16 %v230
    %v241 = vunpack.c.h.b16 %v230
    %v242 = vunpack.c.l.b16 %v231
    %v243 = vpack.c.b16 %v236, %v236
    %v244 = vpack.c.b16 %v237, %v237
    %v245 = vpack.c.b16 %v238, %v238
    %v246 = vpack.c.b16 %v239, %v239
    %v247 = vpack.c.b16 %v240, %v240
    %v248 = vpack.c.b16 %v241, %v241
    %v249 = vpack.c.b16 %v242, %v242
    %257 = vst [vmem:[%s3] sm:$0xf] %v243
    %258 = vst [vmem:[%s3 + $0x4] sm:$0xf] %v244
    %259 = vst [vmem:[%s3 + $0x8] sm:$0xf] %v245
    %260 = vst [vmem:[%s3 + $0xc] sm:$0xf] %v246
    %261 = vst [vmem:[%s3 + $0x10] sm:$0xf] %v247
    %262 = vst [vmem:[%s3 + $0x14] sm:$0xf] %v248
    %263 = vst [vmem:[%s3 + $0x18] sm:$0xf] %v249
  $region21: #{multiscale_discriminator_forward.36} parent=0 // pred_fallthru
    _
  // Predicated region
  $region22: #{multiscale_discriminator_forward.36} parent=0 // pred_check
    _
  $region23: #{multiscale_discriminator_forward.36} parent=0 // pred_check_branch
    %265 = sbr.rel (0) target = $region25
  $region24: #{multiscale_discriminator_forward.36} parent=0 // pred_region
    _
  $region25: #{multiscale_discriminator_forward.36} parent=0 // pred_fallthru
    _
  // Predicated region
  $region26: #{multiscale_discriminator_forward.36} parent=0 // pred_check
    _
  $region27: #{multiscale_discriminator_forward.36} parent=0 // pred_check_branch
    %267 = sbr.rel (0) target = $region29
  $region28: #{multiscale_discriminator_forward.36} parent=0 // pred_region
    _
  $region29: #{multiscale_discriminator_forward.36} parent=0 // pred_fallthru
    _

// kernel: multiscale_discriminator_forward.38
$region0: #{multiscale_discriminator_forward.38}
  #allocation0 [shape = 'u32[]', space=smem, size = 0x4, offset = 0x4, fixed_abs, tag = 'smem constant byte address 0x4 - core index']
  #allocation1 [shape = 'u32[144,128]{1,0:T(1,128)}', space=vmem, size = 0x12000, scoped, tag = 'internal scratch']
  %s0 = inlined_call_operand.vmem [shape: bf16[56,16], index: 0, kind: input, shape index: {}]
  %s1 = inlined_call_operand.vmem [shape: f32[1,16], index: 1, kind: input, shape index: {}]
  %s2 = inlined_call_operand.vmem [shape: f32[1,16], index: 2, kind: input, shape index: {}]
  %s3 = inlined_call_operand.vmem [shape: bf16[56,16], index: 3, kind: output, shape index: {}]
  %s4 = sld [smem:[#allocation0]]
  $region22: #{multiscale_discriminator_forward.38} parent=0
    _
  %s6 = ssub.s32 1, %s4
  %s7 = scalar_select 0, %s6, %s4
  // Predicated region
  $region2: #{multiscale_discriminator_forward.38} parent=0 // pred_check
    _
  $region3: #{multiscale_discriminator_forward.38} parent=0 // pred_check_branch
    %9 = sbr.rel (0) target = $region5
  $region4: #{multiscale_discriminator_forward.38} parent=0 // pred_region
    _
  $region5: #{multiscale_discriminator_forward.38} parent=0 // pred_fallthru
    _
  // Predicated region
  $region6: #{multiscale_discriminator_forward.38} parent=0 // pred_check
    _
  $region7: #{multiscale_discriminator_forward.38} parent=0 // pred_check_branch
    %11 = sbr.rel (0) target = $region9
  $region8: #{multiscale_discriminator_forward.38} parent=0 // pred_region
    _
  $region9: #{multiscale_discriminator_forward.38} parent=0 // pred_fallthru
    _
  // Predicated region
  $region10: #{multiscale_discriminator_forward.38} parent=0 // pred_check
    _
  $region11: #{multiscale_discriminator_forward.38} parent=0 // pred_check_branch
    %13 = sbr.rel (0) target = $region13
  $region12: #{multiscale_discriminator_forward.38} parent=0 // pred_region
    _
  $region13: #{multiscale_discriminator_forward.38} parent=0 // pred_fallthru
    _
  %v14 = vld [vmem:[%s0] sm:$0xf]
  %v15 = vld [vmem:[%s0 + $0x4] sm:$0xf]
  %v16 = vld [vmem:[%s0 + $0x8] sm:$0xf]
  %v17 = vld [vmem:[%s0 + $0xc] sm:$0xf]
  %v18 = vld [vmem:[%s0 + $0x10] sm:$0xf]
  %v19 = vld [vmem:[%s0 + $0x14] sm:$0xf]
  %v20 = vld [vmem:[%s0 + $0x18] sm:$0xf]
  %v21 = vunpack.c.l.bf16 %v14
  %v22 = vunpack.c.l.bf16 %v15
  %v23 = vunpack.c.l.bf16 %v16
  %v24 = vunpack.c.l.bf16 %v17
  %v25 = vunpack.c.l.bf16 %v18
  %v26 = vunpack.c.l.bf16 %v19
  %v27 = vunpack.c.l.bf16 %v20
  %v28 = vld [vmem:[%s1] sm:$0x1]
  %v30 = vlaneseq
  %v31 = vshrl.u32 %v30, 7
  %v32 = vsub.s32 0, %v31
  %v33 = vrot.slane %v28, %v32
  %v35 = vmul.f32 %v21, %v33
  %v36 = vmul.f32 %v22, %v33
  %v37 = vmul.f32 %v23, %v33
  %v38 = vmul.f32 %v24, %v33
  %v39 = vmul.f32 %v25, %v33
  %v40 = vmul.f32 %v26, %v33
  %v41 = vmul.f32 %v27, %v33
  %v42 = vld [vmem:[%s2] sm:$0x1]
  %v44 = vlaneseq
  %v45 = vshrl.u32 %v44, 7
  %v46 = vsub.s32 0, %v45
  %v47 = vrot.slane %v42, %v46
  %v49 = vadd.f32 %v35, %v47
  %v50 = vadd.f32 %v36, %v47
  %v51 = vadd.f32 %v37, %v47
  %v52 = vadd.f32 %v38, %v47
  %v53 = vadd.f32 %v39, %v47
  %v54 = vadd.f32 %v40, %v47
  %v55 = vadd.f32 %v41, %v47
  %vm56 = vcmp.gt.f32.partialorder %v49, 0.0
  %vm57 = vcmp.gt.f32.partialorder %v50, 0.0
  %vm58 = vcmp.gt.f32.partialorder %v51, 0.0
  %vm59 = vcmp.gt.f32.partialorder %v52, 0.0
  %vm60 = vcmp.gt.f32.partialorder %v53, 0.0
  %vm61 = vcmp.gt.f32.partialorder %v54, 0.0
  %vm62 = vcmp.gt.f32.partialorder %v55, 0.0
  %v63 = vmul.f32 %v49, 0.2
  %v64 = vmul.f32 %v50, 0.2
  %v65 = vmul.f32 %v51, 0.2
  %v66 = vmul.f32 %v52, 0.2
  %v67 = vmul.f32 %v53, 0.2
  %v68 = vmul.f32 %v54, 0.2
  %v69 = vmul.f32 %v55, 0.2
  %v70 = vsel %vm56, %v49, %v63
  %v71 = vsel %vm57, %v50, %v64
  %v72 = vsel %vm58, %v51, %v65
  %v73 = vsel %vm59, %v52, %v66
  %v74 = vsel %vm60, %v53, %v67
  %v75 = vsel %vm61, %v54, %v68
  %v76 = vsel %vm62, %v55, %v69
  %v77 = vpack.c.bf16 %v71, %v70
  %v78 = vpack.c.bf16 %v73, %v72
  %v79 = vpack.c.bf16 %v75, %v74
  %v80 = vpack.c.bf16 %v76, %v76
  %v85 = vunpack.c.l.b16 %v77
  %v86 = vunpack.c.h.b16 %v77
  %v87 = vunpack.c.l.b16 %v78
  %v88 = vunpack.c.h.b16 %v78
  %v89 = vunpack.c.l.b16 %v79
  %v90 = vunpack.c.h.b16 %v79
  %v91 = vunpack.c.l.b16 %v80
  %v92 = vpack.c.b16 %v85, %v85
  %v93 = vpack.c.b16 %v86, %v86
  %v94 = vpack.c.b16 %v87, %v87
  %v95 = vpack.c.b16 %v88, %v88
  %v96 = vpack.c.b16 %v89, %v89
  %v97 = vpack.c.b16 %v90, %v90
  %v98 = vpack.c.b16 %v91, %v91
  %vm106 = vcmask 125952
  %107 = vst.msk [vmem:[%s3] sm:$0xf] %vm106, %v92
  %108 = vst.msk [vmem:[%s3 + $0x4] sm:$0xf] %vm106, %v93
  %109 = vst.msk [vmem:[%s3 + $0x8] sm:$0xf] %vm106, %v94
  %110 = vst.msk [vmem:[%s3 + $0xc] sm:$0xf] %vm106, %v95
  %111 = vst.msk [vmem:[%s3 + $0x10] sm:$0xf] %vm106, %v96
  %112 = vst.msk [vmem:[%s3 + $0x14] sm:$0xf] %vm106, %v97
  %113 = vst.msk [vmem:[%s3 + $0x18] sm:$0xf] %vm106, %v98
  // Predicated region
  $region14: #{multiscale_discriminator_forward.38} parent=0 // pred_check
    _
  $region15: #{multiscale_discriminator_forward.38} parent=0 // pred_check_branch
    %115 = sbr.rel (0) target = $region17
  $region16: #{multiscale_discriminator_forward.38} parent=0 // pred_region
    _
  $region17: #{multiscale_discriminator_forward.38} parent=0 // pred_fallthru
    _
  // Predicated region
  $region18: #{multiscale_discriminator_forward.38} parent=0 // pred_check
    _
  $region19: #{multiscale_discriminator_forward.38} parent=0 // pred_check_branch
    %117 = sbr.rel (0) target = $region21
  $region20: #{multiscale_discriminator_forward.38} parent=0 // pred_region
    _
  $region21: #{multiscale_discriminator_forward.38} parent=0 // pred_fallthru
    _

// kernel: multiscale_discriminator_forward.39
$region0: #{multiscale_discriminator_forward.39}
  #allocation0 [shape = 'u32[]', space=smem, size = 0x4, offset = 0x4, fixed_abs, tag = 'smem constant byte address 0x4 - core index']
  #allocation1 [shape = 'u32[144,128]{1,0:T(1,128)}', space=vmem, size = 0x12000, scoped, tag = 'internal scratch']
  #allocation2 [shape = 'f32[24,128]{1,0:T(8,128)}', space=vmem, size = 0x3000, scoped, tag = 'scratch operand']
  %s0 = inlined_call_operand.vmem [shape: bf16[24,256], index: 0, kind: input, shape index: {}]
  %s1 = inlined_call_operand.vmem [shape: bf16[256,128], index: 1, kind: input, shape index: {}]
  %s2 = inlined_call_operand.vmem [shape: f32[1,128], index: 2, kind: input, shape index: {}]
  %s3 = inlined_call_operand.vmem [shape: bf16[24,128], index: 3, kind: output, shape index: {}]
  %s4 = sld [smem:[#allocation0]]
  $region30: #{multiscale_discriminator_forward.39} parent=0
    _
  %s6 = ssub.s32 1, %s4
  %s7 = scalar_select 0, %s6, %s4
  // Predicated region
  $region2: #{multiscale_discriminator_forward.39} parent=0 // pred_check
    _
  $region3: #{multiscale_discriminator_forward.39} parent=0 // pred_check_branch
    %9 = sbr.rel (0) target = $region5
  $region4: #{multiscale_discriminator_forward.39} parent=0 // pred_region
    _
  $region5: #{multiscale_discriminator_forward.39} parent=0 // pred_fallthru
    _
  // Predicated region
  $region6: #{multiscale_discriminator_forward.39} parent=0 // pred_check
    _
  $region7: #{multiscale_discriminator_forward.39} parent=0 // pred_check_branch
    %11 = sbr.rel (0) target = $region9
  $region8: #{multiscale_discriminator_forward.39} parent=0 // pred_region
    _
  $region9: #{multiscale_discriminator_forward.39} parent=0 // pred_fallthru
    _
  // Predicated region
  $region10: #{multiscale_discriminator_forward.39} parent=0 // pred_check
    _
  $region11: #{multiscale_discriminator_forward.39} parent=0 // pred_check_branch
    %13 = sbr.rel (0) target = $region13
  $region12: #{multiscale_discriminator_forward.39} parent=0 // pred_region
    _
  $region13: #{multiscale_discriminator_forward.39} parent=0 // pred_fallthru
    _
  %p15 = scmp.eq.s32.totalorder 0, 0
  // Predicated region
  $region14: #{multiscale_discriminator_forward.39} parent=0 // pred_check
    %p16 = pneg %p15
  $region15: #{multiscale_discriminator_forward.39} parent=0 // pred_check_branch
    %18 = sbr.rel (%p16) target = $region17
  $region16: #{multiscale_discriminator_forward.39} parent=0 // pred_region
    %19 = vst [vmem:[#allocation2] sm:$0xff] 0.0
    %20 = vst [vmem:[#allocation2 + $0x8] sm:$0xff] 0.0
    %21 = vst [vmem:[#allocation2 + $0x10] sm:$0xff] 0.0
  $region17: #{multiscale_discriminator_forward.39} parent=0 // pred_fallthru
    _
  %v22 = vld [vmem:[#allocation2] sm:$0xff]
  %v23 = vld [vmem:[#allocation2 + $0x8] sm:$0xff]
  %v24 = vld [vmem:[#allocation2 + $0x10] sm:$0xff]
  %v25 = vld [vmem:[%s0] sm:$0xff]
  %v26 = vld [vmem:[%s0 + $0x8] sm:$0xff]
  %v27 = vld [vmem:[%s0 + $0x10] sm:$0xff]
  %v28 = vld [vmem:[%s1] sm:$0xf]
  %v29 = vld [vmem:[%s1 + $0x4] sm:$0xf]
  %v30 = vld [vmem:[%s1 + $0x8] sm:$0xf]
  %v31 = vld [vmem:[%s1 + $0xc] sm:$0xf]
  %v32 = vld [vmem:[%s1 + $0x10] sm:$0xf]
  %v33 = vld [vmem:[%s1 + $0x14] sm:$0xf]
  %v34 = vld [vmem:[%s1 + $0x18] sm:$0xf]
  %v35 = vld [vmem:[%s1 + $0x1c] sm:$0xf]
  %v36 = vld [vmem:[%s1 + $0x20] sm:$0xf]
  %v37 = vld [vmem:[%s1 + $0x24] sm:$0xf]
  %v38 = vld [vmem:[%s1 + $0x28] sm:$0xf]
  %v39 = vld [vmem:[%s1 + $0x2c] sm:$0xf]
  %v40 = vld [vmem:[%s1 + $0x30] sm:$0xf]
  %v41 = vld [vmem:[%s1 + $0x34] sm:$0xf]
  %v42 = vld [vmem:[%s1 + $0x38] sm:$0xf]
  %v43 = vld [vmem:[%s1 + $0x3c] sm:$0xf]
  %v44 = vld [vmem:[%s1 + $0x40] sm:$0xf]
  %v45 = vld [vmem:[%s1 + $0x44] sm:$0xf]
  %v46 = vld [vmem:[%s1 + $0x48] sm:$0xf]
  %v47 = vld [vmem:[%s1 + $0x4c] sm:$0xf]
  %v48 = vld [vmem:[%s1 + $0x50] sm:$0xf]
  %v49 = vld [vmem:[%s1 + $0x54] sm:$0xf]
  %v50 = vld [vmem:[%s1 + $0x58] sm:$0xf]
  %v51 = vld [vmem:[%s1 + $0x5c] sm:$0xf]
  %v52 = vld [vmem:[%s1 + $0x60] sm:$0xf]
  %v53 = vld [vmem:[%s1 + $0x64] sm:$0xf]
  %v54 = vld [vmem:[%s1 + $0x68] sm:$0xf]
  %v55 = vld [vmem:[%s1 + $0x6c] sm:$0xf]
  %v56 = vld [vmem:[%s1 + $0x70] sm:$0xf]
  %v57 = vld [vmem:[%s1 + $0x74] sm:$0xf]
  %v58 = vld [vmem:[%s1 + $0x78] sm:$0xf]
  %v59 = vld [vmem:[%s1 + $0x7c] sm:$0xf]
  %v63 = vunpack.c.l.b16 %v25
  %v64 = vunpack.c.h.b16 %v25
  %v65 = vunpack.c.l.b16 %v26
  %v66 = vunpack.c.h.b16 %v26
  %v67 = vunpack.c.l.b16 %v27
  %v68 = vunpack.c.h.b16 %v27
  %v69 = vpack.c.b16 %v65, %v63
  %v70 = vpack.c.b16 %v66, %v64
  %v71 = vpack.c.b16 %v67, %v67
  %v72 = vpack.c.b16 %v68, %v68
  %v109 = vunpack.c.l.b16 %v28
  %v110 = vunpack.c.l.b16 %v29
  %v111 = vunpack.c.l.b16 %v30
  %v112 = vunpack.c.l.b16 %v31
  %v113 = vunpack.c.l.b16 %v32
  %v114 = vunpack.c.l.b16 %v33
  %v115 = vunpack.c.l.b16 %v34
  %v116 = vunpack.c.l.b16 %v35
  %v117 = vunpack.c.l.b16 %v36
  %v118 = vunpack.c.l.b16 %v37
  %v119 = vunpack.c.l.b16 %v38
  %v120 = vunpack.c.l.b16 %v39
  %v121 = vunpack.c.l.b16 %v40
  %v122 = vunpack.c.l.b16 %v41
  %v123 = vunpack.c.l.b16 %v42
  %v124 = vunpack.c.l.b16 %v43
  %v125 = vunpack.c.l.b16 %v44
  %v126 = vunpack.c.l.b16 %v45
  %v127 = vunpack.c.l.b16 %v46
  %v128 = vunpack.c.l.b16 %v47
  %v129 = vunpack.c.l.b16 %v48
  %v130 = vunpack.c.l.b16 %v49
  %v131 = vunpack.c.l.b16 %v50
  %v132 = vunpack.c.l.b16 %v51
  %v133 = vunpack.c.l.b16 %v52
  %v134 = vunpack.c.l.b16 %v53
  %v135 = vunpack.c.l.b16 %v54
  %v136 = vunpack.c.l.b16 %v55
  %v137 = vunpack.c.l.b16 %v56
  %v138 = vunpack.c.l.b16 %v57
  %v139 = vunpack.c.l.b16 %v58
  %v140 = vunpack.c.l.b16 %v59
  %v141 = vpack.c.b16 %v110, %v109
  %v142 = vpack.c.b16 %v112, %v111
  %v143 = vpack.c.b16 %v114, %v113
  %v144 = vpack.c.b16 %v116, %v115
  %v145 = vpack.c.b16 %v118, %v117
  %v146 = vpack.c.b16 %v120, %v119
  %v147 = vpack.c.b16 %v122, %v121
  %v148 = vpack.c.b16 %v124, %v123
  %v149 = vpack.c.b16 %v126, %v125
  %v150 = vpack.c.b16 %v128, %v127
  %v151 = vpack.c.b16 %v130, %v129
  %v152 = vpack.c.b16 %v132, %v131
  %v153 = vpack.c.b16 %v134, %v133
  %v154 = vpack.c.b16 %v136, %v135
  %v155 = vpack.c.b16 %v138, %v137
  %v156 = vpack.c.b16 %v140, %v139
  %173 = vmatprep.subr.bf16.mxu0 0
  %174 = vmatpush1.bf16.msra.mxu0 %v141
  %175 = vmatprep.subr.bf16.mxu0 0
  %176 = vmatpush1.bf16.msra.mxu0 %v142
  %177 = vmatprep.subr.bf16.mxu0 0
  %178 = vmatpush1.bf16.msra.mxu0 %v143
  %179 = vmatprep.subr.bf16.mxu0 0
  %180 = vmatpush1.bf16.msra.mxu0 %v144
  %181 = vmatprep.subr.bf16.mxu0 0
  %182 = vmatpush1.bf16.msra.mxu0 %v145
  %183 = vmatprep.subr.bf16.mxu0 0
  %184 = vmatpush1.bf16.msra.mxu0 %v146
  %185 = vmatprep.subr.bf16.mxu0 0
  %186 = vmatpush1.bf16.msra.mxu0 %v147
  %187 = vmatprep.subr.bf16.mxu0 0
  %188 = vmatpush1.bf16.msra.mxu0 %v148
  %189 = vmatprep.subr.bf16.mxu0 0
  %190 = vmatpush1.bf16.msra.mxu0 %v149
  %191 = vmatprep.subr.bf16.mxu0 0
  %192 = vmatpush1.bf16.msra.mxu0 %v150
  %193 = vmatprep.subr.bf16.mxu0 0
  %194 = vmatpush1.bf16.msra.mxu0 %v151
  %195 = vmatprep.subr.bf16.mxu0 0
  %196 = vmatpush1.bf16.msra.mxu0 %v152
  %197 = vmatprep.subr.bf16.mxu0 0
  %198 = vmatpush1.bf16.msra.mxu0 %v153
  %199 = vmatprep.subr.bf16.mxu0 0
  %200 = vmatpush1.bf16.msra.mxu0 %v154
  %201 = vmatprep.subr.bf16.mxu0 0
  %202 = vmatpush1.bf16.msra.mxu0 %v155
  %203 = vmatprep.subr.bf16.mxu0 0
  %204 = vmatpush1.bf16.msra.mxu0 %v156
  %205 = vmatprep.mubr.bf16.mxu0 %v70
  %206 = vmatmul.mubr.bf16.gmra.mrb[0].mxu0 %v69
  %v207 = vpop.f32.mrb[0].mxu0
  %v208 = vadd.f32 0.0, %v207
  %v209 = vpop.f32.mrb[0].mxu0
  %v210 = vpop.f32.mrb[0].mxu0
  %v211 = vadd.f32 0.0, %v210
  %v212 = vpop.f32.mrb[0].mxu0
  %213 = vmatprep.mubr.bf16.mxu0 %v72
  %214 = vmatmul.mubr.bf16.gmra.mrb[0].mxu0 %v71
  %v215 = vpop.f32.mrb[0].mxu0
  %v216 = vadd.f32 0.0, %v215
  %v217 = vpop.f32.mrb[0].mxu0
  %v218 = vpop.f32.mrb[0].mxu0
  %v219 = vpop.f32.mrb[0].mxu0
  %220 = vdwg.mxu0
  %v221 = vadd.f32 %v22, %v208
  %v222 = vadd.f32 %v23, %v211
  %v223 = vadd.f32 %v24, %v216
  %224 = vst [vmem:[#allocation2] sm:$0xff] %v221
  %225 = vst [vmem:[#allocation2 + $0x8] sm:$0xff] %v222
  %226 = vst [vmem:[#allocation2 + $0x10] sm:$0xff] %v223
  // Predicated region
  $region18: #{multiscale_discriminator_forward.39} parent=0 // pred_check
    %p227 = pneg %p15
  $region19: #{multiscale_discriminator_forward.39} parent=0 // pred_check_branch
    %229 = sbr.rel (%p227) target = $region21
  $region20: #{multiscale_discriminator_forward.39} parent=0 // pred_region
    %v230 = vld [vmem:[#allocation2] sm:$0xff]
    %v231 = vld [vmem:[#allocation2 + $0x8] sm:$0xff]
    %v232 = vld [vmem:[#allocation2 + $0x10] sm:$0xff]
    %v233 = vld [vmem:[%s2] sm:$0x1]
    %v235 = vlaneseq
    %v236 = vshrl.u32 %v235, 7
    %v237 = vsub.s32 0, %v236
    %v238 = vrot.slane %v233, %v237
    %v240 = vadd.f32 %v230, %v238
    %v241 = vadd.f32 %v231, %v238
    %v242 = vadd.f32 %v232, %v238
    %v243 = vpack.c.bf16 %v241, %v240
    %v244 = vpack.c.bf16 %v242, %v242
    %v247 = vunpack.c.l.b16 %v243
    %v248 = vunpack.c.h.b16 %v243
    %v249 = vunpack.c.l.b16 %v244
    %v250 = vpack.c.b16 %v247, %v247
    %v251 = vpack.c.b16 %v248, %v248
    %v252 = vpack.c.b16 %v249, %v249
    %256 = vst [vmem:[%s3] sm:$0xf] %v250
    %257 = vst [vmem:[%s3 + $0x4] sm:$0xf] %v251
    %258 = vst [vmem:[%s3 + $0x8] sm:$0xf] %v252
  $region21: #{multiscale_discriminator_forward.39} parent=0 // pred_fallthru
    _
  // Predicated region
  $region22: #{multiscale_discriminator_forward.39} parent=0 // pred_check
    _
  $region23: #{multiscale_discriminator_forward.39} parent=0 // pred_check_branch
    %260 = sbr.rel (0) target = $region25
  $region24: #{multiscale_discriminator_forward.39} parent=0 // pred_region
    _
  $region25: #{multiscale_discriminator_forward.39} parent=0 // pred_fallthru
    _
  // Predicated region
  $region26: #{multiscale_discriminator_forward.39} parent=0 // pred_check
    _
  $region27: #{multiscale_discriminator_forward.39} parent=0 // pred_check_branch
    %262 = sbr.rel (0) target = $region29
  $region28: #{multiscale_discriminator_forward.39} parent=0 // pred_region
    _
  $region29: #{multiscale_discriminator_forward.39} parent=0 // pred_fallthru
    _

// kernel: multiscale_discriminator_forward.40
$region0: #{multiscale_discriminator_forward.40}
  #allocation0 [shape = 'u32[]', space=smem, size = 0x4, offset = 0x4, fixed_abs, tag = 'smem constant byte address 0x4 - core index']
  #allocation1 [shape = 'u32[144,128]{1,0:T(1,128)}', space=vmem, size = 0x12000, scoped, tag = 'internal scratch']
  %s0 = inlined_call_operand.vmem [shape: bf16[24,32], index: 0, kind: input, shape index: {}]
  %s1 = inlined_call_operand.vmem [shape: f32[1,1,32], index: 1, kind: output, shape index: {0}]
  %s2 = inlined_call_operand.vmem [shape: f32[1,1,32], index: 2, kind: output, shape index: {1}]
  %3 = xla_tuple %s1, %s2
  %s4 = sld [smem:[#allocation0]]
  $region22: #{multiscale_discriminator_forward.40} parent=0
    _
  %s6 = ssub.s32 1, %s4
  %s7 = scalar_select 0, %s6, %s4
  // Predicated region
  $region2: #{multiscale_discriminator_forward.40} parent=0 // pred_check
    _
  $region3: #{multiscale_discriminator_forward.40} parent=0 // pred_check_branch
    %9 = sbr.rel (0) target = $region5
  $region4: #{multiscale_discriminator_forward.40} parent=0 // pred_region
    _
  $region5: #{multiscale_discriminator_forward.40} parent=0 // pred_fallthru
    _
  %v10 = vld [vmem:[%s0] sm:$0xf]
  %v11 = vld [vmem:[%s0 + $0x4] sm:$0xf]
  %v12 = vld [vmem:[%s0 + $0x8] sm:$0xf]
  %v13 = vunpack.c.l.bf16 %v10
  %v14 = vunpack.c.l.bf16 %v11
  %v15 = vunpack.c.l.bf16 %v12
  %vm16 = vcmask 261120
  %v17 = vsel %vm16, %v13, 0.0
  %v18 = vsel %vm16, %v14, 0.0
  %v19 = vadd.f32 %v17, %v18
  %v20 = vsel %vm16, %v15, 0.0
  %v21 = vadd.f32 %v19, %v20
  %v22 = vrot.slane %v21, 4
  %v23 = vadd.f32 %v21, %v22
  %v24 = vrot.slane %v23, 2
  %v25 = vadd.f32 %v23, %v24
  %v26 = vrot.slane %v25, 1
  %v27 = vadd.f32 %v25, %v26
  %vm28 = vcmask 253952
  %29 = vst.msk [vmem:[%s1] sm:$0x1] %vm28, %v27
  %v30 = vmul.f32 %v13, %v13
  %v31 = vmul.f32 %v14, %v14
  %v32 = vmul.f32 %v15, %v15
  %v33 = vsel %vm16, %v30, 0.0
  %v34 = vsel %vm16, %v31, 0.0
  %v35 = vadd.f32 %v33, %v34
  %v36 = vsel %vm16, %v32, 0.0
  %v37 = vadd.f32 %v35, %v36
  %v38 = vrot.slane %v37, 4
  %v39 = vadd.f32 %v37, %v38
  %v40 = vrot.slane %v39, 2
  %v41 = vadd.f32 %v39, %v40
  %v42 = vrot.slane %v41, 1
  %v43 = vadd.f32 %v41, %v42
  %44 = vst.msk [vmem:[%s2] sm:$0x1] %vm28, %v43
  // Predicated region
  $region6: #{multiscale_discriminator_forward.40} parent=0 // pred_check
    _
  $region7: #{multiscale_discriminator_forward.40} parent=0 // pred_check_branch
    %46 = sbr.rel (0) target = $region9
  $region8: #{multiscale_discriminator_forward.40} parent=0 // pred_region
    _
  $region9: #{multiscale_discriminator_forward.40} parent=0 // pred_fallthru
    _
  // Predicated region
  $region10: #{multiscale_discriminator_forward.40} parent=0 // pred_check
    _
  $region11: #{multiscale_discriminator_forward.40} parent=0 // pred_check_branch
    %48 = sbr.rel (0) target = $region13
  $region12: #{multiscale_discriminator_forward.40} parent=0 // pred_region
    _
  $region13: #{multiscale_discriminator_forward.40} parent=0 // pred_fallthru
    _
  // Predicated region
  $region14: #{multiscale_discriminator_forward.40} parent=0 // pred_check
    _
  $region15: #{multiscale_discriminator_forward.40} parent=0 // pred_check_branch
    %50 = sbr.rel (0) target = $region17
  $region16: #{multiscale_discriminator_forward.40} parent=0 // pred_region
    _
  $region17: #{multiscale_discriminator_forward.40} parent=0 // pred_fallthru
    _
  // Predicated region
  $region18: #{multiscale_discriminator_forward.40} parent=0 // pred_check
    _
  $region19: #{multiscale_discriminator_forward.40} parent=0 // pred_check_branch
    %52 = sbr.rel (0) target = $region21
  $region20: #{multiscale_discriminator_forward.40} parent=0 // pred_region
    _
  $region21: #{multiscale_discriminator_forward.40} parent=0 // pred_fallthru
    _

// kernel: multiscale_discriminator_forward.41
$region0: #{multiscale_discriminator_forward.41}
  #allocation0 [shape = 'u32[]', space=smem, size = 0x4, offset = 0x4, fixed_abs, tag = 'smem constant byte address 0x4 - core index']
  #allocation1 [shape = 'u32[144,128]{1,0:T(1,128)}', space=vmem, size = 0x12000, scoped, tag = 'internal scratch']
  %s0 = inlined_call_operand.vmem [shape: bf16[24,32], index: 0, kind: input, shape index: {}]
  %s1 = inlined_call_operand.vmem [shape: f32[1,32], index: 1, kind: input, shape index: {}]
  %s2 = inlined_call_operand.vmem [shape: f32[1,32], index: 2, kind: input, shape index: {}]
  %s3 = inlined_call_operand.vmem [shape: bf16[24,32], index: 3, kind: output, shape index: {}]
  %s4 = sld [smem:[#allocation0]]
  $region22: #{multiscale_discriminator_forward.41} parent=0
    _
  %s6 = ssub.s32 1, %s4
  %s7 = scalar_select 0, %s6, %s4
  // Predicated region
  $region2: #{multiscale_discriminator_forward.41} parent=0 // pred_check
    _
  $region3: #{multiscale_discriminator_forward.41} parent=0 // pred_check_branch
    %9 = sbr.rel (0) target = $region5
  $region4: #{multiscale_discriminator_forward.41} parent=0 // pred_region
    _
  $region5: #{multiscale_discriminator_forward.41} parent=0 // pred_fallthru
    _
  // Predicated region
  $region6: #{multiscale_discriminator_forward.41} parent=0 // pred_check
    _
  $region7: #{multiscale_discriminator_forward.41} parent=0 // pred_check_branch
    %11 = sbr.rel (0) target = $region9
  $region8: #{multiscale_discriminator_forward.41} parent=0 // pred_region
    _
  $region9: #{multiscale_discriminator_forward.41} parent=0 // pred_fallthru
    _
  // Predicated region
  $region10: #{multiscale_discriminator_forward.41} parent=0 // pred_check
    _
  $region11: #{multiscale_discriminator_forward.41} parent=0 // pred_check_branch
    %13 = sbr.rel (0) target = $region13
  $region12: #{multiscale_discriminator_forward.41} parent=0 // pred_region
    _
  $region13: #{multiscale_discriminator_forward.41} parent=0 // pred_fallthru
    _
  %v14 = vld [vmem:[%s0] sm:$0xf]
  %v15 = vld [vmem:[%s0 + $0x4] sm:$0xf]
  %v16 = vld [vmem:[%s0 + $0x8] sm:$0xf]
  %v17 = vunpack.c.l.bf16 %v14
  %v18 = vunpack.c.l.bf16 %v15
  %v19 = vunpack.c.l.bf16 %v16
  %v20 = vld [vmem:[%s1] sm:$0x1]
  %v22 = vlaneseq
  %v23 = vshrl.u32 %v22, 7
  %v24 = vsub.s32 0, %v23
  %v25 = vrot.slane %v20, %v24
  %v27 = vmul.f32 %v17, %v25
  %v28 = vmul.f32 %v18, %v25
  %v29 = vmul.f32 %v19, %v25
  %v30 = vld [vmem:[%s2] sm:$0x1]
  %v32 = vlaneseq
  %v33 = vshrl.u32 %v32, 7
  %v34 = vsub.s32 0, %v33
  %v35 = vrot.slane %v30, %v34
  %v37 = vadd.f32 %v27, %v35
  %v38 = vadd.f32 %v28, %v35
  %v39 = vadd.f32 %v29, %v35
  %vm40 = vcmp.gt.f32.partialorder %v37, 0.0
  %vm41 = vcmp.gt.f32.partialorder %v38, 0.0
  %vm42 = vcmp.gt.f32.partialorder %v39, 0.0
  %v43 = vmul.f32 %v37, 0.2
  %v44 = vmul.f32 %v38, 0.2
  %v45 = vmul.f32 %v39, 0.2
  %v46 = vsel %vm40, %v37, %v43
  %v47 = vsel %vm41, %v38, %v44
  %v48 = vsel %vm42, %v39, %v45
  %v49 = vpack.c.bf16 %v47, %v46
  %v50 = vpack.c.bf16 %v48, %v48
  %v53 = vunpack.c.l.b16 %v49
  %v54 = vunpack.c.h.b16 %v49
  %v55 = vunpack.c.l.b16 %v50
  %v56 = vpack.c.b16 %v53, %v53
  %v57 = vpack.c.b16 %v54, %v54
  %v58 = vpack.c.b16 %v55, %v55
  %vm62 = vcmask 257024
  %63 = vst.msk [vmem:[%s3] sm:$0xf] %vm62, %v56
  %64 = vst.msk [vmem:[%s3 + $0x4] sm:$0xf] %vm62, %v57
  %65 = vst.msk [vmem:[%s3 + $0x8] sm:$0xf] %vm62, %v58
  // Predicated region
  $region14: #{multiscale_discriminator_forward.41} parent=0 // pred_check
    _
  $region15: #{multiscale_discriminator_forward.41} parent=0 // pred_check_branch
    %67 = sbr.rel (0) target = $region17
  $region16: #{multiscale_discriminator_forward.41} parent=0 // pred_region
    _
  $region17: #{multiscale_discriminator_forward.41} parent=0 // pred_fallthru
    _
  // Predicated region
  $region18: #{multiscale_discriminator_forward.41} parent=0 // pred_check
    _
  $region19: #{multiscale_discriminator_forward.41} parent=0 // pred_check_branch
    %69 = sbr.rel (0) target = $region21
  $region20: #{multiscale_discriminator_forward.41} parent=0 // pred_region
    _
  $region21: #{multiscale_discriminator_forward.41} parent=0 // pred_fallthru
    _

// kernel: multiscale_discriminator_forward.42
$region0: #{multiscale_discriminator_forward.42}
  #allocation0 [shape = 'u32[]', space=smem, size = 0x4, offset = 0x4, fixed_abs, tag = 'smem constant byte address 0x4 - core index']
  #allocation1 [shape = 'u32[144,128]{1,0:T(1,128)}', space=vmem, size = 0x12000, scoped, tag = 'internal scratch']
  #allocation2 [shape = 'f32[32,128]{1,0:T(8,128)}', space=vmem, size = 0x4000, scoped, tag = 'scratch operand']
  %s0 = inlined_call_operand.vmem [shape: bf16[32,512], index: 0, kind: input, shape index: {}]
  %s1 = inlined_call_operand.vmem [shape: bf16[512,128], index: 1, kind: input, shape index: {}]
  %s2 = inlined_call_operand.vmem [shape: f32[1,128], index: 2, kind: input, shape index: {}]
  %s3 = inlined_call_operand.vmem [shape: bf16[32,128], index: 3, kind: output, shape index: {}]
  %s4 = sld [smem:[#allocation0]]
  $region30: #{multiscale_discriminator_forward.42} parent=0
    _
  %s6 = ssub.s32 1, %s4
  %s7 = scalar_select 0, %s6, %s4
  // Predicated region
  $region2: #{multiscale_discriminator_forward.42} parent=0 // pred_check
    _
  $region3: #{multiscale_discriminator_forward.42} parent=0 // pred_check_branch
    %9 = sbr.rel (0) target = $region5
  $region4: #{multiscale_discriminator_forward.42} parent=0 // pred_region
    _
  $region5: #{multiscale_discriminator_forward.42} parent=0 // pred_fallthru
    _
  // Predicated region
  $region6: #{multiscale_discriminator_forward.42} parent=0 // pred_check
    _
  $region7: #{multiscale_discriminator_forward.42} parent=0 // pred_check_branch
    %11 = sbr.rel (0) target = $region9
  $region8: #{multiscale_discriminator_forward.42} parent=0 // pred_region
    _
  $region9: #{multiscale_discriminator_forward.42} parent=0 // pred_fallthru
    _
  // Predicated region
  $region10: #{multiscale_discriminator_forward.42} parent=0 // pred_check
    _
  $region11: #{multiscale_discriminator_forward.42} parent=0 // pred_check_branch
    %13 = sbr.rel (0) target = $region13
  $region12: #{multiscale_discriminator_forward.42} parent=0 // pred_region
    _
  $region13: #{multiscale_discriminator_forward.42} parent=0 // pred_fallthru
    _
  %p15 = scmp.eq.s32.totalorder 0, 0
  // Predicated region
  $region14: #{multiscale_discriminator_forward.42} parent=0 // pred_check
    %p16 = pneg %p15
  $region15: #{multiscale_discriminator_forward.42} parent=0 // pred_check_branch
    %18 = sbr.rel (%p16) target = $region17
  $region16: #{multiscale_discriminator_forward.42} parent=0 // pred_region
    %19 = vst [vmem:[#allocation2] sm:$0xff] 0.0
    %20 = vst [vmem:[#allocation2 + $0x8] sm:$0xff] 0.0
    %21 = vst [vmem:[#allocation2 + $0x10] sm:$0xff] 0.0
    %22 = vst [vmem:[#allocation2 + $0x18] sm:$0xff] 0.0
  $region17: #{multiscale_discriminator_forward.42} parent=0 // pred_fallthru
    _
  %v23 = vld [vmem:[#allocation2] sm:$0xff]
  %v24 = vld [vmem:[#allocation2 + $0x8] sm:$0xff]
  %v25 = vld [vmem:[#allocation2 + $0x10] sm:$0xff]
  %v26 = vld [vmem:[#allocation2 + $0x18] sm:$0xff]
  %v27 = vld [vmem:[%s0] sm:$0xff]
  %v28 = vld [vmem:[%s0 + $0x8] sm:$0xff]
  %v29 = vld [vmem:[%s0 + $0x10] sm:$0xff]
  %v30 = vld [vmem:[%s0 + $0x18] sm:$0xff]
  %v31 = vld [vmem:[%s0 + $0x20] sm:$0xff]
  %v32 = vld [vmem:[%s0 + $0x28] sm:$0xff]
  %v33 = vld [vmem:[%s0 + $0x30] sm:$0xff]
  %v34 = vld [vmem:[%s0 + $0x38] sm:$0xff]
  %v35 = vld [vmem:[%s1] sm:$0xf]
  %v36 = vld [vmem:[%s1 + $0x4] sm:$0xf]
  %v37 = vld [vmem:[%s1 + $0x8] sm:$0xf]
  %v38 = vld [vmem:[%s1 + $0xc] sm:$0xf]
  %v39 = vld [vmem:[%s1 + $0x10] sm:$0xf]
  %v40 = vld [vmem:[%s1 + $0x14] sm:$0xf]
  %v41 = vld [vmem:[%s1 + $0x18] sm:$0xf]
  %v42 = vld [vmem:[%s1 + $0x1c] sm:$0xf]
  %v43 = vld [vmem:[%s1 + $0x20] sm:$0xf]
  %v44 = vld [vmem:[%s1 + $0x24] sm:$0xf]
  %v45 = vld [vmem:[%s1 + $0x28] sm:$0xf]
  %v46 = vld [vmem:[%s1 + $0x2c] sm:$0xf]
  %v47 = vld [vmem:[%s1 + $0x30] sm:$0xf]
  %v48 = vld [vmem:[%s1 + $0x34] sm:$0xf]
  %v49 = vld [vmem:[%s1 + $0x38] sm:$0xf]
  %v50 = vld [vmem:[%s1 + $0x3c] sm:$0xf]
  %v51 = vld [vmem:[%s1 + $0x40] sm:$0xf]
  %v52 = vld [vmem:[%s1 + $0x44] sm:$0xf]
  %v53 = vld [vmem:[%s1 + $0x48] sm:$0xf]
  %v54 = vld [vmem:[%s1 + $0x4c] sm:$0xf]
  %v55 = vld [vmem:[%s1 + $0x50] sm:$0xf]
  %v56 = vld [vmem:[%s1 + $0x54] sm:$0xf]
  %v57 = vld [vmem:[%s1 + $0x58] sm:$0xf]
  %v58 = vld [vmem:[%s1 + $0x5c] sm:$0xf]
  %v59 = vld [vmem:[%s1 + $0x60] sm:$0xf]
  %v60 = vld [vmem:[%s1 + $0x64] sm:$0xf]
  %v61 = vld [vmem:[%s1 + $0x68] sm:$0xf]
  %v62 = vld [vmem:[%s1 + $0x6c] sm:$0xf]
  %v63 = vld [vmem:[%s1 + $0x70] sm:$0xf]
  %v64 = vld [vmem:[%s1 + $0x74] sm:$0xf]
  %v65 = vld [vmem:[%s1 + $0x78] sm:$0xf]
  %v66 = vld [vmem:[%s1 + $0x7c] sm:$0xf]
  %v67 = vld [vmem:[%s1 + $0x80] sm:$0xf]
  %v68 = vld [vmem:[%s1 + $0x84] sm:$0xf]
  %v69 = vld [vmem:[%s1 + $0x88] sm:$0xf]
  %v70 = vld [vmem:[%s1 + $0x8c] sm:$0xf]
  %v71 = vld [vmem:[%s1 + $0x90] sm:$0xf]
  %v72 = vld [vmem:[%s1 + $0x94] sm:$0xf]
  %v73 = vld [vmem:[%s1 + $0x98] sm:$0xf]
  %v74 = vld [vmem:[%s1 + $0x9c] sm:$0xf]
  %v75 = vld [vmem:[%s1 + $0xa0] sm:$0xf]
  %v76 = vld [vmem:[%s1 + $0xa4] sm:$0xf]
  %v77 = vld [vmem:[%s1 + $0xa8] sm:$0xf]
  %v78 = vld [vmem:[%s1 + $0xac] sm:$0xf]
  %v79 = vld [vmem:[%s1 + $0xb0] sm:$0xf]
  %v80 = vld [vmem:[%s1 + $0xb4] sm:$0xf]
  %v81 = vld [vmem:[%s1 + $0xb8] sm:$0xf]
  %v82 = vld [vmem:[%s1 + $0xbc] sm:$0xf]
  %v83 = vld [vmem:[%s1 + $0xc0] sm:$0xf]
  %v84 = vld [vmem:[%s1 + $0xc4] sm:$0xf]
  %v85 = vld [vmem:[%s1 + $0xc8] sm:$0xf]
  %v86 = vld [vmem:[%s1 + $0xcc] sm:$0xf]
  %v87 = vld [vmem:[%s1 + $0xd0] sm:$0xf]
  %v88 = vld [vmem:[%s1 + $0xd4] sm:$0xf]
  %v89 = vld [vmem:[%s1 + $0xd8] sm:$0xf]
  %v90 = vld [vmem:[%s1 + $0xdc] sm:$0xf]
  %v91 = vld [vmem:[%s1 + $0xe0] sm:$0xf]
  %v92 = vld [vmem:[%s1 + $0xe4] sm:$0xf]
  %v93 = vld [vmem:[%s1 + $0xe8] sm:$0xf]
  %v94 = vld [vmem:[%s1 + $0xec] sm:$0xf]
  %v95 = vld [vmem:[%s1 + $0xf0] sm:$0xf]
  %v96 = vld [vmem:[%s1 + $0xf4] sm:$0xf]
  %v97 = vld [vmem:[%s1 + $0xf8] sm:$0xf]
  %v98 = vld [vmem:[%s1 + $0xfc] sm:$0xf]
  %v107 = vunpack.c.l.b16 %v27
  %v108 = vunpack.c.h.b16 %v27
  %v109 = vunpack.c.l.b16 %v28
  %v110 = vunpack.c.h.b16 %v28
  %v111 = vunpack.c.l.b16 %v29
  %v112 = vunpack.c.h.b16 %v29
  %v113 = vunpack.c.l.b16 %v30
  %v114 = vunpack.c.h.b16 %v30
  %v115 = vunpack.c.l.b16 %v31
  %v116 = vunpack.c.h.b16 %v31
  %v117 = vunpack.c.l.b16 %v32
  %v118 = vunpack.c.h.b16 %v32
  %v119 = vunpack.c.l.b16 %v33
  %v120 = vunpack.c.h.b16 %v33
  %v121 = vunpack.c.l.b16 %v34
  %v122 = vunpack.c.h.b16 %v34
  %v123 = vpack.c.b16 %v111, %v107
  %v124 = vpack.c.b16 %v112, %v108
  %v125 = vpack.c.b16 %v113, %v109
  %v126 = vpack.c.b16 %v114, %v110
  %v127 = vpack.c.b16 %v119, %v115
  %v128 = vpack.c.b16 %v120, %v116
  %v129 = vpack.c.b16 %v121, %v117
  %v130 = vpack.c.b16 %v122, %v118
  %v203 = vunpack.c.l.b16 %v35
  %v204 = vunpack.c.l.b16 %v36
  %v205 = vunpack.c.l.b16 %v37
  %v206 = vunpack.c.l.b16 %v38
  %v207 = vunpack.c.l.b16 %v39
  %v208 = vunpack.c.l.b16 %v40
  %v209 = vunpack.c.l.b16 %v41
  %v210 = vunpack.c.l.b16 %v42
  %v211 = vunpack.c.l.b16 %v43
  %v212 = vunpack.c.l.b16 %v44
  %v213 = vunpack.c.l.b16 %v45
  %v214 = vunpack.c.l.b16 %v46
  %v215 = vunpack.c.l.b16 %v47
  %v216 = vunpack.c.l.b16 %v48
  %v217 = vunpack.c.l.b16 %v49
  %v218 = vunpack.c.l.b16 %v50
  %v219 = vunpack.c.l.b16 %v51
  %v220 = vunpack.c.l.b16 %v52
  %v221 = vunpack.c.l.b16 %v53
  %v222 = vunpack.c.l.b16 %v54
  %v223 = vunpack.c.l.b16 %v55
  %v224 = vunpack.c.l.b16 %v56
  %v225 = vunpack.c.l.b16 %v57
  %v226 = vunpack.c.l.b16 %v58
  %v227 = vunpack.c.l.b16 %v59
  %v228 = vunpack.c.l.b16 %v60
  %v229 = vunpack.c.l.b16 %v61
  %v230 = vunpack.c.l.b16 %v62
  %v231 = vunpack.c.l.b16 %v63
  %v232 = vunpack.c.l.b16 %v64
  %v233 = vunpack.c.l.b16 %v65
  %v234 = vunpack.c.l.b16 %v66
  %v235 = vunpack.c.l.b16 %v67
  %v236 = vunpack.c.l.b16 %v68
  %v237 = vunpack.c.l.b16 %v69
  %v238 = vunpack.c.l.b16 %v70
  %v239 = vunpack.c.l.b16 %v71
  %v240 = vunpack.c.l.b16 %v72
  %v241 = vunpack.c.l.b16 %v73
  %v242 = vunpack.c.l.b16 %v74
  %v243 = vunpack.c.l.b16 %v75
  %v244 = vunpack.c.l.b16 %v76
  %v245 = vunpack.c.l.b16 %v77
  %v246 = vunpack.c.l.b16 %v78
  %v247 = vunpack.c.l.b16 %v79
  %v248 = vunpack.c.l.b16 %v80
  %v249 = vunpack.c.l.b16 %v81
  %v250 = vunpack.c.l.b16 %v82
  %v251 = vunpack.c.l.b16 %v83
  %v252 = vunpack.c.l.b16 %v84
  %v253 = vunpack.c.l.b16 %v85
  %v254 = vunpack.c.l.b16 %v86
  %v255 = vunpack.c.l.b16 %v87
  %v256 = vunpack.c.l.b16 %v88
  %v257 = vunpack.c.l.b16 %v89
  %v258 = vunpack.c.l.b16 %v90
  %v259 = vunpack.c.l.b16 %v91
  %v260 = vunpack.c.l.b16 %v92
  %v261 = vunpack.c.l.b16 %v93
  %v262 = vunpack.c.l.b16 %v94
  %v263 = vunpack.c.l.b16 %v95
  %v264 = vunpack.c.l.b16 %v96
  %v265 = vunpack.c.l.b16 %v97
  %v266 = vunpack.c.l.b16 %v98
  %v267 = vpack.c.b16 %v204, %v203
  %v268 = vpack.c.b16 %v206, %v205
  %v269 = vpack.c.b16 %v208, %v207
  %v270 = vpack.c.b16 %v210, %v209
  %v271 = vpack.c.b16 %v212, %v211
  %v272 = vpack.c.b16 %v214, %v213
  %v273 = vpack.c.b16 %v216, %v215
  %v274 = vpack.c.b16 %v218, %v217
  %v275 = vpack.c.b16 %v220, %v219
  %v276 = vpack.c.b16 %v222, %v221
  %v277 = vpack.c.b16 %v224, %v223
  %v278 = vpack.c.b16 %v226, %v225
  %v279 = vpack.c.b16 %v228, %v227
  %v280 = vpack.c.b16 %v230, %v229
  %v281 = vpack.c.b16 %v232, %v231
  %v282 = vpack.c.b16 %v234, %v233
  %v283 = vpack.c.b16 %v236, %v235
  %v284 = vpack.c.b16 %v238, %v237
  %v285 = vpack.c.b16 %v240, %v239
  %v286 = vpack.c.b16 %v242, %v241
  %v287 = vpack.c.b16 %v244, %v243
  %v288 = vpack.c.b16 %v246, %v245
  %v289 = vpack.c.b16 %v248, %v247
  %v290 = vpack.c.b16 %v250, %v249
  %v291 = vpack.c.b16 %v252, %v251
  %v292 = vpack.c.b16 %v254, %v253
  %v293 = vpack.c.b16 %v256, %v255
  %v294 = vpack.c.b16 %v258, %v257
  %v295 = vpack.c.b16 %v260, %v259
  %v296 = vpack.c.b16 %v262, %v261
  %v297 = vpack.c.b16 %v264, %v263
  %v298 = vpack.c.b16 %v266, %v265
  %331 = vmatprep.subr.bf16.mxu0 0
  %332 = vmatpush1.bf16.msra.mxu0 %v267
  %333 = vmatprep.subr.bf16.mxu0 0
  %334 = vmatpush1.bf16.msra.mxu0 %v268
  %335 = vmatprep.subr.bf16.mxu0 0
  %336 = vmatpush1.bf16.msra.mxu0 %v269
  %337 = vmatprep.subr.bf16.mxu0 0
  %338 = vmatpush1.bf16.msra.mxu0 %v270
  %339 = vmatprep.subr.bf16.mxu0 0
  %340 = vmatpush1.bf16.msra.mxu0 %v271
  %341 = vmatprep.subr.bf16.mxu0 0
  %342 = vmatpush1.bf16.msra.mxu0 %v272
  %343 = vmatprep.subr.bf16.mxu0 0
  %344 = vmatpush1.bf16.msra.mxu0 %v273
  %345 = vmatprep.subr.bf16.mxu0 0
  %346 = vmatpush1.bf16.msra.mxu0 %v274
  %347 = vmatprep.subr.bf16.mxu0 0
  %348 = vmatpush1.bf16.msra.mxu0 %v275
  %349 = vmatprep.subr.bf16.mxu0 0
  %350 = vmatpush1.bf16.msra.mxu0 %v276
  %351 = vmatprep.subr.bf16.mxu0 0
  %352 = vmatpush1.bf16.msra.mxu0 %v277
  %353 = vmatprep.subr.bf16.mxu0 0
  %354 = vmatpush1.bf16.msra.mxu0 %v278
  %355 = vmatprep.subr.bf16.mxu0 0
  %356 = vmatpush1.bf16.msra.mxu0 %v279
  %357 = vmatprep.subr.bf16.mxu0 0
  %358 = vmatpush1.bf16.msra.mxu0 %v280
  %359 = vmatprep.subr.bf16.mxu0 0
  %360 = vmatpush1.bf16.msra.mxu0 %v281
  %361 = vmatprep.subr.bf16.mxu0 0
  %362 = vmatpush1.bf16.msra.mxu0 %v282
  %363 = vmatprep.mubr.bf16.mxu0 %v124
  %364 = vmatmul.mubr.bf16.gmra.mrb[0].mxu0 %v123
  %v365 = vpop.f32.mrb[0].mxu0
  %v366 = vadd.f32 0.0, %v365
  %v367 = vpop.f32.mrb[0].mxu0
  %v368 = vpop.f32.mrb[0].mxu0
  %v369 = vadd.f32 0.0, %v368
  %v370 = vpop.f32.mrb[0].mxu0
  %371 = vmatprep.mubr.bf16.mxu0 %v128
  %372 = vmatmul.mubr.bf16.gmra.mrb[0].mxu0 %v127
  %v373 = vpop.f32.mrb[0].mxu0
  %v374 = vadd.f32 0.0, %v373
  %v375 = vpop.f32.mrb[0].mxu0
  %v376 = vpop.f32.mrb[0].mxu0
  %v377 = vadd.f32 0.0, %v376
  %v378 = vpop.f32.mrb[0].mxu0
  %379 = vdwg.mxu0
  %380 = vmatprep.subr.bf16.mxu0 0
  %381 = vmatpush1.bf16.msra.mxu0 %v283
  %382 = vmatprep.subr.bf16.mxu0 0
  %383 = vmatpush1.bf16.msra.mxu0 %v284
  %384 = vmatprep.subr.bf16.mxu0 0
  %385 = vmatpush1.bf16.msra.mxu0 %v285
  %386 = vmatprep.subr.bf16.mxu0 0
  %387 = vmatpush1.bf16.msra.mxu0 %v286
  %388 = vmatprep.subr.bf16.mxu0 0
  %389 = vmatpush1.bf16.msra.mxu0 %v287
  %390 = vmatprep.subr.bf16.mxu0 0
  %391 = vmatpush1.bf16.msra.mxu0 %v288
  %392 = vmatprep.subr.bf16.mxu0 0
  %393 = vmatpush1.bf16.msra.mxu0 %v289
  %394 = vmatprep.subr.bf16.mxu0 0
  %395 = vmatpush1.bf16.msra.mxu0 %v290
  %396 = vmatprep.subr.bf16.mxu0 0
  %397 = vmatpush1.bf16.msra.mxu0 %v291
  %398 = vmatprep.subr.bf16.mxu0 0
  %399 = vmatpush1.bf16.msra.mxu0 %v292
  %400 = vmatprep.subr.bf16.mxu0 0
  %401 = vmatpush1.bf16.msra.mxu0 %v293
  %402 = vmatprep.subr.bf16.mxu0 0
  %403 = vmatpush1.bf16.msra.mxu0 %v294
  %404 = vmatprep.subr.bf16.mxu0 0
  %405 = vmatpush1.bf16.msra.mxu0 %v295
  %406 = vmatprep.subr.bf16.mxu0 0
  %407 = vmatpush1.bf16.msra.mxu0 %v296
  %408 = vmatprep.subr.bf16.mxu0 0
  %409 = vmatpush1.bf16.msra.mxu0 %v297
  %410 = vmatprep.subr.bf16.mxu0 0
  %411 = vmatpush1.bf16.msra.mxu0 %v298
  %412 = vmatprep.mubr.bf16.mxu0 %v126
  %413 = vmatmul.mubr.bf16.gmra.mrb[0].mxu0 %v125
  %v414 = vpop.f32.mrb[0].mxu0
  %v415 = vadd.f32 %v366, %v414
  %v416 = vpop.f32.mrb[0].mxu0
  %v417 = vpop.f32.mrb[0].mxu0
  %v418 = vadd.f32 %v369, %v417
  %v419 = vpop.f32.mrb[0].mxu0
  %420 = vmatprep.mubr.bf16.mxu0 %v130
  %421 = vmatmul.mubr.bf16.gmra.mrb[0].mxu0 %v129
  %v422 = vpop.f32.mrb[0].mxu0
  %v423 = vadd.f32 %v374, %v422
  %v424 = vpop.f32.mrb[0].mxu0
  %v425 = vpop.f32.mrb[0].mxu0
  %v426 = vadd.f32 %v377, %v425
  %v427 = vpop.f32.mrb[0].mxu0
  %428 = vdwg.mxu0
  %v429 = vadd.f32 %v23, %v415
  %v430 = vadd.f32 %v24, %v418
  %v431 = vadd.f32 %v25, %v423
  %v432 = vadd.f32 %v26, %v426
  %433 = vst [vmem:[#allocation2] sm:$0xff] %v429
  %434 = vst [vmem:[#allocation2 + $0x8] sm:$0xff] %v430
  %435 = vst [vmem:[#allocation2 + $0x10] sm:$0xff] %v431
  %436 = vst [vmem:[#allocation2 + $0x18] sm:$0xff] %v432
  // Predicated region
  $region18: #{multiscale_discriminator_forward.42} parent=0 // pred_check
    %p437 = pneg %p15
  $region19: #{multiscale_discriminator_forward.42} parent=0 // pred_check_branch
    %439 = sbr.rel (%p437) target = $region21
  $region20: #{multiscale_discriminator_forward.42} parent=0 // pred_region
    %v440 = vld [vmem:[#allocation2] sm:$0xff]
    %v441 = vld [vmem:[#allocation2 + $0x8] sm:$0xff]
    %v442 = vld [vmem:[#allocation2 + $0x10] sm:$0xff]
    %v443 = vld [vmem:[#allocation2 + $0x18] sm:$0xff]
    %v444 = vld [vmem:[%s2] sm:$0x1]
    %v446 = vlaneseq
    %v447 = vshrl.u32 %v446, 7
    %v448 = vsub.s32 0, %v447
    %v449 = vrot.slane %v444, %v448
    %v451 = vadd.f32 %v440, %v449
    %v452 = vadd.f32 %v441, %v449
    %v453 = vadd.f32 %v442, %v449
    %v454 = vadd.f32 %v443, %v449
    %v455 = vpack.c.bf16 %v452, %v451
    %v456 = vpack.c.bf16 %v454, %v453
    %v459 = vunpack.c.l.b16 %v455
    %v460 = vunpack.c.h.b16 %v455
    %v461 = vunpack.c.l.b16 %v456
    %v462 = vunpack.c.h.b16 %v456
    %v463 = vpack.c.b16 %v459, %v459
    %v464 = vpack.c.b16 %v460, %v460
    %v465 = vpack.c.b16 %v461, %v461
    %v466 = vpack.c.b16 %v462, %v462
    %471 = vst [vmem:[%s3] sm:$0xf] %v463
    %472 = vst [vmem:[%s3 + $0x4] sm:$0xf] %v464
    %473 = vst [vmem:[%s3 + $0x8] sm:$0xf] %v465
    %474 = vst [vmem:[%s3 + $0xc] sm:$0xf] %v466
  $region21: #{multiscale_discriminator_forward.42} parent=0 // pred_fallthru
    _
  // Predicated region
  $region22: #{multiscale_discriminator_forward.42} parent=0 // pred_check
    _
  $region23: #{multiscale_discriminator_forward.42} parent=0 // pred_check_branch
    %476 = sbr.rel (0) target = $region25
  $region24: #{multiscale_discriminator_forward.42} parent=0 // pred_region
    _
  $region25: #{multiscale_discriminator_forward.42} parent=0 // pred_fallthru
    _
  // Predicated region
  $region26: #{multiscale_discriminator_forward.42} parent=0 // pred_check
    _
  $region27: #{multiscale_discriminator_forward.42} parent=0 // pred_check_branch
    %478 = sbr.rel (0) target = $region29
  $region28: #{multiscale_discriminator_forward.42} parent=0 // pred_region
    _
  $region29: #{multiscale_discriminator_forward.42} parent=0 // pred_fallthru
    _

// kernel: multiscale_discriminator_forward.43
$region0: #{multiscale_discriminator_forward.43}
  #allocation0 [shape = 'u32[]', space=smem, size = 0x4, offset = 0x4, fixed_abs, tag = 'smem constant byte address 0x4 - core index']
  #allocation1 [shape = 'u32[144,128]{1,0:T(1,128)}', space=vmem, size = 0x12000, scoped, tag = 'internal scratch']
  %s0 = inlined_call_operand.vmem [shape: bf16[32,64], index: 0, kind: input, shape index: {}]
  %s1 = inlined_call_operand.vmem [shape: f32[1,1,64], index: 1, kind: output, shape index: {0}]
  %s2 = inlined_call_operand.vmem [shape: f32[1,1,64], index: 2, kind: output, shape index: {1}]
  %3 = xla_tuple %s1, %s2
  %s4 = sld [smem:[#allocation0]]
  $region22: #{multiscale_discriminator_forward.43} parent=0
    _
  %s6 = ssub.s32 1, %s4
  %s7 = scalar_select 0, %s6, %s4
  // Predicated region
  $region2: #{multiscale_discriminator_forward.43} parent=0 // pred_check
    _
  $region3: #{multiscale_discriminator_forward.43} parent=0 // pred_check_branch
    %9 = sbr.rel (0) target = $region5
  $region4: #{multiscale_discriminator_forward.43} parent=0 // pred_region
    _
  $region5: #{multiscale_discriminator_forward.43} parent=0 // pred_fallthru
    _
  %v10 = vld [vmem:[%s0] sm:$0xf]
  %v11 = vld [vmem:[%s0 + $0x4] sm:$0xf]
  %v12 = vld [vmem:[%s0 + $0x8] sm:$0xf]
  %v13 = vld [vmem:[%s0 + $0xc] sm:$0xf]
  %v14 = vunpack.c.l.bf16 %v10
  %v15 = vunpack.c.l.bf16 %v11
  %v16 = vunpack.c.l.bf16 %v12
  %v17 = vunpack.c.l.bf16 %v13
  %vm18 = vcmask 523264
  %v19 = vsel %vm18, %v14, 0.0
  %v20 = vsel %vm18, %v15, 0.0
  %v21 = vadd.f32 %v19, %v20
  %v22 = vsel %vm18, %v16, 0.0
  %v23 = vadd.f32 %v21, %v22
  %v24 = vsel %vm18, %v17, 0.0
  %v25 = vadd.f32 %v23, %v24
  %v26 = vrot.slane %v25, 4
  %v27 = vadd.f32 %v25, %v26
  %v28 = vrot.slane %v27, 2
  %v29 = vadd.f32 %v27, %v28
  %v30 = vrot.slane %v29, 1
  %v31 = vadd.f32 %v29, %v30
  %vm32 = vcmask 516096
  %33 = vst.msk [vmem:[%s1] sm:$0x1] %vm32, %v31
  %v34 = vmul.f32 %v14, %v14
  %v35 = vmul.f32 %v15, %v15
  %v36 = vmul.f32 %v16, %v16
  %v37 = vmul.f32 %v17, %v17
  %v38 = vsel %vm18, %v34, 0.0
  %v39 = vsel %vm18, %v35, 0.0
  %v40 = vadd.f32 %v38, %v39
  %v41 = vsel %vm18, %v36, 0.0
  %v42 = vadd.f32 %v40, %v41
  %v43 = vsel %vm18, %v37, 0.0
  %v44 = vadd.f32 %v42, %v43
  %v45 = vrot.slane %v44, 4
  %v46 = vadd.f32 %v44, %v45
  %v47 = vrot.slane %v46, 2
  %v48 = vadd.f32 %v46, %v47
  %v49 = vrot.slane %v48, 1
  %v50 = vadd.f32 %v48, %v49
  %51 = vst.msk [vmem:[%s2] sm:$0x1] %vm32, %v50
  // Predicated region
  $region6: #{multiscale_discriminator_forward.43} parent=0 // pred_check
    _
  $region7: #{multiscale_discriminator_forward.43} parent=0 // pred_check_branch
    %53 = sbr.rel (0) target = $region9
  $region8: #{multiscale_discriminator_forward.43} parent=0 // pred_region
    _
  $region9: #{multiscale_discriminator_forward.43} parent=0 // pred_fallthru
    _
  // Predicated region
  $region10: #{multiscale_discriminator_forward.43} parent=0 // pred_check
    _
  $region11: #{multiscale_discriminator_forward.43} parent=0 // pred_check_branch
    %55 = sbr.rel (0) target = $region13
  $region12: #{multiscale_discriminator_forward.43} parent=0 // pred_region
    _
  $region13: #{multiscale_discriminator_forward.43} parent=0 // pred_fallthru
    _
  // Predicated region
  $region14: #{multiscale_discriminator_forward.43} parent=0 // pred_check
    _
  $region15: #{multiscale_discriminator_forward.43} parent=0 // pred_check_branch
    %57 = sbr.rel (0) target = $region17
  $region16: #{multiscale_discriminator_forward.43} parent=0 // pred_region
    _
  $region17: #{multiscale_discriminator_forward.43} parent=0 // pred_fallthru
    _
  // Predicated region
  $region18: #{multiscale_discriminator_forward.43} parent=0 // pred_check
    _
  $region19: #{multiscale_discriminator_forward.43} parent=0 // pred_check_branch
    %59 = sbr.rel (0) target = $region21
  $region20: #{multiscale_discriminator_forward.43} parent=0 // pred_region
    _
  $region21: #{multiscale_discriminator_forward.43} parent=0 // pred_fallthru
    _

// kernel: multiscale_discriminator_forward.44
$region0: #{multiscale_discriminator_forward.44}
  #allocation0 [shape = 'u32[]', space=smem, size = 0x4, offset = 0x4, fixed_abs, tag = 'smem constant byte address 0x4 - core index']
  #allocation1 [shape = 'u32[144,128]{1,0:T(1,128)}', space=vmem, size = 0x12000, scoped, tag = 'internal scratch']
  %s0 = inlined_call_operand.vmem [shape: bf16[32,64], index: 0, kind: input, shape index: {}]
  %s1 = inlined_call_operand.vmem [shape: f32[1,64], index: 1, kind: input, shape index: {}]
  %s2 = inlined_call_operand.vmem [shape: f32[1,64], index: 2, kind: input, shape index: {}]
  %s3 = inlined_call_operand.vmem [shape: bf16[32,64], index: 3, kind: output, shape index: {}]
  %s4 = sld [smem:[#allocation0]]
  $region22: #{multiscale_discriminator_forward.44} parent=0
    _
  %s6 = ssub.s32 1, %s4
  %s7 = scalar_select 0, %s6, %s4
  // Predicated region
  $region2: #{multiscale_discriminator_forward.44} parent=0 // pred_check
    _
  $region3: #{multiscale_discriminator_forward.44} parent=0 // pred_check_branch
    %9 = sbr.rel (0) target = $region5
  $region4: #{multiscale_discriminator_forward.44} parent=0 // pred_region
    _
  $region5: #{multiscale_discriminator_forward.44} parent=0 // pred_fallthru
    _
  // Predicated region
  $region6: #{multiscale_discriminator_forward.44} parent=0 // pred_check
    _
  $region7: #{multiscale_discriminator_forward.44} parent=0 // pred_check_branch
    %11 = sbr.rel (0) target = $region9
  $region8: #{multiscale_discriminator_forward.44} parent=0 // pred_region
    _
  $region9: #{multiscale_discriminator_forward.44} parent=0 // pred_fallthru
    _
  // Predicated region
  $region10: #{multiscale_discriminator_forward.44} parent=0 // pred_check
    _
  $region11: #{multiscale_discriminator_forward.44} parent=0 // pred_check_branch
    %13 = sbr.rel (0) target = $region13
  $region12: #{multiscale_discriminator_forward.44} parent=0 // pred_region
    _
  $region13: #{multiscale_discriminator_forward.44} parent=0 // pred_fallthru
    _
  %v14 = vld [vmem:[%s0] sm:$0xf]
  %v15 = vld [vmem:[%s0 + $0x4] sm:$0xf]
  %v16 = vld [vmem:[%s0 + $0x8] sm:$0xf]
  %v17 = vld [vmem:[%s0 + $0xc] sm:$0xf]
  %v18 = vunpack.c.l.bf16 %v14
  %v19 = vunpack.c.l.bf16 %v15
  %v20 = vunpack.c.l.bf16 %v16
  %v21 = vunpack.c.l.bf16 %v17
  %v22 = vld [vmem:[%s1] sm:$0x1]
  %v24 = vlaneseq
  %v25 = vshrl.u32 %v24, 7
  %v26 = vsub.s32 0, %v25
  %v27 = vrot.slane %v22, %v26
  %v29 = vmul.f32 %v18, %v27
  %v30 = vmul.f32 %v19, %v27
  %v31 = vmul.f32 %v20, %v27
  %v32 = vmul.f32 %v21, %v27
  %v33 = vld [vmem:[%s2] sm:$0x1]
  %v35 = vlaneseq
  %v36 = vshrl.u32 %v35, 7
  %v37 = vsub.s32 0, %v36
  %v38 = vrot.slane %v33, %v37
  %v40 = vadd.f32 %v29, %v38
  %v41 = vadd.f32 %v30, %v38
  %v42 = vadd.f32 %v31, %v38
  %v43 = vadd.f32 %v32, %v38
  %vm44 = vcmp.gt.f32.partialorder %v40, 0.0
  %vm45 = vcmp.gt.f32.partialorder %v41, 0.0
  %vm46 = vcmp.gt.f32.partialorder %v42, 0.0
  %vm47 = vcmp.gt.f32.partialorder %v43, 0.0
  %v48 = vmul.f32 %v40, 0.2
  %v49 = vmul.f32 %v41, 0.2
  %v50 = vmul.f32 %v42, 0.2
  %v51 = vmul.f32 %v43, 0.2
  %v52 = vsel %vm44, %v40, %v48
  %v53 = vsel %vm45, %v41, %v49
  %v54 = vsel %vm46, %v42, %v50
  %v55 = vsel %vm47, %v43, %v51
  %v56 = vpack.c.bf16 %v53, %v52
  %v57 = vpack.c.bf16 %v55, %v54
  %v60 = vunpack.c.l.b16 %v56
  %v61 = vunpack.c.h.b16 %v56
  %v62 = vunpack.c.l.b16 %v57
  %v63 = vunpack.c.h.b16 %v57
  %v64 = vpack.c.b16 %v60, %v60
  %v65 = vpack.c.b16 %v61, %v61
  %v66 = vpack.c.b16 %v62, %v62
  %v67 = vpack.c.b16 %v63, %v63
  %vm72 = vcmask 519168
  %73 = vst.msk [vmem:[%s3] sm:$0xf] %vm72, %v64
  %74 = vst.msk [vmem:[%s3 + $0x4] sm:$0xf] %vm72, %v65
  %75 = vst.msk [vmem:[%s3 + $0x8] sm:$0xf] %vm72, %v66
  %76 = vst.msk [vmem:[%s3 + $0xc] sm:$0xf] %vm72, %v67
  // Predicated region
  $region14: #{multiscale_discriminator_forward.44} parent=0 // pred_check
    _
  $region15: #{multiscale_discriminator_forward.44} parent=0 // pred_check_branch
    %78 = sbr.rel (0) target = $region17
  $region16: #{multiscale_discriminator_forward.44} parent=0 // pred_region
    _
  $region17: #{multiscale_discriminator_forward.44} parent=0 // pred_fallthru
    _
  // Predicated region
  $region18: #{multiscale_discriminator_forward.44} parent=0 // pred_check
    _
  $region19: #{multiscale_discriminator_forward.44} parent=0 // pred_check_branch
    %80 = sbr.rel (0) target = $region21
  $region20: #{multiscale_discriminator_forward.44} parent=0 // pred_region
    _
  $region21: #{multiscale_discriminator_forward.44} parent=0 // pred_fallthru
    _

// kernel: multiscale_discriminator_forward.45
$region0: #{multiscale_discriminator_forward.45}
  #allocation0 [shape = 'u32[]', space=smem, size = 0x4, offset = 0x4, fixed_abs, tag = 'smem constant byte address 0x4 - core index']
  #allocation1 [shape = 'u32[144,128]{1,0:T(1,128)}', space=vmem, size = 0x12000, scoped, tag = 'internal scratch']
  #allocation2 [shape = 'f32[56,128]{1,0:T(8,128)}', space=vmem, size = 0x7000, scoped, tag = 'scratch operand']
  %s0 = inlined_call_operand.vmem [shape: bf16[56,1024], index: 0, kind: input, shape index: {}]
  %s1 = inlined_call_operand.vmem [shape: bf16[1024,128], index: 1, kind: input, shape index: {}]
  %s2 = inlined_call_operand.vmem [shape: f32[1,128], index: 2, kind: input, shape index: {}]
  %s3 = inlined_call_operand.vmem [shape: f32[56,128], index: 3, kind: output, shape index: {}]
  %s4 = sld [smem:[#allocation0]]
  $region30: #{multiscale_discriminator_forward.45} parent=0
    _
  %s6 = ssub.s32 1, %s4
  %s7 = scalar_select 0, %s6, %s4
  // Predicated region
  $region2: #{multiscale_discriminator_forward.45} parent=0 // pred_check
    _
  $region3: #{multiscale_discriminator_forward.45} parent=0 // pred_check_branch
    %9 = sbr.rel (0) target = $region5
  $region4: #{multiscale_discriminator_forward.45} parent=0 // pred_region
    _
  $region5: #{multiscale_discriminator_forward.45} parent=0 // pred_fallthru
    _
  // Predicated region
  $region6: #{multiscale_discriminator_forward.45} parent=0 // pred_check
    _
  $region7: #{multiscale_discriminator_forward.45} parent=0 // pred_check_branch
    %11 = sbr.rel (0) target = $region9
  $region8: #{multiscale_discriminator_forward.45} parent=0 // pred_region
    _
  $region9: #{multiscale_discriminator_forward.45} parent=0 // pred_fallthru
    _
  // Predicated region
  $region10: #{multiscale_discriminator_forward.45} parent=0 // pred_check
    _
  $region11: #{multiscale_discriminator_forward.45} parent=0 // pred_check_branch
    %13 = sbr.rel (0) target = $region13
  $region12: #{multiscale_discriminator_forward.45} parent=0 // pred_region
    _
  $region13: #{multiscale_discriminator_forward.45} parent=0 // pred_fallthru
    _
  %p15 = scmp.eq.s32.totalorder 0, 0
  // Predicated region
  $region14: #{multiscale_discriminator_forward.45} parent=0 // pred_check
    %p16 = pneg %p15
  $region15: #{multiscale_discriminator_forward.45} parent=0 // pred_check_branch
    %18 = sbr.rel (%p16) target = $region17
  $region16: #{multiscale_discriminator_forward.45} parent=0 // pred_region
    %19 = vst [vmem:[#allocation2] sm:$0xff] 0.0
    %20 = vst [vmem:[#allocation2 + $0x8] sm:$0xff] 0.0
    %21 = vst [vmem:[#allocation2 + $0x10] sm:$0xff] 0.0
    %22 = vst [vmem:[#allocation2 + $0x18] sm:$0xff] 0.0
    %23 = vst [vmem:[#allocation2 + $0x20] sm:$0xff] 0.0
    %24 = vst [vmem:[#allocation2 + $0x28] sm:$0xff] 0.0
    %25 = vst [vmem:[#allocation2 + $0x30] sm:$0xff] 0.0
  $region17: #{multiscale_discriminator_forward.45} parent=0 // pred_fallthru
    _
  %v26 = vld [vmem:[#allocation2] sm:$0xff]
  %v27 = vld [vmem:[#allocation2 + $0x8] sm:$0xff]
  %v28 = vld [vmem:[#allocation2 + $0x10] sm:$0xff]
  %v29 = vld [vmem:[#allocation2 + $0x18] sm:$0xff]
  %v30 = vld [vmem:[#allocation2 + $0x20] sm:$0xff]
  %v31 = vld [vmem:[#allocation2 + $0x28] sm:$0xff]
  %v32 = vld [vmem:[#allocation2 + $0x30] sm:$0xff]
  %v33 = vld [vmem:[%s0] sm:$0xff]
  %v34 = vld [vmem:[%s0 + $0x8] sm:$0xff]
  %v35 = vld [vmem:[%s0 + $0x10] sm:$0xff]
  %v36 = vld [vmem:[%s0 + $0x18] sm:$0xff]
  %v37 = vld [vmem:[%s0 + $0x20] sm:$0xff]
  %v38 = vld [vmem:[%s0 + $0x28] sm:$0xff]
  %v39 = vld [vmem:[%s0 + $0x30] sm:$0xff]
  %v40 = vld [vmem:[%s0 + $0x38] sm:$0xff]
  %v41 = vld [vmem:[%s0 + $0x40] sm:$0xff]
  %v42 = vld [vmem:[%s0 + $0x48] sm:$0xff]
  %v43 = vld [vmem:[%s0 + $0x50] sm:$0xff]
  %v44 = vld [vmem:[%s0 + $0x58] sm:$0xff]
  %v45 = vld [vmem:[%s0 + $0x60] sm:$0xff]
  %v46 = vld [vmem:[%s0 + $0x68] sm:$0xff]
  %v47 = vld [vmem:[%s0 + $0x70] sm:$0xff]
  %v48 = vld [vmem:[%s0 + $0x78] sm:$0xff]
  %v49 = vld [vmem:[%s0 + $0x80] sm:$0xff]
  %v50 = vld [vmem:[%s0 + $0x88] sm:$0xff]
  %v51 = vld [vmem:[%s0 + $0x90] sm:$0xff]
  %v52 = vld [vmem:[%s0 + $0x98] sm:$0xff]
  %v53 = vld [vmem:[%s0 + $0xa0] sm:$0xff]
  %v54 = vld [vmem:[%s0 + $0xa8] sm:$0xff]
  %v55 = vld [vmem:[%s0 + $0xb0] sm:$0xff]
  %v56 = vld [vmem:[%s0 + $0xb8] sm:$0xff]
  %v57 = vld [vmem:[%s0 + $0xc0] sm:$0xff]
  %v58 = vld [vmem:[%s0 + $0xc8] sm:$0xff]
  %v59 = vld [vmem:[%s0 + $0xd0] sm:$0xff]
  %v60 = vld [vmem:[%s0 + $0xd8] sm:$0xff]
  %v61 = vld [vmem:[%s1] sm:$0xf]
  %v62 = vld [vmem:[%s1 + $0x4] sm:$0xf]
  %v63 = vld [vmem:[%s1 + $0x8] sm:$0xf]
  %v64 = vld [vmem:[%s1 + $0xc] sm:$0xf]
  %v65 = vld [vmem:[%s1 + $0x10] sm:$0xf]
  %v66 = vld [vmem:[%s1 + $0x14] sm:$0xf]
  %v67 = vld [vmem:[%s1 + $0x18] sm:$0xf]
  %v68 = vld [vmem:[%s1 + $0x1c] sm:$0xf]
  %v69 = vld [vmem:[%s1 + $0x20] sm:$0xf]
  %v70 = vld [vmem:[%s1 + $0x24] sm:$0xf]
  %v71 = vld [vmem:[%s1 + $0x28] sm:$0xf]
  %v72 = vld [vmem:[%s1 + $0x2c] sm:$0xf]
  %v73 = vld [vmem:[%s1 + $0x30] sm:$0xf]
  %v74 = vld [vmem:[%s1 + $0x34] sm:$0xf]
  %v75 = vld [vmem:[%s1 + $0x38] sm:$0xf]
  %v76 = vld [vmem:[%s1 + $0x3c] sm:$0xf]
  %v77 = vld [vmem:[%s1 + $0x40] sm:$0xf]
  %v78 = vld [vmem:[%s1 + $0x44] sm:$0xf]
  %v79 = vld [vmem:[%s1 + $0x48] sm:$0xf]
  %v80 = vld [vmem:[%s1 + $0x4c] sm:$0xf]
  %v81 = vld [vmem:[%s1 + $0x50] sm:$0xf]
  %v82 = vld [vmem:[%s1 + $0x54] sm:$0xf]
  %v83 = vld [vmem:[%s1 + $0x58] sm:$0xf]
  %v84 = vld [vmem:[%s1 + $0x5c] sm:$0xf]
  %v85 = vld [vmem:[%s1 + $0x60] sm:$0xf]
  %v86 = vld [vmem:[%s1 + $0x64] sm:$0xf]
  %v87 = vld [vmem:[%s1 + $0x68] sm:$0xf]
  %v88 = vld [vmem:[%s1 + $0x6c] sm:$0xf]
  %v89 = vld [vmem:[%s1 + $0x70] sm:$0xf]
  %v90 = vld [vmem:[%s1 + $0x74] sm:$0xf]
  %v91 = vld [vmem:[%s1 + $0x78] sm:$0xf]
  %v92 = vld [vmem:[%s1 + $0x7c] sm:$0xf]
  %v93 = vld [vmem:[%s1 + $0x80] sm:$0xf]
  %v94 = vld [vmem:[%s1 + $0x84] sm:$0xf]
  %v95 = vld [vmem:[%s1 + $0x88] sm:$0xf]
  %v96 = vld [vmem:[%s1 + $0x8c] sm:$0xf]
  %v97 = vld [vmem:[%s1 + $0x90] sm:$0xf]
  %v98 = vld [vmem:[%s1 + $0x94] sm:$0xf]
  %v99 = vld [vmem:[%s1 + $0x98] sm:$0xf]
  %v100 = vld [vmem:[%s1 + $0x9c] sm:$0xf]
  %v101 = vld [vmem:[%s1 + $0xa0] sm:$0xf]
  %v102 = vld [vmem:[%s1 + $0xa4] sm:$0xf]
  %v103 = vld [vmem:[%s1 + $0xa8] sm:$0xf]
  %v104 = vld [vmem:[%s1 + $0xac] sm:$0xf]
  %v105 = vld [vmem:[%s1 + $0xb0] sm:$0xf]
  %v106 = vld [vmem:[%s1 + $0xb4] sm:$0xf]
  %v107 = vld [vmem:[%s1 + $0xb8] sm:$0xf]
  %v108 = vld [vmem:[%s1 + $0xbc] sm:$0xf]
  %v109 = vld [vmem:[%s1 + $0xc0] sm:$0xf]
  %v110 = vld [vmem:[%s1 + $0xc4] sm:$0xf]
  %v111 = vld [vmem:[%s1 + $0xc8] sm:$0xf]
  %v112 = vld [vmem:[%s1 + $0xcc] sm:$0xf]
  %v113 = vld [vmem:[%s1 + $0xd0] sm:$0xf]
  %v114 = vld [vmem:[%s1 + $0xd4] sm:$0xf]
  %v115 = vld [vmem:[%s1 + $0xd8] sm:$0xf]
  %v116 = vld [vmem:[%s1 + $0xdc] sm:$0xf]
  %v117 = vld [vmem:[%s1 + $0xe0] sm:$0xf]
  %v118 = vld [vmem:[%s1 + $0xe4] sm:$0xf]
  %v119 = vld [vmem:[%s1 + $0xe8] sm:$0xf]
  %v120 = vld [vmem:[%s1 + $0xec] sm:$0xf]
  %v121 = vld [vmem:[%s1 + $0xf0] sm:$0xf]
  %v122 = vld [vmem:[%s1 + $0xf4] sm:$0xf]
  %v123 = vld [vmem:[%s1 + $0xf8] sm:$0xf]
  %v124 = vld [vmem:[%s1 + $0xfc] sm:$0xf]
  %v125 = vld [vmem:[%s1 + $0x100] sm:$0xf]
  %v126 = vld [vmem:[%s1 + $0x104] sm:$0xf]
  %v127 = vld [vmem:[%s1 + $0x108] sm:$0xf]
  %v128 = vld [vmem:[%s1 + $0x10c] sm:$0xf]
  %v129 = vld [vmem:[%s1 + $0x110] sm:$0xf]
  %v130 = vld [vmem:[%s1 + $0x114] sm:$0xf]
  %v131 = vld [vmem:[%s1 + $0x118] sm:$0xf]
  %v132 = vld [vmem:[%s1 + $0x11c] sm:$0xf]
  %v133 = vld [vmem:[%s1 + $0x120] sm:$0xf]
  %v134 = vld [vmem:[%s1 + $0x124] sm:$0xf]
  %v135 = vld [vmem:[%s1 + $0x128] sm:$0xf]
  %v136 = vld [vmem:[%s1 + $0x12c] sm:$0xf]
  %v137 = vld [vmem:[%s1 + $0x130] sm:$0xf]
  %v138 = vld [vmem:[%s1 + $0x134] sm:$0xf]
  %v139 = vld [vmem:[%s1 + $0x138] sm:$0xf]
  %v140 = vld [vmem:[%s1 + $0x13c] sm:$0xf]
  %v141 = vld [vmem:[%s1 + $0x140] sm:$0xf]
  %v142 = vld [vmem:[%s1 + $0x144] sm:$0xf]
  %v143 = vld [vmem:[%s1 + $0x148] sm:$0xf]
  %v144 = vld [vmem:[%s1 + $0x14c] sm:$0xf]
  %v145 = vld [vmem:[%s1 + $0x150] sm:$0xf]
  %v146 = vld [vmem:[%s1 + $0x154] sm:$0xf]
  %v147 = vld [vmem:[%s1 + $0x158] sm:$0xf]
  %v148 = vld [vmem:[%s1 + $0x15c] sm:$0xf]
  %v149 = vld [vmem:[%s1 + $0x160] sm:$0xf]
  %v150 = vld [vmem:[%s1 + $0x164] sm:$0xf]
  %v151 = vld [vmem:[%s1 + $0x168] sm:$0xf]
  %v152 = vld [vmem:[%s1 + $0x16c] sm:$0xf]
  %v153 = vld [vmem:[%s1 + $0x170] sm:$0xf]
  %v154 = vld [vmem:[%s1 + $0x174] sm:$0xf]
  %v155 = vld [vmem:[%s1 + $0x178] sm:$0xf]
  %v156 = vld [vmem:[%s1 + $0x17c] sm:$0xf]
  %v157 = vld [vmem:[%s1 + $0x180] sm:$0xf]
  %v158 = vld [vmem:[%s1 + $0x184] sm:$0xf]
  %v159 = vld [vmem:[%s1 + $0x188] sm:$0xf]
  %v160 = vld [vmem:[%s1 + $0x18c] sm:$0xf]
  %v161 = vld [vmem:[%s1 + $0x190] sm:$0xf]
  %v162 = vld [vmem:[%s1 + $0x194] sm:$0xf]
  %v163 = vld [vmem:[%s1 + $0x198] sm:$0xf]
  %v164 = vld [vmem:[%s1 + $0x19c] sm:$0xf]
  %v165 = vld [vmem:[%s1 + $0x1a0] sm:$0xf]
  %v166 = vld [vmem:[%s1 + $0x1a4] sm:$0xf]
  %v167 = vld [vmem:[%s1 + $0x1a8] sm:$0xf]
  %v168 = vld [vmem:[%s1 + $0x1ac] sm:$0xf]
  %v169 = vld [vmem:[%s1 + $0x1b0] sm:$0xf]
  %v170 = vld [vmem:[%s1 + $0x1b4] sm:$0xf]
  %v171 = vld [vmem:[%s1 + $0x1b8] sm:$0xf]
  %v172 = vld [vmem:[%s1 + $0x1bc] sm:$0xf]
  %v173 = vld [vmem:[%s1 + $0x1c0] sm:$0xf]
  %v174 = vld [vmem:[%s1 + $0x1c4] sm:$0xf]
  %v175 = vld [vmem:[%s1 + $0x1c8] sm:$0xf]
  %v176 = vld [vmem:[%s1 + $0x1cc] sm:$0xf]
  %v177 = vld [vmem:[%s1 + $0x1d0] sm:$0xf]
  %v178 = vld [vmem:[%s1 + $0x1d4] sm:$0xf]
  %v179 = vld [vmem:[%s1 + $0x1d8] sm:$0xf]
  %v180 = vld [vmem:[%s1 + $0x1dc] sm:$0xf]
  %v181 = vld [vmem:[%s1 + $0x1e0] sm:$0xf]
  %v182 = vld [vmem:[%s1 + $0x1e4] sm:$0xf]
  %v183 = vld [vmem:[%s1 + $0x1e8] sm:$0xf]
  %v184 = vld [vmem:[%s1 + $0x1ec] sm:$0xf]
  %v185 = vld [vmem:[%s1 + $0x1f0] sm:$0xf]
  %v186 = vld [vmem:[%s1 + $0x1f4] sm:$0xf]
  %v187 = vld [vmem:[%s1 + $0x1f8] sm:$0xf]
  %v188 = vld [vmem:[%s1 + $0x1fc] sm:$0xf]
  %v217 = vunpack.c.l.b16 %v33
  %v218 = vunpack.c.h.b16 %v33
  %v219 = vunpack.c.l.b16 %v34
  %v220 = vunpack.c.h.b16 %v34
  %v221 = vunpack.c.l.b16 %v35
  %v222 = vunpack.c.h.b16 %v35
  %v223 = vunpack.c.l.b16 %v36
  %v224 = vunpack.c.h.b16 %v36
  %v225 = vunpack.c.l.b16 %v37
  %v226 = vunpack.c.h.b16 %v37
  %v227 = vunpack.c.l.b16 %v38
  %v228 = vunpack.c.h.b16 %v38
  %v229 = vunpack.c.l.b16 %v39
  %v230 = vunpack.c.h.b16 %v39
  %v231 = vunpack.c.l.b16 %v40
  %v232 = vunpack.c.h.b16 %v40
  %v233 = vunpack.c.l.b16 %v41
  %v234 = vunpack.c.h.b16 %v41
  %v235 = vunpack.c.l.b16 %v42
  %v236 = vunpack.c.h.b16 %v42
  %v237 = vunpack.c.l.b16 %v43
  %v238 = vunpack.c.h.b16 %v43
  %v239 = vunpack.c.l.b16 %v44
  %v240 = vunpack.c.h.b16 %v44
  %v241 = vunpack.c.l.b16 %v45
  %v242 = vunpack.c.h.b16 %v45
  %v243 = vunpack.c.l.b16 %v46
  %v244 = vunpack.c.h.b16 %v46
  %v245 = vunpack.c.l.b16 %v47
  %v246 = vunpack.c.h.b16 %v47
  %v247 = vunpack.c.l.b16 %v48
  %v248 = vunpack.c.h.b16 %v48
  %v249 = vunpack.c.l.b16 %v49
  %v250 = vunpack.c.h.b16 %v49
  %v251 = vunpack.c.l.b16 %v50
  %v252 = vunpack.c.h.b16 %v50
  %v253 = vunpack.c.l.b16 %v51
  %v254 = vunpack.c.h.b16 %v51
  %v255 = vunpack.c.l.b16 %v52
  %v256 = vunpack.c.h.b16 %v52
  %v257 = vunpack.c.l.b16 %v53
  %v258 = vunpack.c.h.b16 %v53
  %v259 = vunpack.c.l.b16 %v54
  %v260 = vunpack.c.h.b16 %v54
  %v261 = vunpack.c.l.b16 %v55
  %v262 = vunpack.c.h.b16 %v55
  %v263 = vunpack.c.l.b16 %v56
  %v264 = vunpack.c.h.b16 %v56
  %v265 = vunpack.c.l.b16 %v57
  %v266 = vunpack.c.h.b16 %v57
  %v267 = vunpack.c.l.b16 %v58
  %v268 = vunpack.c.h.b16 %v58
  %v269 = vunpack.c.l.b16 %v59
  %v270 = vunpack.c.h.b16 %v59
  %v271 = vunpack.c.l.b16 %v60
  %v272 = vunpack.c.h.b16 %v60
  %v273 = vpack.c.b16 %v225, %v217
  %v274 = vpack.c.b16 %v226, %v218
  %v275 = vpack.c.b16 %v227, %v219
  %v276 = vpack.c.b16 %v228, %v220
  %v277 = vpack.c.b16 %v229, %v221
  %v278 = vpack.c.b16 %v230, %v222
  %v279 = vpack.c.b16 %v231, %v223
  %v280 = vpack.c.b16 %v232, %v224
  %v281 = vpack.c.b16 %v241, %v233
  %v282 = vpack.c.b16 %v242, %v234
  %v283 = vpack.c.b16 %v243, %v235
  %v284 = vpack.c.b16 %v244, %v236
  %v285 = vpack.c.b16 %v245, %v237
  %v286 = vpack.c.b16 %v246, %v238
  %v287 = vpack.c.b16 %v247, %v239
  %v288 = vpack.c.b16 %v248, %v240
  %v289 = vpack.c.b16 %v257, %v249
  %v290 = vpack.c.b16 %v258, %v250
  %v291 = vpack.c.b16 %v259, %v251
  %v292 = vpack.c.b16 %v260, %v252
  %v293 = vpack.c.b16 %v261, %v253
  %v294 = vpack.c.b16 %v262, %v254
  %v295 = vpack.c.b16 %v263, %v255
  %v296 = vpack.c.b16 %v264, %v256
  %v297 = vpack.c.b16 %v265, %v265
  %v298 = vpack.c.b16 %v266, %v266
  %v299 = vpack.c.b16 %v267, %v267
  %v300 = vpack.c.b16 %v268, %v268
  %v301 = vpack.c.b16 %v269, %v269
  %v302 = vpack.c.b16 %v270, %v270
  %v303 = vpack.c.b16 %v271, %v271
  %v304 = vpack.c.b16 %v272, %v272
  %v465 = vunpack.c.l.b16 %v61
  %v466 = vunpack.c.l.b16 %v62
  %v467 = vunpack.c.l.b16 %v63
  %v468 = vunpack.c.l.b16 %v64
  %v469 = vunpack.c.l.b16 %v65
  %v470 = vunpack.c.l.b16 %v66
  %v471 = vunpack.c.l.b16 %v67
  %v472 = vunpack.c.l.b16 %v68
  %v473 = vunpack.c.l.b16 %v69
  %v474 = vunpack.c.l.b16 %v70
  %v475 = vunpack.c.l.b16 %v71
  %v476 = vunpack.c.l.b16 %v72
  %v477 = vunpack.c.l.b16 %v73
  %v478 = vunpack.c.l.b16 %v74
  %v479 = vunpack.c.l.b16 %v75
  %v480 = vunpack.c.l.b16 %v76
  %v481 = vunpack.c.l.b16 %v77
  %v482 = vunpack.c.l.b16 %v78
  %v483 = vunpack.c.l.b16 %v79
  %v484 = vunpack.c.l.b16 %v80
  %v485 = vunpack.c.l.b16 %v81
  %v486 = vunpack.c.l.b16 %v82
  %v487 = vunpack.c.l.b16 %v83
  %v488 = vunpack.c.l.b16 %v84
  %v489 = vunpack.c.l.b16 %v85
  %v490 = vunpack.c.l.b16 %v86
  %v491 = vunpack.c.l.b16 %v87
  %v492 = vunpack.c.l.b16 %v88
  %v493 = vunpack.c.l.b16 %v89
  %v494 = vunpack.c.l.b16 %v90
  %v495 = vunpack.c.l.b16 %v91
  %v496 = vunpack.c.l.b16 %v92
  %v497 = vunpack.c.l.b16 %v93
  %v498 = vunpack.c.l.b16 %v94
  %v499 = vunpack.c.l.b16 %v95
  %v500 = vunpack.c.l.b16 %v96
  %v501 = vunpack.c.l.b16 %v97
  %v502 = vunpack.c.l.b16 %v98
  %v503 = vunpack.c.l.b16 %v99
  %v504 = vunpack.c.l.b16 %v100
  %v505 = vunpack.c.l.b16 %v101
  %v506 = vunpack.c.l.b16 %v102
  %v507 = vunpack.c.l.b16 %v103
  %v508 = vunpack.c.l.b16 %v104
  %v509 = vunpack.c.l.b16 %v105
  %v510 = vunpack.c.l.b16 %v106
  %v511 = vunpack.c.l.b16 %v107
  %v512 = vunpack.c.l.b16 %v108
  %v513 = vunpack.c.l.b16 %v109
  %v514 = vunpack.c.l.b16 %v110
  %v515 = vunpack.c.l.b16 %v111
  %v516 = vunpack.c.l.b16 %v112
  %v517 = vunpack.c.l.b16 %v113
  %v518 = vunpack.c.l.b16 %v114
  %v519 = vunpack.c.l.b16 %v115
  %v520 = vunpack.c.l.b16 %v116
  %v521 = vunpack.c.l.b16 %v117
  %v522 = vunpack.c.l.b16 %v118
  %v523 = vunpack.c.l.b16 %v119
  %v524 = vunpack.c.l.b16 %v120
  %v525 = vunpack.c.l.b16 %v121
  %v526 = vunpack.c.l.b16 %v122
  %v527 = vunpack.c.l.b16 %v123
  %v528 = vunpack.c.l.b16 %v124
  %v529 = vunpack.c.l.b16 %v125
  %v530 = vunpack.c.l.b16 %v126
  %v531 = vunpack.c.l.b16 %v127
  %v532 = vunpack.c.l.b16 %v128
  %v533 = vunpack.c.l.b16 %v129
  %v534 = vunpack.c.l.b16 %v130
  %v535 = vunpack.c.l.b16 %v131
  %v536 = vunpack.c.l.b16 %v132
  %v537 = vunpack.c.l.b16 %v133
  %v538 = vunpack.c.l.b16 %v134
  %v539 = vunpack.c.l.b16 %v135
  %v540 = vunpack.c.l.b16 %v136
  %v541 = vunpack.c.l.b16 %v137
  %v542 = vunpack.c.l.b16 %v138
  %v543 = vunpack.c.l.b16 %v139
  %v544 = vunpack.c.l.b16 %v140
  %v545 = vunpack.c.l.b16 %v141
  %v546 = vunpack.c.l.b16 %v142
  %v547 = vunpack.c.l.b16 %v143
  %v548 = vunpack.c.l.b16 %v144
  %v549 = vunpack.c.l.b16 %v145
  %v550 = vunpack.c.l.b16 %v146
  %v551 = vunpack.c.l.b16 %v147
  %v552 = vunpack.c.l.b16 %v148
  %v553 = vunpack.c.l.b16 %v149
  %v554 = vunpack.c.l.b16 %v150
  %v555 = vunpack.c.l.b16 %v151
  %v556 = vunpack.c.l.b16 %v152
  %v557 = vunpack.c.l.b16 %v153
  %v558 = vunpack.c.l.b16 %v154
  %v559 = vunpack.c.l.b16 %v155
  %v560 = vunpack.c.l.b16 %v156
  %v561 = vunpack.c.l.b16 %v157
  %v562 = vunpack.c.l.b16 %v158
  %v563 = vunpack.c.l.b16 %v159
  %v564 = vunpack.c.l.b16 %v160
  %v565 = vunpack.c.l.b16 %v161
  %v566 = vunpack.c.l.b16 %v162
  %v567 = vunpack.c.l.b16 %v163
  %v568 = vunpack.c.l.b16 %v164
  %v569 = vunpack.c.l.b16 %v165
  %v570 = vunpack.c.l.b16 %v166
  %v571 = vunpack.c.l.b16 %v167
  %v572 = vunpack.c.l.b16 %v168
  %v573 = vunpack.c.l.b16 %v169
  %v574 = vunpack.c.l.b16 %v170
  %v575 = vunpack.c.l.b16 %v171
  %v576 = vunpack.c.l.b16 %v172
  %v577 = vunpack.c.l.b16 %v173
  %v578 = vunpack.c.l.b16 %v174
  %v579 = vunpack.c.l.b16 %v175
  %v580 = vunpack.c.l.b16 %v176
  %v581 = vunpack.c.l.b16 %v177
  %v582 = vunpack.c.l.b16 %v178
  %v583 = vunpack.c.l.b16 %v179
  %v584 = vunpack.c.l.b16 %v180
  %v585 = vunpack.c.l.b16 %v181
  %v586 = vunpack.c.l.b16 %v182
  %v587 = vunpack.c.l.b16 %v183
  %v588 = vunpack.c.l.b16 %v184
  %v589 = vunpack.c.l.b16 %v185
  %v590 = vunpack.c.l.b16 %v186
  %v591 = vunpack.c.l.b16 %v187
  %v592 = vunpack.c.l.b16 %v188
  %v593 = vpack.c.b16 %v466, %v465
  %v594 = vpack.c.b16 %v468, %v467
  %v595 = vpack.c.b16 %v470, %v469
  %v596 = vpack.c.b16 %v472, %v471
  %v597 = vpack.c.b16 %v474, %v473
  %v598 = vpack.c.b16 %v476, %v475
  %v599 = vpack.c.b16 %v478, %v477
  %v600 = vpack.c.b16 %v480, %v479
  %v601 = vpack.c.b16 %v482, %v481
  %v602 = vpack.c.b16 %v484, %v483
  %v603 = vpack.c.b16 %v486, %v485
  %v604 = vpack.c.b16 %v488, %v487
  %v605 = vpack.c.b16 %v490, %v489
  %v606 = vpack.c.b16 %v492, %v491
  %v607 = vpack.c.b16 %v494, %v493
  %v608 = vpack.c.b16 %v496, %v495
  %v609 = vpack.c.b16 %v498, %v497
  %v610 = vpack.c.b16 %v500, %v499
  %v611 = vpack.c.b16 %v502, %v501
  %v612 = vpack.c.b16 %v504, %v503
  %v613 = vpack.c.b16 %v506, %v505
  %v614 = vpack.c.b16 %v508, %v507
  %v615 = vpack.c.b16 %v510, %v509
  %v616 = vpack.c.b16 %v512, %v511
  %v617 = vpack.c.b16 %v514, %v513
  %v618 = vpack.c.b16 %v516, %v515
  %v619 = vpack.c.b16 %v518, %v517
  %v620 = vpack.c.b16 %v520, %v519
  %v621 = vpack.c.b16 %v522, %v521
  %v622 = vpack.c.b16 %v524, %v523
  %v623 = vpack.c.b16 %v526, %v525
  %v624 = vpack.c.b16 %v528, %v527
  %v625 = vpack.c.b16 %v530, %v529
  %v626 = vpack.c.b16 %v532, %v531
  %v627 = vpack.c.b16 %v534, %v533
  %v628 = vpack.c.b16 %v536, %v535
  %v629 = vpack.c.b16 %v538, %v537
  %v630 = vpack.c.b16 %v540, %v539
  %v631 = vpack.c.b16 %v542, %v541
  %v632 = vpack.c.b16 %v544, %v543
  %v633 = vpack.c.b16 %v546, %v545
  %v634 = vpack.c.b16 %v548, %v547
  %v635 = vpack.c.b16 %v550, %v549
  %v636 = vpack.c.b16 %v552, %v551
  %v637 = vpack.c.b16 %v554, %v553
  %v638 = vpack.c.b16 %v556, %v555
  %v639 = vpack.c.b16 %v558, %v557
  %v640 = vpack.c.b16 %v560, %v559
  %v641 = vpack.c.b16 %v562, %v561
  %v642 = vpack.c.b16 %v564, %v563
  %v643 = vpack.c.b16 %v566, %v565
  %v644 = vpack.c.b16 %v568, %v567
  %v645 = vpack.c.b16 %v570, %v569
  %v646 = vpack.c.b16 %v572, %v571
  %v647 = vpack.c.b16 %v574, %v573
  %v648 = vpack.c.b16 %v576, %v575
  %v649 = vpack.c.b16 %v578, %v577
  %v650 = vpack.c.b16 %v580, %v579
  %v651 = vpack.c.b16 %v582, %v581
  %v652 = vpack.c.b16 %v584, %v583
  %v653 = vpack.c.b16 %v586, %v585
  %v654 = vpack.c.b16 %v588, %v587
  %v655 = vpack.c.b16 %v590, %v589
  %v656 = vpack.c.b16 %v592, %v591
  %721 = vmatprep.subr.bf16.mxu0 0
  %722 = vmatpush1.bf16.msra.mxu0 %v593
  %723 = vmatprep.subr.bf16.mxu0 0
  %724 = vmatpush1.bf16.msra.mxu0 %v594
  %725 = vmatprep.subr.bf16.mxu0 0
  %726 = vmatpush1.bf16.msra.mxu0 %v595
  %727 = vmatprep.subr.bf16.mxu0 0
  %728 = vmatpush1.bf16.msra.mxu0 %v596
  %729 = vmatprep.subr.bf16.mxu0 0
  %730 = vmatpush1.bf16.msra.mxu0 %v597
  %731 = vmatprep.subr.bf16.mxu0 0
  %732 = vmatpush1.bf16.msra.mxu0 %v598
  %733 = vmatprep.subr.bf16.mxu0 0
  %734 = vmatpush1.bf16.msra.mxu0 %v599
  %735 = vmatprep.subr.bf16.mxu0 0
  %736 = vmatpush1.bf16.msra.mxu0 %v600
  %737 = vmatprep.subr.bf16.mxu0 0
  %738 = vmatpush1.bf16.msra.mxu0 %v601
  %739 = vmatprep.subr.bf16.mxu0 0
  %740 = vmatpush1.bf16.msra.mxu0 %v602
  %741 = vmatprep.subr.bf16.mxu0 0
  %742 = vmatpush1.bf16.msra.mxu0 %v603
  %743 = vmatprep.subr.bf16.mxu0 0
  %744 = vmatpush1.bf16.msra.mxu0 %v604
  %745 = vmatprep.subr.bf16.mxu0 0
  %746 = vmatpush1.bf16.msra.mxu0 %v605
  %747 = vmatprep.subr.bf16.mxu0 0
  %748 = vmatpush1.bf16.msra.mxu0 %v606
  %749 = vmatprep.subr.bf16.mxu0 0
  %750 = vmatpush1.bf16.msra.mxu0 %v607
  %751 = vmatprep.subr.bf16.mxu0 0
  %752 = vmatpush1.bf16.msra.mxu0 %v608
  %753 = vmatprep.mubr.bf16.mxu0 %v274
  %754 = vmatmul.mubr.bf16.gmra.mrb[0].mxu0 %v273
  %v755 = vpop.f32.mrb[0].mxu0
  %v756 = vadd.f32 0.0, %v755
  %v757 = vpop.f32.mrb[0].mxu0
  %v758 = vpop.f32.mrb[0].mxu0
  %v759 = vadd.f32 0.0, %v758
  %v760 = vpop.f32.mrb[0].mxu0
  %761 = vmatprep.mubr.bf16.mxu0 %v282
  %762 = vmatmul.mubr.bf16.gmra.mrb[0].mxu0 %v281
  %v763 = vpop.f32.mrb[0].mxu0
  %v764 = vadd.f32 0.0, %v763
  %v765 = vpop.f32.mrb[0].mxu0
  %v766 = vpop.f32.mrb[0].mxu0
  %v767 = vadd.f32 0.0, %v766
  %v768 = vpop.f32.mrb[0].mxu0
  %769 = vmatprep.mubr.bf16.mxu0 %v290
  %770 = vmatmul.mubr.bf16.gmra.mrb[0].mxu0 %v289
  %v771 = vpop.f32.mrb[0].mxu0
  %v772 = vadd.f32 0.0, %v771
  %v773 = vpop.f32.mrb[0].mxu0
  %v774 = vpop.f32.mrb[0].mxu0
  %v775 = vadd.f32 0.0, %v774
  %v776 = vpop.f32.mrb[0].mxu0
  %777 = vmatprep.mubr.bf16.mxu0 %v298
  %778 = vmatmul.mubr.bf16.gmra.mrb[0].mxu0 %v297
  %v779 = vpop.f32.mrb[0].mxu0
  %v780 = vadd.f32 0.0, %v779
  %v781 = vpop.f32.mrb[0].mxu0
  %v782 = vpop.f32.mrb[0].mxu0
  %v783 = vpop.f32.mrb[0].mxu0
  %784 = vdwg.mxu0
  %785 = vmatprep.subr.bf16.mxu0 0
  %786 = vmatpush1.bf16.msra.mxu0 %v609
  %787 = vmatprep.subr.bf16.mxu0 0
  %788 = vmatpush1.bf16.msra.mxu0 %v610
  %789 = vmatprep.subr.bf16.mxu0 0
  %790 = vmatpush1.bf16.msra.mxu0 %v611
  %791 = vmatprep.subr.bf16.mxu0 0
  %792 = vmatpush1.bf16.msra.mxu0 %v612
  %793 = vmatprep.subr.bf16.mxu0 0
  %794 = vmatpush1.bf16.msra.mxu0 %v613
  %795 = vmatprep.subr.bf16.mxu0 0
  %796 = vmatpush1.bf16.msra.mxu0 %v614
  %797 = vmatprep.subr.bf16.mxu0 0
  %798 = vmatpush1.bf16.msra.mxu0 %v615
  %799 = vmatprep.subr.bf16.mxu0 0
  %800 = vmatpush1.bf16.msra.mxu0 %v616
  %801 = vmatprep.subr.bf16.mxu0 0
  %802 = vmatpush1.bf16.msra.mxu0 %v617
  %803 = vmatprep.subr.bf16.mxu0 0
  %804 = vmatpush1.bf16.msra.mxu0 %v618
  %805 = vmatprep.subr.bf16.mxu0 0
  %806 = vmatpush1.bf16.msra.mxu0 %v619
  %807 = vmatprep.subr.bf16.mxu0 0
  %808 = vmatpush1.bf16.msra.mxu0 %v620
  %809 = vmatprep.subr.bf16.mxu0 0
  %810 = vmatpush1.bf16.msra.mxu0 %v621
  %811 = vmatprep.subr.bf16.mxu0 0
  %812 = vmatpush1.bf16.msra.mxu0 %v622
  %813 = vmatprep.subr.bf16.mxu0 0
  %814 = vmatpush1.bf16.msra.mxu0 %v623
  %815 = vmatprep.subr.bf16.mxu0 0
  %816 = vmatpush1.bf16.msra.mxu0 %v624
  %817 = vmatprep.mubr.bf16.mxu0 %v276
  %818 = vmatmul.mubr.bf16.gmra.mrb[0].mxu0 %v275
  %v819 = vpop.f32.mrb[0].mxu0
  %v820 = vadd.f32 %v756, %v819
  %v821 = vpop.f32.mrb[0].mxu0
  %v822 = vpop.f32.mrb[0].mxu0
  %v823 = vadd.f32 %v759, %v822
  %v824 = vpop.f32.mrb[0].mxu0
  %825 = vmatprep.mubr.bf16.mxu0 %v284
  %826 = vmatmul.mubr.bf16.gmra.mrb[0].mxu0 %v283
  %v827 = vpop.f32.mrb[0].mxu0
  %v828 = vadd.f32 %v764, %v827
  %v829 = vpop.f32.mrb[0].mxu0
  %v830 = vpop.f32.mrb[0].mxu0
  %v831 = vadd.f32 %v767, %v830
  %v832 = vpop.f32.mrb[0].mxu0
  %833 = vmatprep.mubr.bf16.mxu0 %v292
  %834 = vmatmul.mubr.bf16.gmra.mrb[0].mxu0 %v291
  %v835 = vpop.f32.mrb[0].mxu0
  %v836 = vadd.f32 %v772, %v835
  %v837 = vpop.f32.mrb[0].mxu0
  %v838 = vpop.f32.mrb[0].mxu0
  %v839 = vadd.f32 %v775, %v838
  %v840 = vpop.f32.mrb[0].mxu0
  %841 = vmatprep.mubr.bf16.mxu0 %v300
  %842 = vmatmul.mubr.bf16.gmra.mrb[0].mxu0 %v299
  %v843 = vpop.f32.mrb[0].mxu0
  %v844 = vadd.f32 %v780, %v843
  %v845 = vpop.f32.mrb[0].mxu0
  %v846 = vpop.f32.mrb[0].mxu0
  %v847 = vpop.f32.mrb[0].mxu0
  %848 = vdwg.mxu0
  %849 = vmatprep.subr.bf16.mxu0 0
  %850 = vmatpush1.bf16.msra.mxu0 %v625
  %851 = vmatprep.subr.bf16.mxu0 0
  %852 = vmatpush1.bf16.msra.mxu0 %v626
  %853 = vmatprep.subr.bf16.mxu0 0
  %854 = vmatpush1.bf16.msra.mxu0 %v627
  %855 = vmatprep.subr.bf16.mxu0 0
  %856 = vmatpush1.bf16.msra.mxu0 %v628
  %857 = vmatprep.subr.bf16.mxu0 0
  %858 = vmatpush1.bf16.msra.mxu0 %v629
  %859 = vmatprep.subr.bf16.mxu0 0
  %860 = vmatpush1.bf16.msra.mxu0 %v630
  %861 = vmatprep.subr.bf16.mxu0 0
  %862 = vmatpush1.bf16.msra.mxu0 %v631
  %863 = vmatprep.subr.bf16.mxu0 0
  %864 = vmatpush1.bf16.msra.mxu0 %v632
  %865 = vmatprep.subr.bf16.mxu0 0
  %866 = vmatpush1.bf16.msra.mxu0 %v633
  %867 = vmatprep.subr.bf16.mxu0 0
  %868 = vmatpush1.bf16.msra.mxu0 %v634
  %869 = vmatprep.subr.bf16.mxu0 0
  %870 = vmatpush1.bf16.msra.mxu0 %v635
  %871 = vmatprep.subr.bf16.mxu0 0
  %872 = vmatpush1.bf16.msra.mxu0 %v636
  %873 = vmatprep.subr.bf16.mxu0 0
  %874 = vmatpush1.bf16.msra.mxu0 %v637
  %875 = vmatprep.subr.bf16.mxu0 0
  %876 = vmatpush1.bf16.msra.mxu0 %v638
  %877 = vmatprep.subr.bf16.mxu0 0
  %878 = vmatpush1.bf16.msra.mxu0 %v639
  %879 = vmatprep.subr.bf16.mxu0 0
  %880 = vmatpush1.bf16.msra.mxu0 %v640
  %881 = vmatprep.mubr.bf16.mxu0 %v278
  %882 = vmatmul.mubr.bf16.gmra.mrb[0].mxu0 %v277
  %v883 = vpop.f32.mrb[0].mxu0
  %v884 = vadd.f32 %v820, %v883
  %v885 = vpop.f32.mrb[0].mxu0
  %v886 = vpop.f32.mrb[0].mxu0
  %v887 = vadd.f32 %v823, %v886
  %v888 = vpop.f32.mrb[0].mxu0
  %889 = vmatprep.mubr.bf16.mxu0 %v286
  %890 = vmatmul.mubr.bf16.gmra.mrb[0].mxu0 %v285
  %v891 = vpop.f32.mrb[0].mxu0
  %v892 = vadd.f32 %v828, %v891
  %v893 = vpop.f32.mrb[0].mxu0
  %v894 = vpop.f32.mrb[0].mxu0
  %v895 = vadd.f32 %v831, %v894
  %v896 = vpop.f32.mrb[0].mxu0
  %897 = vmatprep.mubr.bf16.mxu0 %v294
  %898 = vmatmul.mubr.bf16.gmra.mrb[0].mxu0 %v293
  %v899 = vpop.f32.mrb[0].mxu0
  %v900 = vadd.f32 %v836, %v899
  %v901 = vpop.f32.mrb[0].mxu0
  %v902 = vpop.f32.mrb[0].mxu0
  %v903 = vadd.f32 %v839, %v902
  %v904 = vpop.f32.mrb[0].mxu0
  %905 = vmatprep.mubr.bf16.mxu0 %v302
  %906 = vmatmul.mubr.bf16.gmra.mrb[0].mxu0 %v301
  %v907 = vpop.f32.mrb[0].mxu0
  %v908 = vadd.f32 %v844, %v907
  %v909 = vpop.f32.mrb[0].mxu0
  %v910 = vpop.f32.mrb[0].mxu0
  %v911 = vpop.f32.mrb[0].mxu0
  %912 = vdwg.mxu0
  %913 = vmatprep.subr.bf16.mxu0 0
  %914 = vmatpush1.bf16.msra.mxu0 %v641
  %915 = vmatprep.subr.bf16.mxu0 0
  %916 = vmatpush1.bf16.msra.mxu0 %v642
  %917 = vmatprep.subr.bf16.mxu0 0
  %918 = vmatpush1.bf16.msra.mxu0 %v643
  %919 = vmatprep.subr.bf16.mxu0 0
  %920 = vmatpush1.bf16.msra.mxu0 %v644
  %921 = vmatprep.subr.bf16.mxu0 0
  %922 = vmatpush1.bf16.msra.mxu0 %v645
  %923 = vmatprep.subr.bf16.mxu0 0
  %924 = vmatpush1.bf16.msra.mxu0 %v646
  %925 = vmatprep.subr.bf16.mxu0 0
  %926 = vmatpush1.bf16.msra.mxu0 %v647
  %927 = vmatprep.subr.bf16.mxu0 0
  %928 = vmatpush1.bf16.msra.mxu0 %v648
  %929 = vmatprep.subr.bf16.mxu0 0
  %930 = vmatpush1.bf16.msra.mxu0 %v649
  %931 = vmatprep.subr.bf16.mxu0 0
  %932 = vmatpush1.bf16.msra.mxu0 %v650
  %933 = vmatprep.subr.bf16.mxu0 0
  %934 = vmatpush1.bf16.msra.mxu0 %v651
  %935 = vmatprep.subr.bf16.mxu0 0
  %936 = vmatpush1.bf16.msra.mxu0 %v652
  %937 = vmatprep.subr.bf16.mxu0 0
  %938 = vmatpush1.bf16.msra.mxu0 %v653
  %939 = vmatprep.subr.bf16.mxu0 0
  %940 = vmatpush1.bf16.msra.mxu0 %v654
  %941 = vmatprep.subr.bf16.mxu0 0
  %942 = vmatpush1.bf16.msra.mxu0 %v655
  %943 = vmatprep.subr.bf16.mxu0 0
  %944 = vmatpush1.bf16.msra.mxu0 %v656
  %945 = vmatprep.mubr.bf16.mxu0 %v280
  %946 = vmatmul.mubr.bf16.gmra.mrb[0].mxu0 %v279
  %v947 = vpop.f32.mrb[0].mxu0
  %v948 = vadd.f32 %v884, %v947
  %v949 = vpop.f32.mrb[0].mxu0
  %v950 = vpop.f32.mrb[0].mxu0
  %v951 = vadd.f32 %v887, %v950
  %v952 = vpop.f32.mrb[0].mxu0
  %953 = vmatprep.mubr.bf16.mxu0 %v288
  %954 = vmatmul.mubr.bf16.gmra.mrb[0].mxu0 %v287
  %v955 = vpop.f32.mrb[0].mxu0
  %v956 = vadd.f32 %v892, %v955
  %v957 = vpop.f32.mrb[0].mxu0
  %v958 = vpop.f32.mrb[0].mxu0
  %v959 = vadd.f32 %v895, %v958
  %v960 = vpop.f32.mrb[0].mxu0
  %961 = vmatprep.mubr.bf16.mxu0 %v296
  %962 = vmatmul.mubr.bf16.gmra.mrb[0].mxu0 %v295
  %v963 = vpop.f32.mrb[0].mxu0
  %v964 = vadd.f32 %v900, %v963
  %v965 = vpop.f32.mrb[0].mxu0
  %v966 = vpop.f32.mrb[0].mxu0
  %v967 = vadd.f32 %v903, %v966
  %v968 = vpop.f32.mrb[0].mxu0
  %969 = vmatprep.mubr.bf16.mxu0 %v304
  %970 = vmatmul.mubr.bf16.gmra.mrb[0].mxu0 %v303
  %v971 = vpop.f32.mrb[0].mxu0
  %v972 = vadd.f32 %v908, %v971
  %v973 = vpop.f32.mrb[0].mxu0
  %v974 = vpop.f32.mrb[0].mxu0
  %v975 = vpop.f32.mrb[0].mxu0
  %976 = vdwg.mxu0
  %v977 = vadd.f32 %v26, %v948
  %v978 = vadd.f32 %v27, %v951
  %v979 = vadd.f32 %v28, %v956
  %v980 = vadd.f32 %v29, %v959
  %v981 = vadd.f32 %v30, %v964
  %v982 = vadd.f32 %v31, %v967
  %v983 = vadd.f32 %v32, %v972
  %984 = vst [vmem:[#allocation2] sm:$0xff] %v977
  %985 = vst [vmem:[#allocation2 + $0x8] sm:$0xff] %v978
  %986 = vst [vmem:[#allocation2 + $0x10] sm:$0xff] %v979
  %987 = vst [vmem:[#allocation2 + $0x18] sm:$0xff] %v980
  %988 = vst [vmem:[#allocation2 + $0x20] sm:$0xff] %v981
  %989 = vst [vmem:[#allocation2 + $0x28] sm:$0xff] %v982
  %990 = vst [vmem:[#allocation2 + $0x30] sm:$0xff] %v983
  // Predicated region
  $region18: #{multiscale_discriminator_forward.45} parent=0 // pred_check
    %p991 = pneg %p15
  $region19: #{multiscale_discriminator_forward.45} parent=0 // pred_check_branch
    %993 = sbr.rel (%p991) target = $region21
  $region20: #{multiscale_discriminator_forward.45} parent=0 // pred_region
    %v994 = vld [vmem:[#allocation2] sm:$0xff]
    %v995 = vld [vmem:[#allocation2 + $0x8] sm:$0xff]
    %v996 = vld [vmem:[#allocation2 + $0x10] sm:$0xff]
    %v997 = vld [vmem:[#allocation2 + $0x18] sm:$0xff]
    %v998 = vld [vmem:[#allocation2 + $0x20] sm:$0xff]
    %v999 = vld [vmem:[#allocation2 + $0x28] sm:$0xff]
    %v1000 = vld [vmem:[#allocation2 + $0x30] sm:$0xff]
    %v1001 = vld [vmem:[%s2] sm:$0x1]
    %v1003 = vlaneseq
    %v1004 = vshrl.u32 %v1003, 7
    %v1005 = vsub.s32 0, %v1004
    %v1006 = vrot.slane %v1001, %v1005
    %v1008 = vadd.f32 %v994, %v1006
    %v1009 = vadd.f32 %v995, %v1006
    %v1010 = vadd.f32 %v996, %v1006
    %v1011 = vadd.f32 %v997, %v1006
    %v1012 = vadd.f32 %v998, %v1006
    %v1013 = vadd.f32 %v999, %v1006
    %v1014 = vadd.f32 %v1000, %v1006
    %1015 = vst [vmem:[%s3] sm:$0xff] %v1008
    %1016 = vst [vmem:[%s3 + $0x8] sm:$0xff] %v1009
    %1017 = vst [vmem:[%s3 + $0x10] sm:$0xff] %v1010
    %1018 = vst [vmem:[%s3 + $0x18] sm:$0xff] %v1011
    %1019 = vst [vmem:[%s3 + $0x20] sm:$0xff] %v1012
    %1020 = vst [vmem:[%s3 + $0x28] sm:$0xff] %v1013
    %1021 = vst [vmem:[%s3 + $0x30] sm:$0xff] %v1014
  $region21: #{multiscale_discriminator_forward.45} parent=0 // pred_fallthru
    _
  // Predicated region
  $region22: #{multiscale_discriminator_forward.45} parent=0 // pred_check
    _
  $region23: #{multiscale_discriminator_forward.45} parent=0 // pred_check_branch
    %1023 = sbr.rel (0) target = $region25
  $region24: #{multiscale_discriminator_forward.45} parent=0 // pred_region
    _
  $region25: #{multiscale_discriminator_forward.45} parent=0 // pred_fallthru
    _
  // Predicated region
  $region26: #{multiscale_discriminator_forward.45} parent=0 // pred_check
    _
  $region27: #{multiscale_discriminator_forward.45} parent=0 // pred_check_branch
    %1025 = sbr.rel (0) target = $region29
  $region28: #{multiscale_discriminator_forward.45} parent=0 // pred_region
    _
  $region29: #{multiscale_discriminator_forward.45} parent=0 // pred_fallthru
    _

// kernel: multiscale_discriminator_forward.46
$region0: #{multiscale_discriminator_forward.46}
  #allocation0 [shape = 'u32[]', space=smem, size = 0x4, offset = 0x4, fixed_abs, tag = 'smem constant byte address 0x4 - core index']
  #allocation1 [shape = 'u32[144,128]{1,0:T(1,128)}', space=vmem, size = 0x12000, scoped, tag = 'internal scratch']
  %s0 = inlined_call_operand.vmem [shape: f32[9,48,8], index: 0, kind: input, shape index: {}]
  %s1 = inlined_call_operand.vmem [shape: f32[48,1], index: 1, kind: input, shape index: {}]
  %s2 = inlined_call_operand.vmem [shape: f32[1,8], index: 2, kind: input, shape index: {}]
  %s3 = inlined_call_operand.vmem [shape: f32[48,8], index: 3, kind: output, shape index: {}]
  %s4 = sld [smem:[#allocation0]]
  $region53: #{multiscale_discriminator_forward.46} parent=0
    _
  %s6 = ssub.s32 1, %s4
  %s7 = scalar_select 0, %s6, %s4
  loop: start=0, step=1, limit=11
  $region2: #{multiscale_discriminator_forward.46} parent=0 // loop_pre_header
    _
  $region3: #{multiscale_discriminator_forward.46} parent=0 // loop_header
    %s9 = sphi 0, %s13
    %p10 = scmp.ge.s32.totalorder %s9, 11
    %s16 = sphi 0, %s28
    %s17 = sphi 0, %s24
    %s18 = sphi 0, %s16
    %s19 = sphi 0, %s17
    %s20 = sphi 0, %s18
    %s21 = sphi 0, %s19
    %s33 = sphi 0, %s35
    %s36 = sphi 0, %s33
    %s37 = sphi 0, %s36
    %s53 = sphi 0, %s37
    %s59 = sphi 0, %s61
    %s62 = sphi 0, %s59
    %s63 = sphi 0, %s62
    %s79 = sphi 0, %s63
    %s83 = sphi 0, %s83
    %s85 = sphi 0, %s83
    %s86 = sphi 0, %s85
    %s100 = sphi 0, %s86
    %s106 = sphi 0, %s108
    %s109 = sphi 0, %s106
    %s110 = sphi 0, %s109
    %s126 = sphi 0, %s110
  $region4: #{multiscale_discriminator_forward.46} parent=0 // loop_header_branch
    %12 = sbr.rel (%p10) target = $region8
  $region5: #{multiscale_discriminator_forward.46} parent=0 // loop_body
    %s14 = ssub.s32 %s9, 1
    %s15 = ssub.s32 %s9, 2
    %s22 = sadd.s32 1, %s17
    %p23 = scmp.ge.s32.totalorder %s22, 9
    %s24 = scalar_select %p23, 0, %s22
    %s25 = sadd.s32 1, %s16
    %s26 = scalar_select %p23, %s25, %s16
    %p27 = scmp.ge.s32.totalorder %s26, 1
    %s28 = scalar_select %p27, 0, %s26
    %s29 = ssub.s32 %s17, %s24
    %s30 = ssub.s32 %s16, %s28
    %s31 = sor.u32 %s29, %s30
    %p32 = scmp.eq.s32.totalorder %s31, 0
    %s34 = sadd.s32 %s33, 1
    %s35 = scalar_select %p32, %s33, %s34
    %p38 = pneg %p32
    %p39 = scmp.eq.s32.totalorder %s9, 8
    %p40 = por %p38, %p39
    %p41 = scmp.ne.s32.totalorder %s33, %s36
    %p42 = scmp.eq.s32.totalorder %s9, 0
    %p43 = por %p41, %p42
    %p44 = scmp.ne.s32.totalorder %s33, %s36
    %p45 = scmp.eq.s32.totalorder %s14, 8
    %p46 = por %p44, %p45
    %p47 = scmp.ne.s32.totalorder %s36, %s37
    %p48 = scmp.eq.s32.totalorder %s14, 0
    %p49 = por %p47, %p48
    %p50 = scmp.ne.s32.totalorder %s36, %s37
    %p51 = scmp.eq.s32.totalorder %s15, 8
    %p52 = por %p50, %p51
    %p54 = scmp.ne.s32.totalorder %s37, %s53
    %p55 = scmp.eq.s32.totalorder %s15, 0
    %p56 = por %p54, %p55
    %s57 = ssub.s32 %s16, %s28
    %p58 = scmp.eq.s32.totalorder %s57, 0
    %s60 = sadd.s32 %s59, 1
    %s61 = scalar_select %p58, %s59, %s60
    %p64 = pneg %p58
    %p65 = scmp.eq.s32.totalorder %s9, 8
    %p66 = por %p64, %p65
    %p67 = scmp.ne.s32.totalorder %s59, %s62
    %p68 = scmp.eq.s32.totalorder %s9, 0
    %p69 = por %p67, %p68
    %p70 = scmp.ne.s32.totalorder %s59, %s62
    %p71 = scmp.eq.s32.totalorder %s14, 8
    %p72 = por %p70, %p71
    %p73 = scmp.ne.s32.totalorder %s62, %s63
    %p74 = scmp.eq.s32.totalorder %s14, 0
    %p75 = por %p73, %p74
    %p76 = scmp.ne.s32.totalorder %s62, %s63
    %p77 = scmp.eq.s32.totalorder %s15, 8
    %p78 = por %p76, %p77
    %p80 = scmp.ne.s32.totalorder %s63, %s79
    %p81 = scmp.eq.s32.totalorder %s15, 0
    %p82 = por %p80, %p81
    %s84 = sadd.s32 %s83, 1
    %p87 = scmp.eq.s32.totalorder %s9, 8
    %p88 = scmp.ne.s32.totalorder %s83, %s85
    %p89 = scmp.eq.s32.totalorder %s9, 0
    %p90 = por %p88, %p89
    %p91 = scmp.ne.s32.totalorder %s83, %s85
    %p92 = scmp.eq.s32.totalorder %s14, 8
    %p93 = por %p91, %p92
    %p94 = scmp.ne.s32.totalorder %s85, %s86
    %p95 = scmp.eq.s32.totalorder %s14, 0
    %p96 = por %p94, %p95
    %p97 = scmp.ne.s32.totalorder %s85, %s86
    %p98 = scmp.eq.s32.totalorder %s15, 8
    %p99 = por %p97, %p98
    %p101 = scmp.ne.s32.totalorder %s86, %s100
    %p102 = scmp.eq.s32.totalorder %s15, 0
    %p103 = por %p101, %p102
    %s104 = ssub.s32 %s16, %s28
    %p105 = scmp.eq.s32.totalorder %s104, 0
    %s107 = sadd.s32 %s106, 1
    %s108 = scalar_select %p105, %s106, %s107
    %p111 = pneg %p105
    %p112 = scmp.eq.s32.totalorder %s9, 8
    %p113 = por %p111, %p112
    %p114 = scmp.ne.s32.totalorder %s106, %s109
    %p115 = scmp.eq.s32.totalorder %s9, 0
    %p116 = por %p114, %p115
    %p117 = scmp.ne.s32.totalorder %s106, %s109
    %p118 = scmp.eq.s32.totalorder %s14, 8
    %p119 = por %p117, %p118
    %p120 = scmp.ne.s32.totalorder %s109, %s110
    %p121 = scmp.eq.s32.totalorder %s14, 0
    %p122 = por %p120, %p121
    %p123 = scmp.ne.s32.totalorder %s109, %s110
    %p124 = scmp.eq.s32.totalorder %s15, 8
    %p125 = por %p123, %p124
    %p127 = scmp.ne.s32.totalorder %s110, %s126
    %p128 = scmp.eq.s32.totalorder %s15, 0
    %p129 = por %p127, %p128
    %p130 = scmp.le.s32.totalorder 1, %s9
    %p131 = scmp.lt.s32.totalorder %s9, 10
    %p132 = pnand %p130, %p131
    %p133 = pneg %p132
    // Predicated region
    $region9: #{multiscale_discriminator_forward.46} parent=5 // pred_check
      _
    $region10: #{multiscale_discriminator_forward.46} parent=5 // pred_check_branch
      %135 = sbr.rel (%p132) target = $region12
    $region11: #{multiscale_discriminator_forward.46} parent=5 // pred_region
      %s136 = ssub.s32 %s9, 1
      // Predicated region
      $region13: #{multiscale_discriminator_forward.46} parent=11 // pred_check
        %p137 = pneg %p75
      $region14: #{multiscale_discriminator_forward.46} parent=11 // pred_check_branch
        %139 = sbr.rel (%p137) target = $region16
      $region15: #{multiscale_discriminator_forward.46} parent=11 // pred_region
        %s140 = smul.u32 6, %s18
        %p141 = scmp.lt.s32.totalorder %s140, 5
        %s142 = scalar_select %p141, %s140, 5
        %s143 = smul.addr %s142, 8
        %s144 = scalar_lea.vmem %s1, %s143
        %s145 = smul.u32 6, %s18
      $region16: #{multiscale_discriminator_forward.46} parent=11 // pred_fallthru
        _
      // Predicated region
      $region17: #{multiscale_discriminator_forward.46} parent=11 // pred_check
        %p146 = pneg %p96
      $region18: #{multiscale_discriminator_forward.46} parent=11 // pred_check_branch
        %148 = sbr.rel (%p146) target = $region20
      $region19: #{multiscale_discriminator_forward.46} parent=11 // pred_region
        _
      $region20: #{multiscale_discriminator_forward.46} parent=11 // pred_fallthru
        _
    $region12: #{multiscale_discriminator_forward.46} parent=5 // pred_fallthru
      _
    %p149 = scmp.lt.s32.totalorder %s9, 9
    // Predicated region
    $region21: #{multiscale_discriminator_forward.46} parent=5 // pred_check
      %p150 = pneg %p149
    $region22: #{multiscale_discriminator_forward.46} parent=5 // pred_check_branch
      %152 = sbr.rel (%p150) target = $region24
    $region23: #{multiscale_discriminator_forward.46} parent=5 // pred_region
      // Predicated region
      $region25: #{multiscale_discriminator_forward.46} parent=23 // pred_check
        %p153 = pneg %p43
      $region26: #{multiscale_discriminator_forward.46} parent=23 // pred_check_branch
        %155 = sbr.rel (%p153) target = $region28
      $region27: #{multiscale_discriminator_forward.46} parent=23 // pred_region
        %s156 = smul.u32 6, %s16
        %p157 = scmp.lt.s32.totalorder %s17, 8
        %s158 = scalar_select %p157, %s17, 8
        %p159 = scmp.lt.s32.totalorder %s156, 5
        %s160 = scalar_select %p159, %s156, 5
        %s161 = smul.addr %s158, 6
        %s162 = sadd.s32 %s160, %s161
        %s163 = smul.addr %s162, 8
        %s164 = scalar_lea.vmem %s0, %s163
        %s165 = smul.u32 6, %s16
      $region28: #{multiscale_discriminator_forward.46} parent=23 // pred_fallthru
        _
    $region24: #{multiscale_discriminator_forward.46} parent=5 // pred_fallthru
      _
    %p166 = scmp.le.s32.totalorder 1, %s9
    %p167 = scmp.lt.s32.totalorder %s9, 10
    %p168 = pnand %p166, %p167
    %p169 = pneg %p168
    // Predicated region
    $region29: #{multiscale_discriminator_forward.46} parent=5 // pred_check
      _
    $region30: #{multiscale_discriminator_forward.46} parent=5 // pred_check_branch
      %171 = sbr.rel (%p168) target = $region32
    $region31: #{multiscale_discriminator_forward.46} parent=5 // pred_region
      %s172 = ssub.s32 %s9, 1
      %s173 = smul.u32 6, %s18
      %p174 = scmp.lt.s32.totalorder %s19, 8
      %s175 = scalar_select %p174, %s19, 8
      %p176 = scmp.lt.s32.totalorder %s173, 5
      %s177 = scalar_select %p176, %s173, 5
      %s178 = smul.addr %s175, 6
      %s179 = sadd.s32 %s177, %s178
      %s180 = smul.addr %s179, 8
      %s181 = scalar_lea.vmem %s0, %s180
      %p182 = pneg %p49
      %p183 = pneg %p46
      %s184 = smul.u32 6, %s18
      %p185 = scmp.lt.s32.totalorder %s184, 5
      %s186 = scalar_select %p185, %s184, 5
      %s187 = smul.addr %s186, 8
      %s188 = scalar_lea.vmem %s1, %s187
      %p189 = pneg %p75
      %p190 = pneg %p72
      %p191 = pneg %p96
      %p192 = pneg %p93
      %p193 = pneg %p122
      %p194 = pneg %p119
      %s195 = smul.u32 6, %s18
      %p196 = scmp.lt.s32.totalorder %s195, 5
      %s197 = scalar_select %p196, %s195, 5
      %s198 = smul.addr %s197, 8
      %s199 = scalar_lea.vmem %s3, %s198
      %s200 = smul.u32 6, %s18
      %p201 = scmp.lt.s32.totalorder %s19, 8
      %s202 = scalar_select %p201, %s19, 8
      %p203 = scmp.lt.s32.totalorder %s200, 5
      %s204 = scalar_select %p203, %s200, 5
      %s205 = smul.addr %s202, 6
      %s206 = sadd.s32 %s204, %s205
      %s207 = smul.addr %s206, 8
      %s208 = scalar_lea.vmem %s0, %s207
      %s209 = smul.u32 6, %s18
      %s210 = smul.u32 6, %s18
      %p211 = scmp.lt.s32.totalorder %s210, 5
      %s212 = scalar_select %p211, %s210, 5
      %s213 = smul.addr %s212, 8
      %s214 = scalar_lea.vmem %s1, %s213
      %s215 = smul.u32 6, %s18
      %s216 = smul.u32 6, %s18
      %p217 = scmp.lt.s32.totalorder %s216, 5
      %s218 = scalar_select %p217, %s216, 5
      %s219 = smul.addr %s218, 8
      %s220 = scalar_lea.vmem %s3, %s219
      %s221 = smul.u32 6, %s18
      %p222 = scmp.eq.s32.totalorder %s19, 0
      // Predicated region
      $region33: #{multiscale_discriminator_forward.46} parent=31 // pred_check
        %p223 = pneg %p222
      $region34: #{multiscale_discriminator_forward.46} parent=31 // pred_check_branch
        %225 = sbr.rel (%p223) target = $region36
      $region35: #{multiscale_discriminator_forward.46} parent=31 // pred_region
        %vm226 = vcmask 64512
        %227 = vst.msk [vmem:[%s220] sm:$0xff] %vm226, 0.0
        %228 = vst.msk [vmem:[%s220 + $0x8] sm:$0xff] %vm226, 0.0
        %229 = vst.msk [vmem:[%s220 + $0x10] sm:$0xff] %vm226, 0.0
        %230 = vst.msk [vmem:[%s220 + $0x18] sm:$0xff] %vm226, 0.0
        %231 = vst.msk [vmem:[%s220 + $0x20] sm:$0xff] %vm226, 0.0
        %232 = vst.msk [vmem:[%s220 + $0x28] sm:$0xff] %vm226, 0.0
      $region36: #{multiscale_discriminator_forward.46} parent=31 // pred_fallthru
        _
      %v233 = vld [vmem:[%s220] sm:$0xff]
      %v234 = vld [vmem:[%s220 + $0x8] sm:$0xff]
      %v235 = vld [vmem:[%s220 + $0x10] sm:$0xff]
      %v236 = vld [vmem:[%s220 + $0x18] sm:$0xff]
      %v237 = vld [vmem:[%s220 + $0x20] sm:$0xff]
      %v238 = vld [vmem:[%s220 + $0x28] sm:$0xff]
      %v239 = vld [vmem:[%s208] sm:$0xff]
      %v240 = vld [vmem:[%s208 + $0x8] sm:$0xff]
      %v241 = vld [vmem:[%s208 + $0x10] sm:$0xff]
      %v242 = vld [vmem:[%s208 + $0x18] sm:$0xff]
      %v243 = vld [vmem:[%s208 + $0x20] sm:$0xff]
      %v244 = vld [vmem:[%s208 + $0x28] sm:$0xff]
      %v245 = vadd.f32 %v233, %v239
      %v246 = vadd.f32 %v234, %v240
      %v247 = vadd.f32 %v235, %v241
      %v248 = vadd.f32 %v236, %v242
      %v249 = vadd.f32 %v237, %v243
      %v250 = vadd.f32 %v238, %v244
      %vm251 = vcmask 64512
      %252 = vst.msk [vmem:[%s220] sm:$0xff] %vm251, %v245
      %253 = vst.msk [vmem:[%s220 + $0x8] sm:$0xff] %vm251, %v246
      %254 = vst.msk [vmem:[%s220 + $0x10] sm:$0xff] %vm251, %v247
      %255 = vst.msk [vmem:[%s220 + $0x18] sm:$0xff] %vm251, %v248
      %256 = vst.msk [vmem:[%s220 + $0x20] sm:$0xff] %vm251, %v249
      %257 = vst.msk [vmem:[%s220 + $0x28] sm:$0xff] %vm251, %v250
      %p258 = scmp.eq.s32.totalorder %s19, 8
      // Predicated region
      $region37: #{multiscale_discriminator_forward.46} parent=31 // pred_check
        %p259 = pneg %p258
      $region38: #{multiscale_discriminator_forward.46} parent=31 // pred_check_branch
        %261 = sbr.rel (%p259) target = $region40
      $region39: #{multiscale_discriminator_forward.46} parent=31 // pred_region
        %v262 = vld [vmem:[%s220] sm:$0xff]
        %v263 = vld [vmem:[%s220 + $0x8] sm:$0xff]
        %v264 = vld [vmem:[%s220 + $0x10] sm:$0xff]
        %v265 = vld [vmem:[%s220 + $0x18] sm:$0xff]
        %v266 = vld [vmem:[%s220 + $0x20] sm:$0xff]
        %v267 = vld [vmem:[%s220 + $0x28] sm:$0xff]
        %v268 = vld [vmem:[%s214] sm:$0xff]
        %v269 = vld [vmem:[%s214 + $0x8] sm:$0xff]
        %v270 = vld [vmem:[%s214 + $0x10] sm:$0xff]
        %v271 = vld [vmem:[%s214 + $0x18] sm:$0xff]
        %v272 = vld [vmem:[%s214 + $0x20] sm:$0xff]
        %v273 = vld [vmem:[%s214 + $0x28] sm:$0xff]
        %v274 = vld [vmem:[%s2] sm:$0x1]
        %276 = vset.pattern.permute.xlu0 0
        %277 = vperm.xlu0 %276, %v268
        %v278 = vpop.permute.xlu0 %277
        %281 = vset.pattern.permute.xlu0 0
        %282 = vperm.xlu0 %281, %v269
        %v283 = vpop.permute.xlu0 %282
        %286 = vset.pattern.permute.xlu0 0
        %287 = vperm.xlu0 %286, %v270
        %v288 = vpop.permute.xlu0 %287
        %291 = vset.pattern.permute.xlu0 0
        %292 = vperm.xlu0 %291, %v271
        %v293 = vpop.permute.xlu0 %292
        %296 = vset.pattern.permute.xlu0 0
        %297 = vperm.xlu0 %296, %v272
        %v298 = vpop.permute.xlu0 %297
        %301 = vset.pattern.permute.xlu0 0
        %302 = vperm.xlu0 %301, %v273
        %v303 = vpop.permute.xlu0 %302
        %v306 = vlaneseq
        %v307 = vshrl.u32 %v306, 7
        %v308 = vsub.s32 0, %v307
        %v309 = vrot.slane %v274, %v308
        %v311 = vmul.f32 %v278, %v309
        %v312 = vmul.f32 %v283, %v309
        %v313 = vmul.f32 %v288, %v309
        %v314 = vmul.f32 %v293, %v309
        %v315 = vmul.f32 %v298, %v309
        %v316 = vmul.f32 %v303, %v309
        %v317 = vmul.f32 %v262, %v311
        %v318 = vmul.f32 %v263, %v312
        %v319 = vmul.f32 %v264, %v313
        %v320 = vmul.f32 %v265, %v314
        %v321 = vmul.f32 %v266, %v315
        %v322 = vmul.f32 %v267, %v316
        %323 = vst.msk [vmem:[%s220] sm:$0xff] %vm251, %v317
        %324 = vst.msk [vmem:[%s220 + $0x8] sm:$0xff] %vm251, %v318
        %325 = vst.msk [vmem:[%s220 + $0x10] sm:$0xff] %vm251, %v319
        %326 = vst.msk [vmem:[%s220 + $0x18] sm:$0xff] %vm251, %v320
        %327 = vst.msk [vmem:[%s220 + $0x20] sm:$0xff] %vm251, %v321
        %328 = vst.msk [vmem:[%s220 + $0x28] sm:$0xff] %vm251, %v322
      $region40: #{multiscale_discriminator_forward.46} parent=31 // pred_fallthru
        _
      %s329 = smul.u32 6, %s18
      %p330 = scmp.lt.s32.totalorder %s329, 5
      %s331 = scalar_select %p330, %s329, 5
      %s332 = smul.addr %s331, 8
      %s333 = scalar_lea.vmem %s3, %s332
      // Predicated region
      $region41: #{multiscale_discriminator_forward.46} parent=31 // pred_check
        %p334 = pneg %p119
      $region42: #{multiscale_discriminator_forward.46} parent=31 // pred_check_branch
        %336 = sbr.rel (%p334) target = $region44
      $region43: #{multiscale_discriminator_forward.46} parent=31 // pred_region
        %s337 = smul.u32 6, %s18
      $region44: #{multiscale_discriminator_forward.46} parent=31 // pred_fallthru
        _
      // Predicated region
      $region45: #{multiscale_discriminator_forward.46} parent=31 // pred_check
        %p338 = pneg %p119
      $region46: #{multiscale_discriminator_forward.46} parent=31 // pred_check_branch
        %340 = sbr.rel (%p338) target = $region48
      $region47: #{multiscale_discriminator_forward.46} parent=31 // pred_region
        %s341 = smul.u32 6, %s18
        %p342 = scmp.lt.s32.totalorder %s341, 5
        %s343 = scalar_select %p342, %s341, 5
        %s344 = smul.addr %s343, 8
        %s345 = scalar_lea.vmem %s3, %s344
      $region48: #{multiscale_discriminator_forward.46} parent=31 // pred_fallthru
        _
    $region32: #{multiscale_discriminator_forward.46} parent=5 // pred_fallthru
      _
    %p346 = scmp.le.s32.totalorder 2, %s9
    // Predicated region
    $region49: #{multiscale_discriminator_forward.46} parent=5 // pred_check
      %p347 = pneg %p346
    $region50: #{multiscale_discriminator_forward.46} parent=5 // pred_check_branch
      %349 = sbr.rel (%p347) target = $region52
    $region51: #{multiscale_discriminator_forward.46} parent=5 // pred_region
      %s350 = ssub.s32 %s9, 2
    $region52: #{multiscale_discriminator_forward.46} parent=5 // pred_fallthru
      _
  $region6: #{multiscale_discriminator_forward.46} parent=0 // loop_footer
    %s13 = sadd.s32 1, %s9
  $region7: #{multiscale_discriminator_forward.46} parent=0 // loop_footer_branch
    %8 = sbr.rel target = $region3
  $region8: #{multiscale_discriminator_forward.46} parent=0 // loop_exit
    _

// kernel: multiscale_discriminator_forward.47
$region0: #{multiscale_discriminator_forward.47}
  #allocation0 [shape = 'u32[]', space=smem, size = 0x4, offset = 0x4, fixed_abs, tag = 'smem constant byte address 0x4 - core index']
  #allocation1 [shape = 'u32[144,128]{1,0:T(1,128)}', space=vmem, size = 0x12000, scoped, tag = 'internal scratch']
  #allocation2 [shape = 'f32[56,128]{1,0:T(8,128)}', space=vmem, size = 0x7000, scoped, tag = 'scratch operand']
  %s0 = inlined_call_operand.vmem [shape: bf16[56,128], index: 0, kind: input, shape index: {}]
  %s1 = inlined_call_operand.vmem [shape: bf16[128,128], index: 1, kind: input, shape index: {}]
  %s2 = inlined_call_operand.vmem [shape: f32[1,128], index: 2, kind: input, shape index: {}]
  %s3 = inlined_call_operand.vmem [shape: bf16[56,128], index: 3, kind: output, shape index: {}]
  %s4 = sld [smem:[#allocation0]]
  $region30: #{multiscale_discriminator_forward.47} parent=0
    _
  %s6 = ssub.s32 1, %s4
  %s7 = scalar_select 0, %s6, %s4
  // Predicated region
  $region2: #{multiscale_discriminator_forward.47} parent=0 // pred_check
    _
  $region3: #{multiscale_discriminator_forward.47} parent=0 // pred_check_branch
    %9 = sbr.rel (0) target = $region5
  $region4: #{multiscale_discriminator_forward.47} parent=0 // pred_region
    _
  $region5: #{multiscale_discriminator_forward.47} parent=0 // pred_fallthru
    _
  // Predicated region
  $region6: #{multiscale_discriminator_forward.47} parent=0 // pred_check
    _
  $region7: #{multiscale_discriminator_forward.47} parent=0 // pred_check_branch
    %11 = sbr.rel (0) target = $region9
  $region8: #{multiscale_discriminator_forward.47} parent=0 // pred_region
    _
  $region9: #{multiscale_discriminator_forward.47} parent=0 // pred_fallthru
    _
  // Predicated region
  $region10: #{multiscale_discriminator_forward.47} parent=0 // pred_check
    _
  $region11: #{multiscale_discriminator_forward.47} parent=0 // pred_check_branch
    %13 = sbr.rel (0) target = $region13
  $region12: #{multiscale_discriminator_forward.47} parent=0 // pred_region
    _
  $region13: #{multiscale_discriminator_forward.47} parent=0 // pred_fallthru
    _
  %p15 = scmp.eq.s32.totalorder 0, 0
  // Predicated region
  $region14: #{multiscale_discriminator_forward.47} parent=0 // pred_check
    %p16 = pneg %p15
  $region15: #{multiscale_discriminator_forward.47} parent=0 // pred_check_branch
    %18 = sbr.rel (%p16) target = $region17
  $region16: #{multiscale_discriminator_forward.47} parent=0 // pred_region
    %19 = vst [vmem:[#allocation2] sm:$0xff] 0.0
    %20 = vst [vmem:[#allocation2 + $0x8] sm:$0xff] 0.0
    %21 = vst [vmem:[#allocation2 + $0x10] sm:$0xff] 0.0
    %22 = vst [vmem:[#allocation2 + $0x18] sm:$0xff] 0.0
    %23 = vst [vmem:[#allocation2 + $0x20] sm:$0xff] 0.0
    %24 = vst [vmem:[#allocation2 + $0x28] sm:$0xff] 0.0
    %25 = vst [vmem:[#allocation2 + $0x30] sm:$0xff] 0.0
  $region17: #{multiscale_discriminator_forward.47} parent=0 // pred_fallthru
    _
  %v26 = vld [vmem:[#allocation2] sm:$0xff]
  %v27 = vld [vmem:[#allocation2 + $0x8] sm:$0xff]
  %v28 = vld [vmem:[#allocation2 + $0x10] sm:$0xff]
  %v29 = vld [vmem:[#allocation2 + $0x18] sm:$0xff]
  %v30 = vld [vmem:[#allocation2 + $0x20] sm:$0xff]
  %v31 = vld [vmem:[#allocation2 + $0x28] sm:$0xff]
  %v32 = vld [vmem:[#allocation2 + $0x30] sm:$0xff]
  %v33 = vld [vmem:[%s0] sm:$0xf]
  %v34 = vld [vmem:[%s0 + $0x4] sm:$0xf]
  %v35 = vld [vmem:[%s0 + $0x8] sm:$0xf]
  %v36 = vld [vmem:[%s0 + $0xc] sm:$0xf]
  %v37 = vld [vmem:[%s0 + $0x10] sm:$0xf]
  %v38 = vld [vmem:[%s0 + $0x14] sm:$0xf]
  %v39 = vld [vmem:[%s0 + $0x18] sm:$0xf]
  %v40 = vld [vmem:[%s1] sm:$0xf]
  %v41 = vld [vmem:[%s1 + $0x4] sm:$0xf]
  %v42 = vld [vmem:[%s1 + $0x8] sm:$0xf]
  %v43 = vld [vmem:[%s1 + $0xc] sm:$0xf]
  %v44 = vld [vmem:[%s1 + $0x10] sm:$0xf]
  %v45 = vld [vmem:[%s1 + $0x14] sm:$0xf]
  %v46 = vld [vmem:[%s1 + $0x18] sm:$0xf]
  %v47 = vld [vmem:[%s1 + $0x1c] sm:$0xf]
  %v48 = vld [vmem:[%s1 + $0x20] sm:$0xf]
  %v49 = vld [vmem:[%s1 + $0x24] sm:$0xf]
  %v50 = vld [vmem:[%s1 + $0x28] sm:$0xf]
  %v51 = vld [vmem:[%s1 + $0x2c] sm:$0xf]
  %v52 = vld [vmem:[%s1 + $0x30] sm:$0xf]
  %v53 = vld [vmem:[%s1 + $0x34] sm:$0xf]
  %v54 = vld [vmem:[%s1 + $0x38] sm:$0xf]
  %v55 = vld [vmem:[%s1 + $0x3c] sm:$0xf]
  %v63 = vunpack.c.l.b16 %v33
  %v64 = vunpack.c.l.b16 %v34
  %v65 = vunpack.c.l.b16 %v35
  %v66 = vunpack.c.l.b16 %v36
  %v67 = vunpack.c.l.b16 %v37
  %v68 = vunpack.c.l.b16 %v38
  %v69 = vunpack.c.l.b16 %v39
  %v70 = vpack.c.b16 %v64, %v63
  %v71 = vpack.c.b16 %v66, %v65
  %v72 = vpack.c.b16 %v68, %v67
  %v73 = vpack.c.b16 %v69, %v69
  %v94 = vunpack.c.l.b16 %v40
  %v95 = vunpack.c.l.b16 %v41
  %v96 = vunpack.c.l.b16 %v42
  %v97 = vunpack.c.l.b16 %v43
  %v98 = vunpack.c.l.b16 %v44
  %v99 = vunpack.c.l.b16 %v45
  %v100 = vunpack.c.l.b16 %v46
  %v101 = vunpack.c.l.b16 %v47
  %v102 = vunpack.c.l.b16 %v48
  %v103 = vunpack.c.l.b16 %v49
  %v104 = vunpack.c.l.b16 %v50
  %v105 = vunpack.c.l.b16 %v51
  %v106 = vunpack.c.l.b16 %v52
  %v107 = vunpack.c.l.b16 %v53
  %v108 = vunpack.c.l.b16 %v54
  %v109 = vunpack.c.l.b16 %v55
  %v110 = vpack.c.b16 %v95, %v94
  %v111 = vpack.c.b16 %v97, %v96
  %v112 = vpack.c.b16 %v99, %v98
  %v113 = vpack.c.b16 %v101, %v100
  %v114 = vpack.c.b16 %v103, %v102
  %v115 = vpack.c.b16 %v105, %v104
  %v116 = vpack.c.b16 %v107, %v106
  %v117 = vpack.c.b16 %v109, %v108
  %126 = vmatprep.subr.bf16.mxu0 0
  %127 = vmatpush1.bf16.msra.mxu0 %v110
  %128 = vmatprep.subr.bf16.mxu0 0
  %129 = vmatpush1.bf16.msra.mxu0 %v111
  %130 = vmatprep.subr.bf16.mxu0 0
  %131 = vmatpush1.bf16.msra.mxu0 %v112
  %132 = vmatprep.subr.bf16.mxu0 0
  %133 = vmatpush1.bf16.msra.mxu0 %v113
  %134 = vmatprep.subr.bf16.mxu0 0
  %135 = vmatpush1.bf16.msra.mxu0 %v114
  %136 = vmatprep.subr.bf16.mxu0 0
  %137 = vmatpush1.bf16.msra.mxu0 %v115
  %138 = vmatprep.subr.bf16.mxu0 0
  %139 = vmatpush1.bf16.msra.mxu0 %v116
  %140 = vmatprep.subr.bf16.mxu0 0
  %141 = vmatpush1.bf16.msra.mxu0 %v117
  %142 = vmatprep.subr.bf16.mxu0 0
  %143 = vmatpush1.bf16.msra.mxu0 0
  %144 = vmatprep.subr.bf16.mxu0 0
  %145 = vmatpush1.bf16.msra.mxu0 0
  %146 = vmatprep.subr.bf16.mxu0 0
  %147 = vmatpush1.bf16.msra.mxu0 0
  %148 = vmatprep.subr.bf16.mxu0 0
  %149 = vmatpush1.bf16.msra.mxu0 0
  %150 = vmatprep.subr.bf16.mxu0 0
  %151 = vmatpush1.bf16.msra.mxu0 0
  %152 = vmatprep.subr.bf16.mxu0 0
  %153 = vmatpush1.bf16.msra.mxu0 0
  %154 = vmatprep.subr.bf16.mxu0 0
  %155 = vmatpush1.bf16.msra.mxu0 0
  %156 = vmatprep.subr.bf16.mxu0 0
  %157 = vmatpush1.bf16.msra.mxu0 0
  %158 = vmatprep.mubr.bf16.mxu0 0
  %159 = vmatmul.mubr.bf16.gmra.mrb[0].mxu0 %v70
  %v160 = vpop.f32.mrb[0].mxu0
  %v161 = vadd.f32 0.0, %v160
  %v162 = vpop.f32.mrb[0].mxu0
  %v163 = vpop.f32.mrb[0].mxu0
  %v164 = vadd.f32 0.0, %v163
  %v165 = vpop.f32.mrb[0].mxu0
  %166 = vmatprep.mubr.bf16.mxu0 0
  %167 = vmatmul.mubr.bf16.gmra.mrb[0].mxu0 %v71
  %v168 = vpop.f32.mrb[0].mxu0
  %v169 = vadd.f32 0.0, %v168
  %v170 = vpop.f32.mrb[0].mxu0
  %v171 = vpop.f32.mrb[0].mxu0
  %v172 = vadd.f32 0.0, %v171
  %v173 = vpop.f32.mrb[0].mxu0
  %174 = vmatprep.mubr.bf16.mxu0 0
  %175 = vmatmul.mubr.bf16.gmra.mrb[0].mxu0 %v72
  %v176 = vpop.f32.mrb[0].mxu0
  %v177 = vadd.f32 0.0, %v176
  %v178 = vpop.f32.mrb[0].mxu0
  %v179 = vpop.f32.mrb[0].mxu0
  %v180 = vadd.f32 0.0, %v179
  %v181 = vpop.f32.mrb[0].mxu0
  %182 = vmatprep.mubr.bf16.mxu0 0
  %183 = vmatmul.mubr.bf16.gmra.mrb[0].mxu0 %v73
  %v184 = vpop.f32.mrb[0].mxu0
  %v185 = vadd.f32 0.0, %v184
  %v186 = vpop.f32.mrb[0].mxu0
  %v187 = vpop.f32.mrb[0].mxu0
  %v188 = vpop.f32.mrb[0].mxu0
  %189 = vdwg.mxu0
  %v190 = vadd.f32 %v26, %v161
  %v191 = vadd.f32 %v27, %v164
  %v192 = vadd.f32 %v28, %v169
  %v193 = vadd.f32 %v29, %v172
  %v194 = vadd.f32 %v30, %v177
  %v195 = vadd.f32 %v31, %v180
  %v196 = vadd.f32 %v32, %v185
  %197 = vst [vmem:[#allocation2] sm:$0xff] %v190
  %198 = vst [vmem:[#allocation2 + $0x8] sm:$0xff] %v191
  %199 = vst [vmem:[#allocation2 + $0x10] sm:$0xff] %v192
  %200 = vst [vmem:[#allocation2 + $0x18] sm:$0xff] %v193
  %201 = vst [vmem:[#allocation2 + $0x20] sm:$0xff] %v194
  %202 = vst [vmem:[#allocation2 + $0x28] sm:$0xff] %v195
  %203 = vst [vmem:[#allocation2 + $0x30] sm:$0xff] %v196
  // Predicated region
  $region18: #{multiscale_discriminator_forward.47} parent=0 // pred_check
    %p204 = pneg %p15
  $region19: #{multiscale_discriminator_forward.47} parent=0 // pred_check_branch
    %206 = sbr.rel (%p204) target = $region21
  $region20: #{multiscale_discriminator_forward.47} parent=0 // pred_region
    %v207 = vld [vmem:[#allocation2] sm:$0xff]
    %v208 = vld [vmem:[#allocation2 + $0x8] sm:$0xff]
    %v209 = vld [vmem:[#allocation2 + $0x10] sm:$0xff]
    %v210 = vld [vmem:[#allocation2 + $0x18] sm:$0xff]
    %v211 = vld [vmem:[#allocation2 + $0x20] sm:$0xff]
    %v212 = vld [vmem:[#allocation2 + $0x28] sm:$0xff]
    %v213 = vld [vmem:[#allocation2 + $0x30] sm:$0xff]
    %v214 = vld [vmem:[%s2] sm:$0x1]
    %v216 = vlaneseq
    %v217 = vshrl.u32 %v216, 7
    %v218 = vsub.s32 0, %v217
    %v219 = vrot.slane %v214, %v218
    %v221 = vadd.f32 %v207, %v219
    %v222 = vadd.f32 %v208, %v219
    %v223 = vadd.f32 %v209, %v219
    %v224 = vadd.f32 %v210, %v219
    %v225 = vadd.f32 %v211, %v219
    %v226 = vadd.f32 %v212, %v219
    %v227 = vadd.f32 %v213, %v219
    %vm228 = vcmp.gt.f32.partialorder %v221, 0.0
    %vm229 = vcmp.gt.f32.partialorder %v222, 0.0
    %vm230 = vcmp.gt.f32.partialorder %v223, 0.0
    %vm231 = vcmp.gt.f32.partialorder %v224, 0.0
    %vm232 = vcmp.gt.f32.partialorder %v225, 0.0
    %vm233 = vcmp.gt.f32.partialorder %v226, 0.0
    %vm234 = vcmp.gt.f32.partialorder %v227, 0.0
    %v235 = vmul.f32 %v221, 0.2
    %v236 = vmul.f32 %v222, 0.2
    %v237 = vmul.f32 %v223, 0.2
    %v238 = vmul.f32 %v224, 0.2
    %v239 = vmul.f32 %v225, 0.2
    %v240 = vmul.f32 %v226, 0.2
    %v241 = vmul.f32 %v227, 0.2
    %v242 = vsel %vm228, %v221, %v235
    %v243 = vsel %vm229, %v222, %v236
    %v244 = vsel %vm230, %v223, %v237
    %v245 = vsel %vm231, %v224, %v238
    %v246 = vsel %vm232, %v225, %v239
    %v247 = vsel %vm233, %v226, %v240
    %v248 = vsel %vm234, %v227, %v241
    %v249 = vpack.c.bf16 %v243, %v242
    %v250 = vpack.c.bf16 %v245, %v244
    %v251 = vpack.c.bf16 %v247, %v246
    %v252 = vpack.c.bf16 %v248, %v248
    %v257 = vunpack.c.l.b16 %v249
    %v258 = vunpack.c.h.b16 %v249
    %v259 = vunpack.c.l.b16 %v250
    %v260 = vunpack.c.h.b16 %v250
    %v261 = vunpack.c.l.b16 %v251
    %v262 = vunpack.c.h.b16 %v251
    %v263 = vunpack.c.l.b16 %v252
    %v264 = vpack.c.b16 %v257, %v257
    %v265 = vpack.c.b16 %v258, %v258
    %v266 = vpack.c.b16 %v259, %v259
    %v267 = vpack.c.b16 %v260, %v260
    %v268 = vpack.c.b16 %v261, %v261
    %v269 = vpack.c.b16 %v262, %v262
    %v270 = vpack.c.b16 %v263, %v263
    %278 = vst [vmem:[%s3] sm:$0xf] %v264
    %279 = vst [vmem:[%s3 + $0x4] sm:$0xf] %v265
    %280 = vst [vmem:[%s3 + $0x8] sm:$0xf] %v266
    %281 = vst [vmem:[%s3 + $0xc] sm:$0xf] %v267
    %282 = vst [vmem:[%s3 + $0x10] sm:$0xf] %v268
    %283 = vst [vmem:[%s3 + $0x14] sm:$0xf] %v269
    %284 = vst [vmem:[%s3 + $0x18] sm:$0xf] %v270
  $region21: #{multiscale_discriminator_forward.47} parent=0 // pred_fallthru
    _
  // Predicated region
  $region22: #{multiscale_discriminator_forward.47} parent=0 // pred_check
    _
  $region23: #{multiscale_discriminator_forward.47} parent=0 // pred_check_branch
    %286 = sbr.rel (0) target = $region25
  $region24: #{multiscale_discriminator_forward.47} parent=0 // pred_region
    _
  $region25: #{multiscale_discriminator_forward.47} parent=0 // pred_fallthru
    _
  // Predicated region
  $region26: #{multiscale_discriminator_forward.47} parent=0 // pred_check
    _
  $region27: #{multiscale_discriminator_forward.47} parent=0 // pred_check_branch
    %288 = sbr.rel (0) target = $region29
  $region28: #{multiscale_discriminator_forward.47} parent=0 // pred_region
    _
  $region29: #{multiscale_discriminator_forward.47} parent=0 // pred_fallthru
    _

// kernel: multiscale_discriminator_forward.48
$region0: #{multiscale_discriminator_forward.48}
  #allocation0 [shape = 'u32[]', space=smem, size = 0x4, offset = 0x4, fixed_abs, tag = 'smem constant byte address 0x4 - core index']
  #allocation1 [shape = 'u32[144,128]{1,0:T(1,128)}', space=vmem, size = 0x12000, scoped, tag = 'internal scratch']
  #allocation2 [shape = 'f32[24,128]{1,0:T(8,128)}', space=vmem, size = 0x3000, scoped, tag = 'scratch operand']
  %s0 = inlined_call_operand.vmem [shape: bf16[24,128], index: 0, kind: input, shape index: {}]
  %s1 = inlined_call_operand.vmem [shape: bf16[128,128], index: 1, kind: input, shape index: {}]
  %s2 = inlined_call_operand.vmem [shape: f32[1,128], index: 2, kind: input, shape index: {}]
  %s3 = inlined_call_operand.vmem [shape: bf16[24,128], index: 3, kind: output, shape index: {}]
  %s4 = sld [smem:[#allocation0]]
  $region30: #{multiscale_discriminator_forward.48} parent=0
    _
  %s6 = ssub.s32 1, %s4
  %s7 = scalar_select 0, %s6, %s4
  // Predicated region
  $region2: #{multiscale_discriminator_forward.48} parent=0 // pred_check
    _
  $region3: #{multiscale_discriminator_forward.48} parent=0 // pred_check_branch
    %9 = sbr.rel (0) target = $region5
  $region4: #{multiscale_discriminator_forward.48} parent=0 // pred_region
    _
  $region5: #{multiscale_discriminator_forward.48} parent=0 // pred_fallthru
    _
  // Predicated region
  $region6: #{multiscale_discriminator_forward.48} parent=0 // pred_check
    _
  $region7: #{multiscale_discriminator_forward.48} parent=0 // pred_check_branch
    %11 = sbr.rel (0) target = $region9
  $region8: #{multiscale_discriminator_forward.48} parent=0 // pred_region
    _
  $region9: #{multiscale_discriminator_forward.48} parent=0 // pred_fallthru
    _
  // Predicated region
  $region10: #{multiscale_discriminator_forward.48} parent=0 // pred_check
    _
  $region11: #{multiscale_discriminator_forward.48} parent=0 // pred_check_branch
    %13 = sbr.rel (0) target = $region13
  $region12: #{multiscale_discriminator_forward.48} parent=0 // pred_region
    _
  $region13: #{multiscale_discriminator_forward.48} parent=0 // pred_fallthru
    _
  %p15 = scmp.eq.s32.totalorder 0, 0
  // Predicated region
  $region14: #{multiscale_discriminator_forward.48} parent=0 // pred_check
    %p16 = pneg %p15
  $region15: #{multiscale_discriminator_forward.48} parent=0 // pred_check_branch
    %18 = sbr.rel (%p16) target = $region17
  $region16: #{multiscale_discriminator_forward.48} parent=0 // pred_region
    %19 = vst [vmem:[#allocation2] sm:$0xff] 0.0
    %20 = vst [vmem:[#allocation2 + $0x8] sm:$0xff] 0.0
    %21 = vst [vmem:[#allocation2 + $0x10] sm:$0xff] 0.0
  $region17: #{multiscale_discriminator_forward.48} parent=0 // pred_fallthru
    _
  %v22 = vld [vmem:[#allocation2] sm:$0xff]
  %v23 = vld [vmem:[#allocation2 + $0x8] sm:$0xff]
  %v24 = vld [vmem:[#allocation2 + $0x10] sm:$0xff]
  %v25 = vld [vmem:[%s0] sm:$0xf]
  %v26 = vld [vmem:[%s0 + $0x4] sm:$0xf]
  %v27 = vld [vmem:[%s0 + $0x8] sm:$0xf]
  %v28 = vld [vmem:[%s1] sm:$0xf]
  %v29 = vld [vmem:[%s1 + $0x4] sm:$0xf]
  %v30 = vld [vmem:[%s1 + $0x8] sm:$0xf]
  %v31 = vld [vmem:[%s1 + $0xc] sm:$0xf]
  %v32 = vld [vmem:[%s1 + $0x10] sm:$0xf]
  %v33 = vld [vmem:[%s1 + $0x14] sm:$0xf]
  %v34 = vld [vmem:[%s1 + $0x18] sm:$0xf]
  %v35 = vld [vmem:[%s1 + $0x1c] sm:$0xf]
  %v36 = vld [vmem:[%s1 + $0x20] sm:$0xf]
  %v37 = vld [vmem:[%s1 + $0x24] sm:$0xf]
  %v38 = vld [vmem:[%s1 + $0x28] sm:$0xf]
  %v39 = vld [vmem:[%s1 + $0x2c] sm:$0xf]
  %v40 = vld [vmem:[%s1 + $0x30] sm:$0xf]
  %v41 = vld [vmem:[%s1 + $0x34] sm:$0xf]
  %v42 = vld [vmem:[%s1 + $0x38] sm:$0xf]
  %v43 = vld [vmem:[%s1 + $0x3c] sm:$0xf]
  %v47 = vunpack.c.l.b16 %v25
  %v48 = vunpack.c.l.b16 %v26
  %v49 = vunpack.c.l.b16 %v27
  %v50 = vpack.c.b16 %v48, %v47
  %v51 = vpack.c.b16 %v49, %v49
  %v70 = vunpack.c.l.b16 %v28
  %v71 = vunpack.c.l.b16 %v29
  %v72 = vunpack.c.l.b16 %v30
  %v73 = vunpack.c.l.b16 %v31
  %v74 = vunpack.c.l.b16 %v32
  %v75 = vunpack.c.l.b16 %v33
  %v76 = vunpack.c.l.b16 %v34
  %v77 = vunpack.c.l.b16 %v35
  %v78 = vunpack.c.l.b16 %v36
  %v79 = vunpack.c.l.b16 %v37
  %v80 = vunpack.c.l.b16 %v38
  %v81 = vunpack.c.l.b16 %v39
  %v82 = vunpack.c.l.b16 %v40
  %v83 = vunpack.c.l.b16 %v41
  %v84 = vunpack.c.l.b16 %v42
  %v85 = vunpack.c.l.b16 %v43
  %v86 = vpack.c.b16 %v71, %v70
  %v87 = vpack.c.b16 %v73, %v72
  %v88 = vpack.c.b16 %v75, %v74
  %v89 = vpack.c.b16 %v77, %v76
  %v90 = vpack.c.b16 %v79, %v78
  %v91 = vpack.c.b16 %v81, %v80
  %v92 = vpack.c.b16 %v83, %v82
  %v93 = vpack.c.b16 %v85, %v84
  %102 = vmatprep.subr.bf16.mxu0 0
  %103 = vmatpush1.bf16.msra.mxu0 %v86
  %104 = vmatprep.subr.bf16.mxu0 0
  %105 = vmatpush1.bf16.msra.mxu0 %v87
  %106 = vmatprep.subr.bf16.mxu0 0
  %107 = vmatpush1.bf16.msra.mxu0 %v88
  %108 = vmatprep.subr.bf16.mxu0 0
  %109 = vmatpush1.bf16.msra.mxu0 %v89
  %110 = vmatprep.subr.bf16.mxu0 0
  %111 = vmatpush1.bf16.msra.mxu0 %v90
  %112 = vmatprep.subr.bf16.mxu0 0
  %113 = vmatpush1.bf16.msra.mxu0 %v91
  %114 = vmatprep.subr.bf16.mxu0 0
  %115 = vmatpush1.bf16.msra.mxu0 %v92
  %116 = vmatprep.subr.bf16.mxu0 0
  %117 = vmatpush1.bf16.msra.mxu0 %v93
  %118 = vmatprep.subr.bf16.mxu0 0
  %119 = vmatpush1.bf16.msra.mxu0 0
  %120 = vmatprep.subr.bf16.mxu0 0
  %121 = vmatpush1.bf16.msra.mxu0 0
  %122 = vmatprep.subr.bf16.mxu0 0
  %123 = vmatpush1.bf16.msra.mxu0 0
  %124 = vmatprep.subr.bf16.mxu0 0
  %125 = vmatpush1.bf16.msra.mxu0 0
  %126 = vmatprep.subr.bf16.mxu0 0
  %127 = vmatpush1.bf16.msra.mxu0 0
  %128 = vmatprep.subr.bf16.mxu0 0
  %129 = vmatpush1.bf16.msra.mxu0 0
  %130 = vmatprep.subr.bf16.mxu0 0
  %131 = vmatpush1.bf16.msra.mxu0 0
  %132 = vmatprep.subr.bf16.mxu0 0
  %133 = vmatpush1.bf16.msra.mxu0 0
  %134 = vmatprep.mubr.bf16.mxu0 0
  %135 = vmatmul.mubr.bf16.gmra.mrb[0].mxu0 %v50
  %v136 = vpop.f32.mrb[0].mxu0
  %v137 = vadd.f32 0.0, %v136
  %v138 = vpop.f32.mrb[0].mxu0
  %v139 = vpop.f32.mrb[0].mxu0
  %v140 = vadd.f32 0.0, %v139
  %v141 = vpop.f32.mrb[0].mxu0
  %142 = vmatprep.mubr.bf16.mxu0 0
  %143 = vmatmul.mubr.bf16.gmra.mrb[0].mxu0 %v51
  %v144 = vpop.f32.mrb[0].mxu0
  %v145 = vadd.f32 0.0, %v144
  %v146 = vpop.f32.mrb[0].mxu0
  %v147 = vpop.f32.mrb[0].mxu0
  %v148 = vpop.f32.mrb[0].mxu0
  %149 = vdwg.mxu0
  %v150 = vadd.f32 %v22, %v137
  %v151 = vadd.f32 %v23, %v140
  %v152 = vadd.f32 %v24, %v145
  %153 = vst [vmem:[#allocation2] sm:$0xff] %v150
  %154 = vst [vmem:[#allocation2 + $0x8] sm:$0xff] %v151
  %155 = vst [vmem:[#allocation2 + $0x10] sm:$0xff] %v152
  // Predicated region
  $region18: #{multiscale_discriminator_forward.48} parent=0 // pred_check
    %p156 = pneg %p15
  $region19: #{multiscale_discriminator_forward.48} parent=0 // pred_check_branch
    %158 = sbr.rel (%p156) target = $region21
  $region20: #{multiscale_discriminator_forward.48} parent=0 // pred_region
    %v159 = vld [vmem:[#allocation2] sm:$0xff]
    %v160 = vld [vmem:[#allocation2 + $0x8] sm:$0xff]
    %v161 = vld [vmem:[#allocation2 + $0x10] sm:$0xff]
    %v162 = vld [vmem:[%s2] sm:$0x1]
    %v164 = vlaneseq
    %v165 = vshrl.u32 %v164, 7
    %v166 = vsub.s32 0, %v165
    %v167 = vrot.slane %v162, %v166
    %v169 = vadd.f32 %v159, %v167
    %v170 = vadd.f32 %v160, %v167
    %v171 = vadd.f32 %v161, %v167
    %v172 = vpack.c.bf16 %v170, %v169
    %v173 = vpack.c.bf16 %v171, %v171
    %v176 = vunpack.c.l.b16 %v172
    %v177 = vunpack.c.h.b16 %v172
    %v178 = vunpack.c.l.b16 %v173
    %v179 = vpack.c.b16 %v176, %v176
    %v180 = vpack.c.b16 %v177, %v177
    %v181 = vpack.c.b16 %v178, %v178
    %185 = vst [vmem:[%s3] sm:$0xf] %v179
    %186 = vst [vmem:[%s3 + $0x4] sm:$0xf] %v180
    %187 = vst [vmem:[%s3 + $0x8] sm:$0xf] %v181
  $region21: #{multiscale_discriminator_forward.48} parent=0 // pred_fallthru
    _
  // Predicated region
  $region22: #{multiscale_discriminator_forward.48} parent=0 // pred_check
    _
  $region23: #{multiscale_discriminator_forward.48} parent=0 // pred_check_branch
    %189 = sbr.rel (0) target = $region25
  $region24: #{multiscale_discriminator_forward.48} parent=0 // pred_region
    _
  $region25: #{multiscale_discriminator_forward.48} parent=0 // pred_fallthru
    _
  // Predicated region
  $region26: #{multiscale_discriminator_forward.48} parent=0 // pred_check
    _
  $region27: #{multiscale_discriminator_forward.48} parent=0 // pred_check_branch
    %191 = sbr.rel (0) target = $region29
  $region28: #{multiscale_discriminator_forward.48} parent=0 // pred_region
    _
  $region29: #{multiscale_discriminator_forward.48} parent=0 // pred_fallthru
    _

// kernel: multiscale_discriminator_forward.49
$region0: #{multiscale_discriminator_forward.49}
  #allocation0 [shape = 'u32[]', space=smem, size = 0x4, offset = 0x4, fixed_abs, tag = 'smem constant byte address 0x4 - core index']
  #allocation1 [shape = 'u32[144,128]{1,0:T(1,128)}', space=vmem, size = 0x12000, scoped, tag = 'internal scratch']
  %s0 = inlined_call_operand.vmem [shape: bf16[24,16], index: 0, kind: input, shape index: {}]
  %s1 = inlined_call_operand.vmem [shape: f32[1,1,16], index: 1, kind: output, shape index: {0}]
  %s2 = inlined_call_operand.vmem [shape: f32[1,1,16], index: 2, kind: output, shape index: {1}]
  %3 = xla_tuple %s1, %s2
  %s4 = sld [smem:[#allocation0]]
  $region22: #{multiscale_discriminator_forward.49} parent=0
    _
  %s6 = ssub.s32 1, %s4
  %s7 = scalar_select 0, %s6, %s4
  // Predicated region
  $region2: #{multiscale_discriminator_forward.49} parent=0 // pred_check
    _
  $region3: #{multiscale_discriminator_forward.49} parent=0 // pred_check_branch
    %9 = sbr.rel (0) target = $region5
  $region4: #{multiscale_discriminator_forward.49} parent=0 // pred_region
    _
  $region5: #{multiscale_discriminator_forward.49} parent=0 // pred_fallthru
    _
  %v10 = vld [vmem:[%s0] sm:$0xf]
  %v11 = vld [vmem:[%s0 + $0x4] sm:$0xf]
  %v12 = vld [vmem:[%s0 + $0x8] sm:$0xf]
  %v13 = vunpack.c.l.bf16 %v10
  %v14 = vunpack.c.l.bf16 %v11
  %v15 = vunpack.c.l.bf16 %v12
  %vm16 = vcmask 130048
  %v17 = vsel %vm16, %v13, 0.0
  %v18 = vsel %vm16, %v14, 0.0
  %v19 = vadd.f32 %v17, %v18
  %v20 = vsel %vm16, %v15, 0.0
  %v21 = vadd.f32 %v19, %v20
  %v22 = vrot.slane %v21, 4
  %v23 = vadd.f32 %v21, %v22
  %v24 = vrot.slane %v23, 2
  %v25 = vadd.f32 %v23, %v24
  %v26 = vrot.slane %v25, 1
  %v27 = vadd.f32 %v25, %v26
  %vm28 = vcmask 122880
  %29 = vst.msk [vmem:[%s1] sm:$0x1] %vm28, %v27
  %v30 = vmul.f32 %v13, %v13
  %v31 = vmul.f32 %v14, %v14
  %v32 = vmul.f32 %v15, %v15
  %v33 = vsel %vm16, %v30, 0.0
  %v34 = vsel %vm16, %v31, 0.0
  %v35 = vadd.f32 %v33, %v34
  %v36 = vsel %vm16, %v32, 0.0
  %v37 = vadd.f32 %v35, %v36
  %v38 = vrot.slane %v37, 4
  %v39 = vadd.f32 %v37, %v38
  %v40 = vrot.slane %v39, 2
  %v41 = vadd.f32 %v39, %v40
  %v42 = vrot.slane %v41, 1
  %v43 = vadd.f32 %v41, %v42
  %44 = vst.msk [vmem:[%s2] sm:$0x1] %vm28, %v43
  // Predicated region
  $region6: #{multiscale_discriminator_forward.49} parent=0 // pred_check
    _
  $region7: #{multiscale_discriminator_forward.49} parent=0 // pred_check_branch
    %46 = sbr.rel (0) target = $region9
  $region8: #{multiscale_discriminator_forward.49} parent=0 // pred_region
    _
  $region9: #{multiscale_discriminator_forward.49} parent=0 // pred_fallthru
    _
  // Predicated region
  $region10: #{multiscale_discriminator_forward.49} parent=0 // pred_check
    _
  $region11: #{multiscale_discriminator_forward.49} parent=0 // pred_check_branch
    %48 = sbr.rel (0) target = $region13
  $region12: #{multiscale_discriminator_forward.49} parent=0 // pred_region
    _
  $region13: #{multiscale_discriminator_forward.49} parent=0 // pred_fallthru
    _
  // Predicated region
  $region14: #{multiscale_discriminator_forward.49} parent=0 // pred_check
    _
  $region15: #{multiscale_discriminator_forward.49} parent=0 // pred_check_branch
    %50 = sbr.rel (0) target = $region17
  $region16: #{multiscale_discriminator_forward.49} parent=0 // pred_region
    _
  $region17: #{multiscale_discriminator_forward.49} parent=0 // pred_fallthru
    _
  // Predicated region
  $region18: #{multiscale_discriminator_forward.49} parent=0 // pred_check
    _
  $region19: #{multiscale_discriminator_forward.49} parent=0 // pred_check_branch
    %52 = sbr.rel (0) target = $region21
  $region20: #{multiscale_discriminator_forward.49} parent=0 // pred_region
    _
  $region21: #{multiscale_discriminator_forward.49} parent=0 // pred_fallthru
    _

// kernel: multiscale_discriminator_forward.50
$region0: #{multiscale_discriminator_forward.50}
  #allocation0 [shape = 'u32[]', space=smem, size = 0x4, offset = 0x4, fixed_abs, tag = 'smem constant byte address 0x4 - core index']
  #allocation1 [shape = 'u32[144,128]{1,0:T(1,128)}', space=vmem, size = 0x12000, scoped, tag = 'internal scratch']
  %s0 = inlined_call_operand.vmem [shape: bf16[24,16], index: 0, kind: input, shape index: {}]
  %s1 = inlined_call_operand.vmem [shape: f32[1,16], index: 1, kind: input, shape index: {}]
  %s2 = inlined_call_operand.vmem [shape: f32[1,16], index: 2, kind: input, shape index: {}]
  %s3 = inlined_call_operand.vmem [shape: bf16[24,16], index: 3, kind: output, shape index: {}]
  %s4 = sld [smem:[#allocation0]]
  $region22: #{multiscale_discriminator_forward.50} parent=0
    _
  %s6 = ssub.s32 1, %s4
  %s7 = scalar_select 0, %s6, %s4
  // Predicated region
  $region2: #{multiscale_discriminator_forward.50} parent=0 // pred_check
    _
  $region3: #{multiscale_discriminator_forward.50} parent=0 // pred_check_branch
    %9 = sbr.rel (0) target = $region5
  $region4: #{multiscale_discriminator_forward.50} parent=0 // pred_region
    _
  $region5: #{multiscale_discriminator_forward.50} parent=0 // pred_fallthru
    _
  // Predicated region
  $region6: #{multiscale_discriminator_forward.50} parent=0 // pred_check
    _
  $region7: #{multiscale_discriminator_forward.50} parent=0 // pred_check_branch
    %11 = sbr.rel (0) target = $region9
  $region8: #{multiscale_discriminator_forward.50} parent=0 // pred_region
    _
  $region9: #{multiscale_discriminator_forward.50} parent=0 // pred_fallthru
    _
  // Predicated region
  $region10: #{multiscale_discriminator_forward.50} parent=0 // pred_check
    _
  $region11: #{multiscale_discriminator_forward.50} parent=0 // pred_check_branch
    %13 = sbr.rel (0) target = $region13
  $region12: #{multiscale_discriminator_forward.50} parent=0 // pred_region
    _
  $region13: #{multiscale_discriminator_forward.50} parent=0 // pred_fallthru
    _
  %v14 = vld [vmem:[%s0] sm:$0xf]
  %v15 = vld [vmem:[%s0 + $0x4] sm:$0xf]
  %v16 = vld [vmem:[%s0 + $0x8] sm:$0xf]
  %v17 = vunpack.c.l.bf16 %v14
  %v18 = vunpack.c.l.bf16 %v15
  %v19 = vunpack.c.l.bf16 %v16
  %v20 = vld [vmem:[%s1] sm:$0x1]
  %v22 = vlaneseq
  %v23 = vshrl.u32 %v22, 7
  %v24 = vsub.s32 0, %v23
  %v25 = vrot.slane %v20, %v24
  %v27 = vmul.f32 %v17, %v25
  %v28 = vmul.f32 %v18, %v25
  %v29 = vmul.f32 %v19, %v25
  %v30 = vld [vmem:[%s2] sm:$0x1]
  %v32 = vlaneseq
  %v33 = vshrl.u32 %v32, 7
  %v34 = vsub.s32 0, %v33
  %v35 = vrot.slane %v30, %v34
  %v37 = vadd.f32 %v27, %v35
  %v38 = vadd.f32 %v28, %v35
  %v39 = vadd.f32 %v29, %v35
  %vm40 = vcmp.gt.f32.partialorder %v37, 0.0
  %vm41 = vcmp.gt.f32.partialorder %v38, 0.0
  %vm42 = vcmp.gt.f32.partialorder %v39, 0.0
  %v43 = vmul.f32 %v37, 0.2
  %v44 = vmul.f32 %v38, 0.2
  %v45 = vmul.f32 %v39, 0.2
  %v46 = vsel %vm40, %v37, %v43
  %v47 = vsel %vm41, %v38, %v44
  %v48 = vsel %vm42, %v39, %v45
  %v49 = vpack.c.bf16 %v47, %v46
  %v50 = vpack.c.bf16 %v48, %v48
  %v53 = vunpack.c.l.b16 %v49
  %v54 = vunpack.c.h.b16 %v49
  %v55 = vunpack.c.l.b16 %v50
  %v56 = vpack.c.b16 %v53, %v53
  %v57 = vpack.c.b16 %v54, %v54
  %v58 = vpack.c.b16 %v55, %v55
  %vm62 = vcmask 125952
  %63 = vst.msk [vmem:[%s3] sm:$0xf] %vm62, %v56
  %64 = vst.msk [vmem:[%s3 + $0x4] sm:$0xf] %vm62, %v57
  %65 = vst.msk [vmem:[%s3 + $0x8] sm:$0xf] %vm62, %v58
  // Predicated region
  $region14: #{multiscale_discriminator_forward.50} parent=0 // pred_check
    _
  $region15: #{multiscale_discriminator_forward.50} parent=0 // pred_check_branch
    %67 = sbr.rel (0) target = $region17
  $region16: #{multiscale_discriminator_forward.50} parent=0 // pred_region
    _
  $region17: #{multiscale_discriminator_forward.50} parent=0 // pred_fallthru
    _
  // Predicated region
  $region18: #{multiscale_discriminator_forward.50} parent=0 // pred_check
    _
  $region19: #{multiscale_discriminator_forward.50} parent=0 // pred_check_branch
    %69 = sbr.rel (0) target = $region21
  $region20: #{multiscale_discriminator_forward.50} parent=0 // pred_region
    _
  $region21: #{multiscale_discriminator_forward.50} parent=0 // pred_fallthru
    _

// kernel: multiscale_discriminator_forward.51
$region0: #{multiscale_discriminator_forward.51}
  #allocation0 [shape = 'u32[]', space=smem, size = 0x4, offset = 0x4, fixed_abs, tag = 'smem constant byte address 0x4 - core index']
  #allocation1 [shape = 'u32[144,128]{1,0:T(1,128)}', space=vmem, size = 0x12000, scoped, tag = 'internal scratch']
  #allocation2 [shape = 'f32[8,128]{1,0:T(8,128)}', space=vmem, size = 0x1000, scoped, tag = 'scratch operand']
  %s0 = inlined_call_operand.vmem [shape: bf16[8,256], index: 0, kind: input, shape index: {}]
  %s1 = inlined_call_operand.vmem [shape: bf16[256,128], index: 1, kind: input, shape index: {}]
  %s2 = inlined_call_operand.vmem [shape: f32[1,128], index: 2, kind: input, shape index: {}]
  %s3 = inlined_call_operand.vmem [shape: bf16[8,128], index: 3, kind: output, shape index: {}]
  %s4 = sld [smem:[#allocation0]]
  $region30: #{multiscale_discriminator_forward.51} parent=0
    _
  %s6 = ssub.s32 1, %s4
  %s7 = scalar_select 0, %s6, %s4
  // Predicated region
  $region2: #{multiscale_discriminator_forward.51} parent=0 // pred_check
    _
  $region3: #{multiscale_discriminator_forward.51} parent=0 // pred_check_branch
    %9 = sbr.rel (0) target = $region5
  $region4: #{multiscale_discriminator_forward.51} parent=0 // pred_region
    _
  $region5: #{multiscale_discriminator_forward.51} parent=0 // pred_fallthru
    _
  // Predicated region
  $region6: #{multiscale_discriminator_forward.51} parent=0 // pred_check
    _
  $region7: #{multiscale_discriminator_forward.51} parent=0 // pred_check_branch
    %11 = sbr.rel (0) target = $region9
  $region8: #{multiscale_discriminator_forward.51} parent=0 // pred_region
    _
  $region9: #{multiscale_discriminator_forward.51} parent=0 // pred_fallthru
    _
  // Predicated region
  $region10: #{multiscale_discriminator_forward.51} parent=0 // pred_check
    _
  $region11: #{multiscale_discriminator_forward.51} parent=0 // pred_check_branch
    %13 = sbr.rel (0) target = $region13
  $region12: #{multiscale_discriminator_forward.51} parent=0 // pred_region
    _
  $region13: #{multiscale_discriminator_forward.51} parent=0 // pred_fallthru
    _
  %p15 = scmp.eq.s32.totalorder 0, 0
  // Predicated region
  $region14: #{multiscale_discriminator_forward.51} parent=0 // pred_check
    %p16 = pneg %p15
  $region15: #{multiscale_discriminator_forward.51} parent=0 // pred_check_branch
    %18 = sbr.rel (%p16) target = $region17
  $region16: #{multiscale_discriminator_forward.51} parent=0 // pred_region
    %19 = vst [vmem:[#allocation2] sm:$0xff] 0.0
  $region17: #{multiscale_discriminator_forward.51} parent=0 // pred_fallthru
    _
  %v20 = vld [vmem:[#allocation2] sm:$0xff]
  %v21 = vld [vmem:[%s0] sm:$0xff]
  %v22 = vld [vmem:[%s1] sm:$0xf]
  %v23 = vld [vmem:[%s1 + $0x4] sm:$0xf]
  %v24 = vld [vmem:[%s1 + $0x8] sm:$0xf]
  %v25 = vld [vmem:[%s1 + $0xc] sm:$0xf]
  %v26 = vld [vmem:[%s1 + $0x10] sm:$0xf]
  %v27 = vld [vmem:[%s1 + $0x14] sm:$0xf]
  %v28 = vld [vmem:[%s1 + $0x18] sm:$0xf]
  %v29 = vld [vmem:[%s1 + $0x1c] sm:$0xf]
  %v30 = vld [vmem:[%s1 + $0x20] sm:$0xf]
  %v31 = vld [vmem:[%s1 + $0x24] sm:$0xf]
  %v32 = vld [vmem:[%s1 + $0x28] sm:$0xf]
  %v33 = vld [vmem:[%s1 + $0x2c] sm:$0xf]
  %v34 = vld [vmem:[%s1 + $0x30] sm:$0xf]
  %v35 = vld [vmem:[%s1 + $0x34] sm:$0xf]
  %v36 = vld [vmem:[%s1 + $0x38] sm:$0xf]
  %v37 = vld [vmem:[%s1 + $0x3c] sm:$0xf]
  %v38 = vld [vmem:[%s1 + $0x40] sm:$0xf]
  %v39 = vld [vmem:[%s1 + $0x44] sm:$0xf]
  %v40 = vld [vmem:[%s1 + $0x48] sm:$0xf]
  %v41 = vld [vmem:[%s1 + $0x4c] sm:$0xf]
  %v42 = vld [vmem:[%s1 + $0x50] sm:$0xf]
  %v43 = vld [vmem:[%s1 + $0x54] sm:$0xf]
  %v44 = vld [vmem:[%s1 + $0x58] sm:$0xf]
  %v45 = vld [vmem:[%s1 + $0x5c] sm:$0xf]
  %v46 = vld [vmem:[%s1 + $0x60] sm:$0xf]
  %v47 = vld [vmem:[%s1 + $0x64] sm:$0xf]
  %v48 = vld [vmem:[%s1 + $0x68] sm:$0xf]
  %v49 = vld [vmem:[%s1 + $0x6c] sm:$0xf]
  %v50 = vld [vmem:[%s1 + $0x70] sm:$0xf]
  %v51 = vld [vmem:[%s1 + $0x74] sm:$0xf]
  %v52 = vld [vmem:[%s1 + $0x78] sm:$0xf]
  %v53 = vld [vmem:[%s1 + $0x7c] sm:$0xf]
  %v55 = vunpack.c.l.b16 %v21
  %v56 = vunpack.c.h.b16 %v21
  %v57 = vpack.c.b16 %v55, %v55
  %v58 = vpack.c.b16 %v56, %v56
  %v93 = vunpack.c.l.b16 %v22
  %v94 = vunpack.c.l.b16 %v23
  %v95 = vunpack.c.l.b16 %v24
  %v96 = vunpack.c.l.b16 %v25
  %v97 = vunpack.c.l.b16 %v26
  %v98 = vunpack.c.l.b16 %v27
  %v99 = vunpack.c.l.b16 %v28
  %v100 = vunpack.c.l.b16 %v29
  %v101 = vunpack.c.l.b16 %v30
  %v102 = vunpack.c.l.b16 %v31
  %v103 = vunpack.c.l.b16 %v32
  %v104 = vunpack.c.l.b16 %v33
  %v105 = vunpack.c.l.b16 %v34
  %v106 = vunpack.c.l.b16 %v35
  %v107 = vunpack.c.l.b16 %v36
  %v108 = vunpack.c.l.b16 %v37
  %v109 = vunpack.c.l.b16 %v38
  %v110 = vunpack.c.l.b16 %v39
  %v111 = vunpack.c.l.b16 %v40
  %v112 = vunpack.c.l.b16 %v41
  %v113 = vunpack.c.l.b16 %v42
  %v114 = vunpack.c.l.b16 %v43
  %v115 = vunpack.c.l.b16 %v44
  %v116 = vunpack.c.l.b16 %v45
  %v117 = vunpack.c.l.b16 %v46
  %v118 = vunpack.c.l.b16 %v47
  %v119 = vunpack.c.l.b16 %v48
  %v120 = vunpack.c.l.b16 %v49
  %v121 = vunpack.c.l.b16 %v50
  %v122 = vunpack.c.l.b16 %v51
  %v123 = vunpack.c.l.b16 %v52
  %v124 = vunpack.c.l.b16 %v53
  %v125 = vpack.c.b16 %v94, %v93
  %v126 = vpack.c.b16 %v96, %v95
  %v127 = vpack.c.b16 %v98, %v97
  %v128 = vpack.c.b16 %v100, %v99
  %v129 = vpack.c.b16 %v102, %v101
  %v130 = vpack.c.b16 %v104, %v103
  %v131 = vpack.c.b16 %v106, %v105
  %v132 = vpack.c.b16 %v108, %v107
  %v133 = vpack.c.b16 %v110, %v109
  %v134 = vpack.c.b16 %v112, %v111
  %v135 = vpack.c.b16 %v114, %v113
  %v136 = vpack.c.b16 %v116, %v115
  %v137 = vpack.c.b16 %v118, %v117
  %v138 = vpack.c.b16 %v120, %v119
  %v139 = vpack.c.b16 %v122, %v121
  %v140 = vpack.c.b16 %v124, %v123
  %157 = vmatprep.subr.bf16.mxu0 0
  %158 = vmatpush1.bf16.msra.mxu0 %v125
  %159 = vmatprep.subr.bf16.mxu0 0
  %160 = vmatpush1.bf16.msra.mxu0 %v126
  %161 = vmatprep.subr.bf16.mxu0 0
  %162 = vmatpush1.bf16.msra.mxu0 %v127
  %163 = vmatprep.subr.bf16.mxu0 0
  %164 = vmatpush1.bf16.msra.mxu0 %v128
  %165 = vmatprep.subr.bf16.mxu0 0
  %166 = vmatpush1.bf16.msra.mxu0 %v129
  %167 = vmatprep.subr.bf16.mxu0 0
  %168 = vmatpush1.bf16.msra.mxu0 %v130
  %169 = vmatprep.subr.bf16.mxu0 0
  %170 = vmatpush1.bf16.msra.mxu0 %v131
  %171 = vmatprep.subr.bf16.mxu0 0
  %172 = vmatpush1.bf16.msra.mxu0 %v132
  %173 = vmatprep.subr.bf16.mxu0 0
  %174 = vmatpush1.bf16.msra.mxu0 %v133
  %175 = vmatprep.subr.bf16.mxu0 0
  %176 = vmatpush1.bf16.msra.mxu0 %v134
  %177 = vmatprep.subr.bf16.mxu0 0
  %178 = vmatpush1.bf16.msra.mxu0 %v135
  %179 = vmatprep.subr.bf16.mxu0 0
  %180 = vmatpush1.bf16.msra.mxu0 %v136
  %181 = vmatprep.subr.bf16.mxu0 0
  %182 = vmatpush1.bf16.msra.mxu0 %v137
  %183 = vmatprep.subr.bf16.mxu0 0
  %184 = vmatpush1.bf16.msra.mxu0 %v138
  %185 = vmatprep.subr.bf16.mxu0 0
  %186 = vmatpush1.bf16.msra.mxu0 %v139
  %187 = vmatprep.subr.bf16.mxu0 0
  %188 = vmatpush1.bf16.msra.mxu0 %v140
  %189 = vmatprep.mubr.bf16.mxu0 %v58
  %190 = vmatmul.mubr.bf16.gmra.mrb[0].mxu0 %v57
  %v191 = vpop.f32.mrb[0].mxu0
  %v192 = vadd.f32 0.0, %v191
  %v193 = vpop.f32.mrb[0].mxu0
  %v194 = vpop.f32.mrb[0].mxu0
  %v195 = vpop.f32.mrb[0].mxu0
  %196 = vdwg.mxu0
  %v197 = vadd.f32 %v20, %v192
  %198 = vst [vmem:[#allocation2] sm:$0xff] %v197
  // Predicated region
  $region18: #{multiscale_discriminator_forward.51} parent=0 // pred_check
    %p199 = pneg %p15
  $region19: #{multiscale_discriminator_forward.51} parent=0 // pred_check_branch
    %201 = sbr.rel (%p199) target = $region21
  $region20: #{multiscale_discriminator_forward.51} parent=0 // pred_region
    %v202 = vld [vmem:[#allocation2] sm:$0xff]
    %v203 = vld [vmem:[%s2] sm:$0x1]
    %v205 = vlaneseq
    %v206 = vshrl.u32 %v205, 7
    %v207 = vsub.s32 0, %v206
    %v208 = vrot.slane %v203, %v207
    %v210 = vadd.f32 %v202, %v208
    %v211 = vpack.c.bf16 %v210, %v210
    %212 = vst [vmem:[%s3] sm:$0xf] %v211
  $region21: #{multiscale_discriminator_forward.51} parent=0 // pred_fallthru
    _
  // Predicated region
  $region22: #{multiscale_discriminator_forward.51} parent=0 // pred_check
    _
  $region23: #{multiscale_discriminator_forward.51} parent=0 // pred_check_branch
    %214 = sbr.rel (0) target = $region25
  $region24: #{multiscale_discriminator_forward.51} parent=0 // pred_region
    _
  $region25: #{multiscale_discriminator_forward.51} parent=0 // pred_fallthru
    _
  // Predicated region
  $region26: #{multiscale_discriminator_forward.51} parent=0 // pred_check
    _
  $region27: #{multiscale_discriminator_forward.51} parent=0 // pred_check_branch
    %216 = sbr.rel (0) target = $region29
  $region28: #{multiscale_discriminator_forward.51} parent=0 // pred_region
    _
  $region29: #{multiscale_discriminator_forward.51} parent=0 // pred_fallthru
    _

// kernel: multiscale_discriminator_forward.52
$region0: #{multiscale_discriminator_forward.52}
  #allocation0 [shape = 'u32[]', space=smem, size = 0x4, offset = 0x4, fixed_abs, tag = 'smem constant byte address 0x4 - core index']
  #allocation1 [shape = 'u32[144,128]{1,0:T(1,128)}', space=vmem, size = 0x12000, scoped, tag = 'internal scratch']
  %s0 = inlined_call_operand.vmem [shape: bf16[8,32], index: 0, kind: input, shape index: {}]
  %s1 = inlined_call_operand.vmem [shape: f32[1,1,32], index: 1, kind: output, shape index: {0}]
  %s2 = inlined_call_operand.vmem [shape: f32[1,1,32], index: 2, kind: output, shape index: {1}]
  %3 = xla_tuple %s1, %s2
  %s4 = sld [smem:[#allocation0]]
  $region22: #{multiscale_discriminator_forward.52} parent=0
    _
  %s6 = ssub.s32 1, %s4
  %s7 = scalar_select 0, %s6, %s4
  // Predicated region
  $region2: #{multiscale_discriminator_forward.52} parent=0 // pred_check
    _
  $region3: #{multiscale_discriminator_forward.52} parent=0 // pred_check_branch
    %9 = sbr.rel (0) target = $region5
  $region4: #{multiscale_discriminator_forward.52} parent=0 // pred_region
    _
  $region5: #{multiscale_discriminator_forward.52} parent=0 // pred_fallthru
    _
  %v10 = vld [vmem:[%s0] sm:$0xf]
  %v11 = vunpack.c.l.bf16 %v10
  %vm12 = vcmask 261120
  %v13 = vsel %vm12, %v11, 0.0
  %v14 = vrot.slane %v13, 4
  %v15 = vadd.f32 %v13, %v14
  %v16 = vrot.slane %v15, 2
  %v17 = vadd.f32 %v15, %v16
  %v18 = vrot.slane %v17, 1
  %v19 = vadd.f32 %v17, %v18
  %vm20 = vcmask 253952
  %21 = vst.msk [vmem:[%s1] sm:$0x1] %vm20, %v19
  %v22 = vmul.f32 %v11, %v11
  %v23 = vsel %vm12, %v22, 0.0
  %v24 = vrot.slane %v23, 4
  %v25 = vadd.f32 %v23, %v24
  %v26 = vrot.slane %v25, 2
  %v27 = vadd.f32 %v25, %v26
  %v28 = vrot.slane %v27, 1
  %v29 = vadd.f32 %v27, %v28
  %30 = vst.msk [vmem:[%s2] sm:$0x1] %vm20, %v29
  // Predicated region
  $region6: #{multiscale_discriminator_forward.52} parent=0 // pred_check
    _
  $region7: #{multiscale_discriminator_forward.52} parent=0 // pred_check_branch
    %32 = sbr.rel (0) target = $region9
  $region8: #{multiscale_discriminator_forward.52} parent=0 // pred_region
    _
  $region9: #{multiscale_discriminator_forward.52} parent=0 // pred_fallthru
    _
  // Predicated region
  $region10: #{multiscale_discriminator_forward.52} parent=0 // pred_check
    _
  $region11: #{multiscale_discriminator_forward.52} parent=0 // pred_check_branch
    %34 = sbr.rel (0) target = $region13
  $region12: #{multiscale_discriminator_forward.52} parent=0 // pred_region
    _
  $region13: #{multiscale_discriminator_forward.52} parent=0 // pred_fallthru
    _
  // Predicated region
  $region14: #{multiscale_discriminator_forward.52} parent=0 // pred_check
    _
  $region15: #{multiscale_discriminator_forward.52} parent=0 // pred_check_branch
    %36 = sbr.rel (0) target = $region17
  $region16: #{multiscale_discriminator_forward.52} parent=0 // pred_region
    _
  $region17: #{multiscale_discriminator_forward.52} parent=0 // pred_fallthru
    _
  // Predicated region
  $region18: #{multiscale_discriminator_forward.52} parent=0 // pred_check
    _
  $region19: #{multiscale_discriminator_forward.52} parent=0 // pred_check_branch
    %38 = sbr.rel (0) target = $region21
  $region20: #{multiscale_discriminator_forward.52} parent=0 // pred_region
    _
  $region21: #{multiscale_discriminator_forward.52} parent=0 // pred_fallthru
    _

// kernel: multiscale_discriminator_forward.53
$region0: #{multiscale_discriminator_forward.53}
  #allocation0 [shape = 'u32[]', space=smem, size = 0x4, offset = 0x4, fixed_abs, tag = 'smem constant byte address 0x4 - core index']
  #allocation1 [shape = 'u32[144,128]{1,0:T(1,128)}', space=vmem, size = 0x12000, scoped, tag = 'internal scratch']
  %s0 = inlined_call_operand.vmem [shape: bf16[8,32], index: 0, kind: input, shape index: {}]
  %s1 = inlined_call_operand.vmem [shape: f32[1,32], index: 1, kind: input, shape index: {}]
  %s2 = inlined_call_operand.vmem [shape: f32[1,32], index: 2, kind: input, shape index: {}]
  %s3 = inlined_call_operand.vmem [shape: bf16[8,32], index: 3, kind: output, shape index: {}]
  %s4 = sld [smem:[#allocation0]]
  $region22: #{multiscale_discriminator_forward.53} parent=0
    _
  %s6 = ssub.s32 1, %s4
  %s7 = scalar_select 0, %s6, %s4
  // Predicated region
  $region2: #{multiscale_discriminator_forward.53} parent=0 // pred_check
    _
  $region3: #{multiscale_discriminator_forward.53} parent=0 // pred_check_branch
    %9 = sbr.rel (0) target = $region5
  $region4: #{multiscale_discriminator_forward.53} parent=0 // pred_region
    _
  $region5: #{multiscale_discriminator_forward.53} parent=0 // pred_fallthru
    _
  // Predicated region
  $region6: #{multiscale_discriminator_forward.53} parent=0 // pred_check
    _
  $region7: #{multiscale_discriminator_forward.53} parent=0 // pred_check_branch
    %11 = sbr.rel (0) target = $region9
  $region8: #{multiscale_discriminator_forward.53} parent=0 // pred_region
    _
  $region9: #{multiscale_discriminator_forward.53} parent=0 // pred_fallthru
    _
  // Predicated region
  $region10: #{multiscale_discriminator_forward.53} parent=0 // pred_check
    _
  $region11: #{multiscale_discriminator_forward.53} parent=0 // pred_check_branch
    %13 = sbr.rel (0) target = $region13
  $region12: #{multiscale_discriminator_forward.53} parent=0 // pred_region
    _
  $region13: #{multiscale_discriminator_forward.53} parent=0 // pred_fallthru
    _
  %v14 = vld [vmem:[%s0] sm:$0xf]
  %v15 = vunpack.c.l.bf16 %v14
  %v16 = vld [vmem:[%s1] sm:$0x1]
  %v18 = vlaneseq
  %v19 = vshrl.u32 %v18, 7
  %v20 = vsub.s32 0, %v19
  %v21 = vrot.slane %v16, %v20
  %v23 = vmul.f32 %v15, %v21
  %v24 = vld [vmem:[%s2] sm:$0x1]
  %v26 = vlaneseq
  %v27 = vshrl.u32 %v26, 7
  %v28 = vsub.s32 0, %v27
  %v29 = vrot.slane %v24, %v28
  %v31 = vadd.f32 %v23, %v29
  %vm32 = vcmp.gt.f32.partialorder %v31, 0.0
  %v33 = vmul.f32 %v31, 0.2
  %v34 = vsel %vm32, %v31, %v33
  %v35 = vpack.c.bf16 %v34, %v34
  %vm36 = vcmask 257024
  %37 = vst.msk [vmem:[%s3] sm:$0xf] %vm36, %v35
  // Predicated region
  $region14: #{multiscale_discriminator_forward.53} parent=0 // pred_check
    _
  $region15: #{multiscale_discriminator_forward.53} parent=0 // pred_check_branch
    %39 = sbr.rel (0) target = $region17
  $region16: #{multiscale_discriminator_forward.53} parent=0 // pred_region
    _
  $region17: #{multiscale_discriminator_forward.53} parent=0 // pred_fallthru
    _
  // Predicated region
  $region18: #{multiscale_discriminator_forward.53} parent=0 // pred_check
    _
  $region19: #{multiscale_discriminator_forward.53} parent=0 // pred_check_branch
    %41 = sbr.rel (0) target = $region21
  $region20: #{multiscale_discriminator_forward.53} parent=0 // pred_region
    _
  $region21: #{multiscale_discriminator_forward.53} parent=0 // pred_fallthru
    _

// kernel: multiscale_discriminator_forward.55
$region0: #{multiscale_discriminator_forward.55}
  #allocation0 [shape = 'u32[]', space=smem, size = 0x4, offset = 0x4, fixed_abs, tag = 'smem constant byte address 0x4 - core index']
  #allocation1 [shape = 'u32[144,128]{1,0:T(1,128)}', space=vmem, size = 0x12000, scoped, tag = 'internal scratch']
  %s0 = inlined_call_operand.vmem [shape: bf16[24,64], index: 0, kind: input, shape index: {}]
  %s1 = inlined_call_operand.vmem [shape: f32[1,1,64], index: 1, kind: output, shape index: {0}]
  %s2 = inlined_call_operand.vmem [shape: f32[1,1,64], index: 2, kind: output, shape index: {1}]
  %3 = xla_tuple %s1, %s2
  %s4 = sld [smem:[#allocation0]]
  $region22: #{multiscale_discriminator_forward.55} parent=0
    _
  %s6 = ssub.s32 1, %s4
  %s7 = scalar_select 0, %s6, %s4
  // Predicated region
  $region2: #{multiscale_discriminator_forward.55} parent=0 // pred_check
    _
  $region3: #{multiscale_discriminator_forward.55} parent=0 // pred_check_branch
    %9 = sbr.rel (0) target = $region5
  $region4: #{multiscale_discriminator_forward.55} parent=0 // pred_region
    _
  $region5: #{multiscale_discriminator_forward.55} parent=0 // pred_fallthru
    _
  %v10 = vld [vmem:[%s0] sm:$0xf]
  %v11 = vld [vmem:[%s0 + $0x4] sm:$0xf]
  %v12 = vld [vmem:[%s0 + $0x8] sm:$0xf]
  %v13 = vunpack.c.l.bf16 %v10
  %v14 = vunpack.c.l.bf16 %v11
  %v15 = vunpack.c.l.bf16 %v12
  %vm16 = vcmask 523264
  %v17 = vsel %vm16, %v13, 0.0
  %v18 = vsel %vm16, %v14, 0.0
  %v19 = vadd.f32 %v17, %v18
  %v20 = vsel %vm16, %v15, 0.0
  %v21 = vadd.f32 %v19, %v20
  %v22 = vrot.slane %v21, 4
  %v23 = vadd.f32 %v21, %v22
  %v24 = vrot.slane %v23, 2
  %v25 = vadd.f32 %v23, %v24
  %v26 = vrot.slane %v25, 1
  %v27 = vadd.f32 %v25, %v26
  %vm28 = vcmask 516096
  %29 = vst.msk [vmem:[%s1] sm:$0x1] %vm28, %v27
  %v30 = vmul.f32 %v13, %v13
  %v31 = vmul.f32 %v14, %v14
  %v32 = vmul.f32 %v15, %v15
  %v33 = vsel %vm16, %v30, 0.0
  %v34 = vsel %vm16, %v31, 0.0
  %v35 = vadd.f32 %v33, %v34
  %v36 = vsel %vm16, %v32, 0.0
  %v37 = vadd.f32 %v35, %v36
  %v38 = vrot.slane %v37, 4
  %v39 = vadd.f32 %v37, %v38
  %v40 = vrot.slane %v39, 2
  %v41 = vadd.f32 %v39, %v40
  %v42 = vrot.slane %v41, 1
  %v43 = vadd.f32 %v41, %v42
  %44 = vst.msk [vmem:[%s2] sm:$0x1] %vm28, %v43
  // Predicated region
  $region6: #{multiscale_discriminator_forward.55} parent=0 // pred_check
    _
  $region7: #{multiscale_discriminator_forward.55} parent=0 // pred_check_branch
    %46 = sbr.rel (0) target = $region9
  $region8: #{multiscale_discriminator_forward.55} parent=0 // pred_region
    _
  $region9: #{multiscale_discriminator_forward.55} parent=0 // pred_fallthru
    _
  // Predicated region
  $region10: #{multiscale_discriminator_forward.55} parent=0 // pred_check
    _
  $region11: #{multiscale_discriminator_forward.55} parent=0 // pred_check_branch
    %48 = sbr.rel (0) target = $region13
  $region12: #{multiscale_discriminator_forward.55} parent=0 // pred_region
    _
  $region13: #{multiscale_discriminator_forward.55} parent=0 // pred_fallthru
    _
  // Predicated region
  $region14: #{multiscale_discriminator_forward.55} parent=0 // pred_check
    _
  $region15: #{multiscale_discriminator_forward.55} parent=0 // pred_check_branch
    %50 = sbr.rel (0) target = $region17
  $region16: #{multiscale_discriminator_forward.55} parent=0 // pred_region
    _
  $region17: #{multiscale_discriminator_forward.55} parent=0 // pred_fallthru
    _
  // Predicated region
  $region18: #{multiscale_discriminator_forward.55} parent=0 // pred_check
    _
  $region19: #{multiscale_discriminator_forward.55} parent=0 // pred_check_branch
    %52 = sbr.rel (0) target = $region21
  $region20: #{multiscale_discriminator_forward.55} parent=0 // pred_region
    _
  $region21: #{multiscale_discriminator_forward.55} parent=0 // pred_fallthru
    _

// kernel: multiscale_discriminator_forward.54
$region0: #{multiscale_discriminator_forward.54}
  #allocation0 [shape = 'u32[]', space=smem, size = 0x4, offset = 0x4, fixed_abs, tag = 'smem constant byte address 0x4 - core index']
  #allocation1 [shape = 'u32[144,128]{1,0:T(1,128)}', space=vmem, size = 0x12000, scoped, tag = 'internal scratch']
  #allocation2 [shape = 'f32[24,128]{1,0:T(8,128)}', space=vmem, size = 0x3000, scoped, tag = 'scratch operand']
  %s0 = inlined_call_operand.vmem [shape: bf16[24,512], index: 0, kind: input, shape index: {}]
  %s1 = inlined_call_operand.vmem [shape: bf16[512,128], index: 1, kind: input, shape index: {}]
  %s2 = inlined_call_operand.vmem [shape: f32[1,128], index: 2, kind: input, shape index: {}]
  %s3 = inlined_call_operand.vmem [shape: bf16[24,128], index: 3, kind: output, shape index: {}]
  %s4 = sld [smem:[#allocation0]]
  $region30: #{multiscale_discriminator_forward.54} parent=0
    _
  %s6 = ssub.s32 1, %s4
  %s7 = scalar_select 0, %s6, %s4
  // Predicated region
  $region2: #{multiscale_discriminator_forward.54} parent=0 // pred_check
    _
  $region3: #{multiscale_discriminator_forward.54} parent=0 // pred_check_branch
    %9 = sbr.rel (0) target = $region5
  $region4: #{multiscale_discriminator_forward.54} parent=0 // pred_region
    _
  $region5: #{multiscale_discriminator_forward.54} parent=0 // pred_fallthru
    _
  // Predicated region
  $region6: #{multiscale_discriminator_forward.54} parent=0 // pred_check
    _
  $region7: #{multiscale_discriminator_forward.54} parent=0 // pred_check_branch
    %11 = sbr.rel (0) target = $region9
  $region8: #{multiscale_discriminator_forward.54} parent=0 // pred_region
    _
  $region9: #{multiscale_discriminator_forward.54} parent=0 // pred_fallthru
    _
  // Predicated region
  $region10: #{multiscale_discriminator_forward.54} parent=0 // pred_check
    _
  $region11: #{multiscale_discriminator_forward.54} parent=0 // pred_check_branch
    %13 = sbr.rel (0) target = $region13
  $region12: #{multiscale_discriminator_forward.54} parent=0 // pred_region
    _
  $region13: #{multiscale_discriminator_forward.54} parent=0 // pred_fallthru
    _
  %p15 = scmp.eq.s32.totalorder 0, 0
  // Predicated region
  $region14: #{multiscale_discriminator_forward.54} parent=0 // pred_check
    %p16 = pneg %p15
  $region15: #{multiscale_discriminator_forward.54} parent=0 // pred_check_branch
    %18 = sbr.rel (%p16) target = $region17
  $region16: #{multiscale_discriminator_forward.54} parent=0 // pred_region
    %19 = vst [vmem:[#allocation2] sm:$0xff] 0.0
    %20 = vst [vmem:[#allocation2 + $0x8] sm:$0xff] 0.0
    %21 = vst [vmem:[#allocation2 + $0x10] sm:$0xff] 0.0
  $region17: #{multiscale_discriminator_forward.54} parent=0 // pred_fallthru
    _
  %v22 = vld [vmem:[#allocation2] sm:$0xff]
  %v23 = vld [vmem:[#allocation2 + $0x8] sm:$0xff]
  %v24 = vld [vmem:[#allocation2 + $0x10] sm:$0xff]
  %v25 = vld [vmem:[%s0] sm:$0xff]
  %v26 = vld [vmem:[%s0 + $0x8] sm:$0xff]
  %v27 = vld [vmem:[%s0 + $0x10] sm:$0xff]
  %v28 = vld [vmem:[%s0 + $0x18] sm:$0xff]
  %v29 = vld [vmem:[%s0 + $0x20] sm:$0xff]
  %v30 = vld [vmem:[%s0 + $0x28] sm:$0xff]
  %v31 = vld [vmem:[%s1] sm:$0xf]
  %v32 = vld [vmem:[%s1 + $0x4] sm:$0xf]
  %v33 = vld [vmem:[%s1 + $0x8] sm:$0xf]
  %v34 = vld [vmem:[%s1 + $0xc] sm:$0xf]
  %v35 = vld [vmem:[%s1 + $0x10] sm:$0xf]
  %v36 = vld [vmem:[%s1 + $0x14] sm:$0xf]
  %v37 = vld [vmem:[%s1 + $0x18] sm:$0xf]
  %v38 = vld [vmem:[%s1 + $0x1c] sm:$0xf]
  %v39 = vld [vmem:[%s1 + $0x20] sm:$0xf]
  %v40 = vld [vmem:[%s1 + $0x24] sm:$0xf]
  %v41 = vld [vmem:[%s1 + $0x28] sm:$0xf]
  %v42 = vld [vmem:[%s1 + $0x2c] sm:$0xf]
  %v43 = vld [vmem:[%s1 + $0x30] sm:$0xf]
  %v44 = vld [vmem:[%s1 + $0x34] sm:$0xf]
  %v45 = vld [vmem:[%s1 + $0x38] sm:$0xf]
  %v46 = vld [vmem:[%s1 + $0x3c] sm:$0xf]
  %v47 = vld [vmem:[%s1 + $0x40] sm:$0xf]
  %v48 = vld [vmem:[%s1 + $0x44] sm:$0xf]
  %v49 = vld [vmem:[%s1 + $0x48] sm:$0xf]
  %v50 = vld [vmem:[%s1 + $0x4c] sm:$0xf]
  %v51 = vld [vmem:[%s1 + $0x50] sm:$0xf]
  %v52 = vld [vmem:[%s1 + $0x54] sm:$0xf]
  %v53 = vld [vmem:[%s1 + $0x58] sm:$0xf]
  %v54 = vld [vmem:[%s1 + $0x5c] sm:$0xf]
  %v55 = vld [vmem:[%s1 + $0x60] sm:$0xf]
  %v56 = vld [vmem:[%s1 + $0x64] sm:$0xf]
  %v57 = vld [vmem:[%s1 + $0x68] sm:$0xf]
  %v58 = vld [vmem:[%s1 + $0x6c] sm:$0xf]
  %v59 = vld [vmem:[%s1 + $0x70] sm:$0xf]
  %v60 = vld [vmem:[%s1 + $0x74] sm:$0xf]
  %v61 = vld [vmem:[%s1 + $0x78] sm:$0xf]
  %v62 = vld [vmem:[%s1 + $0x7c] sm:$0xf]
  %v63 = vld [vmem:[%s1 + $0x80] sm:$0xf]
  %v64 = vld [vmem:[%s1 + $0x84] sm:$0xf]
  %v65 = vld [vmem:[%s1 + $0x88] sm:$0xf]
  %v66 = vld [vmem:[%s1 + $0x8c] sm:$0xf]
  %v67 = vld [vmem:[%s1 + $0x90] sm:$0xf]
  %v68 = vld [vmem:[%s1 + $0x94] sm:$0xf]
  %v69 = vld [vmem:[%s1 + $0x98] sm:$0xf]
  %v70 = vld [vmem:[%s1 + $0x9c] sm:$0xf]
  %v71 = vld [vmem:[%s1 + $0xa0] sm:$0xf]
  %v72 = vld [vmem:[%s1 + $0xa4] sm:$0xf]
  %v73 = vld [vmem:[%s1 + $0xa8] sm:$0xf]
  %v74 = vld [vmem:[%s1 + $0xac] sm:$0xf]
  %v75 = vld [vmem:[%s1 + $0xb0] sm:$0xf]
  %v76 = vld [vmem:[%s1 + $0xb4] sm:$0xf]
  %v77 = vld [vmem:[%s1 + $0xb8] sm:$0xf]
  %v78 = vld [vmem:[%s1 + $0xbc] sm:$0xf]
  %v79 = vld [vmem:[%s1 + $0xc0] sm:$0xf]
  %v80 = vld [vmem:[%s1 + $0xc4] sm:$0xf]
  %v81 = vld [vmem:[%s1 + $0xc8] sm:$0xf]
  %v82 = vld [vmem:[%s1 + $0xcc] sm:$0xf]
  %v83 = vld [vmem:[%s1 + $0xd0] sm:$0xf]
  %v84 = vld [vmem:[%s1 + $0xd4] sm:$0xf]
  %v85 = vld [vmem:[%s1 + $0xd8] sm:$0xf]
  %v86 = vld [vmem:[%s1 + $0xdc] sm:$0xf]
  %v87 = vld [vmem:[%s1 + $0xe0] sm:$0xf]
  %v88 = vld [vmem:[%s1 + $0xe4] sm:$0xf]
  %v89 = vld [vmem:[%s1 + $0xe8] sm:$0xf]
  %v90 = vld [vmem:[%s1 + $0xec] sm:$0xf]
  %v91 = vld [vmem:[%s1 + $0xf0] sm:$0xf]
  %v92 = vld [vmem:[%s1 + $0xf4] sm:$0xf]
  %v93 = vld [vmem:[%s1 + $0xf8] sm:$0xf]
  %v94 = vld [vmem:[%s1 + $0xfc] sm:$0xf]
  %v101 = vunpack.c.l.b16 %v25
  %v102 = vunpack.c.h.b16 %v25
  %v103 = vunpack.c.l.b16 %v26
  %v104 = vunpack.c.h.b16 %v26
  %v105 = vunpack.c.l.b16 %v27
  %v106 = vunpack.c.h.b16 %v27
  %v107 = vunpack.c.l.b16 %v28
  %v108 = vunpack.c.h.b16 %v28
  %v109 = vunpack.c.l.b16 %v29
  %v110 = vunpack.c.h.b16 %v29
  %v111 = vunpack.c.l.b16 %v30
  %v112 = vunpack.c.h.b16 %v30
  %v113 = vpack.c.b16 %v105, %v101
  %v114 = vpack.c.b16 %v106, %v102
  %v115 = vpack.c.b16 %v107, %v103
  %v116 = vpack.c.b16 %v108, %v104
  %v117 = vpack.c.b16 %v109, %v109
  %v118 = vpack.c.b16 %v110, %v110
  %v119 = vpack.c.b16 %v111, %v111
  %v120 = vpack.c.b16 %v112, %v112
  %v193 = vunpack.c.l.b16 %v31
  %v194 = vunpack.c.l.b16 %v32
  %v195 = vunpack.c.l.b16 %v33
  %v196 = vunpack.c.l.b16 %v34
  %v197 = vunpack.c.l.b16 %v35
  %v198 = vunpack.c.l.b16 %v36
  %v199 = vunpack.c.l.b16 %v37
  %v200 = vunpack.c.l.b16 %v38
  %v201 = vunpack.c.l.b16 %v39
  %v202 = vunpack.c.l.b16 %v40
  %v203 = vunpack.c.l.b16 %v41
  %v204 = vunpack.c.l.b16 %v42
  %v205 = vunpack.c.l.b16 %v43
  %v206 = vunpack.c.l.b16 %v44
  %v207 = vunpack.c.l.b16 %v45
  %v208 = vunpack.c.l.b16 %v46
  %v209 = vunpack.c.l.b16 %v47
  %v210 = vunpack.c.l.b16 %v48
  %v211 = vunpack.c.l.b16 %v49
  %v212 = vunpack.c.l.b16 %v50
  %v213 = vunpack.c.l.b16 %v51
  %v214 = vunpack.c.l.b16 %v52
  %v215 = vunpack.c.l.b16 %v53
  %v216 = vunpack.c.l.b16 %v54
  %v217 = vunpack.c.l.b16 %v55
  %v218 = vunpack.c.l.b16 %v56
  %v219 = vunpack.c.l.b16 %v57
  %v220 = vunpack.c.l.b16 %v58
  %v221 = vunpack.c.l.b16 %v59
  %v222 = vunpack.c.l.b16 %v60
  %v223 = vunpack.c.l.b16 %v61
  %v224 = vunpack.c.l.b16 %v62
  %v225 = vunpack.c.l.b16 %v63
  %v226 = vunpack.c.l.b16 %v64
  %v227 = vunpack.c.l.b16 %v65
  %v228 = vunpack.c.l.b16 %v66
  %v229 = vunpack.c.l.b16 %v67
  %v230 = vunpack.c.l.b16 %v68
  %v231 = vunpack.c.l.b16 %v69
  %v232 = vunpack.c.l.b16 %v70
  %v233 = vunpack.c.l.b16 %v71
  %v234 = vunpack.c.l.b16 %v72
  %v235 = vunpack.c.l.b16 %v73
  %v236 = vunpack.c.l.b16 %v74
  %v237 = vunpack.c.l.b16 %v75
  %v238 = vunpack.c.l.b16 %v76
  %v239 = vunpack.c.l.b16 %v77
  %v240 = vunpack.c.l.b16 %v78
  %v241 = vunpack.c.l.b16 %v79
  %v242 = vunpack.c.l.b16 %v80
  %v243 = vunpack.c.l.b16 %v81
  %v244 = vunpack.c.l.b16 %v82
  %v245 = vunpack.c.l.b16 %v83
  %v246 = vunpack.c.l.b16 %v84
  %v247 = vunpack.c.l.b16 %v85
  %v248 = vunpack.c.l.b16 %v86
  %v249 = vunpack.c.l.b16 %v87
  %v250 = vunpack.c.l.b16 %v88
  %v251 = vunpack.c.l.b16 %v89
  %v252 = vunpack.c.l.b16 %v90
  %v253 = vunpack.c.l.b16 %v91
  %v254 = vunpack.c.l.b16 %v92
  %v255 = vunpack.c.l.b16 %v93
  %v256 = vunpack.c.l.b16 %v94
  %v257 = vpack.c.b16 %v194, %v193
  %v258 = vpack.c.b16 %v196, %v195
  %v259 = vpack.c.b16 %v198, %v197
  %v260 = vpack.c.b16 %v200, %v199
  %v261 = vpack.c.b16 %v202, %v201
  %v262 = vpack.c.b16 %v204, %v203
  %v263 = vpack.c.b16 %v206, %v205
  %v264 = vpack.c.b16 %v208, %v207
  %v265 = vpack.c.b16 %v210, %v209
  %v266 = vpack.c.b16 %v212, %v211
  %v267 = vpack.c.b16 %v214, %v213
  %v268 = vpack.c.b16 %v216, %v215
  %v269 = vpack.c.b16 %v218, %v217
  %v270 = vpack.c.b16 %v220, %v219
  %v271 = vpack.c.b16 %v222, %v221
  %v272 = vpack.c.b16 %v224, %v223
  %v273 = vpack.c.b16 %v226, %v225
  %v274 = vpack.c.b16 %v228, %v227
  %v275 = vpack.c.b16 %v230, %v229
  %v276 = vpack.c.b16 %v232, %v231
  %v277 = vpack.c.b16 %v234, %v233
  %v278 = vpack.c.b16 %v236, %v235
  %v279 = vpack.c.b16 %v238, %v237
  %v280 = vpack.c.b16 %v240, %v239
  %v281 = vpack.c.b16 %v242, %v241
  %v282 = vpack.c.b16 %v244, %v243
  %v283 = vpack.c.b16 %v246, %v245
  %v284 = vpack.c.b16 %v248, %v247
  %v285 = vpack.c.b16 %v250, %v249
  %v286 = vpack.c.b16 %v252, %v251
  %v287 = vpack.c.b16 %v254, %v253
  %v288 = vpack.c.b16 %v256, %v255
  %321 = vmatprep.subr.bf16.mxu0 0
  %322 = vmatpush1.bf16.msra.mxu0 %v257
  %323 = vmatprep.subr.bf16.mxu0 0
  %324 = vmatpush1.bf16.msra.mxu0 %v258
  %325 = vmatprep.subr.bf16.mxu0 0
  %326 = vmatpush1.bf16.msra.mxu0 %v259
  %327 = vmatprep.subr.bf16.mxu0 0
  %328 = vmatpush1.bf16.msra.mxu0 %v260
  %329 = vmatprep.subr.bf16.mxu0 0
  %330 = vmatpush1.bf16.msra.mxu0 %v261
  %331 = vmatprep.subr.bf16.mxu0 0
  %332 = vmatpush1.bf16.msra.mxu0 %v262
  %333 = vmatprep.subr.bf16.mxu0 0
  %334 = vmatpush1.bf16.msra.mxu0 %v263
  %335 = vmatprep.subr.bf16.mxu0 0
  %336 = vmatpush1.bf16.msra.mxu0 %v264
  %337 = vmatprep.subr.bf16.mxu0 0
  %338 = vmatpush1.bf16.msra.mxu0 %v265
  %339 = vmatprep.subr.bf16.mxu0 0
  %340 = vmatpush1.bf16.msra.mxu0 %v266
  %341 = vmatprep.subr.bf16.mxu0 0
  %342 = vmatpush1.bf16.msra.mxu0 %v267
  %343 = vmatprep.subr.bf16.mxu0 0
  %344 = vmatpush1.bf16.msra.mxu0 %v268
  %345 = vmatprep.subr.bf16.mxu0 0
  %346 = vmatpush1.bf16.msra.mxu0 %v269
  %347 = vmatprep.subr.bf16.mxu0 0
  %348 = vmatpush1.bf16.msra.mxu0 %v270
  %349 = vmatprep.subr.bf16.mxu0 0
  %350 = vmatpush1.bf16.msra.mxu0 %v271
  %351 = vmatprep.subr.bf16.mxu0 0
  %352 = vmatpush1.bf16.msra.mxu0 %v272
  %353 = vmatprep.mubr.bf16.mxu0 %v114
  %354 = vmatmul.mubr.bf16.gmra.mrb[0].mxu0 %v113
  %v355 = vpop.f32.mrb[0].mxu0
  %v356 = vadd.f32 0.0, %v355
  %v357 = vpop.f32.mrb[0].mxu0
  %v358 = vpop.f32.mrb[0].mxu0
  %v359 = vadd.f32 0.0, %v358
  %v360 = vpop.f32.mrb[0].mxu0
  %361 = vmatprep.mubr.bf16.mxu0 %v118
  %362 = vmatmul.mubr.bf16.gmra.mrb[0].mxu0 %v117
  %v363 = vpop.f32.mrb[0].mxu0
  %v364 = vadd.f32 0.0, %v363
  %v365 = vpop.f32.mrb[0].mxu0
  %v366 = vpop.f32.mrb[0].mxu0
  %v367 = vpop.f32.mrb[0].mxu0
  %368 = vdwg.mxu0
  %369 = vmatprep.subr.bf16.mxu0 0
  %370 = vmatpush1.bf16.msra.mxu0 %v273
  %371 = vmatprep.subr.bf16.mxu0 0
  %372 = vmatpush1.bf16.msra.mxu0 %v274
  %373 = vmatprep.subr.bf16.mxu0 0
  %374 = vmatpush1.bf16.msra.mxu0 %v275
  %375 = vmatprep.subr.bf16.mxu0 0
  %376 = vmatpush1.bf16.msra.mxu0 %v276
  %377 = vmatprep.subr.bf16.mxu0 0
  %378 = vmatpush1.bf16.msra.mxu0 %v277
  %379 = vmatprep.subr.bf16.mxu0 0
  %380 = vmatpush1.bf16.msra.mxu0 %v278
  %381 = vmatprep.subr.bf16.mxu0 0
  %382 = vmatpush1.bf16.msra.mxu0 %v279
  %383 = vmatprep.subr.bf16.mxu0 0
  %384 = vmatpush1.bf16.msra.mxu0 %v280
  %385 = vmatprep.subr.bf16.mxu0 0
  %386 = vmatpush1.bf16.msra.mxu0 %v281
  %387 = vmatprep.subr.bf16.mxu0 0
  %388 = vmatpush1.bf16.msra.mxu0 %v282
  %389 = vmatprep.subr.bf16.mxu0 0
  %390 = vmatpush1.bf16.msra.mxu0 %v283
  %391 = vmatprep.subr.bf16.mxu0 0
  %392 = vmatpush1.bf16.msra.mxu0 %v284
  %393 = vmatprep.subr.bf16.mxu0 0
  %394 = vmatpush1.bf16.msra.mxu0 %v285
  %395 = vmatprep.subr.bf16.mxu0 0
  %396 = vmatpush1.bf16.msra.mxu0 %v286
  %397 = vmatprep.subr.bf16.mxu0 0
  %398 = vmatpush1.bf16.msra.mxu0 %v287
  %399 = vmatprep.subr.bf16.mxu0 0
  %400 = vmatpush1.bf16.msra.mxu0 %v288
  %401 = vmatprep.mubr.bf16.mxu0 %v116
  %402 = vmatmul.mubr.bf16.gmra.mrb[0].mxu0 %v115
  %v403 = vpop.f32.mrb[0].mxu0
  %v404 = vadd.f32 %v356, %v403
  %v405 = vpop.f32.mrb[0].mxu0
  %v406 = vpop.f32.mrb[0].mxu0
  %v407 = vadd.f32 %v359, %v406
  %v408 = vpop.f32.mrb[0].mxu0
  %409 = vmatprep.mubr.bf16.mxu0 %v120
  %410 = vmatmul.mubr.bf16.gmra.mrb[0].mxu0 %v119
  %v411 = vpop.f32.mrb[0].mxu0
  %v412 = vadd.f32 %v364, %v411
  %v413 = vpop.f32.mrb[0].mxu0
  %v414 = vpop.f32.mrb[0].mxu0
  %v415 = vpop.f32.mrb[0].mxu0
  %416 = vdwg.mxu0
  %v417 = vadd.f32 %v22, %v404
  %v418 = vadd.f32 %v23, %v407
  %v419 = vadd.f32 %v24, %v412
  %420 = vst [vmem:[#allocation2] sm:$0xff] %v417
  %421 = vst [vmem:[#allocation2 + $0x8] sm:$0xff] %v418
  %422 = vst [vmem:[#allocation2 + $0x10] sm:$0xff] %v419
  // Predicated region
  $region18: #{multiscale_discriminator_forward.54} parent=0 // pred_check
    %p423 = pneg %p15
  $region19: #{multiscale_discriminator_forward.54} parent=0 // pred_check_branch
    %425 = sbr.rel (%p423) target = $region21
  $region20: #{multiscale_discriminator_forward.54} parent=0 // pred_region
    %v426 = vld [vmem:[#allocation2] sm:$0xff]
    %v427 = vld [vmem:[#allocation2 + $0x8] sm:$0xff]
    %v428 = vld [vmem:[#allocation2 + $0x10] sm:$0xff]
    %v429 = vld [vmem:[%s2] sm:$0x1]
    %v431 = vlaneseq
    %v432 = vshrl.u32 %v431, 7
    %v433 = vsub.s32 0, %v432
    %v434 = vrot.slane %v429, %v433
    %v436 = vadd.f32 %v426, %v434
    %v437 = vadd.f32 %v427, %v434
    %v438 = vadd.f32 %v428, %v434
    %v439 = vpack.c.bf16 %v437, %v436
    %v440 = vpack.c.bf16 %v438, %v438
    %v443 = vunpack.c.l.b16 %v439
    %v444 = vunpack.c.h.b16 %v439
    %v445 = vunpack.c.l.b16 %v440
    %v446 = vpack.c.b16 %v443, %v443
    %v447 = vpack.c.b16 %v444, %v444
    %v448 = vpack.c.b16 %v445, %v445
    %452 = vst [vmem:[%s3] sm:$0xf] %v446
    %453 = vst [vmem:[%s3 + $0x4] sm:$0xf] %v447
    %454 = vst [vmem:[%s3 + $0x8] sm:$0xf] %v448
  $region21: #{multiscale_discriminator_forward.54} parent=0 // pred_fallthru
    _
  // Predicated region
  $region22: #{multiscale_discriminator_forward.54} parent=0 // pred_check
    _
  $region23: #{multiscale_discriminator_forward.54} parent=0 // pred_check_branch
    %456 = sbr.rel (0) target = $region25
  $region24: #{multiscale_discriminator_forward.54} parent=0 // pred_region
    _
  $region25: #{multiscale_discriminator_forward.54} parent=0 // pred_fallthru
    _
  // Predicated region
  $region26: #{multiscale_discriminator_forward.54} parent=0 // pred_check
    _
  $region27: #{multiscale_discriminator_forward.54} parent=0 // pred_check_branch
    %458 = sbr.rel (0) target = $region29
  $region28: #{multiscale_discriminator_forward.54} parent=0 // pred_region
    _
  $region29: #{multiscale_discriminator_forward.54} parent=0 // pred_fallthru
    _

// kernel: multiscale_discriminator_forward.56
$region0: #{multiscale_discriminator_forward.56}
  #allocation0 [shape = 'u32[]', space=smem, size = 0x4, offset = 0x4, fixed_abs, tag = 'smem constant byte address 0x4 - core index']
  #allocation1 [shape = 'u32[144,128]{1,0:T(1,128)}', space=vmem, size = 0x12000, scoped, tag = 'internal scratch']
  %s0 = inlined_call_operand.vmem [shape: bf16[24,64], index: 0, kind: input, shape index: {}]
  %s1 = inlined_call_operand.vmem [shape: f32[1,64], index: 1, kind: input, shape index: {}]
  %s2 = inlined_call_operand.vmem [shape: f32[1,64], index: 2, kind: input, shape index: {}]
  %s3 = inlined_call_operand.vmem [shape: bf16[24,64], index: 3, kind: output, shape index: {}]
  %s4 = sld [smem:[#allocation0]]
  $region22: #{multiscale_discriminator_forward.56} parent=0
    _
  %s6 = ssub.s32 1, %s4
  %s7 = scalar_select 0, %s6, %s4
  // Predicated region
  $region2: #{multiscale_discriminator_forward.56} parent=0 // pred_check
    _
  $region3: #{multiscale_discriminator_forward.56} parent=0 // pred_check_branch
    %9 = sbr.rel (0) target = $region5
  $region4: #{multiscale_discriminator_forward.56} parent=0 // pred_region
    _
  $region5: #{multiscale_discriminator_forward.56} parent=0 // pred_fallthru
    _
  // Predicated region
  $region6: #{multiscale_discriminator_forward.56} parent=0 // pred_check
    _
  $region7: #{multiscale_discriminator_forward.56} parent=0 // pred_check_branch
    %11 = sbr.rel (0) target = $region9
  $region8: #{multiscale_discriminator_forward.56} parent=0 // pred_region
    _
  $region9: #{multiscale_discriminator_forward.56} parent=0 // pred_fallthru
    _
  // Predicated region
  $region10: #{multiscale_discriminator_forward.56} parent=0 // pred_check
    _
  $region11: #{multiscale_discriminator_forward.56} parent=0 // pred_check_branch
    %13 = sbr.rel (0) target = $region13
  $region12: #{multiscale_discriminator_forward.56} parent=0 // pred_region
    _
  $region13: #{multiscale_discriminator_forward.56} parent=0 // pred_fallthru
    _
  %v14 = vld [vmem:[%s0] sm:$0xf]
  %v15 = vld [vmem:[%s0 + $0x4] sm:$0xf]
  %v16 = vld [vmem:[%s0 + $0x8] sm:$0xf]
  %v17 = vunpack.c.l.bf16 %v14
  %v18 = vunpack.c.l.bf16 %v15
  %v19 = vunpack.c.l.bf16 %v16
  %v20 = vld [vmem:[%s1] sm:$0x1]
  %v22 = vlaneseq
  %v23 = vshrl.u32 %v22, 7
  %v24 = vsub.s32 0, %v23
  %v25 = vrot.slane %v20, %v24
  %v27 = vmul.f32 %v17, %v25
  %v28 = vmul.f32 %v18, %v25
  %v29 = vmul.f32 %v19, %v25
  %v30 = vld [vmem:[%s2] sm:$0x1]
  %v32 = vlaneseq
  %v33 = vshrl.u32 %v32, 7
  %v34 = vsub.s32 0, %v33
  %v35 = vrot.slane %v30, %v34
  %v37 = vadd.f32 %v27, %v35
  %v38 = vadd.f32 %v28, %v35
  %v39 = vadd.f32 %v29, %v35
  %vm40 = vcmp.gt.f32.partialorder %v37, 0.0
  %vm41 = vcmp.gt.f32.partialorder %v38, 0.0
  %vm42 = vcmp.gt.f32.partialorder %v39, 0.0
  %v43 = vmul.f32 %v37, 0.2
  %v44 = vmul.f32 %v38, 0.2
  %v45 = vmul.f32 %v39, 0.2
  %v46 = vsel %vm40, %v37, %v43
  %v47 = vsel %vm41, %v38, %v44
  %v48 = vsel %vm42, %v39, %v45
  %v49 = vpack.c.bf16 %v47, %v46
  %v50 = vpack.c.bf16 %v48, %v48
  %v53 = vunpack.c.l.b16 %v49
  %v54 = vunpack.c.h.b16 %v49
  %v55 = vunpack.c.l.b16 %v50
  %v56 = vpack.c.b16 %v53, %v53
  %v57 = vpack.c.b16 %v54, %v54
  %v58 = vpack.c.b16 %v55, %v55
  %vm62 = vcmask 519168
  %63 = vst.msk [vmem:[%s3] sm:$0xf] %vm62, %v56
  %64 = vst.msk [vmem:[%s3 + $0x4] sm:$0xf] %vm62, %v57
  %65 = vst.msk [vmem:[%s3 + $0x8] sm:$0xf] %vm62, %v58
  // Predicated region
  $region14: #{multiscale_discriminator_forward.56} parent=0 // pred_check
    _
  $region15: #{multiscale_discriminator_forward.56} parent=0 // pred_check_branch
    %67 = sbr.rel (0) target = $region17
  $region16: #{multiscale_discriminator_forward.56} parent=0 // pred_region
    _
  $region17: #{multiscale_discriminator_forward.56} parent=0 // pred_fallthru
    _
  // Predicated region
  $region18: #{multiscale_discriminator_forward.56} parent=0 // pred_check
    _
  $region19: #{multiscale_discriminator_forward.56} parent=0 // pred_check_branch
    %69 = sbr.rel (0) target = $region21
  $region20: #{multiscale_discriminator_forward.56} parent=0 // pred_region
    _
  $region21: #{multiscale_discriminator_forward.56} parent=0 // pred_fallthru
    _

// kernel: multiscale_discriminator_forward.57
$region0: #{multiscale_discriminator_forward.57}
  #allocation0 [shape = 'u32[]', space=smem, size = 0x4, offset = 0x4, fixed_abs, tag = 'smem constant byte address 0x4 - core index']
  #allocation1 [shape = 'u32[144,128]{1,0:T(1,128)}', space=vmem, size = 0x12000, scoped, tag = 'internal scratch']
  #allocation2 [shape = 'f32[32,128]{1,0:T(8,128)}', space=vmem, size = 0x4000, scoped, tag = 'scratch operand']
  %s0 = inlined_call_operand.vmem [shape: bf16[32,1024], index: 0, kind: input, shape index: {}]
  %s1 = inlined_call_operand.vmem [shape: bf16[1024,128], index: 1, kind: input, shape index: {}]
  %s2 = inlined_call_operand.vmem [shape: f32[1,128], index: 2, kind: input, shape index: {}]
  %s3 = inlined_call_operand.vmem [shape: f32[32,128], index: 3, kind: output, shape index: {}]
  %s4 = sld [smem:[#allocation0]]
  $region30: #{multiscale_discriminator_forward.57} parent=0
    _
  %s6 = ssub.s32 1, %s4
  %s7 = scalar_select 0, %s6, %s4
  // Predicated region
  $region2: #{multiscale_discriminator_forward.57} parent=0 // pred_check
    _
  $region3: #{multiscale_discriminator_forward.57} parent=0 // pred_check_branch
    %9 = sbr.rel (0) target = $region5
  $region4: #{multiscale_discriminator_forward.57} parent=0 // pred_region
    _
  $region5: #{multiscale_discriminator_forward.57} parent=0 // pred_fallthru
    _
  // Predicated region
  $region6: #{multiscale_discriminator_forward.57} parent=0 // pred_check
    _
  $region7: #{multiscale_discriminator_forward.57} parent=0 // pred_check_branch
    %11 = sbr.rel (0) target = $region9
  $region8: #{multiscale_discriminator_forward.57} parent=0 // pred_region
    _
  $region9: #{multiscale_discriminator_forward.57} parent=0 // pred_fallthru
    _
  // Predicated region
  $region10: #{multiscale_discriminator_forward.57} parent=0 // pred_check
    _
  $region11: #{multiscale_discriminator_forward.57} parent=0 // pred_check_branch
    %13 = sbr.rel (0) target = $region13
  $region12: #{multiscale_discriminator_forward.57} parent=0 // pred_region
    _
  $region13: #{multiscale_discriminator_forward.57} parent=0 // pred_fallthru
    _
  %p15 = scmp.eq.s32.totalorder 0, 0
  // Predicated region
  $region14: #{multiscale_discriminator_forward.57} parent=0 // pred_check
    %p16 = pneg %p15
  $region15: #{multiscale_discriminator_forward.57} parent=0 // pred_check_branch
    %18 = sbr.rel (%p16) target = $region17
  $region16: #{multiscale_discriminator_forward.57} parent=0 // pred_region
    %19 = vst [vmem:[#allocation2] sm:$0xff] 0.0
    %20 = vst [vmem:[#allocation2 + $0x8] sm:$0xff] 0.0
    %21 = vst [vmem:[#allocation2 + $0x10] sm:$0xff] 0.0
    %22 = vst [vmem:[#allocation2 + $0x18] sm:$0xff] 0.0
  $region17: #{multiscale_discriminator_forward.57} parent=0 // pred_fallthru
    _
  %v23 = vld [vmem:[#allocation2] sm:$0xff]
  %v24 = vld [vmem:[#allocation2 + $0x8] sm:$0xff]
  %v25 = vld [vmem:[#allocation2 + $0x10] sm:$0xff]
  %v26 = vld [vmem:[#allocation2 + $0x18] sm:$0xff]
  %v27 = vld [vmem:[%s0] sm:$0xff]
  %v28 = vld [vmem:[%s0 + $0x8] sm:$0xff]
  %v29 = vld [vmem:[%s0 + $0x10] sm:$0xff]
  %v30 = vld [vmem:[%s0 + $0x18] sm:$0xff]
  %v31 = vld [vmem:[%s0 + $0x20] sm:$0xff]
  %v32 = vld [vmem:[%s0 + $0x28] sm:$0xff]
  %v33 = vld [vmem:[%s0 + $0x30] sm:$0xff]
  %v34 = vld [vmem:[%s0 + $0x38] sm:$0xff]
  %v35 = vld [vmem:[%s0 + $0x40] sm:$0xff]
  %v36 = vld [vmem:[%s0 + $0x48] sm:$0xff]
  %v37 = vld [vmem:[%s0 + $0x50] sm:$0xff]
  %v38 = vld [vmem:[%s0 + $0x58] sm:$0xff]
  %v39 = vld [vmem:[%s0 + $0x60] sm:$0xff]
  %v40 = vld [vmem:[%s0 + $0x68] sm:$0xff]
  %v41 = vld [vmem:[%s0 + $0x70] sm:$0xff]
  %v42 = vld [vmem:[%s0 + $0x78] sm:$0xff]
  %v43 = vld [vmem:[%s1] sm:$0xf]
  %v44 = vld [vmem:[%s1 + $0x4] sm:$0xf]
  %v45 = vld [vmem:[%s1 + $0x8] sm:$0xf]
  %v46 = vld [vmem:[%s1 + $0xc] sm:$0xf]
  %v47 = vld [vmem:[%s1 + $0x10] sm:$0xf]
  %v48 = vld [vmem:[%s1 + $0x14] sm:$0xf]
  %v49 = vld [vmem:[%s1 + $0x18] sm:$0xf]
  %v50 = vld [vmem:[%s1 + $0x1c] sm:$0xf]
  %v51 = vld [vmem:[%s1 + $0x20] sm:$0xf]
  %v52 = vld [vmem:[%s1 + $0x24] sm:$0xf]
  %v53 = vld [vmem:[%s1 + $0x28] sm:$0xf]
  %v54 = vld [vmem:[%s1 + $0x2c] sm:$0xf]
  %v55 = vld [vmem:[%s1 + $0x30] sm:$0xf]
  %v56 = vld [vmem:[%s1 + $0x34] sm:$0xf]
  %v57 = vld [vmem:[%s1 + $0x38] sm:$0xf]
  %v58 = vld [vmem:[%s1 + $0x3c] sm:$0xf]
  %v59 = vld [vmem:[%s1 + $0x40] sm:$0xf]
  %v60 = vld [vmem:[%s1 + $0x44] sm:$0xf]
  %v61 = vld [vmem:[%s1 + $0x48] sm:$0xf]
  %v62 = vld [vmem:[%s1 + $0x4c] sm:$0xf]
  %v63 = vld [vmem:[%s1 + $0x50] sm:$0xf]
  %v64 = vld [vmem:[%s1 + $0x54] sm:$0xf]
  %v65 = vld [vmem:[%s1 + $0x58] sm:$0xf]
  %v66 = vld [vmem:[%s1 + $0x5c] sm:$0xf]
  %v67 = vld [vmem:[%s1 + $0x60] sm:$0xf]
  %v68 = vld [vmem:[%s1 + $0x64] sm:$0xf]
  %v69 = vld [vmem:[%s1 + $0x68] sm:$0xf]
  %v70 = vld [vmem:[%s1 + $0x6c] sm:$0xf]
  %v71 = vld [vmem:[%s1 + $0x70] sm:$0xf]
  %v72 = vld [vmem:[%s1 + $0x74] sm:$0xf]
  %v73 = vld [vmem:[%s1 + $0x78] sm:$0xf]
  %v74 = vld [vmem:[%s1 + $0x7c] sm:$0xf]
  %v75 = vld [vmem:[%s1 + $0x80] sm:$0xf]
  %v76 = vld [vmem:[%s1 + $0x84] sm:$0xf]
  %v77 = vld [vmem:[%s1 + $0x88] sm:$0xf]
  %v78 = vld [vmem:[%s1 + $0x8c] sm:$0xf]
  %v79 = vld [vmem:[%s1 + $0x90] sm:$0xf]
  %v80 = vld [vmem:[%s1 + $0x94] sm:$0xf]
  %v81 = vld [vmem:[%s1 + $0x98] sm:$0xf]
  %v82 = vld [vmem:[%s1 + $0x9c] sm:$0xf]
  %v83 = vld [vmem:[%s1 + $0xa0] sm:$0xf]
  %v84 = vld [vmem:[%s1 + $0xa4] sm:$0xf]
  %v85 = vld [vmem:[%s1 + $0xa8] sm:$0xf]
  %v86 = vld [vmem:[%s1 + $0xac] sm:$0xf]
  %v87 = vld [vmem:[%s1 + $0xb0] sm:$0xf]
  %v88 = vld [vmem:[%s1 + $0xb4] sm:$0xf]
  %v89 = vld [vmem:[%s1 + $0xb8] sm:$0xf]
  %v90 = vld [vmem:[%s1 + $0xbc] sm:$0xf]
  %v91 = vld [vmem:[%s1 + $0xc0] sm:$0xf]
  %v92 = vld [vmem:[%s1 + $0xc4] sm:$0xf]
  %v93 = vld [vmem:[%s1 + $0xc8] sm:$0xf]
  %v94 = vld [vmem:[%s1 + $0xcc] sm:$0xf]
  %v95 = vld [vmem:[%s1 + $0xd0] sm:$0xf]
  %v96 = vld [vmem:[%s1 + $0xd4] sm:$0xf]
  %v97 = vld [vmem:[%s1 + $0xd8] sm:$0xf]
  %v98 = vld [vmem:[%s1 + $0xdc] sm:$0xf]
  %v99 = vld [vmem:[%s1 + $0xe0] sm:$0xf]
  %v100 = vld [vmem:[%s1 + $0xe4] sm:$0xf]
  %v101 = vld [vmem:[%s1 + $0xe8] sm:$0xf]
  %v102 = vld [vmem:[%s1 + $0xec] sm:$0xf]
  %v103 = vld [vmem:[%s1 + $0xf0] sm:$0xf]
  %v104 = vld [vmem:[%s1 + $0xf4] sm:$0xf]
  %v105 = vld [vmem:[%s1 + $0xf8] sm:$0xf]
  %v106 = vld [vmem:[%s1 + $0xfc] sm:$0xf]
  %v107 = vld [vmem:[%s1 + $0x100] sm:$0xf]
  %v108 = vld [vmem:[%s1 + $0x104] sm:$0xf]
  %v109 = vld [vmem:[%s1 + $0x108] sm:$0xf]
  %v110 = vld [vmem:[%s1 + $0x10c] sm:$0xf]
  %v111 = vld [vmem:[%s1 + $0x110] sm:$0xf]
  %v112 = vld [vmem:[%s1 + $0x114] sm:$0xf]
  %v113 = vld [vmem:[%s1 + $0x118] sm:$0xf]
  %v114 = vld [vmem:[%s1 + $0x11c] sm:$0xf]
  %v115 = vld [vmem:[%s1 + $0x120] sm:$0xf]
  %v116 = vld [vmem:[%s1 + $0x124] sm:$0xf]
  %v117 = vld [vmem:[%s1 + $0x128] sm:$0xf]
  %v118 = vld [vmem:[%s1 + $0x12c] sm:$0xf]
  %v119 = vld [vmem:[%s1 + $0x130] sm:$0xf]
  %v120 = vld [vmem:[%s1 + $0x134] sm:$0xf]
  %v121 = vld [vmem:[%s1 + $0x138] sm:$0xf]
  %v122 = vld [vmem:[%s1 + $0x13c] sm:$0xf]
  %v123 = vld [vmem:[%s1 + $0x140] sm:$0xf]
  %v124 = vld [vmem:[%s1 + $0x144] sm:$0xf]
  %v125 = vld [vmem:[%s1 + $0x148] sm:$0xf]
  %v126 = vld [vmem:[%s1 + $0x14c] sm:$0xf]
  %v127 = vld [vmem:[%s1 + $0x150] sm:$0xf]
  %v128 = vld [vmem:[%s1 + $0x154] sm:$0xf]
  %v129 = vld [vmem:[%s1 + $0x158] sm:$0xf]
  %v130 = vld [vmem:[%s1 + $0x15c] sm:$0xf]
  %v131 = vld [vmem:[%s1 + $0x160] sm:$0xf]
  %v132 = vld [vmem:[%s1 + $0x164] sm:$0xf]
  %v133 = vld [vmem:[%s1 + $0x168] sm:$0xf]
  %v134 = vld [vmem:[%s1 + $0x16c] sm:$0xf]
  %v135 = vld [vmem:[%s1 + $0x170] sm:$0xf]
  %v136 = vld [vmem:[%s1 + $0x174] sm:$0xf]
  %v137 = vld [vmem:[%s1 + $0x178] sm:$0xf]
  %v138 = vld [vmem:[%s1 + $0x17c] sm:$0xf]
  %v139 = vld [vmem:[%s1 + $0x180] sm:$0xf]
  %v140 = vld [vmem:[%s1 + $0x184] sm:$0xf]
  %v141 = vld [vmem:[%s1 + $0x188] sm:$0xf]
  %v142 = vld [vmem:[%s1 + $0x18c] sm:$0xf]
  %v143 = vld [vmem:[%s1 + $0x190] sm:$0xf]
  %v144 = vld [vmem:[%s1 + $0x194] sm:$0xf]
  %v145 = vld [vmem:[%s1 + $0x198] sm:$0xf]
  %v146 = vld [vmem:[%s1 + $0x19c] sm:$0xf]
  %v147 = vld [vmem:[%s1 + $0x1a0] sm:$0xf]
  %v148 = vld [vmem:[%s1 + $0x1a4] sm:$0xf]
  %v149 = vld [vmem:[%s1 + $0x1a8] sm:$0xf]
  %v150 = vld [vmem:[%s1 + $0x1ac] sm:$0xf]
  %v151 = vld [vmem:[%s1 + $0x1b0] sm:$0xf]
  %v152 = vld [vmem:[%s1 + $0x1b4] sm:$0xf]
  %v153 = vld [vmem:[%s1 + $0x1b8] sm:$0xf]
  %v154 = vld [vmem:[%s1 + $0x1bc] sm:$0xf]
  %v155 = vld [vmem:[%s1 + $0x1c0] sm:$0xf]
  %v156 = vld [vmem:[%s1 + $0x1c4] sm:$0xf]
  %v157 = vld [vmem:[%s1 + $0x1c8] sm:$0xf]
  %v158 = vld [vmem:[%s1 + $0x1cc] sm:$0xf]
  %v159 = vld [vmem:[%s1 + $0x1d0] sm:$0xf]
  %v160 = vld [vmem:[%s1 + $0x1d4] sm:$0xf]
  %v161 = vld [vmem:[%s1 + $0x1d8] sm:$0xf]
  %v162 = vld [vmem:[%s1 + $0x1dc] sm:$0xf]
  %v163 = vld [vmem:[%s1 + $0x1e0] sm:$0xf]
  %v164 = vld [vmem:[%s1 + $0x1e4] sm:$0xf]
  %v165 = vld [vmem:[%s1 + $0x1e8] sm:$0xf]
  %v166 = vld [vmem:[%s1 + $0x1ec] sm:$0xf]
  %v167 = vld [vmem:[%s1 + $0x1f0] sm:$0xf]
  %v168 = vld [vmem:[%s1 + $0x1f4] sm:$0xf]
  %v169 = vld [vmem:[%s1 + $0x1f8] sm:$0xf]
  %v170 = vld [vmem:[%s1 + $0x1fc] sm:$0xf]
  %v187 = vunpack.c.l.b16 %v27
  %v188 = vunpack.c.h.b16 %v27
  %v189 = vunpack.c.l.b16 %v28
  %v190 = vunpack.c.h.b16 %v28
  %v191 = vunpack.c.l.b16 %v29
  %v192 = vunpack.c.h.b16 %v29
  %v193 = vunpack.c.l.b16 %v30
  %v194 = vunpack.c.h.b16 %v30
  %v195 = vunpack.c.l.b16 %v31
  %v196 = vunpack.c.h.b16 %v31
  %v197 = vunpack.c.l.b16 %v32
  %v198 = vunpack.c.h.b16 %v32
  %v199 = vunpack.c.l.b16 %v33
  %v200 = vunpack.c.h.b16 %v33
  %v201 = vunpack.c.l.b16 %v34
  %v202 = vunpack.c.h.b16 %v34
  %v203 = vunpack.c.l.b16 %v35
  %v204 = vunpack.c.h.b16 %v35
  %v205 = vunpack.c.l.b16 %v36
  %v206 = vunpack.c.h.b16 %v36
  %v207 = vunpack.c.l.b16 %v37
  %v208 = vunpack.c.h.b16 %v37
  %v209 = vunpack.c.l.b16 %v38
  %v210 = vunpack.c.h.b16 %v38
  %v211 = vunpack.c.l.b16 %v39
  %v212 = vunpack.c.h.b16 %v39
  %v213 = vunpack.c.l.b16 %v40
  %v214 = vunpack.c.h.b16 %v40
  %v215 = vunpack.c.l.b16 %v41
  %v216 = vunpack.c.h.b16 %v41
  %v217 = vunpack.c.l.b16 %v42
  %v218 = vunpack.c.h.b16 %v42
  %v219 = vpack.c.b16 %v195, %v187
  %v220 = vpack.c.b16 %v196, %v188
  %v221 = vpack.c.b16 %v197, %v189
  %v222 = vpack.c.b16 %v198, %v190
  %v223 = vpack.c.b16 %v199, %v191
  %v224 = vpack.c.b16 %v200, %v192
  %v225 = vpack.c.b16 %v201, %v193
  %v226 = vpack.c.b16 %v202, %v194
  %v227 = vpack.c.b16 %v211, %v203
  %v228 = vpack.c.b16 %v212, %v204
  %v229 = vpack.c.b16 %v213, %v205
  %v230 = vpack.c.b16 %v214, %v206
  %v231 = vpack.c.b16 %v215, %v207
  %v232 = vpack.c.b16 %v216, %v208
  %v233 = vpack.c.b16 %v217, %v209
  %v234 = vpack.c.b16 %v218, %v210
  %v379 = vunpack.c.l.b16 %v43
  %v380 = vunpack.c.l.b16 %v44
  %v381 = vunpack.c.l.b16 %v45
  %v382 = vunpack.c.l.b16 %v46
  %v383 = vunpack.c.l.b16 %v47
  %v384 = vunpack.c.l.b16 %v48
  %v385 = vunpack.c.l.b16 %v49
  %v386 = vunpack.c.l.b16 %v50
  %v387 = vunpack.c.l.b16 %v51
  %v388 = vunpack.c.l.b16 %v52
  %v389 = vunpack.c.l.b16 %v53
  %v390 = vunpack.c.l.b16 %v54
  %v391 = vunpack.c.l.b16 %v55
  %v392 = vunpack.c.l.b16 %v56
  %v393 = vunpack.c.l.b16 %v57
  %v394 = vunpack.c.l.b16 %v58
  %v395 = vunpack.c.l.b16 %v59
  %v396 = vunpack.c.l.b16 %v60
  %v397 = vunpack.c.l.b16 %v61
  %v398 = vunpack.c.l.b16 %v62
  %v399 = vunpack.c.l.b16 %v63
  %v400 = vunpack.c.l.b16 %v64
  %v401 = vunpack.c.l.b16 %v65
  %v402 = vunpack.c.l.b16 %v66
  %v403 = vunpack.c.l.b16 %v67
  %v404 = vunpack.c.l.b16 %v68
  %v405 = vunpack.c.l.b16 %v69
  %v406 = vunpack.c.l.b16 %v70
  %v407 = vunpack.c.l.b16 %v71
  %v408 = vunpack.c.l.b16 %v72
  %v409 = vunpack.c.l.b16 %v73
  %v410 = vunpack.c.l.b16 %v74
  %v411 = vunpack.c.l.b16 %v75
  %v412 = vunpack.c.l.b16 %v76
  %v413 = vunpack.c.l.b16 %v77
  %v414 = vunpack.c.l.b16 %v78
  %v415 = vunpack.c.l.b16 %v79
  %v416 = vunpack.c.l.b16 %v80
  %v417 = vunpack.c.l.b16 %v81
  %v418 = vunpack.c.l.b16 %v82
  %v419 = vunpack.c.l.b16 %v83
  %v420 = vunpack.c.l.b16 %v84
  %v421 = vunpack.c.l.b16 %v85
  %v422 = vunpack.c.l.b16 %v86
  %v423 = vunpack.c.l.b16 %v87
  %v424 = vunpack.c.l.b16 %v88
  %v425 = vunpack.c.l.b16 %v89
  %v426 = vunpack.c.l.b16 %v90
  %v427 = vunpack.c.l.b16 %v91
  %v428 = vunpack.c.l.b16 %v92
  %v429 = vunpack.c.l.b16 %v93
  %v430 = vunpack.c.l.b16 %v94
  %v431 = vunpack.c.l.b16 %v95
  %v432 = vunpack.c.l.b16 %v96
  %v433 = vunpack.c.l.b16 %v97
  %v434 = vunpack.c.l.b16 %v98
  %v435 = vunpack.c.l.b16 %v99
  %v436 = vunpack.c.l.b16 %v100
  %v437 = vunpack.c.l.b16 %v101
  %v438 = vunpack.c.l.b16 %v102
  %v439 = vunpack.c.l.b16 %v103
  %v440 = vunpack.c.l.b16 %v104
  %v441 = vunpack.c.l.b16 %v105
  %v442 = vunpack.c.l.b16 %v106
  %v443 = vunpack.c.l.b16 %v107
  %v444 = vunpack.c.l.b16 %v108
  %v445 = vunpack.c.l.b16 %v109
  %v446 = vunpack.c.l.b16 %v110
  %v447 = vunpack.c.l.b16 %v111
  %v448 = vunpack.c.l.b16 %v112
  %v449 = vunpack.c.l.b16 %v113
  %v450 = vunpack.c.l.b16 %v114
  %v451 = vunpack.c.l.b16 %v115
  %v452 = vunpack.c.l.b16 %v116
  %v453 = vunpack.c.l.b16 %v117
  %v454 = vunpack.c.l.b16 %v118
  %v455 = vunpack.c.l.b16 %v119
  %v456 = vunpack.c.l.b16 %v120
  %v457 = vunpack.c.l.b16 %v121
  %v458 = vunpack.c.l.b16 %v122
  %v459 = vunpack.c.l.b16 %v123
  %v460 = vunpack.c.l.b16 %v124
  %v461 = vunpack.c.l.b16 %v125
  %v462 = vunpack.c.l.b16 %v126
  %v463 = vunpack.c.l.b16 %v127
  %v464 = vunpack.c.l.b16 %v128
  %v465 = vunpack.c.l.b16 %v129
  %v466 = vunpack.c.l.b16 %v130
  %v467 = vunpack.c.l.b16 %v131
  %v468 = vunpack.c.l.b16 %v132
  %v469 = vunpack.c.l.b16 %v133
  %v470 = vunpack.c.l.b16 %v134
  %v471 = vunpack.c.l.b16 %v135
  %v472 = vunpack.c.l.b16 %v136
  %v473 = vunpack.c.l.b16 %v137
  %v474 = vunpack.c.l.b16 %v138
  %v475 = vunpack.c.l.b16 %v139
  %v476 = vunpack.c.l.b16 %v140
  %v477 = vunpack.c.l.b16 %v141
  %v478 = vunpack.c.l.b16 %v142
  %v479 = vunpack.c.l.b16 %v143
  %v480 = vunpack.c.l.b16 %v144
  %v481 = vunpack.c.l.b16 %v145
  %v482 = vunpack.c.l.b16 %v146
  %v483 = vunpack.c.l.b16 %v147
  %v484 = vunpack.c.l.b16 %v148
  %v485 = vunpack.c.l.b16 %v149
  %v486 = vunpack.c.l.b16 %v150
  %v487 = vunpack.c.l.b16 %v151
  %v488 = vunpack.c.l.b16 %v152
  %v489 = vunpack.c.l.b16 %v153
  %v490 = vunpack.c.l.b16 %v154
  %v491 = vunpack.c.l.b16 %v155
  %v492 = vunpack.c.l.b16 %v156
  %v493 = vunpack.c.l.b16 %v157
  %v494 = vunpack.c.l.b16 %v158
  %v495 = vunpack.c.l.b16 %v159
  %v496 = vunpack.c.l.b16 %v160
  %v497 = vunpack.c.l.b16 %v161
  %v498 = vunpack.c.l.b16 %v162
  %v499 = vunpack.c.l.b16 %v163
  %v500 = vunpack.c.l.b16 %v164
  %v501 = vunpack.c.l.b16 %v165
  %v502 = vunpack.c.l.b16 %v166
  %v503 = vunpack.c.l.b16 %v167
  %v504 = vunpack.c.l.b16 %v168
  %v505 = vunpack.c.l.b16 %v169
  %v506 = vunpack.c.l.b16 %v170
  %v507 = vpack.c.b16 %v380, %v379
  %v508 = vpack.c.b16 %v382, %v381
  %v509 = vpack.c.b16 %v384, %v383
  %v510 = vpack.c.b16 %v386, %v385
  %v511 = vpack.c.b16 %v388, %v387
  %v512 = vpack.c.b16 %v390, %v389
  %v513 = vpack.c.b16 %v392, %v391
  %v514 = vpack.c.b16 %v394, %v393
  %v515 = vpack.c.b16 %v396, %v395
  %v516 = vpack.c.b16 %v398, %v397
  %v517 = vpack.c.b16 %v400, %v399
  %v518 = vpack.c.b16 %v402, %v401
  %v519 = vpack.c.b16 %v404, %v403
  %v520 = vpack.c.b16 %v406, %v405
  %v521 = vpack.c.b16 %v408, %v407
  %v522 = vpack.c.b16 %v410, %v409
  %v523 = vpack.c.b16 %v412, %v411
  %v524 = vpack.c.b16 %v414, %v413
  %v525 = vpack.c.b16 %v416, %v415
  %v526 = vpack.c.b16 %v418, %v417
  %v527 = vpack.c.b16 %v420, %v419
  %v528 = vpack.c.b16 %v422, %v421
  %v529 = vpack.c.b16 %v424, %v423
  %v530 = vpack.c.b16 %v426, %v425
  %v531 = vpack.c.b16 %v428, %v427
  %v532 = vpack.c.b16 %v430, %v429
  %v533 = vpack.c.b16 %v432, %v431
  %v534 = vpack.c.b16 %v434, %v433
  %v535 = vpack.c.b16 %v436, %v435
  %v536 = vpack.c.b16 %v438, %v437
  %v537 = vpack.c.b16 %v440, %v439
  %v538 = vpack.c.b16 %v442, %v441
  %v539 = vpack.c.b16 %v444, %v443
  %v540 = vpack.c.b16 %v446, %v445
  %v541 = vpack.c.b16 %v448, %v447
  %v542 = vpack.c.b16 %v450, %v449
  %v543 = vpack.c.b16 %v452, %v451
  %v544 = vpack.c.b16 %v454, %v453
  %v545 = vpack.c.b16 %v456, %v455
  %v546 = vpack.c.b16 %v458, %v457
  %v547 = vpack.c.b16 %v460, %v459
  %v548 = vpack.c.b16 %v462, %v461
  %v549 = vpack.c.b16 %v464, %v463
  %v550 = vpack.c.b16 %v466, %v465
  %v551 = vpack.c.b16 %v468, %v467
  %v552 = vpack.c.b16 %v470, %v469
  %v553 = vpack.c.b16 %v472, %v471
  %v554 = vpack.c.b16 %v474, %v473
  %v555 = vpack.c.b16 %v476, %v475
  %v556 = vpack.c.b16 %v478, %v477
  %v557 = vpack.c.b16 %v480, %v479
  %v558 = vpack.c.b16 %v482, %v481
  %v559 = vpack.c.b16 %v484, %v483
  %v560 = vpack.c.b16 %v486, %v485
  %v561 = vpack.c.b16 %v488, %v487
  %v562 = vpack.c.b16 %v490, %v489
  %v563 = vpack.c.b16 %v492, %v491
  %v564 = vpack.c.b16 %v494, %v493
  %v565 = vpack.c.b16 %v496, %v495
  %v566 = vpack.c.b16 %v498, %v497
  %v567 = vpack.c.b16 %v500, %v499
  %v568 = vpack.c.b16 %v502, %v501
  %v569 = vpack.c.b16 %v504, %v503
  %v570 = vpack.c.b16 %v506, %v505
  %635 = vmatprep.subr.bf16.mxu0 0
  %636 = vmatpush1.bf16.msra.mxu0 %v507
  %637 = vmatprep.subr.bf16.mxu0 0
  %638 = vmatpush1.bf16.msra.mxu0 %v508
  %639 = vmatprep.subr.bf16.mxu0 0
  %640 = vmatpush1.bf16.msra.mxu0 %v509
  %641 = vmatprep.subr.bf16.mxu0 0
  %642 = vmatpush1.bf16.msra.mxu0 %v510
  %643 = vmatprep.subr.bf16.mxu0 0
  %644 = vmatpush1.bf16.msra.mxu0 %v511
  %645 = vmatprep.subr.bf16.mxu0 0
  %646 = vmatpush1.bf16.msra.mxu0 %v512
  %647 = vmatprep.subr.bf16.mxu0 0
  %648 = vmatpush1.bf16.msra.mxu0 %v513
  %649 = vmatprep.subr.bf16.mxu0 0
  %650 = vmatpush1.bf16.msra.mxu0 %v514
  %651 = vmatprep.subr.bf16.mxu0 0
  %652 = vmatpush1.bf16.msra.mxu0 %v515
  %653 = vmatprep.subr.bf16.mxu0 0
  %654 = vmatpush1.bf16.msra.mxu0 %v516
  %655 = vmatprep.subr.bf16.mxu0 0
  %656 = vmatpush1.bf16.msra.mxu0 %v517
  %657 = vmatprep.subr.bf16.mxu0 0
  %658 = vmatpush1.bf16.msra.mxu0 %v518
  %659 = vmatprep.subr.bf16.mxu0 0
  %660 = vmatpush1.bf16.msra.mxu0 %v519
  %661 = vmatprep.subr.bf16.mxu0 0
  %662 = vmatpush1.bf16.msra.mxu0 %v520
  %663 = vmatprep.subr.bf16.mxu0 0
  %664 = vmatpush1.bf16.msra.mxu0 %v521
  %665 = vmatprep.subr.bf16.mxu0 0
  %666 = vmatpush1.bf16.msra.mxu0 %v522
  %667 = vmatprep.mubr.bf16.mxu0 %v220
  %668 = vmatmul.mubr.bf16.gmra.mrb[0].mxu0 %v219
  %v669 = vpop.f32.mrb[0].mxu0
  %v670 = vadd.f32 0.0, %v669
  %v671 = vpop.f32.mrb[0].mxu0
  %v672 = vpop.f32.mrb[0].mxu0
  %v673 = vadd.f32 0.0, %v672
  %v674 = vpop.f32.mrb[0].mxu0
  %675 = vmatprep.mubr.bf16.mxu0 %v228
  %676 = vmatmul.mubr.bf16.gmra.mrb[0].mxu0 %v227
  %v677 = vpop.f32.mrb[0].mxu0
  %v678 = vadd.f32 0.0, %v677
  %v679 = vpop.f32.mrb[0].mxu0
  %v680 = vpop.f32.mrb[0].mxu0
  %v681 = vadd.f32 0.0, %v680
  %v682 = vpop.f32.mrb[0].mxu0
  %683 = vdwg.mxu0
  %684 = vmatprep.subr.bf16.mxu0 0
  %685 = vmatpush1.bf16.msra.mxu0 %v523
  %686 = vmatprep.subr.bf16.mxu0 0
  %687 = vmatpush1.bf16.msra.mxu0 %v524
  %688 = vmatprep.subr.bf16.mxu0 0
  %689 = vmatpush1.bf16.msra.mxu0 %v525
  %690 = vmatprep.subr.bf16.mxu0 0
  %691 = vmatpush1.bf16.msra.mxu0 %v526
  %692 = vmatprep.subr.bf16.mxu0 0
  %693 = vmatpush1.bf16.msra.mxu0 %v527
  %694 = vmatprep.subr.bf16.mxu0 0
  %695 = vmatpush1.bf16.msra.mxu0 %v528
  %696 = vmatprep.subr.bf16.mxu0 0
  %697 = vmatpush1.bf16.msra.mxu0 %v529
  %698 = vmatprep.subr.bf16.mxu0 0
  %699 = vmatpush1.bf16.msra.mxu0 %v530
  %700 = vmatprep.subr.bf16.mxu0 0
  %701 = vmatpush1.bf16.msra.mxu0 %v531
  %702 = vmatprep.subr.bf16.mxu0 0
  %703 = vmatpush1.bf16.msra.mxu0 %v532
  %704 = vmatprep.subr.bf16.mxu0 0
  %705 = vmatpush1.bf16.msra.mxu0 %v533
  %706 = vmatprep.subr.bf16.mxu0 0
  %707 = vmatpush1.bf16.msra.mxu0 %v534
  %708 = vmatprep.subr.bf16.mxu0 0
  %709 = vmatpush1.bf16.msra.mxu0 %v535
  %710 = vmatprep.subr.bf16.mxu0 0
  %711 = vmatpush1.bf16.msra.mxu0 %v536
  %712 = vmatprep.subr.bf16.mxu0 0
  %713 = vmatpush1.bf16.msra.mxu0 %v537
  %714 = vmatprep.subr.bf16.mxu0 0
  %715 = vmatpush1.bf16.msra.mxu0 %v538
  %716 = vmatprep.mubr.bf16.mxu0 %v222
  %717 = vmatmul.mubr.bf16.gmra.mrb[0].mxu0 %v221
  %v718 = vpop.f32.mrb[0].mxu0
  %v719 = vadd.f32 %v670, %v718
  %v720 = vpop.f32.mrb[0].mxu0
  %v721 = vpop.f32.mrb[0].mxu0
  %v722 = vadd.f32 %v673, %v721
  %v723 = vpop.f32.mrb[0].mxu0
  %724 = vmatprep.mubr.bf16.mxu0 %v230
  %725 = vmatmul.mubr.bf16.gmra.mrb[0].mxu0 %v229
  %v726 = vpop.f32.mrb[0].mxu0
  %v727 = vadd.f32 %v678, %v726
  %v728 = vpop.f32.mrb[0].mxu0
  %v729 = vpop.f32.mrb[0].mxu0
  %v730 = vadd.f32 %v681, %v729
  %v731 = vpop.f32.mrb[0].mxu0
  %732 = vdwg.mxu0
  %733 = vmatprep.subr.bf16.mxu0 0
  %734 = vmatpush1.bf16.msra.mxu0 %v539
  %735 = vmatprep.subr.bf16.mxu0 0
  %736 = vmatpush1.bf16.msra.mxu0 %v540
  %737 = vmatprep.subr.bf16.mxu0 0
  %738 = vmatpush1.bf16.msra.mxu0 %v541
  %739 = vmatprep.subr.bf16.mxu0 0
  %740 = vmatpush1.bf16.msra.mxu0 %v542
  %741 = vmatprep.subr.bf16.mxu0 0
  %742 = vmatpush1.bf16.msra.mxu0 %v543
  %743 = vmatprep.subr.bf16.mxu0 0
  %744 = vmatpush1.bf16.msra.mxu0 %v544
  %745 = vmatprep.subr.bf16.mxu0 0
  %746 = vmatpush1.bf16.msra.mxu0 %v545
  %747 = vmatprep.subr.bf16.mxu0 0
  %748 = vmatpush1.bf16.msra.mxu0 %v546
  %749 = vmatprep.subr.bf16.mxu0 0
  %750 = vmatpush1.bf16.msra.mxu0 %v547
  %751 = vmatprep.subr.bf16.mxu0 0
  %752 = vmatpush1.bf16.msra.mxu0 %v548
  %753 = vmatprep.subr.bf16.mxu0 0
  %754 = vmatpush1.bf16.msra.mxu0 %v549
  %755 = vmatprep.subr.bf16.mxu0 0
  %756 = vmatpush1.bf16.msra.mxu0 %v550
  %757 = vmatprep.subr.bf16.mxu0 0
  %758 = vmatpush1.bf16.msra.mxu0 %v551
  %759 = vmatprep.subr.bf16.mxu0 0
  %760 = vmatpush1.bf16.msra.mxu0 %v552
  %761 = vmatprep.subr.bf16.mxu0 0
  %762 = vmatpush1.bf16.msra.mxu0 %v553
  %763 = vmatprep.subr.bf16.mxu0 0
  %764 = vmatpush1.bf16.msra.mxu0 %v554
  %765 = vmatprep.mubr.bf16.mxu0 %v224
  %766 = vmatmul.mubr.bf16.gmra.mrb[0].mxu0 %v223
  %v767 = vpop.f32.mrb[0].mxu0
  %v768 = vadd.f32 %v719, %v767
  %v769 = vpop.f32.mrb[0].mxu0
  %v770 = vpop.f32.mrb[0].mxu0
  %v771 = vadd.f32 %v722, %v770
  %v772 = vpop.f32.mrb[0].mxu0
  %773 = vmatprep.mubr.bf16.mxu0 %v232
  %774 = vmatmul.mubr.bf16.gmra.mrb[0].mxu0 %v231
  %v775 = vpop.f32.mrb[0].mxu0
  %v776 = vadd.f32 %v727, %v775
  %v777 = vpop.f32.mrb[0].mxu0
  %v778 = vpop.f32.mrb[0].mxu0
  %v779 = vadd.f32 %v730, %v778
  %v780 = vpop.f32.mrb[0].mxu0
  %781 = vdwg.mxu0
  %782 = vmatprep.subr.bf16.mxu0 0
  %783 = vmatpush1.bf16.msra.mxu0 %v555
  %784 = vmatprep.subr.bf16.mxu0 0
  %785 = vmatpush1.bf16.msra.mxu0 %v556
  %786 = vmatprep.subr.bf16.mxu0 0
  %787 = vmatpush1.bf16.msra.mxu0 %v557
  %788 = vmatprep.subr.bf16.mxu0 0
  %789 = vmatpush1.bf16.msra.mxu0 %v558
  %790 = vmatprep.subr.bf16.mxu0 0
  %791 = vmatpush1.bf16.msra.mxu0 %v559
  %792 = vmatprep.subr.bf16.mxu0 0
  %793 = vmatpush1.bf16.msra.mxu0 %v560
  %794 = vmatprep.subr.bf16.mxu0 0
  %795 = vmatpush1.bf16.msra.mxu0 %v561
  %796 = vmatprep.subr.bf16.mxu0 0
  %797 = vmatpush1.bf16.msra.mxu0 %v562
  %798 = vmatprep.subr.bf16.mxu0 0
  %799 = vmatpush1.bf16.msra.mxu0 %v563
  %800 = vmatprep.subr.bf16.mxu0 0
  %801 = vmatpush1.bf16.msra.mxu0 %v564
  %802 = vmatprep.subr.bf16.mxu0 0
  %803 = vmatpush1.bf16.msra.mxu0 %v565
  %804 = vmatprep.subr.bf16.mxu0 0
  %805 = vmatpush1.bf16.msra.mxu0 %v566
  %806 = vmatprep.subr.bf16.mxu0 0
  %807 = vmatpush1.bf16.msra.mxu0 %v567
  %808 = vmatprep.subr.bf16.mxu0 0
  %809 = vmatpush1.bf16.msra.mxu0 %v568
  %810 = vmatprep.subr.bf16.mxu0 0
  %811 = vmatpush1.bf16.msra.mxu0 %v569
  %812 = vmatprep.subr.bf16.mxu0 0
  %813 = vmatpush1.bf16.msra.mxu0 %v570
  %814 = vmatprep.mubr.bf16.mxu0 %v226
  %815 = vmatmul.mubr.bf16.gmra.mrb[0].mxu0 %v225
  %v816 = vpop.f32.mrb[0].mxu0
  %v817 = vadd.f32 %v768, %v816
  %v818 = vpop.f32.mrb[0].mxu0
  %v819 = vpop.f32.mrb[0].mxu0
  %v820 = vadd.f32 %v771, %v819
  %v821 = vpop.f32.mrb[0].mxu0
  %822 = vmatprep.mubr.bf16.mxu0 %v234
  %823 = vmatmul.mubr.bf16.gmra.mrb[0].mxu0 %v233
  %v824 = vpop.f32.mrb[0].mxu0
  %v825 = vadd.f32 %v776, %v824
  %v826 = vpop.f32.mrb[0].mxu0
  %v827 = vpop.f32.mrb[0].mxu0
  %v828 = vadd.f32 %v779, %v827
  %v829 = vpop.f32.mrb[0].mxu0
  %830 = vdwg.mxu0
  %v831 = vadd.f32 %v23, %v817
  %v832 = vadd.f32 %v24, %v820
  %v833 = vadd.f32 %v25, %v825
  %v834 = vadd.f32 %v26, %v828
  %835 = vst [vmem:[#allocation2] sm:$0xff] %v831
  %836 = vst [vmem:[#allocation2 + $0x8] sm:$0xff] %v832
  %837 = vst [vmem:[#allocation2 + $0x10] sm:$0xff] %v833
  %838 = vst [vmem:[#allocation2 + $0x18] sm:$0xff] %v834
  // Predicated region
  $region18: #{multiscale_discriminator_forward.57} parent=0 // pred_check
    %p839 = pneg %p15
  $region19: #{multiscale_discriminator_forward.57} parent=0 // pred_check_branch
    %841 = sbr.rel (%p839) target = $region21
  $region20: #{multiscale_discriminator_forward.57} parent=0 // pred_region
    %v842 = vld [vmem:[#allocation2] sm:$0xff]
    %v843 = vld [vmem:[#allocation2 + $0x8] sm:$0xff]
    %v844 = vld [vmem:[#allocation2 + $0x10] sm:$0xff]
    %v845 = vld [vmem:[#allocation2 + $0x18] sm:$0xff]
    %v846 = vld [vmem:[%s2] sm:$0x1]
    %v848 = vlaneseq
    %v849 = vshrl.u32 %v848, 7
    %v850 = vsub.s32 0, %v849
    %v851 = vrot.slane %v846, %v850
    %v853 = vadd.f32 %v842, %v851
    %v854 = vadd.f32 %v843, %v851
    %v855 = vadd.f32 %v844, %v851
    %v856 = vadd.f32 %v845, %v851
    %857 = vst [vmem:[%s3] sm:$0xff] %v853
    %858 = vst [vmem:[%s3 + $0x8] sm:$0xff] %v854
    %859 = vst [vmem:[%s3 + $0x10] sm:$0xff] %v855
    %860 = vst [vmem:[%s3 + $0x18] sm:$0xff] %v856
  $region21: #{multiscale_discriminator_forward.57} parent=0 // pred_fallthru
    _
  // Predicated region
  $region22: #{multiscale_discriminator_forward.57} parent=0 // pred_check
    _
  $region23: #{multiscale_discriminator_forward.57} parent=0 // pred_check_branch
    %862 = sbr.rel (0) target = $region25
  $region24: #{multiscale_discriminator_forward.57} parent=0 // pred_region
    _
  $region25: #{multiscale_discriminator_forward.57} parent=0 // pred_fallthru
    _
  // Predicated region
  $region26: #{multiscale_discriminator_forward.57} parent=0 // pred_check
    _
  $region27: #{multiscale_discriminator_forward.57} parent=0 // pred_check_branch
    %864 = sbr.rel (0) target = $region29
  $region28: #{multiscale_discriminator_forward.57} parent=0 // pred_region
    _
  $region29: #{multiscale_discriminator_forward.57} parent=0 // pred_fallthru
    _

// kernel: multiscale_discriminator_forward.58
$region0: #{multiscale_discriminator_forward.58}
  #allocation0 [shape = 'u32[]', space=smem, size = 0x4, offset = 0x4, fixed_abs, tag = 'smem constant byte address 0x4 - core index']
  #allocation1 [shape = 'u32[144,128]{1,0:T(1,128)}', space=vmem, size = 0x12000, scoped, tag = 'internal scratch']
  %s0 = inlined_call_operand.vmem [shape: f32[9,24,4], index: 0, kind: input, shape index: {}]
  %s1 = inlined_call_operand.vmem [shape: f32[24,1], index: 1, kind: input, shape index: {}]
  %s2 = inlined_call_operand.vmem [shape: f32[1,4], index: 2, kind: input, shape index: {}]
  %s3 = inlined_call_operand.vmem [shape: f32[24,4], index: 3, kind: output, shape index: {}]
  %s4 = sld [smem:[#allocation0]]
  $region53: #{multiscale_discriminator_forward.58} parent=0
    _
  %s6 = ssub.s32 1, %s4
  %s7 = scalar_select 0, %s6, %s4
  loop: start=0, step=1, limit=11
  $region2: #{multiscale_discriminator_forward.58} parent=0 // loop_pre_header
    _
  $region3: #{multiscale_discriminator_forward.58} parent=0 // loop_header
    %s9 = sphi 0, %s13
    %p10 = scmp.ge.s32.totalorder %s9, 11
    %s16 = sphi 0, %s28
    %s17 = sphi 0, %s24
    %s18 = sphi 0, %s16
    %s19 = sphi 0, %s17
    %s20 = sphi 0, %s18
    %s21 = sphi 0, %s19
    %s33 = sphi 0, %s35
    %s36 = sphi 0, %s33
    %s37 = sphi 0, %s36
    %s53 = sphi 0, %s37
    %s59 = sphi 0, %s61
    %s62 = sphi 0, %s59
    %s63 = sphi 0, %s62
    %s79 = sphi 0, %s63
    %s83 = sphi 0, %s83
    %s85 = sphi 0, %s83
    %s86 = sphi 0, %s85
    %s100 = sphi 0, %s86
    %s106 = sphi 0, %s108
    %s109 = sphi 0, %s106
    %s110 = sphi 0, %s109
    %s126 = sphi 0, %s110
  $region4: #{multiscale_discriminator_forward.58} parent=0 // loop_header_branch
    %12 = sbr.rel (%p10) target = $region8
  $region5: #{multiscale_discriminator_forward.58} parent=0 // loop_body
    %s14 = ssub.s32 %s9, 1
    %s15 = ssub.s32 %s9, 2
    %s22 = sadd.s32 1, %s17
    %p23 = scmp.ge.s32.totalorder %s22, 9
    %s24 = scalar_select %p23, 0, %s22
    %s25 = sadd.s32 1, %s16
    %s26 = scalar_select %p23, %s25, %s16
    %p27 = scmp.ge.s32.totalorder %s26, 1
    %s28 = scalar_select %p27, 0, %s26
    %s29 = ssub.s32 %s17, %s24
    %s30 = ssub.s32 %s16, %s28
    %s31 = sor.u32 %s29, %s30
    %p32 = scmp.eq.s32.totalorder %s31, 0
    %s34 = sadd.s32 %s33, 1
    %s35 = scalar_select %p32, %s33, %s34
    %p38 = pneg %p32
    %p39 = scmp.eq.s32.totalorder %s9, 8
    %p40 = por %p38, %p39
    %p41 = scmp.ne.s32.totalorder %s33, %s36
    %p42 = scmp.eq.s32.totalorder %s9, 0
    %p43 = por %p41, %p42
    %p44 = scmp.ne.s32.totalorder %s33, %s36
    %p45 = scmp.eq.s32.totalorder %s14, 8
    %p46 = por %p44, %p45
    %p47 = scmp.ne.s32.totalorder %s36, %s37
    %p48 = scmp.eq.s32.totalorder %s14, 0
    %p49 = por %p47, %p48
    %p50 = scmp.ne.s32.totalorder %s36, %s37
    %p51 = scmp.eq.s32.totalorder %s15, 8
    %p52 = por %p50, %p51
    %p54 = scmp.ne.s32.totalorder %s37, %s53
    %p55 = scmp.eq.s32.totalorder %s15, 0
    %p56 = por %p54, %p55
    %s57 = ssub.s32 %s16, %s28
    %p58 = scmp.eq.s32.totalorder %s57, 0
    %s60 = sadd.s32 %s59, 1
    %s61 = scalar_select %p58, %s59, %s60
    %p64 = pneg %p58
    %p65 = scmp.eq.s32.totalorder %s9, 8
    %p66 = por %p64, %p65
    %p67 = scmp.ne.s32.totalorder %s59, %s62
    %p68 = scmp.eq.s32.totalorder %s9, 0
    %p69 = por %p67, %p68
    %p70 = scmp.ne.s32.totalorder %s59, %s62
    %p71 = scmp.eq.s32.totalorder %s14, 8
    %p72 = por %p70, %p71
    %p73 = scmp.ne.s32.totalorder %s62, %s63
    %p74 = scmp.eq.s32.totalorder %s14, 0
    %p75 = por %p73, %p74
    %p76 = scmp.ne.s32.totalorder %s62, %s63
    %p77 = scmp.eq.s32.totalorder %s15, 8
    %p78 = por %p76, %p77
    %p80 = scmp.ne.s32.totalorder %s63, %s79
    %p81 = scmp.eq.s32.totalorder %s15, 0
    %p82 = por %p80, %p81
    %s84 = sadd.s32 %s83, 1
    %p87 = scmp.eq.s32.totalorder %s9, 8
    %p88 = scmp.ne.s32.totalorder %s83, %s85
    %p89 = scmp.eq.s32.totalorder %s9, 0
    %p90 = por %p88, %p89
    %p91 = scmp.ne.s32.totalorder %s83, %s85
    %p92 = scmp.eq.s32.totalorder %s14, 8
    %p93 = por %p91, %p92
    %p94 = scmp.ne.s32.totalorder %s85, %s86
    %p95 = scmp.eq.s32.totalorder %s14, 0
    %p96 = por %p94, %p95
    %p97 = scmp.ne.s32.totalorder %s85, %s86
    %p98 = scmp.eq.s32.totalorder %s15, 8
    %p99 = por %p97, %p98
    %p101 = scmp.ne.s32.totalorder %s86, %s100
    %p102 = scmp.eq.s32.totalorder %s15, 0
    %p103 = por %p101, %p102
    %s104 = ssub.s32 %s16, %s28
    %p105 = scmp.eq.s32.totalorder %s104, 0
    %s107 = sadd.s32 %s106, 1
    %s108 = scalar_select %p105, %s106, %s107
    %p111 = pneg %p105
    %p112 = scmp.eq.s32.totalorder %s9, 8
    %p113 = por %p111, %p112
    %p114 = scmp.ne.s32.totalorder %s106, %s109
    %p115 = scmp.eq.s32.totalorder %s9, 0
    %p116 = por %p114, %p115
    %p117 = scmp.ne.s32.totalorder %s106, %s109
    %p118 = scmp.eq.s32.totalorder %s14, 8
    %p119 = por %p117, %p118
    %p120 = scmp.ne.s32.totalorder %s109, %s110
    %p121 = scmp.eq.s32.totalorder %s14, 0
    %p122 = por %p120, %p121
    %p123 = scmp.ne.s32.totalorder %s109, %s110
    %p124 = scmp.eq.s32.totalorder %s15, 8
    %p125 = por %p123, %p124
    %p127 = scmp.ne.s32.totalorder %s110, %s126
    %p128 = scmp.eq.s32.totalorder %s15, 0
    %p129 = por %p127, %p128
    %p130 = scmp.le.s32.totalorder 1, %s9
    %p131 = scmp.lt.s32.totalorder %s9, 10
    %p132 = pnand %p130, %p131
    %p133 = pneg %p132
    // Predicated region
    $region9: #{multiscale_discriminator_forward.58} parent=5 // pred_check
      _
    $region10: #{multiscale_discriminator_forward.58} parent=5 // pred_check_branch
      %135 = sbr.rel (%p132) target = $region12
    $region11: #{multiscale_discriminator_forward.58} parent=5 // pred_region
      %s136 = ssub.s32 %s9, 1
      // Predicated region
      $region13: #{multiscale_discriminator_forward.58} parent=11 // pred_check
        %p137 = pneg %p75
      $region14: #{multiscale_discriminator_forward.58} parent=11 // pred_check_branch
        %139 = sbr.rel (%p137) target = $region16
      $region15: #{multiscale_discriminator_forward.58} parent=11 // pred_region
        %s140 = smul.u32 3, %s18
        %p141 = scmp.lt.s32.totalorder %s140, 2
        %s142 = scalar_select %p141, %s140, 2
        %s143 = smul.addr %s142, 8
        %s144 = scalar_lea.vmem %s1, %s143
        %s145 = smul.u32 3, %s18
      $region16: #{multiscale_discriminator_forward.58} parent=11 // pred_fallthru
        _
      // Predicated region
      $region17: #{multiscale_discriminator_forward.58} parent=11 // pred_check
        %p146 = pneg %p96
      $region18: #{multiscale_discriminator_forward.58} parent=11 // pred_check_branch
        %148 = sbr.rel (%p146) target = $region20
      $region19: #{multiscale_discriminator_forward.58} parent=11 // pred_region
        _
      $region20: #{multiscale_discriminator_forward.58} parent=11 // pred_fallthru
        _
    $region12: #{multiscale_discriminator_forward.58} parent=5 // pred_fallthru
      _
    %p149 = scmp.lt.s32.totalorder %s9, 9
    // Predicated region
    $region21: #{multiscale_discriminator_forward.58} parent=5 // pred_check
      %p150 = pneg %p149
    $region22: #{multiscale_discriminator_forward.58} parent=5 // pred_check_branch
      %152 = sbr.rel (%p150) target = $region24
    $region23: #{multiscale_discriminator_forward.58} parent=5 // pred_region
      // Predicated region
      $region25: #{multiscale_discriminator_forward.58} parent=23 // pred_check
        %p153 = pneg %p43
      $region26: #{multiscale_discriminator_forward.58} parent=23 // pred_check_branch
        %155 = sbr.rel (%p153) target = $region28
      $region27: #{multiscale_discriminator_forward.58} parent=23 // pred_region
        %s156 = smul.u32 3, %s16
        %p157 = scmp.lt.s32.totalorder %s17, 8
        %s158 = scalar_select %p157, %s17, 8
        %p159 = scmp.lt.s32.totalorder %s156, 2
        %s160 = scalar_select %p159, %s156, 2
        %s161 = smul.addr %s158, 3
        %s162 = sadd.s32 %s160, %s161
        %s163 = smul.addr %s162, 8
        %s164 = scalar_lea.vmem %s0, %s163
        %s165 = smul.u32 3, %s16
      $region28: #{multiscale_discriminator_forward.58} parent=23 // pred_fallthru
        _
    $region24: #{multiscale_discriminator_forward.58} parent=5 // pred_fallthru
      _
    %p166 = scmp.le.s32.totalorder 1, %s9
    %p167 = scmp.lt.s32.totalorder %s9, 10
    %p168 = pnand %p166, %p167
    %p169 = pneg %p168
    // Predicated region
    $region29: #{multiscale_discriminator_forward.58} parent=5 // pred_check
      _
    $region30: #{multiscale_discriminator_forward.58} parent=5 // pred_check_branch
      %171 = sbr.rel (%p168) target = $region32
    $region31: #{multiscale_discriminator_forward.58} parent=5 // pred_region
      %s172 = ssub.s32 %s9, 1
      %s173 = smul.u32 3, %s18
      %p174 = scmp.lt.s32.totalorder %s19, 8
      %s175 = scalar_select %p174, %s19, 8
      %p176 = scmp.lt.s32.totalorder %s173, 2
      %s177 = scalar_select %p176, %s173, 2
      %s178 = smul.addr %s175, 3
      %s179 = sadd.s32 %s177, %s178
      %s180 = smul.addr %s179, 8
      %s181 = scalar_lea.vmem %s0, %s180
      %p182 = pneg %p49
      %p183 = pneg %p46
      %s184 = smul.u32 3, %s18
      %p185 = scmp.lt.s32.totalorder %s184, 2
      %s186 = scalar_select %p185, %s184, 2
      %s187 = smul.addr %s186, 8
      %s188 = scalar_lea.vmem %s1, %s187
      %p189 = pneg %p75
      %p190 = pneg %p72
      %p191 = pneg %p96
      %p192 = pneg %p93
      %p193 = pneg %p122
      %p194 = pneg %p119
      %s195 = smul.u32 3, %s18
      %p196 = scmp.lt.s32.totalorder %s195, 2
      %s197 = scalar_select %p196, %s195, 2
      %s198 = smul.addr %s197, 8
      %s199 = scalar_lea.vmem %s3, %s198
      %s200 = smul.u32 3, %s18
      %p201 = scmp.lt.s32.totalorder %s19, 8
      %s202 = scalar_select %p201, %s19, 8
      %p203 = scmp.lt.s32.totalorder %s200, 2
      %s204 = scalar_select %p203, %s200, 2
      %s205 = smul.addr %s202, 3
      %s206 = sadd.s32 %s204, %s205
      %s207 = smul.addr %s206, 8
      %s208 = scalar_lea.vmem %s0, %s207
      %s209 = smul.u32 3, %s18
      %s210 = smul.u32 3, %s18
      %p211 = scmp.lt.s32.totalorder %s210, 2
      %s212 = scalar_select %p211, %s210, 2
      %s213 = smul.addr %s212, 8
      %s214 = scalar_lea.vmem %s1, %s213
      %s215 = smul.u32 3, %s18
      %s216 = smul.u32 3, %s18
      %p217 = scmp.lt.s32.totalorder %s216, 2
      %s218 = scalar_select %p217, %s216, 2
      %s219 = smul.addr %s218, 8
      %s220 = scalar_lea.vmem %s3, %s219
      %s221 = smul.u32 3, %s18
      %p222 = scmp.eq.s32.totalorder %s19, 0
      // Predicated region
      $region33: #{multiscale_discriminator_forward.58} parent=31 // pred_check
        %p223 = pneg %p222
      $region34: #{multiscale_discriminator_forward.58} parent=31 // pred_check_branch
        %225 = sbr.rel (%p223) target = $region36
      $region35: #{multiscale_discriminator_forward.58} parent=31 // pred_region
        %vm226 = vcmask 31744
        %227 = vst.msk [vmem:[%s220] sm:$0xff] %vm226, 0.0
        %228 = vst.msk [vmem:[%s220 + $0x8] sm:$0xff] %vm226, 0.0
        %229 = vst.msk [vmem:[%s220 + $0x10] sm:$0xff] %vm226, 0.0
      $region36: #{multiscale_discriminator_forward.58} parent=31 // pred_fallthru
        _
      %v230 = vld [vmem:[%s220] sm:$0xff]
      %v231 = vld [vmem:[%s220 + $0x8] sm:$0xff]
      %v232 = vld [vmem:[%s220 + $0x10] sm:$0xff]
      %v233 = vld [vmem:[%s208] sm:$0xff]
      %v234 = vld [vmem:[%s208 + $0x8] sm:$0xff]
      %v235 = vld [vmem:[%s208 + $0x10] sm:$0xff]
      %v236 = vadd.f32 %v230, %v233
      %v237 = vadd.f32 %v231, %v234
      %v238 = vadd.f32 %v232, %v235
      %vm239 = vcmask 31744
      %240 = vst.msk [vmem:[%s220] sm:$0xff] %vm239, %v236
      %241 = vst.msk [vmem:[%s220 + $0x8] sm:$0xff] %vm239, %v237
      %242 = vst.msk [vmem:[%s220 + $0x10] sm:$0xff] %vm239, %v238
      %p243 = scmp.eq.s32.totalorder %s19, 8
      // Predicated region
      $region37: #{multiscale_discriminator_forward.58} parent=31 // pred_check
        %p244 = pneg %p243
      $region38: #{multiscale_discriminator_forward.58} parent=31 // pred_check_branch
        %246 = sbr.rel (%p244) target = $region40
      $region39: #{multiscale_discriminator_forward.58} parent=31 // pred_region
        %v247 = vld [vmem:[%s220] sm:$0xff]
        %v248 = vld [vmem:[%s220 + $0x8] sm:$0xff]
        %v249 = vld [vmem:[%s220 + $0x10] sm:$0xff]
        %v250 = vld [vmem:[%s214] sm:$0xff]
        %v251 = vld [vmem:[%s214 + $0x8] sm:$0xff]
        %v252 = vld [vmem:[%s214 + $0x10] sm:$0xff]
        %v253 = vld [vmem:[%s2] sm:$0x1]
        %255 = vset.pattern.permute.xlu0 0
        %256 = vperm.xlu0 %255, %v250
        %v257 = vpop.permute.xlu0 %256
        %260 = vset.pattern.permute.xlu0 0
        %261 = vperm.xlu0 %260, %v251
        %v262 = vpop.permute.xlu0 %261
        %265 = vset.pattern.permute.xlu0 0
        %266 = vperm.xlu0 %265, %v252
        %v267 = vpop.permute.xlu0 %266
        %v270 = vlaneseq
        %v271 = vshrl.u32 %v270, 7
        %v272 = vsub.s32 0, %v271
        %v273 = vrot.slane %v253, %v272
        %v275 = vmul.f32 %v257, %v273
        %v276 = vmul.f32 %v262, %v273
        %v277 = vmul.f32 %v267, %v273
        %v278 = vmul.f32 %v247, %v275
        %v279 = vmul.f32 %v248, %v276
        %v280 = vmul.f32 %v249, %v277
        %281 = vst.msk [vmem:[%s220] sm:$0xff] %vm239, %v278
        %282 = vst.msk [vmem:[%s220 + $0x8] sm:$0xff] %vm239, %v279
        %283 = vst.msk [vmem:[%s220 + $0x10] sm:$0xff] %vm239, %v280
      $region40: #{multiscale_discriminator_forward.58} parent=31 // pred_fallthru
        _
      %s284 = smul.u32 3, %s18
      %p285 = scmp.lt.s32.totalorder %s284, 2
      %s286 = scalar_select %p285, %s284, 2
      %s287 = smul.addr %s286, 8
      %s288 = scalar_lea.vmem %s3, %s287
      // Predicated region
      $region41: #{multiscale_discriminator_forward.58} parent=31 // pred_check
        %p289 = pneg %p119
      $region42: #{multiscale_discriminator_forward.58} parent=31 // pred_check_branch
        %291 = sbr.rel (%p289) target = $region44
      $region43: #{multiscale_discriminator_forward.58} parent=31 // pred_region
        %s292 = smul.u32 3, %s18
      $region44: #{multiscale_discriminator_forward.58} parent=31 // pred_fallthru
        _
      // Predicated region
      $region45: #{multiscale_discriminator_forward.58} parent=31 // pred_check
        %p293 = pneg %p119
      $region46: #{multiscale_discriminator_forward.58} parent=31 // pred_check_branch
        %295 = sbr.rel (%p293) target = $region48
      $region47: #{multiscale_discriminator_forward.58} parent=31 // pred_region
        %s296 = smul.u32 3, %s18
        %p297 = scmp.lt.s32.totalorder %s296, 2
        %s298 = scalar_select %p297, %s296, 2
        %s299 = smul.addr %s298, 8
        %s300 = scalar_lea.vmem %s3, %s299
      $region48: #{multiscale_discriminator_forward.58} parent=31 // pred_fallthru
        _
    $region32: #{multiscale_discriminator_forward.58} parent=5 // pred_fallthru
      _
    %p301 = scmp.le.s32.totalorder 2, %s9
    // Predicated region
    $region49: #{multiscale_discriminator_forward.58} parent=5 // pred_check
      %p302 = pneg %p301
    $region50: #{multiscale_discriminator_forward.58} parent=5 // pred_check_branch
      %304 = sbr.rel (%p302) target = $region52
    $region51: #{multiscale_discriminator_forward.58} parent=5 // pred_region
      %s305 = ssub.s32 %s9, 2
    $region52: #{multiscale_discriminator_forward.58} parent=5 // pred_fallthru
      _
  $region6: #{multiscale_discriminator_forward.58} parent=0 // loop_footer
    %s13 = sadd.s32 1, %s9
  $region7: #{multiscale_discriminator_forward.58} parent=0 // loop_footer_branch
    %8 = sbr.rel target = $region3
  $region8: #{multiscale_discriminator_forward.58} parent=0 // loop_exit
    _

// kernel: multiscale_discriminator_forward.59
$region0: #{multiscale_discriminator_forward.59}
  #allocation0 [shape = 'u32[]', space=smem, size = 0x4, offset = 0x4, fixed_abs, tag = 'smem constant byte address 0x4 - core index']
  #allocation1 [shape = 'u32[144,128]{1,0:T(1,128)}', space=vmem, size = 0x12000, scoped, tag = 'internal scratch']
  #allocation2 [shape = 'f32[24,128]{1,0:T(8,128)}', space=vmem, size = 0x3000, scoped, tag = 'scratch operand']
  %s0 = inlined_call_operand.vmem [shape: bf16[24,128], index: 0, kind: input, shape index: {}]
  %s1 = inlined_call_operand.vmem [shape: bf16[128,128], index: 1, kind: input, shape index: {}]
  %s2 = inlined_call_operand.vmem [shape: f32[1,128], index: 2, kind: input, shape index: {}]
  %s3 = inlined_call_operand.vmem [shape: bf16[24,128], index: 3, kind: output, shape index: {}]
  %s4 = sld [smem:[#allocation0]]
  $region30: #{multiscale_discriminator_forward.59} parent=0
    _
  %s6 = ssub.s32 1, %s4
  %s7 = scalar_select 0, %s6, %s4
  // Predicated region
  $region2: #{multiscale_discriminator_forward.59} parent=0 // pred_check
    _
  $region3: #{multiscale_discriminator_forward.59} parent=0 // pred_check_branch
    %9 = sbr.rel (0) target = $region5
  $region4: #{multiscale_discriminator_forward.59} parent=0 // pred_region
    _
  $region5: #{multiscale_discriminator_forward.59} parent=0 // pred_fallthru
    _
  // Predicated region
  $region6: #{multiscale_discriminator_forward.59} parent=0 // pred_check
    _
  $region7: #{multiscale_discriminator_forward.59} parent=0 // pred_check_branch
    %11 = sbr.rel (0) target = $region9
  $region8: #{multiscale_discriminator_forward.59} parent=0 // pred_region
    _
  $region9: #{multiscale_discriminator_forward.59} parent=0 // pred_fallthru
    _
  // Predicated region
  $region10: #{multiscale_discriminator_forward.59} parent=0 // pred_check
    _
  $region11: #{multiscale_discriminator_forward.59} parent=0 // pred_check_branch
    %13 = sbr.rel (0) target = $region13
  $region12: #{multiscale_discriminator_forward.59} parent=0 // pred_region
    _
  $region13: #{multiscale_discriminator_forward.59} parent=0 // pred_fallthru
    _
  %p15 = scmp.eq.s32.totalorder 0, 0
  // Predicated region
  $region14: #{multiscale_discriminator_forward.59} parent=0 // pred_check
    %p16 = pneg %p15
  $region15: #{multiscale_discriminator_forward.59} parent=0 // pred_check_branch
    %18 = sbr.rel (%p16) target = $region17
  $region16: #{multiscale_discriminator_forward.59} parent=0 // pred_region
    %19 = vst [vmem:[#allocation2] sm:$0xff] 0.0
    %20 = vst [vmem:[#allocation2 + $0x8] sm:$0xff] 0.0
    %21 = vst [vmem:[#allocation2 + $0x10] sm:$0xff] 0.0
  $region17: #{multiscale_discriminator_forward.59} parent=0 // pred_fallthru
    _
  %v22 = vld [vmem:[#allocation2] sm:$0xff]
  %v23 = vld [vmem:[#allocation2 + $0x8] sm:$0xff]
  %v24 = vld [vmem:[#allocation2 + $0x10] sm:$0xff]
  %v25 = vld [vmem:[%s0] sm:$0xf]
  %v26 = vld [vmem:[%s0 + $0x4] sm:$0xf]
  %v27 = vld [vmem:[%s0 + $0x8] sm:$0xf]
  %v28 = vld [vmem:[%s1] sm:$0xf]
  %v29 = vld [vmem:[%s1 + $0x4] sm:$0xf]
  %v30 = vld [vmem:[%s1 + $0x8] sm:$0xf]
  %v31 = vld [vmem:[%s1 + $0xc] sm:$0xf]
  %v32 = vld [vmem:[%s1 + $0x10] sm:$0xf]
  %v33 = vld [vmem:[%s1 + $0x14] sm:$0xf]
  %v34 = vld [vmem:[%s1 + $0x18] sm:$0xf]
  %v35 = vld [vmem:[%s1 + $0x1c] sm:$0xf]
  %v36 = vld [vmem:[%s1 + $0x20] sm:$0xf]
  %v37 = vld [vmem:[%s1 + $0x24] sm:$0xf]
  %v38 = vld [vmem:[%s1 + $0x28] sm:$0xf]
  %v39 = vld [vmem:[%s1 + $0x2c] sm:$0xf]
  %v40 = vld [vmem:[%s1 + $0x30] sm:$0xf]
  %v41 = vld [vmem:[%s1 + $0x34] sm:$0xf]
  %v42 = vld [vmem:[%s1 + $0x38] sm:$0xf]
  %v43 = vld [vmem:[%s1 + $0x3c] sm:$0xf]
  %v47 = vunpack.c.l.b16 %v25
  %v48 = vunpack.c.l.b16 %v26
  %v49 = vunpack.c.l.b16 %v27
  %v50 = vpack.c.b16 %v48, %v47
  %v51 = vpack.c.b16 %v49, %v49
  %v70 = vunpack.c.l.b16 %v28
  %v71 = vunpack.c.l.b16 %v29
  %v72 = vunpack.c.l.b16 %v30
  %v73 = vunpack.c.l.b16 %v31
  %v74 = vunpack.c.l.b16 %v32
  %v75 = vunpack.c.l.b16 %v33
  %v76 = vunpack.c.l.b16 %v34
  %v77 = vunpack.c.l.b16 %v35
  %v78 = vunpack.c.l.b16 %v36
  %v79 = vunpack.c.l.b16 %v37
  %v80 = vunpack.c.l.b16 %v38
  %v81 = vunpack.c.l.b16 %v39
  %v82 = vunpack.c.l.b16 %v40
  %v83 = vunpack.c.l.b16 %v41
  %v84 = vunpack.c.l.b16 %v42
  %v85 = vunpack.c.l.b16 %v43
  %v86 = vpack.c.b16 %v71, %v70
  %v87 = vpack.c.b16 %v73, %v72
  %v88 = vpack.c.b16 %v75, %v74
  %v89 = vpack.c.b16 %v77, %v76
  %v90 = vpack.c.b16 %v79, %v78
  %v91 = vpack.c.b16 %v81, %v80
  %v92 = vpack.c.b16 %v83, %v82
  %v93 = vpack.c.b16 %v85, %v84
  %102 = vmatprep.subr.bf16.mxu0 0
  %103 = vmatpush1.bf16.msra.mxu0 %v86
  %104 = vmatprep.subr.bf16.mxu0 0
  %105 = vmatpush1.bf16.msra.mxu0 %v87
  %106 = vmatprep.subr.bf16.mxu0 0
  %107 = vmatpush1.bf16.msra.mxu0 %v88
  %108 = vmatprep.subr.bf16.mxu0 0
  %109 = vmatpush1.bf16.msra.mxu0 %v89
  %110 = vmatprep.subr.bf16.mxu0 0
  %111 = vmatpush1.bf16.msra.mxu0 %v90
  %112 = vmatprep.subr.bf16.mxu0 0
  %113 = vmatpush1.bf16.msra.mxu0 %v91
  %114 = vmatprep.subr.bf16.mxu0 0
  %115 = vmatpush1.bf16.msra.mxu0 %v92
  %116 = vmatprep.subr.bf16.mxu0 0
  %117 = vmatpush1.bf16.msra.mxu0 %v93
  %118 = vmatprep.subr.bf16.mxu0 0
  %119 = vmatpush1.bf16.msra.mxu0 0
  %120 = vmatprep.subr.bf16.mxu0 0
  %121 = vmatpush1.bf16.msra.mxu0 0
  %122 = vmatprep.subr.bf16.mxu0 0
  %123 = vmatpush1.bf16.msra.mxu0 0
  %124 = vmatprep.subr.bf16.mxu0 0
  %125 = vmatpush1.bf16.msra.mxu0 0
  %126 = vmatprep.subr.bf16.mxu0 0
  %127 = vmatpush1.bf16.msra.mxu0 0
  %128 = vmatprep.subr.bf16.mxu0 0
  %129 = vmatpush1.bf16.msra.mxu0 0
  %130 = vmatprep.subr.bf16.mxu0 0
  %131 = vmatpush1.bf16.msra.mxu0 0
  %132 = vmatprep.subr.bf16.mxu0 0
  %133 = vmatpush1.bf16.msra.mxu0 0
  %134 = vmatprep.mubr.bf16.mxu0 0
  %135 = vmatmul.mubr.bf16.gmra.mrb[0].mxu0 %v50
  %v136 = vpop.f32.mrb[0].mxu0
  %v137 = vadd.f32 0.0, %v136
  %v138 = vpop.f32.mrb[0].mxu0
  %v139 = vpop.f32.mrb[0].mxu0
  %v140 = vadd.f32 0.0, %v139
  %v141 = vpop.f32.mrb[0].mxu0
  %142 = vmatprep.mubr.bf16.mxu0 0
  %143 = vmatmul.mubr.bf16.gmra.mrb[0].mxu0 %v51
  %v144 = vpop.f32.mrb[0].mxu0
  %v145 = vadd.f32 0.0, %v144
  %v146 = vpop.f32.mrb[0].mxu0
  %v147 = vpop.f32.mrb[0].mxu0
  %v148 = vpop.f32.mrb[0].mxu0
  %149 = vdwg.mxu0
  %v150 = vadd.f32 %v22, %v137
  %v151 = vadd.f32 %v23, %v140
  %v152 = vadd.f32 %v24, %v145
  %153 = vst [vmem:[#allocation2] sm:$0xff] %v150
  %154 = vst [vmem:[#allocation2 + $0x8] sm:$0xff] %v151
  %155 = vst [vmem:[#allocation2 + $0x10] sm:$0xff] %v152
  // Predicated region
  $region18: #{multiscale_discriminator_forward.59} parent=0 // pred_check
    %p156 = pneg %p15
  $region19: #{multiscale_discriminator_forward.59} parent=0 // pred_check_branch
    %158 = sbr.rel (%p156) target = $region21
  $region20: #{multiscale_discriminator_forward.59} parent=0 // pred_region
    %v159 = vld [vmem:[#allocation2] sm:$0xff]
    %v160 = vld [vmem:[#allocation2 + $0x8] sm:$0xff]
    %v161 = vld [vmem:[#allocation2 + $0x10] sm:$0xff]
    %v162 = vld [vmem:[%s2] sm:$0x1]
    %v164 = vlaneseq
    %v165 = vshrl.u32 %v164, 7
    %v166 = vsub.s32 0, %v165
    %v167 = vrot.slane %v162, %v166
    %v169 = vadd.f32 %v159, %v167
    %v170 = vadd.f32 %v160, %v167
    %v171 = vadd.f32 %v161, %v167
    %vm172 = vcmp.gt.f32.partialorder %v169, 0.0
    %vm173 = vcmp.gt.f32.partialorder %v170, 0.0
    %vm174 = vcmp.gt.f32.partialorder %v171, 0.0
    %v175 = vmul.f32 %v169, 0.2
    %v176 = vmul.f32 %v170, 0.2
    %v177 = vmul.f32 %v171, 0.2
    %v178 = vsel %vm172, %v169, %v175
    %v179 = vsel %vm173, %v170, %v176
    %v180 = vsel %vm174, %v171, %v177
    %v181 = vpack.c.bf16 %v179, %v178
    %v182 = vpack.c.bf16 %v180, %v180
    %v185 = vunpack.c.l.b16 %v181
    %v186 = vunpack.c.h.b16 %v181
    %v187 = vunpack.c.l.b16 %v182
    %v188 = vpack.c.b16 %v185, %v185
    %v189 = vpack.c.b16 %v186, %v186
    %v190 = vpack.c.b16 %v187, %v187
    %194 = vst [vmem:[%s3] sm:$0xf] %v188
    %195 = vst [vmem:[%s3 + $0x4] sm:$0xf] %v189
    %196 = vst [vmem:[%s3 + $0x8] sm:$0xf] %v190
  $region21: #{multiscale_discriminator_forward.59} parent=0 // pred_fallthru
    _
  // Predicated region
  $region22: #{multiscale_discriminator_forward.59} parent=0 // pred_check
    _
  $region23: #{multiscale_discriminator_forward.59} parent=0 // pred_check_branch
    %198 = sbr.rel (0) target = $region25
  $region24: #{multiscale_discriminator_forward.59} parent=0 // pred_region
    _
  $region25: #{multiscale_discriminator_forward.59} parent=0 // pred_fallthru
    _
  // Predicated region
  $region26: #{multiscale_discriminator_forward.59} parent=0 // pred_check
    _
  $region27: #{multiscale_discriminator_forward.59} parent=0 // pred_check_branch
    %200 = sbr.rel (0) target = $region29
  $region28: #{multiscale_discriminator_forward.59} parent=0 // pred_region
    _
  $region29: #{multiscale_discriminator_forward.59} parent=0 // pred_fallthru
    _

// kernel: multiscale_discriminator_forward.60
$region0: #{multiscale_discriminator_forward.60}
  #allocation0 [shape = 'u32[]', space=smem, size = 0x4, offset = 0x4, fixed_abs, tag = 'smem constant byte address 0x4 - core index']
  #allocation1 [shape = 'u32[144,128]{1,0:T(1,128)}', space=vmem, size = 0x12000, scoped, tag = 'internal scratch']
  #allocation2 [shape = 'f32[8,128]{1,0:T(8,128)}', space=vmem, size = 0x1000, scoped, tag = 'scratch operand']
  %s0 = inlined_call_operand.vmem [shape: bf16[8,128], index: 0, kind: input, shape index: {}]
  %s1 = inlined_call_operand.vmem [shape: bf16[128,128], index: 1, kind: input, shape index: {}]
  %s2 = inlined_call_operand.vmem [shape: f32[1,128], index: 2, kind: input, shape index: {}]
  %s3 = inlined_call_operand.vmem [shape: bf16[8,128], index: 3, kind: output, shape index: {}]
  %s4 = sld [smem:[#allocation0]]
  $region30: #{multiscale_discriminator_forward.60} parent=0
    _
  %s6 = ssub.s32 1, %s4
  %s7 = scalar_select 0, %s6, %s4
  // Predicated region
  $region2: #{multiscale_discriminator_forward.60} parent=0 // pred_check
    _
  $region3: #{multiscale_discriminator_forward.60} parent=0 // pred_check_branch
    %9 = sbr.rel (0) target = $region5
  $region4: #{multiscale_discriminator_forward.60} parent=0 // pred_region
    _
  $region5: #{multiscale_discriminator_forward.60} parent=0 // pred_fallthru
    _
  // Predicated region
  $region6: #{multiscale_discriminator_forward.60} parent=0 // pred_check
    _
  $region7: #{multiscale_discriminator_forward.60} parent=0 // pred_check_branch
    %11 = sbr.rel (0) target = $region9
  $region8: #{multiscale_discriminator_forward.60} parent=0 // pred_region
    _
  $region9: #{multiscale_discriminator_forward.60} parent=0 // pred_fallthru
    _
  // Predicated region
  $region10: #{multiscale_discriminator_forward.60} parent=0 // pred_check
    _
  $region11: #{multiscale_discriminator_forward.60} parent=0 // pred_check_branch
    %13 = sbr.rel (0) target = $region13
  $region12: #{multiscale_discriminator_forward.60} parent=0 // pred_region
    _
  $region13: #{multiscale_discriminator_forward.60} parent=0 // pred_fallthru
    _
  %p15 = scmp.eq.s32.totalorder 0, 0
  // Predicated region
  $region14: #{multiscale_discriminator_forward.60} parent=0 // pred_check
    %p16 = pneg %p15
  $region15: #{multiscale_discriminator_forward.60} parent=0 // pred_check_branch
    %18 = sbr.rel (%p16) target = $region17
  $region16: #{multiscale_discriminator_forward.60} parent=0 // pred_region
    %19 = vst [vmem:[#allocation2] sm:$0xff] 0.0
  $region17: #{multiscale_discriminator_forward.60} parent=0 // pred_fallthru
    _
  %v20 = vld [vmem:[#allocation2] sm:$0xff]
  %v21 = vld [vmem:[%s0] sm:$0xf]
  %v22 = vld [vmem:[%s1] sm:$0xf]
  %v23 = vld [vmem:[%s1 + $0x4] sm:$0xf]
  %v24 = vld [vmem:[%s1 + $0x8] sm:$0xf]
  %v25 = vld [vmem:[%s1 + $0xc] sm:$0xf]
  %v26 = vld [vmem:[%s1 + $0x10] sm:$0xf]
  %v27 = vld [vmem:[%s1 + $0x14] sm:$0xf]
  %v28 = vld [vmem:[%s1 + $0x18] sm:$0xf]
  %v29 = vld [vmem:[%s1 + $0x1c] sm:$0xf]
  %v30 = vld [vmem:[%s1 + $0x20] sm:$0xf]
  %v31 = vld [vmem:[%s1 + $0x24] sm:$0xf]
  %v32 = vld [vmem:[%s1 + $0x28] sm:$0xf]
  %v33 = vld [vmem:[%s1 + $0x2c] sm:$0xf]
  %v34 = vld [vmem:[%s1 + $0x30] sm:$0xf]
  %v35 = vld [vmem:[%s1 + $0x34] sm:$0xf]
  %v36 = vld [vmem:[%s1 + $0x38] sm:$0xf]
  %v37 = vld [vmem:[%s1 + $0x3c] sm:$0xf]
  %v54 = vunpack.c.l.b16 %v22
  %v55 = vunpack.c.l.b16 %v23
  %v56 = vunpack.c.l.b16 %v24
  %v57 = vunpack.c.l.b16 %v25
  %v58 = vunpack.c.l.b16 %v26
  %v59 = vunpack.c.l.b16 %v27
  %v60 = vunpack.c.l.b16 %v28
  %v61 = vunpack.c.l.b16 %v29
  %v62 = vunpack.c.l.b16 %v30
  %v63 = vunpack.c.l.b16 %v31
  %v64 = vunpack.c.l.b16 %v32
  %v65 = vunpack.c.l.b16 %v33
  %v66 = vunpack.c.l.b16 %v34
  %v67 = vunpack.c.l.b16 %v35
  %v68 = vunpack.c.l.b16 %v36
  %v69 = vunpack.c.l.b16 %v37
  %v70 = vpack.c.b16 %v55, %v54
  %v71 = vpack.c.b16 %v57, %v56
  %v72 = vpack.c.b16 %v59, %v58
  %v73 = vpack.c.b16 %v61, %v60
  %v74 = vpack.c.b16 %v63, %v62
  %v75 = vpack.c.b16 %v65, %v64
  %v76 = vpack.c.b16 %v67, %v66
  %v77 = vpack.c.b16 %v69, %v68
  %86 = vmatprep.subr.bf16.mxu0 0
  %87 = vmatpush1.bf16.msra.mxu0 %v70
  %88 = vmatprep.subr.bf16.mxu0 0
  %89 = vmatpush1.bf16.msra.mxu0 %v71
  %90 = vmatprep.subr.bf16.mxu0 0
  %91 = vmatpush1.bf16.msra.mxu0 %v72
  %92 = vmatprep.subr.bf16.mxu0 0
  %93 = vmatpush1.bf16.msra.mxu0 %v73
  %94 = vmatprep.subr.bf16.mxu0 0
  %95 = vmatpush1.bf16.msra.mxu0 %v74
  %96 = vmatprep.subr.bf16.mxu0 0
  %97 = vmatpush1.bf16.msra.mxu0 %v75
  %98 = vmatprep.subr.bf16.mxu0 0
  %99 = vmatpush1.bf16.msra.mxu0 %v76
  %100 = vmatprep.subr.bf16.mxu0 0
  %101 = vmatpush1.bf16.msra.mxu0 %v77
  %102 = vmatprep.subr.bf16.mxu0 0
  %103 = vmatpush1.bf16.msra.mxu0 0
  %104 = vmatprep.subr.bf16.mxu0 0
  %105 = vmatpush1.bf16.msra.mxu0 0
  %106 = vmatprep.subr.bf16.mxu0 0
  %107 = vmatpush1.bf16.msra.mxu0 0
  %108 = vmatprep.subr.bf16.mxu0 0
  %109 = vmatpush1.bf16.msra.mxu0 0
  %110 = vmatprep.subr.bf16.mxu0 0
  %111 = vmatpush1.bf16.msra.mxu0 0
  %112 = vmatprep.subr.bf16.mxu0 0
  %113 = vmatpush1.bf16.msra.mxu0 0
  %114 = vmatprep.subr.bf16.mxu0 0
  %115 = vmatpush1.bf16.msra.mxu0 0
  %116 = vmatprep.subr.bf16.mxu0 0
  %117 = vmatpush1.bf16.msra.mxu0 0
  %118 = vmatprep.mubr.bf16.mxu0 0
  %119 = vmatmul.mubr.bf16.gmra.mrb[0].mxu0 %v21
  %v120 = vpop.f32.mrb[0].mxu0
  %v121 = vadd.f32 0.0, %v120
  %v122 = vpop.f32.mrb[0].mxu0
  %v123 = vpop.f32.mrb[0].mxu0
  %v124 = vpop.f32.mrb[0].mxu0
  %125 = vdwg.mxu0
  %v126 = vadd.f32 %v20, %v121
  %127 = vst [vmem:[#allocation2] sm:$0xff] %v126
  // Predicated region
  $region18: #{multiscale_discriminator_forward.60} parent=0 // pred_check
    %p128 = pneg %p15
  $region19: #{multiscale_discriminator_forward.60} parent=0 // pred_check_branch
    %130 = sbr.rel (%p128) target = $region21
  $region20: #{multiscale_discriminator_forward.60} parent=0 // pred_region
    %v131 = vld [vmem:[#allocation2] sm:$0xff]
    %v132 = vld [vmem:[%s2] sm:$0x1]
    %v134 = vlaneseq
    %v135 = vshrl.u32 %v134, 7
    %v136 = vsub.s32 0, %v135
    %v137 = vrot.slane %v132, %v136
    %v139 = vadd.f32 %v131, %v137
    %v140 = vpack.c.bf16 %v139, %v139
    %141 = vst [vmem:[%s3] sm:$0xf] %v140
  $region21: #{multiscale_discriminator_forward.60} parent=0 // pred_fallthru
    _
  // Predicated region
  $region22: #{multiscale_discriminator_forward.60} parent=0 // pred_check
    _
  $region23: #{multiscale_discriminator_forward.60} parent=0 // pred_check_branch
    %143 = sbr.rel (0) target = $region25
  $region24: #{multiscale_discriminator_forward.60} parent=0 // pred_region
    _
  $region25: #{multiscale_discriminator_forward.60} parent=0 // pred_fallthru
    _
  // Predicated region
  $region26: #{multiscale_discriminator_forward.60} parent=0 // pred_check
    _
  $region27: #{multiscale_discriminator_forward.60} parent=0 // pred_check_branch
    %145 = sbr.rel (0) target = $region29
  $region28: #{multiscale_discriminator_forward.60} parent=0 // pred_region
    _
  $region29: #{multiscale_discriminator_forward.60} parent=0 // pred_fallthru
    _

// kernel: multiscale_discriminator_forward.61
$region0: #{multiscale_discriminator_forward.61}
  #allocation0 [shape = 'u32[]', space=smem, size = 0x4, offset = 0x4, fixed_abs, tag = 'smem constant byte address 0x4 - core index']
  #allocation1 [shape = 'u32[144,128]{1,0:T(1,128)}', space=vmem, size = 0x12000, scoped, tag = 'internal scratch']
  %s0 = inlined_call_operand.vmem [shape: bf16[8,16], index: 0, kind: input, shape index: {}]
  %s1 = inlined_call_operand.vmem [shape: f32[1,1,16], index: 1, kind: output, shape index: {0}]
  %s2 = inlined_call_operand.vmem [shape: f32[1,1,16], index: 2, kind: output, shape index: {1}]
  %3 = xla_tuple %s1, %s2
  %s4 = sld [smem:[#allocation0]]
  $region22: #{multiscale_discriminator_forward.61} parent=0
    _
  %s6 = ssub.s32 1, %s4
  %s7 = scalar_select 0, %s6, %s4
  // Predicated region
  $region2: #{multiscale_discriminator_forward.61} parent=0 // pred_check
    _
  $region3: #{multiscale_discriminator_forward.61} parent=0 // pred_check_branch
    %9 = sbr.rel (0) target = $region5
  $region4: #{multiscale_discriminator_forward.61} parent=0 // pred_region
    _
  $region5: #{multiscale_discriminator_forward.61} parent=0 // pred_fallthru
    _
  %v10 = vld [vmem:[%s0] sm:$0xf]
  %v11 = vunpack.c.l.bf16 %v10
  %vm12 = vcmask 130048
  %v13 = vsel %vm12, %v11, 0.0
  %v14 = vrot.slane %v13, 4
  %v15 = vadd.f32 %v13, %v14
  %v16 = vrot.slane %v15, 2
  %v17 = vadd.f32 %v15, %v16
  %v18 = vrot.slane %v17, 1
  %v19 = vadd.f32 %v17, %v18
  %vm20 = vcmask 122880
  %21 = vst.msk [vmem:[%s1] sm:$0x1] %vm20, %v19
  %v22 = vmul.f32 %v11, %v11
  %v23 = vsel %vm12, %v22, 0.0
  %v24 = vrot.slane %v23, 4
  %v25 = vadd.f32 %v23, %v24
  %v26 = vrot.slane %v25, 2
  %v27 = vadd.f32 %v25, %v26
  %v28 = vrot.slane %v27, 1
  %v29 = vadd.f32 %v27, %v28
  %30 = vst.msk [vmem:[%s2] sm:$0x1] %vm20, %v29
  // Predicated region
  $region6: #{multiscale_discriminator_forward.61} parent=0 // pred_check
    _
  $region7: #{multiscale_discriminator_forward.61} parent=0 // pred_check_branch
    %32 = sbr.rel (0) target = $region9
  $region8: #{multiscale_discriminator_forward.61} parent=0 // pred_region
    _
  $region9: #{multiscale_discriminator_forward.61} parent=0 // pred_fallthru
    _
  // Predicated region
  $region10: #{multiscale_discriminator_forward.61} parent=0 // pred_check
    _
  $region11: #{multiscale_discriminator_forward.61} parent=0 // pred_check_branch
    %34 = sbr.rel (0) target = $region13
  $region12: #{multiscale_discriminator_forward.61} parent=0 // pred_region
    _
  $region13: #{multiscale_discriminator_forward.61} parent=0 // pred_fallthru
    _
  // Predicated region
  $region14: #{multiscale_discriminator_forward.61} parent=0 // pred_check
    _
  $region15: #{multiscale_discriminator_forward.61} parent=0 // pred_check_branch
    %36 = sbr.rel (0) target = $region17
  $region16: #{multiscale_discriminator_forward.61} parent=0 // pred_region
    _
  $region17: #{multiscale_discriminator_forward.61} parent=0 // pred_fallthru
    _
  // Predicated region
  $region18: #{multiscale_discriminator_forward.61} parent=0 // pred_check
    _
  $region19: #{multiscale_discriminator_forward.61} parent=0 // pred_check_branch
    %38 = sbr.rel (0) target = $region21
  $region20: #{multiscale_discriminator_forward.61} parent=0 // pred_region
    _
  $region21: #{multiscale_discriminator_forward.61} parent=0 // pred_fallthru
    _

// kernel: multiscale_discriminator_forward.62
$region0: #{multiscale_discriminator_forward.62}
  #allocation0 [shape = 'u32[]', space=smem, size = 0x4, offset = 0x4, fixed_abs, tag = 'smem constant byte address 0x4 - core index']
  #allocation1 [shape = 'u32[144,128]{1,0:T(1,128)}', space=vmem, size = 0x12000, scoped, tag = 'internal scratch']
  %s0 = inlined_call_operand.vmem [shape: bf16[8,16], index: 0, kind: input, shape index: {}]
  %s1 = inlined_call_operand.vmem [shape: f32[1,16], index: 1, kind: input, shape index: {}]
  %s2 = inlined_call_operand.vmem [shape: f32[1,16], index: 2, kind: input, shape index: {}]
  %s3 = inlined_call_operand.vmem [shape: bf16[8,16], index: 3, kind: output, shape index: {}]
  %s4 = sld [smem:[#allocation0]]
  $region22: #{multiscale_discriminator_forward.62} parent=0
    _
  %s6 = ssub.s32 1, %s4
  %s7 = scalar_select 0, %s6, %s4
  // Predicated region
  $region2: #{multiscale_discriminator_forward.62} parent=0 // pred_check
    _
  $region3: #{multiscale_discriminator_forward.62} parent=0 // pred_check_branch
    %9 = sbr.rel (0) target = $region5
  $region4: #{multiscale_discriminator_forward.62} parent=0 // pred_region
    _
  $region5: #{multiscale_discriminator_forward.62} parent=0 // pred_fallthru
    _
  // Predicated region
  $region6: #{multiscale_discriminator_forward.62} parent=0 // pred_check
    _
  $region7: #{multiscale_discriminator_forward.62} parent=0 // pred_check_branch
    %11 = sbr.rel (0) target = $region9
  $region8: #{multiscale_discriminator_forward.62} parent=0 // pred_region
    _
  $region9: #{multiscale_discriminator_forward.62} parent=0 // pred_fallthru
    _
  // Predicated region
  $region10: #{multiscale_discriminator_forward.62} parent=0 // pred_check
    _
  $region11: #{multiscale_discriminator_forward.62} parent=0 // pred_check_branch
    %13 = sbr.rel (0) target = $region13
  $region12: #{multiscale_discriminator_forward.62} parent=0 // pred_region
    _
  $region13: #{multiscale_discriminator_forward.62} parent=0 // pred_fallthru
    _
  %v14 = vld [vmem:[%s0] sm:$0xf]
  %v15 = vunpack.c.l.bf16 %v14
  %v16 = vld [vmem:[%s1] sm:$0x1]
  %v18 = vlaneseq
  %v19 = vshrl.u32 %v18, 7
  %v20 = vsub.s32 0, %v19
  %v21 = vrot.slane %v16, %v20
  %v23 = vmul.f32 %v15, %v21
  %v24 = vld [vmem:[%s2] sm:$0x1]
  %v26 = vlaneseq
  %v27 = vshrl.u32 %v26, 7
  %v28 = vsub.s32 0, %v27
  %v29 = vrot.slane %v24, %v28
  %v31 = vadd.f32 %v23, %v29
  %vm32 = vcmp.gt.f32.partialorder %v31, 0.0
  %v33 = vmul.f32 %v31, 0.2
  %v34 = vsel %vm32, %v31, %v33
  %v35 = vpack.c.bf16 %v34, %v34
  %vm36 = vcmask 125952
  %37 = vst.msk [vmem:[%s3] sm:$0xf] %vm36, %v35
  // Predicated region
  $region14: #{multiscale_discriminator_forward.62} parent=0 // pred_check
    _
  $region15: #{multiscale_discriminator_forward.62} parent=0 // pred_check_branch
    %39 = sbr.rel (0) target = $region17
  $region16: #{multiscale_discriminator_forward.62} parent=0 // pred_region
    _
  $region17: #{multiscale_discriminator_forward.62} parent=0 // pred_fallthru
    _
  // Predicated region
  $region18: #{multiscale_discriminator_forward.62} parent=0 // pred_check
    _
  $region19: #{multiscale_discriminator_forward.62} parent=0 // pred_check_branch
    %41 = sbr.rel (0) target = $region21
  $region20: #{multiscale_discriminator_forward.62} parent=0 // pred_region
    _
  $region21: #{multiscale_discriminator_forward.62} parent=0 // pred_fallthru
    _

</llo_original>
